<compile_context>
chip_gen: v6e
topology: v6e:2x2x1
jax: 0.10.0
libtpu: 0.0.40
codegen_flags: <defaults>
</compile_context>

<pallas_src>
import functools

import jax
import jax.numpy as jnp
from jax import lax
from jax.experimental import pallas as pl
from jax.experimental.pallas import tpu as pltpu


# Per-layer weight orderings (wrapper and kernel must agree).
ENC_KEYS = ("wqkv", "bqkv", "wo", "bo", "g1", "bn1",
            "w1", "bm1", "alpha", "w2", "bm2", "g2", "bn2")
SELF_KEYS = ("wqkv", "bqkv", "wo", "bo", "g")
XBLK_KEYS = ("wq", "bq", "wkv", "bkv", "wo", "bo", "g1", "bn1",
             "w1", "bm1", "alpha", "w2", "bm2", "g2", "bn2")


# ----------------------------------------------------------------------------
# In-kernel helpers (operate on values already resident in vregs / VMEM)
# ----------------------------------------------------------------------------
def _mm(x, w_bf16):
    """MXU matmul: bf16 operands (weight already stored bf16), f32 accumulate."""
    return jnp.dot(x.astype(jnp.bfloat16), w_bf16,
                   preferred_element_type=jnp.float32)


def _layer_norm(x, gamma, beta, eps=1e-5):
    mu = jnp.mean(x, axis=-1, keepdims=True)
    var = jnp.mean(jnp.square(x - mu), axis=-1, keepdims=True)
    return (x - mu) * lax.rsqrt(var + eps) * gamma + beta


def _rms_norm(x, gamma, eps=1e-6):
    ms = jnp.mean(x * x, axis=-1, keepdims=True)
    return x * lax.rsqrt(ms + eps) * gamma


def _gqa_core(q_proj, k_proj, v_proj, wo_bf16, bo, mask, *, H, G, Dh):
    """Grouped-query attention + single fused output projection.

    q_proj: (Sq, H*Dh) f32 (already scaled by 1/sqrt(Dh))
    k_proj/v_proj: (Skv, G*Dh) f32,  wo_bf16: (H*Dh, E) bf16,  bo: (1, E) f32
    mask: (Sq, Skv) bool or None (hoisted out of the head loop)
    Returns (Sq, E) f32.
    """
    hpg = H // G
    # Cast once; per-head slices below are pure views of these bf16 tensors.
    q_bf = q_proj.astype(jnp.bfloat16)
    k_bf = k_proj.astype(jnp.bfloat16)
    v_bf = v_proj.astype(jnp.bfloat16)

    heads = []
    for h in range(H):                                   # static unroll (H small)
        g = h // hpg
        qh = q_bf[:, h * Dh:(h + 1) * Dh]                # (Sq, Dh)
        kg = k_bf[:, g * Dh:(g + 1) * Dh]                # (Skv, Dh)
        vg = v_bf[:, g * Dh:(g + 1) * Dh]                # (Skv, Dh)
        s = lax.dot_general(qh, kg, (((1,), (1,)), ((), ())),
                            preferred_element_type=jnp.float32)   # (Sq, Skv)
        if mask is not None:
            s = jnp.where(mask, s, jnp.float32(-1e30))
        m = jnp.max(s, axis=-1, keepdims=True)
        p = jnp.exp(s - m)
        p = p * pl.reciprocal(jnp.sum(p, axis=-1, keepdims=True), approx=True)
        heads.append(jnp.dot(p.astype(jnp.bfloat16), vg,
                             preferred_element_type=jnp.float32))  # (Sq, Dh)

    o_heads = jnp.concatenate(heads, axis=-1)            # (Sq, H*Dh)
    return _mm(o_heads, wo_bf16) + bo                    # ONE (H*Dh -> E) proj


def _mlp_and_norms(xq, attn, w, l):
    """x = LN1(query + attn); out = LN2(x + MLP_PReLU(x)).  All in vregs."""
    x1 = _layer_norm(xq + attn, w["g1"][l], w["bn1"][l])
    h = _mm(x1, w["w1"][l]) + w["bm1"][l]                # (Sq, 4E)
    alpha = w["alpha"][l]                                # SMEM scalar
    h = jnp.where(h >= 0.0, h, alpha * h)                # PReLU
    mlp = _mm(h, w["w2"][l]) + w["bm2"][l]               # (Sq, E)
    return _layer_norm(x1 + mlp, w["g2"][l], w["bn2"][l])


def _encoder_block(x, w, l, *, H, G, Dh):
    """Encoder TransformerBlock (query == key == value), fused Q|K|V proj."""
    HID, GK = H * Dh, G * Dh
    scale = 1.0 / (Dh ** 0.5)
    qkv = _mm(x, w["wqkv"][l]) + w["bqkv"][l]            # (S, HID + 2*GK), lane-dense
    q = qkv[:, :HID] * scale
    k = qkv[:, HID:HID + GK]
    v = qkv[:, HID + GK:]
    attn = _gqa_core(q, k, v, w["wo"][l], w["bo"][l], None, H=H, G=G, Dh=Dh)
    return _mlp_and_norms(x, attn, w, l)


def _self_attn_rms(x, w, l, causal_mask, *, H, G, Dh):
    """Decoder self-attention (causal GQA) + residual + RMSNorm."""
    HID, GK = H * Dh, G * Dh
    scale = 1.0 / (Dh ** 0.5)
    qkv = _mm(x, w["wqkv"][l]) + w["bqkv"][l]
    q = qkv[:, :HID] * scale
    k = qkv[:, HID:HID + GK]
    v = qkv[:, HID + GK:]
    sa = _gqa_core(q, k, v, w["wo"][l], w["bo"][l], causal_mask, H=H, G=G, Dh=Dh)
    return _rms_norm(sa + x, w["g"][l])


def _cross_block(xq, xkv, w, l, *, H, G, Dh):
    """Decoder TransformerBlock: cross-attention on encoder output, no mask."""
    GK = G * Dh
    scale = 1.0 / (Dh ** 0.5)
    q = (_mm(xq, w["wq"][l]) + w["bq"][l]) * scale       # (Sq, H*Dh)
    kv = _mm(xkv, w["wkv"][l]) + w["bkv"][l]             # (Skv, 2*G*Dh)
    attn = _gqa_core(q, kv[:, :GK], kv[:, GK:], w["wo"][l], w["bo"][l],
                     None, H=H, G=G, Dh=Dh)
    return _mlp_and_norms(xq, attn, w, l)


# ----------------------------------------------------------------------------
# Fused whole-model kernel (one batch element per grid step)
# ----------------------------------------------------------------------------
def _transformer_kernel(*refs, L, H, G, Dh):
    lr_ref, hr_ref = refs[0], refs[1]
    i = 2
    enc_w = dict(zip(ENC_KEYS, refs[i:i + len(ENC_KEYS)])); i += len(ENC_KEYS)
    self_w = dict(zip(SELF_KEYS, refs[i:i + len(SELF_KEYS)])); i += len(SELF_KEYS)
    xblk_w = dict(zip(XBLK_KEYS, refs[i:i + len(XBLK_KEYS)])); i += len(XBLK_KEYS)
    o_ref = refs[i]

    # Causal mask computed ONCE (shared across all decoder self-attn layers/heads).
    S_hr = hr_ref.shape[1]
    iq = lax.broadcasted_iota(jnp.int32, (S_hr, S_hr), 0)
    ik = lax.broadcasted_iota(jnp.int32, (S_hr, S_hr), 1)
    causal_mask = ik <= iq

    # ---- Encoder stack (activation stays in vregs/VMEM across layers) ----
    x = lr_ref[0].astype(jnp.float32)                    # (S_LR, E)
    for l in range(L):
        x = _encoder_block(x, enc_w, l, H=H, G=G, Dh=Dh)
    enc = x

    # ---- Decoder stack ----
    y = hr_ref[0].astype(jnp.float32)                    # (S_HR, E)
    for l in range(L):
        q = _self_attn_rms(y, self_w, l, causal_mask, H=H, G=G, Dh=Dh)
        y = _cross_block(q, enc, xblk_w, l, H=H, G=G, Dh=Dh)

    o_ref[0] = y.astype(o_ref.dtype)


# ----------------------------------------------------------------------------
# pallas_call wrapper (ONE launch for the whole forward pass)
# ----------------------------------------------------------------------------
def transformer_forward(params, lr_sample, hr_sample, H, G):
    B, S_LR, E = lr_sample.shape
    S_HR = hr_sample.shape[1]
    L = params["enc"]["wqkv"].shape[0]
    HID = params["enc"]["wo"].shape[1]
    Dh = HID // H

    enc_arrs = [params["enc"][k] for k in ENC_KEYS]
    self_arrs = [params["dec_self"][k] for k in SELF_KEYS]
    xblk_arrs = [params["dec_block"][k] for k in XBLK_KEYS]

    def seq_spec(S):
        return pl.BlockSpec((1, S, E), lambda b: (b, 0, 0))

    def w_spec(arr, name):
        if name == "alpha":
            # PReLU scalars: (L,) f32 in SMEM.
            return pl.BlockSpec(memory_space=pltpu.MemorySpace.SMEM)
        nd = arr.ndim
        return pl.BlockSpec(arr.shape, lambda b, _nd=nd: (0,) * _nd)

    in_specs = [seq_spec(S_LR), seq_spec(S_HR)]
    in_specs += [w_spec(a, k) for a, k in zip(enc_arrs, ENC_KEYS)]
    in_specs += [w_spec(a, k) for a, k in zip(self_arrs, SELF_KEYS)]
    in_specs += [w_spec(a, k) for a, k in zip(xblk_arrs, XBLK_KEYS)]

    kernel = functools.partial(_transformer_kernel, L=L, H=H, G=G, Dh=Dh)

    return pl.pallas_call(
        kernel,
        out_shape=jax.ShapeDtypeStruct((B, S_HR, E), jnp.float32),
        grid=(B,),
        in_specs=in_specs,
        out_specs=pl.BlockSpec((1, S_HR, E), lambda b: (b, 0, 0)),
        compiler_params=pltpu.CompilerParams(
            dimension_semantics=("parallel",)),
    )(lr_sample, hr_sample, *enc_arrs, *self_arrs, *xblk_arrs)


# ----------------------------------------------------------------------------
# Deterministic parameter initialization (weights stacked along a layer axis)
# ----------------------------------------------------------------------------
def init_transformer(key, E, HID, L, H, G):
    Dh = HID // H
    GK = G * Dh
    keys = iter(jax.random.split(key, 4096))
    bf16 = jnp.bfloat16

    def xavier(in_d, out_d):
        limit = (6.0 / (in_d + out_d)) ** 0.5
        return jax.random.uniform(next(keys), (in_d, out_d), jnp.float32,
                                  -limit, limit)

    def zeros_row(n):
        return jnp.zeros((1, n), jnp.float32)

    def ones_row(n):
        return jnp.ones((1, n), jnp.float32)

    def enc_layer():
        wq, wk, wv = xavier(E, HID), xavier(E, GK), xavier(E, GK)
        return {
            "wqkv": jnp.concatenate([wq, wk, wv], axis=1).astype(bf16),
            "bqkv": zeros_row(HID + 2 * GK),
            "wo": xavier(HID, E).astype(bf16), "bo": zeros_row(E),
            "g1": ones_row(E), "bn1": zeros_row(E),
            "w1": xavier(E, 4 * E).astype(bf16), "bm1": zeros_row(4 * E),
            "alpha": jnp.float32(0.25),              # PReLU init
            "w2": xavier(4 * E, E).astype(bf16), "bm2": zeros_row(E),
            "g2": ones_row(E), "bn2": zeros_row(E),
        }

    def dec_self_layer():
        wq, wk, wv = xavier(E, HID), xavier(E, GK), xavier(E, GK)
        return {
            "wqkv": jnp.concatenate([wq, wk, wv], axis=1).astype(bf16),
            "bqkv": zeros_row(HID + 2 * GK),
            "wo": xavier(HID, E).astype(bf16), "bo": zeros_row(E),
            "g": ones_row(E),
        }

    def dec_block_layer():
        wq, wk, wv = xavier(E, HID), xavier(E, GK), xavier(E, GK)
        return {
            "wq": wq.astype(bf16), "bq": zeros_row(HID),
            "wkv": jnp.concatenate([wk, wv], axis=1).astype(bf16),
            "bkv": zeros_row(2 * GK),
            "wo": xavier(HID, E).astype(bf16), "bo": zeros_row(E),
            "g1": ones_row(E), "bn1": zeros_row(E),
            "w1": xavier(E, 4 * E).astype(bf16), "bm1": zeros_row(4 * E),
            "alpha": jnp.float32(0.25),
            "w2": xavier(4 * E, E).astype(bf16), "bm2": zeros_row(E),
            "g2": ones_row(E), "bn2": zeros_row(E),
        }

    def stack(layers, key_order):
        return {k: jnp.stack([lyr[k] for lyr in layers]) for k in key_order}

    enc = stack([enc_layer() for _ in range(L)], ENC_KEYS)
    dec_self = stack([dec_self_layer() for _ in range(L)], SELF_KEYS)
    dec_block = stack([dec_block_layer() for _ in range(L)], XBLK_KEYS)
    return {"enc": enc, "dec_self": dec_self, "dec_block": dec_block}


# ----------------------------------------------------------------------------
if __name__ == "__main__":
    # Small, consistent shapes: batch=2, lr_seq=8, hr_seq=8, emb=32, hidden=64,
    # layers=2, heads=4, kv-groups=2.
    B, S_LR, S_HR = 2, 8, 8
    EMB, HIDDEN, LAYERS, HEADS, GROUPS = 32, 64, 2, 4, 2

    pkey, ikey = jax.random.split(jax.random.PRNGKey(0))
    params = init_transformer(pkey, EMB, HIDDEN, LAYERS, HEADS, GROUPS)

    k_lr, k_hr = jax.random.split(ikey)
    lr_sample = jax.random.normal(k_lr, (B, S_LR, EMB), jnp.float32)
    hr_sample = jax.random.normal(k_hr, (B, S_HR, EMB), jnp.float32)

    fwd = jax.jit(transformer_forward, static_argnums=(3, 4))
    out = jax.block_until_ready(fwd(params, lr_sample, hr_sample, HEADS, GROUPS))
    assert out.shape == (B, S_HR, EMB) and out.dtype == jnp.float32
    print("KERNEL_OK")
</pallas_src>

<mosaic_0001>
module attributes {stable_mosaic.version = 11 : i64} {
  func.func @_transformer_kernel(%arg0: i32, %arg1: memref<1x8x32xf32, #tpu.memory_space<vmem>>, %arg2: memref<1x8x32xf32, #tpu.memory_space<vmem>>, %arg3: memref<2x32x128xbf16, #tpu.memory_space<vmem>>, %arg4: memref<2x1x128xf32, #tpu.memory_space<vmem>>, %arg5: memref<2x64x32xbf16, #tpu.memory_space<vmem>>, %arg6: memref<2x1x32xf32, #tpu.memory_space<vmem>>, %arg7: memref<2x1x32xf32, #tpu.memory_space<vmem>>, %arg8: memref<2x1x32xf32, #tpu.memory_space<vmem>>, %arg9: memref<2x32x128xbf16, #tpu.memory_space<vmem>>, %arg10: memref<2x1x128xf32, #tpu.memory_space<vmem>>, %arg11: memref<2xf32, #tpu.memory_space<smem>>, %arg12: memref<2x128x32xbf16, #tpu.memory_space<vmem>>, %arg13: memref<2x1x32xf32, #tpu.memory_space<vmem>>, %arg14: memref<2x1x32xf32, #tpu.memory_space<vmem>>, %arg15: memref<2x1x32xf32, #tpu.memory_space<vmem>>, %arg16: memref<2x32x128xbf16, #tpu.memory_space<vmem>>, %arg17: memref<2x1x128xf32, #tpu.memory_space<vmem>>, %arg18: memref<2x64x32xbf16, #tpu.memory_space<vmem>>, %arg19: memref<2x1x32xf32, #tpu.memory_space<vmem>>, %arg20: memref<2x1x32xf32, #tpu.memory_space<vmem>>, %arg21: memref<2x32x64xbf16, #tpu.memory_space<vmem>>, %arg22: memref<2x1x64xf32, #tpu.memory_space<vmem>>, %arg23: memref<2x32x64xbf16, #tpu.memory_space<vmem>>, %arg24: memref<2x1x64xf32, #tpu.memory_space<vmem>>, %arg25: memref<2x64x32xbf16, #tpu.memory_space<vmem>>, %arg26: memref<2x1x32xf32, #tpu.memory_space<vmem>>, %arg27: memref<2x1x32xf32, #tpu.memory_space<vmem>>, %arg28: memref<2x1x32xf32, #tpu.memory_space<vmem>>, %arg29: memref<2x32x128xbf16, #tpu.memory_space<vmem>>, %arg30: memref<2x1x128xf32, #tpu.memory_space<vmem>>, %arg31: memref<2xf32, #tpu.memory_space<smem>>, %arg32: memref<2x128x32xbf16, #tpu.memory_space<vmem>>, %arg33: memref<2x1x32xf32, #tpu.memory_space<vmem>>, %arg34: memref<2x1x32xf32, #tpu.memory_space<vmem>>, %arg35: memref<2x1x32xf32, #tpu.memory_space<vmem>>, %arg36: memref<1x8x32xf32, #tpu.memory_space<vmem>>) attributes {dimension_semantics = [#tpu.dimension_semantics<parallel>], iteration_bounds = array<i64: 2>, scalar_prefetch = 0 : i64, scratch_operands = 0 : i64, tpu.core_type = #tpu.core_type<tc>, window_params = [{transform_indices = @transform_0, window_bounds = array<i64: 1, 8, 32>}, {transform_indices = @transform_1, window_bounds = array<i64: 1, 8, 32>}, {pipeline_mode = #tpu.pipeline_mode<synchronous>, transform_indices = @transform_2, window_bounds = array<i64: 2, 32, 128>}, {pipeline_mode = #tpu.pipeline_mode<synchronous>, transform_indices = @transform_3, window_bounds = array<i64: 2, 1, 128>}, {pipeline_mode = #tpu.pipeline_mode<synchronous>, transform_indices = @transform_4, window_bounds = array<i64: 2, 64, 32>}, {pipeline_mode = #tpu.pipeline_mode<synchronous>, transform_indices = @transform_5, window_bounds = array<i64: 2, 1, 32>}, {pipeline_mode = #tpu.pipeline_mode<synchronous>, transform_indices = @transform_6, window_bounds = array<i64: 2, 1, 32>}, {pipeline_mode = #tpu.pipeline_mode<synchronous>, transform_indices = @transform_7, window_bounds = array<i64: 2, 1, 32>}, {pipeline_mode = #tpu.pipeline_mode<synchronous>, transform_indices = @transform_8, window_bounds = array<i64: 2, 32, 128>}, {pipeline_mode = #tpu.pipeline_mode<synchronous>, transform_indices = @transform_9, window_bounds = array<i64: 2, 1, 128>}, {transform_indices = @transform_10, window_bounds = array<i64: 2>}, {pipeline_mode = #tpu.pipeline_mode<synchronous>, transform_indices = @transform_11, window_bounds = array<i64: 2, 128, 32>}, {pipeline_mode = #tpu.pipeline_mode<synchronous>, transform_indices = @transform_12, window_bounds = array<i64: 2, 1, 32>}, {pipeline_mode = #tpu.pipeline_mode<synchronous>, transform_indices = @transform_13, window_bounds = array<i64: 2, 1, 32>}, {pipeline_mode = #tpu.pipeline_mode<synchronous>, transform_indices = @transform_14, window_bounds = array<i64: 2, 1, 32>}, {pipeline_mode = #tpu.pipeline_mode<synchronous>, transform_indices = @transform_15, window_bounds = array<i64: 2, 32, 128>}, {pipeline_mode = #tpu.pipeline_mode<synchronous>, transform_indices = @transform_16, window_bounds = array<i64: 2, 1, 128>}, {pipeline_mode = #tpu.pipeline_mode<synchronous>, transform_indices = @transform_17, window_bounds = array<i64: 2, 64, 32>}, {pipeline_mode = #tpu.pipeline_mode<synchronous>, transform_indices = @transform_18, window_bounds = array<i64: 2, 1, 32>}, {pipeline_mode = #tpu.pipeline_mode<synchronous>, transform_indices = @transform_19, window_bounds = array<i64: 2, 1, 32>}, {pipeline_mode = #tpu.pipeline_mode<synchronous>, transform_indices = @transform_20, window_bounds = array<i64: 2, 32, 64>}, {pipeline_mode = #tpu.pipeline_mode<synchronous>, transform_indices = @transform_21, window_bounds = array<i64: 2, 1, 64>}, {pipeline_mode = #tpu.pipeline_mode<synchronous>, transform_indices = @transform_22, window_bounds = array<i64: 2, 32, 64>}, {pipeline_mode = #tpu.pipeline_mode<synchronous>, transform_indices = @transform_23, window_bounds = array<i64: 2, 1, 64>}, {pipeline_mode = #tpu.pipeline_mode<synchronous>, transform_indices = @transform_24, window_bounds = array<i64: 2, 64, 32>}, {pipeline_mode = #tpu.pipeline_mode<synchronous>, transform_indices = @transform_25, window_bounds = array<i64: 2, 1, 32>}, {pipeline_mode = #tpu.pipeline_mode<synchronous>, transform_indices = @transform_26, window_bounds = array<i64: 2, 1, 32>}, {pipeline_mode = #tpu.pipeline_mode<synchronous>, transform_indices = @transform_27, window_bounds = array<i64: 2, 1, 32>}, {pipeline_mode = #tpu.pipeline_mode<synchronous>, transform_indices = @transform_28, window_bounds = array<i64: 2, 32, 128>}, {pipeline_mode = #tpu.pipeline_mode<synchronous>, transform_indices = @transform_29, window_bounds = array<i64: 2, 1, 128>}, {transform_indices = @transform_30, window_bounds = array<i64: 2>}, {pipeline_mode = #tpu.pipeline_mode<synchronous>, transform_indices = @transform_31, window_bounds = array<i64: 2, 128, 32>}, {pipeline_mode = #tpu.pipeline_mode<synchronous>, transform_indices = @transform_32, window_bounds = array<i64: 2, 1, 32>}, {pipeline_mode = #tpu.pipeline_mode<synchronous>, transform_indices = @transform_33, window_bounds = array<i64: 2, 1, 32>}, {pipeline_mode = #tpu.pipeline_mode<synchronous>, transform_indices = @transform_34, window_bounds = array<i64: 2, 1, 32>}, {transform_indices = @transform_35, window_bounds = array<i64: 1, 8, 32>}]} {
    %0 = tpu.iota {dimensions = array<i32: 0>} : vector<8x8xi32>
    %1 = tpu.iota {dimensions = array<i32: 1>} : vector<8x8xi32>
    %2 = arith.cmpi sle, %1, %0 : vector<8x8xi32>
    %c0 = arith.constant 0 : index
    %c0_0 = arith.constant 0 : index
    %c0_1 = arith.constant 0 : index
    %3 = vector.load %arg1[%c0, %c0_0, %c0_1] : memref<1x8x32xf32, #tpu.memory_space<vmem>>, vector<1x8x32xf32>
    %4 = vector.shape_cast %3 : vector<1x8x32xf32> to vector<8x32xf32>
    %c0_2 = arith.constant 0 : index
    %c0_3 = arith.constant 0 : index
    %c0_4 = arith.constant 0 : index
    %5 = vector.load %arg3[%c0_2, %c0_3, %c0_4] : memref<2x32x128xbf16, #tpu.memory_space<vmem>>, vector<1x32x128xbf16>
    %6 = vector.shape_cast %5 : vector<1x32x128xbf16> to vector<32x128xbf16>
    %7 = arith.truncf %4 : vector<8x32xf32> to vector<8x32xbf16>
    %cst = arith.constant dense<0.000000e+00> : vector<8x128xf32>
    %8 = tpu.matmul %7, %6, %cst {dimension_numbers = #tpu.dot_dimension_numbers<[1], [0], [0], [1], [0, 0, 1, 1], [], []>} : vector<8x32xbf16>, vector<32x128xbf16>, vector<8x128xf32> -> vector<8x128xf32>
    %c0_5 = arith.constant 0 : index
    %c0_6 = arith.constant 0 : index
    %c0_7 = arith.constant 0 : index
    %9 = vector.load %arg4[%c0_5, %c0_6, %c0_7] : memref<2x1x128xf32, #tpu.memory_space<vmem>>, vector<1x1x128xf32>
    %10 = vector.shape_cast %9 : vector<1x1x128xf32> to vector<1x128xf32>
    %11 = vector.broadcast %10 : vector<1x128xf32> to vector<8x128xf32>
    %12 = arith.addf %8, %11 : vector<8x128xf32>
    %13 = vector.extract_strided_slice %12 {offsets = [0, 0], sizes = [8, 64], strides = [1, 1]} : vector<8x128xf32> to vector<8x64xf32>
    %cst_8 = arith.constant 2.500000e-01 : f32
    %14 = vector.broadcast %cst_8 : f32 to vector<8x64xf32>
    %15 = arith.mulf %13, %14 : vector<8x64xf32>
    %16 = vector.extract_strided_slice %12 {offsets = [0, 64], sizes = [8, 32], strides = [1, 1]} : vector<8x128xf32> to vector<8x32xf32>
    %17 = vector.extract_strided_slice %12 {offsets = [0, 96], sizes = [8, 32], strides = [1, 1]} : vector<8x128xf32> to vector<8x32xf32>
    %c0_9 = arith.constant 0 : index
    %c0_10 = arith.constant 0 : index
    %c0_11 = arith.constant 0 : index
    %18 = vector.load %arg5[%c0_9, %c0_10, %c0_11] : memref<2x64x32xbf16, #tpu.memory_space<vmem>>, vector<1x64x32xbf16>
    %19 = vector.shape_cast %18 : vector<1x64x32xbf16> to vector<64x32xbf16>
    %c0_12 = arith.constant 0 : index
    %c0_13 = arith.constant 0 : index
    %c0_14 = arith.constant 0 : index
    %20 = vector.load %arg6[%c0_12, %c0_13, %c0_14] : memref<2x1x32xf32, #tpu.memory_space<vmem>>, vector<1x1x32xf32>
    %21 = vector.shape_cast %20 : vector<1x1x32xf32> to vector<1x32xf32>
    %22 = arith.truncf %15 : vector<8x64xf32> to vector<8x64xbf16>
    %23 = arith.truncf %16 : vector<8x32xf32> to vector<8x32xbf16>
    %24 = arith.truncf %17 : vector<8x32xf32> to vector<8x32xbf16>
    %25 = vector.extract_strided_slice %22 {offsets = [0, 0], sizes = [8, 16], strides = [1, 1]} : vector<8x64xbf16> to vector<8x16xbf16>
    %26 = vector.extract_strided_slice %23 {offsets = [0, 0], sizes = [8, 16], strides = [1, 1]} : vector<8x32xbf16> to vector<8x16xbf16>
    %27 = vector.extract_strided_slice %24 {offsets = [0, 0], sizes = [8, 16], strides = [1, 1]} : vector<8x32xbf16> to vector<8x16xbf16>
    %cst_15 = arith.constant dense<0.000000e+00> : vector<8x8xf32>
    %28 = tpu.matmul %25, %26, %cst_15 {dimension_numbers = #tpu.dot_dimension_numbers<[1], [1], [0], [0], [0, 0, 1, 0], [], []>} : vector<8x16xbf16>, vector<8x16xbf16>, vector<8x8xf32> -> vector<8x8xf32>
    %cst_16 = arith.constant dense<0xFF800000> : vector<8xf32>
    %29 = vector.multi_reduction <maximumf>, %28, %cst_16 [1] : vector<8x8xf32> to vector<8xf32>
    %30 = vector.shape_cast %29 : vector<8xf32> to vector<8x1xf32>
    %31 = vector.broadcast %30 : vector<8x1xf32> to vector<8x8xf32>
    %32 = arith.subf %28, %31 : vector<8x8xf32>
    %33 = math.exp %32 : vector<8x8xf32>
    %cst_17 = arith.constant dense<0.000000e+00> : vector<8xf32>
    %34 = vector.multi_reduction <add>, %33, %cst_17 [1] : vector<8x8xf32> to vector<8xf32>
    %35 = vector.shape_cast %34 : vector<8xf32> to vector<8x1xf32>
    %36 = tpu.reciprocal %35 {approx = true} : vector<8x1xf32> -> vector<8x1xf32>
    %37 = vector.broadcast %36 : vector<8x1xf32> to vector<8x8xf32>
    %38 = arith.mulf %33, %37 : vector<8x8xf32>
    %39 = arith.truncf %38 : vector<8x8xf32> to vector<8x8xbf16>
    %cst_18 = arith.constant dense<0.000000e+00> : vector<8x16xf32>
    %40 = tpu.matmul %39, %27, %cst_18 {dimension_numbers = #tpu.dot_dimension_numbers<[1], [0], [0], [1], [0, 0, 1, 1], [], []>} : vector<8x8xbf16>, vector<8x16xbf16>, vector<8x16xf32> -> vector<8x16xf32>
    %41 = vector.extract_strided_slice %22 {offsets = [0, 16], sizes = [8, 16], strides = [1, 1]} : vector<8x64xbf16> to vector<8x16xbf16>
    %42 = vector.extract_strided_slice %23 {offsets = [0, 0], sizes = [8, 16], strides = [1, 1]} : vector<8x32xbf16> to vector<8x16xbf16>
    %43 = vector.extract_strided_slice %24 {offsets = [0, 0], sizes = [8, 16], strides = [1, 1]} : vector<8x32xbf16> to vector<8x16xbf16>
    %cst_19 = arith.constant dense<0.000000e+00> : vector<8x8xf32>
    %44 = tpu.matmul %41, %42, %cst_19 {dimension_numbers = #tpu.dot_dimension_numbers<[1], [1], [0], [0], [0, 0, 1, 0], [], []>} : vector<8x16xbf16>, vector<8x16xbf16>, vector<8x8xf32> -> vector<8x8xf32>
    %cst_20 = arith.constant dense<0xFF800000> : vector<8xf32>
    %45 = vector.multi_reduction <maximumf>, %44, %cst_20 [1] : vector<8x8xf32> to vector<8xf32>
    %46 = vector.shape_cast %45 : vector<8xf32> to vector<8x1xf32>
    %47 = vector.broadcast %46 : vector<8x1xf32> to vector<8x8xf32>
    %48 = arith.subf %44, %47 : vector<8x8xf32>
    %49 = math.exp %48 : vector<8x8xf32>
    %cst_21 = arith.constant dense<0.000000e+00> : vector<8xf32>
    %50 = vector.multi_reduction <add>, %49, %cst_21 [1] : vector<8x8xf32> to vector<8xf32>
    %51 = vector.shape_cast %50 : vector<8xf32> to vector<8x1xf32>
    %52 = tpu.reciprocal %51 {approx = true} : vector<8x1xf32> -> vector<8x1xf32>
    %53 = vector.broadcast %52 : vector<8x1xf32> to vector<8x8xf32>
    %54 = arith.mulf %49, %53 : vector<8x8xf32>
    %55 = arith.truncf %54 : vector<8x8xf32> to vector<8x8xbf16>
    %cst_22 = arith.constant dense<0.000000e+00> : vector<8x16xf32>
    %56 = tpu.matmul %55, %43, %cst_22 {dimension_numbers = #tpu.dot_dimension_numbers<[1], [0], [0], [1], [0, 0, 1, 1], [], []>} : vector<8x8xbf16>, vector<8x16xbf16>, vector<8x16xf32> -> vector<8x16xf32>
    %57 = vector.extract_strided_slice %22 {offsets = [0, 32], sizes = [8, 16], strides = [1, 1]} : vector<8x64xbf16> to vector<8x16xbf16>
    %58 = vector.extract_strided_slice %23 {offsets = [0, 16], sizes = [8, 16], strides = [1, 1]} : vector<8x32xbf16> to vector<8x16xbf16>
    %59 = vector.extract_strided_slice %24 {offsets = [0, 16], sizes = [8, 16], strides = [1, 1]} : vector<8x32xbf16> to vector<8x16xbf16>
    %cst_23 = arith.constant dense<0.000000e+00> : vector<8x8xf32>
    %60 = tpu.matmul %57, %58, %cst_23 {dimension_numbers = #tpu.dot_dimension_numbers<[1], [1], [0], [0], [0, 0, 1, 0], [], []>} : vector<8x16xbf16>, vector<8x16xbf16>, vector<8x8xf32> -> vector<8x8xf32>
    %cst_24 = arith.constant dense<0xFF800000> : vector<8xf32>
    %61 = vector.multi_reduction <maximumf>, %60, %cst_24 [1] : vector<8x8xf32> to vector<8xf32>
    %62 = vector.shape_cast %61 : vector<8xf32> to vector<8x1xf32>
    %63 = vector.broadcast %62 : vector<8x1xf32> to vector<8x8xf32>
    %64 = arith.subf %60, %63 : vector<8x8xf32>
    %65 = math.exp %64 : vector<8x8xf32>
    %cst_25 = arith.constant dense<0.000000e+00> : vector<8xf32>
    %66 = vector.multi_reduction <add>, %65, %cst_25 [1] : vector<8x8xf32> to vector<8xf32>
    %67 = vector.shape_cast %66 : vector<8xf32> to vector<8x1xf32>
    %68 = tpu.reciprocal %67 {approx = true} : vector<8x1xf32> -> vector<8x1xf32>
    %69 = vector.broadcast %68 : vector<8x1xf32> to vector<8x8xf32>
    %70 = arith.mulf %65, %69 : vector<8x8xf32>
    %71 = arith.truncf %70 : vector<8x8xf32> to vector<8x8xbf16>
    %cst_26 = arith.constant dense<0.000000e+00> : vector<8x16xf32>
    %72 = tpu.matmul %71, %59, %cst_26 {dimension_numbers = #tpu.dot_dimension_numbers<[1], [0], [0], [1], [0, 0, 1, 1], [], []>} : vector<8x8xbf16>, vector<8x16xbf16>, vector<8x16xf32> -> vector<8x16xf32>
    %73 = vector.extract_strided_slice %22 {offsets = [0, 48], sizes = [8, 16], strides = [1, 1]} : vector<8x64xbf16> to vector<8x16xbf16>
    %74 = vector.extract_strided_slice %23 {offsets = [0, 16], sizes = [8, 16], strides = [1, 1]} : vector<8x32xbf16> to vector<8x16xbf16>
    %75 = vector.extract_strided_slice %24 {offsets = [0, 16], sizes = [8, 16], strides = [1, 1]} : vector<8x32xbf16> to vector<8x16xbf16>
    %cst_27 = arith.constant dense<0.000000e+00> : vector<8x8xf32>
    %76 = tpu.matmul %73, %74, %cst_27 {dimension_numbers = #tpu.dot_dimension_numbers<[1], [1], [0], [0], [0, 0, 1, 0], [], []>} : vector<8x16xbf16>, vector<8x16xbf16>, vector<8x8xf32> -> vector<8x8xf32>
    %cst_28 = arith.constant dense<0xFF800000> : vector<8xf32>
    %77 = vector.multi_reduction <maximumf>, %76, %cst_28 [1] : vector<8x8xf32> to vector<8xf32>
    %78 = vector.shape_cast %77 : vector<8xf32> to vector<8x1xf32>
    %79 = vector.broadcast %78 : vector<8x1xf32> to vector<8x8xf32>
    %80 = arith.subf %76, %79 : vector<8x8xf32>
    %81 = math.exp %80 : vector<8x8xf32>
    %cst_29 = arith.constant dense<0.000000e+00> : vector<8xf32>
    %82 = vector.multi_reduction <add>, %81, %cst_29 [1] : vector<8x8xf32> to vector<8xf32>
    %83 = vector.shape_cast %82 : vector<8xf32> to vector<8x1xf32>
    %84 = tpu.reciprocal %83 {approx = true} : vector<8x1xf32> -> vector<8x1xf32>
    %85 = vector.broadcast %84 : vector<8x1xf32> to vector<8x8xf32>
    %86 = arith.mulf %81, %85 : vector<8x8xf32>
    %87 = arith.truncf %86 : vector<8x8xf32> to vector<8x8xbf16>
    %cst_30 = arith.constant dense<0.000000e+00> : vector<8x16xf32>
    %88 = tpu.matmul %87, %75, %cst_30 {dimension_numbers = #tpu.dot_dimension_numbers<[1], [0], [0], [1], [0, 0, 1, 1], [], []>} : vector<8x8xbf16>, vector<8x16xbf16>, vector<8x16xf32> -> vector<8x16xf32>
    %89 = tpu.concatenate %40, %56, %72, %88 in 1 : vector<8x16xf32>, vector<8x16xf32>, vector<8x16xf32>, vector<8x16xf32> -> vector<8x64xf32>
    %90 = arith.truncf %89 : vector<8x64xf32> to vector<8x64xbf16>
    %cst_31 = arith.constant dense<0.000000e+00> : vector<8x32xf32>
    %91 = tpu.matmul %90, %19, %cst_31 {dimension_numbers = #tpu.dot_dimension_numbers<[1], [0], [0], [1], [0, 0, 1, 1], [], []>} : vector<8x64xbf16>, vector<64x32xbf16>, vector<8x32xf32> -> vector<8x32xf32>
    %92 = vector.broadcast %21 : vector<1x32xf32> to vector<8x32xf32>
    %93 = arith.addf %91, %92 : vector<8x32xf32>
    %94 = arith.addf %4, %93 : vector<8x32xf32>
    %c0_32 = arith.constant 0 : index
    %c0_33 = arith.constant 0 : index
    %c0_34 = arith.constant 0 : index
    %95 = vector.load %arg7[%c0_32, %c0_33, %c0_34] : memref<2x1x32xf32, #tpu.memory_space<vmem>>, vector<1x1x32xf32>
    %96 = vector.shape_cast %95 : vector<1x1x32xf32> to vector<1x32xf32>
    %c0_35 = arith.constant 0 : index
    %c0_36 = arith.constant 0 : index
    %c0_37 = arith.constant 0 : index
    %97 = vector.load %arg8[%c0_35, %c0_36, %c0_37] : memref<2x1x32xf32, #tpu.memory_space<vmem>>, vector<1x1x32xf32>
    %98 = vector.shape_cast %97 : vector<1x1x32xf32> to vector<1x32xf32>
    %cst_38 = arith.constant dense<0.000000e+00> : vector<8xf32>
    %99 = vector.multi_reduction <add>, %94, %cst_38 [1] : vector<8x32xf32> to vector<8xf32>
    %100 = vector.shape_cast %99 : vector<8xf32> to vector<8x1xf32>
    %cst_39 = arith.constant 3.200000e+01 : f32
    %101 = vector.broadcast %cst_39 : f32 to vector<8x1xf32>
    %102 = arith.divf %100, %101 : vector<8x1xf32>
    %103 = vector.broadcast %102 : vector<8x1xf32> to vector<8x32xf32>
    %104 = arith.subf %94, %103 : vector<8x32xf32>
    %105 = arith.mulf %104, %104 : vector<8x32xf32>
    %cst_40 = arith.constant dense<0.000000e+00> : vector<8xf32>
    %106 = vector.multi_reduction <add>, %105, %cst_40 [1] : vector<8x32xf32> to vector<8xf32>
    %107 = vector.shape_cast %106 : vector<8xf32> to vector<8x1xf32>
    %cst_41 = arith.constant 3.200000e+01 : f32
    %108 = vector.broadcast %cst_41 : f32 to vector<8x1xf32>
    %109 = arith.divf %107, %108 : vector<8x1xf32>
    %110 = vector.broadcast %102 : vector<8x1xf32> to vector<8x32xf32>
    %111 = arith.subf %94, %110 : vector<8x32xf32>
    %cst_42 = arith.constant 9.99999974E-6 : f32
    %112 = vector.broadcast %cst_42 : f32 to vector<8x1xf32>
    %113 = arith.addf %109, %112 : vector<8x1xf32>
    %114 = math.rsqrt %113 : vector<8x1xf32>
    %115 = vector.broadcast %114 : vector<8x1xf32> to vector<8x32xf32>
    %116 = arith.mulf %111, %115 : vector<8x32xf32>
    %117 = vector.broadcast %96 : vector<1x32xf32> to vector<8x32xf32>
    %118 = arith.mulf %116, %117 : vector<8x32xf32>
    %119 = vector.broadcast %98 : vector<1x32xf32> to vector<8x32xf32>
    %120 = arith.addf %118, %119 : vector<8x32xf32>
    %c0_43 = arith.constant 0 : index
    %c0_44 = arith.constant 0 : index
    %c0_45 = arith.constant 0 : index
    %121 = vector.load %arg9[%c0_43, %c0_44, %c0_45] : memref<2x32x128xbf16, #tpu.memory_space<vmem>>, vector<1x32x128xbf16>
    %122 = vector.shape_cast %121 : vector<1x32x128xbf16> to vector<32x128xbf16>
    %123 = arith.truncf %120 : vector<8x32xf32> to vector<8x32xbf16>
    %cst_46 = arith.constant dense<0.000000e+00> : vector<8x128xf32>
    %124 = tpu.matmul %123, %122, %cst_46 {dimension_numbers = #tpu.dot_dimension_numbers<[1], [0], [0], [1], [0, 0, 1, 1], [], []>} : vector<8x32xbf16>, vector<32x128xbf16>, vector<8x128xf32> -> vector<8x128xf32>
    %c0_47 = arith.constant 0 : index
    %c0_48 = arith.constant 0 : index
    %c0_49 = arith.constant 0 : index
    %125 = vector.load %arg10[%c0_47, %c0_48, %c0_49] : memref<2x1x128xf32, #tpu.memory_space<vmem>>, vector<1x1x128xf32>
    %126 = vector.shape_cast %125 : vector<1x1x128xf32> to vector<1x128xf32>
    %127 = vector.broadcast %126 : vector<1x128xf32> to vector<8x128xf32>
    %128 = arith.addf %124, %127 : vector<8x128xf32>
    %c0_50 = arith.constant 0 : index
    %129 = memref.load %arg11[%c0_50] : memref<2xf32, #tpu.memory_space<smem>>
    %cst_51 = arith.constant 0.000000e+00 : f32
    %130 = vector.broadcast %cst_51 : f32 to vector<8x128xf32>
    %131 = arith.cmpf oge, %128, %130 : vector<8x128xf32>
    %132 = vector.broadcast %129 : f32 to vector<8x128xf32>
    %133 = arith.mulf %132, %128 : vector<8x128xf32>
    %134 = arith.select %131, %128, %133 : vector<8x128xi1>, vector<8x128xf32>
    %c0_52 = arith.constant 0 : index
    %c0_53 = arith.constant 0 : index
    %c0_54 = arith.constant 0 : index
    %135 = vector.load %arg12[%c0_52, %c0_53, %c0_54] : memref<2x128x32xbf16, #tpu.memory_space<vmem>>, vector<1x128x32xbf16>
    %136 = vector.shape_cast %135 : vector<1x128x32xbf16> to vector<128x32xbf16>
    %137 = arith.truncf %134 : vector<8x128xf32> to vector<8x128xbf16>
    %cst_55 = arith.constant dense<0.000000e+00> : vector<8x32xf32>
    %138 = tpu.matmul %137, %136, %cst_55 {dimension_numbers = #tpu.dot_dimension_numbers<[1], [0], [0], [1], [0, 0, 1, 1], [], []>} : vector<8x128xbf16>, vector<128x32xbf16>, vector<8x32xf32> -> vector<8x32xf32>
    %c0_56 = arith.constant 0 : index
    %c0_57 = arith.constant 0 : index
    %c0_58 = arith.constant 0 : index
    %139 = vector.load %arg13[%c0_56, %c0_57, %c0_58] : memref<2x1x32xf32, #tpu.memory_space<vmem>>, vector<1x1x32xf32>
    %140 = vector.shape_cast %139 : vector<1x1x32xf32> to vector<1x32xf32>
    %141 = vector.broadcast %140 : vector<1x32xf32> to vector<8x32xf32>
    %142 = arith.addf %138, %141 : vector<8x32xf32>
    %143 = arith.addf %120, %142 : vector<8x32xf32>
    %c0_59 = arith.constant 0 : index
    %c0_60 = arith.constant 0 : index
    %c0_61 = arith.constant 0 : index
    %144 = vector.load %arg14[%c0_59, %c0_60, %c0_61] : memref<2x1x32xf32, #tpu.memory_space<vmem>>, vector<1x1x32xf32>
    %145 = vector.shape_cast %144 : vector<1x1x32xf32> to vector<1x32xf32>
    %c0_62 = arith.constant 0 : index
    %c0_63 = arith.constant 0 : index
    %c0_64 = arith.constant 0 : index
    %146 = vector.load %arg15[%c0_62, %c0_63, %c0_64] : memref<2x1x32xf32, #tpu.memory_space<vmem>>, vector<1x1x32xf32>
    %147 = vector.shape_cast %146 : vector<1x1x32xf32> to vector<1x32xf32>
    %cst_65 = arith.constant dense<0.000000e+00> : vector<8xf32>
    %148 = vector.multi_reduction <add>, %143, %cst_65 [1] : vector<8x32xf32> to vector<8xf32>
    %149 = vector.shape_cast %148 : vector<8xf32> to vector<8x1xf32>
    %cst_66 = arith.constant 3.200000e+01 : f32
    %150 = vector.broadcast %cst_66 : f32 to vector<8x1xf32>
    %151 = arith.divf %149, %150 : vector<8x1xf32>
    %152 = vector.broadcast %151 : vector<8x1xf32> to vector<8x32xf32>
    %153 = arith.subf %143, %152 : vector<8x32xf32>
    %154 = arith.mulf %153, %153 : vector<8x32xf32>
    %cst_67 = arith.constant dense<0.000000e+00> : vector<8xf32>
    %155 = vector.multi_reduction <add>, %154, %cst_67 [1] : vector<8x32xf32> to vector<8xf32>
    %156 = vector.shape_cast %155 : vector<8xf32> to vector<8x1xf32>
    %cst_68 = arith.constant 3.200000e+01 : f32
    %157 = vector.broadcast %cst_68 : f32 to vector<8x1xf32>
    %158 = arith.divf %156, %157 : vector<8x1xf32>
    %159 = vector.broadcast %151 : vector<8x1xf32> to vector<8x32xf32>
    %160 = arith.subf %143, %159 : vector<8x32xf32>
    %cst_69 = arith.constant 9.99999974E-6 : f32
    %161 = vector.broadcast %cst_69 : f32 to vector<8x1xf32>
    %162 = arith.addf %158, %161 : vector<8x1xf32>
    %163 = math.rsqrt %162 : vector<8x1xf32>
    %164 = vector.broadcast %163 : vector<8x1xf32> to vector<8x32xf32>
    %165 = arith.mulf %160, %164 : vector<8x32xf32>
    %166 = vector.broadcast %145 : vector<1x32xf32> to vector<8x32xf32>
    %167 = arith.mulf %165, %166 : vector<8x32xf32>
    %168 = vector.broadcast %147 : vector<1x32xf32> to vector<8x32xf32>
    %169 = arith.addf %167, %168 : vector<8x32xf32>
    %c1 = arith.constant 1 : index
    %c0_70 = arith.constant 0 : index
    %c0_71 = arith.constant 0 : index
    %170 = vector.load %arg3[%c1, %c0_70, %c0_71] : memref<2x32x128xbf16, #tpu.memory_space<vmem>>, vector<1x32x128xbf16>
    %171 = vector.shape_cast %170 : vector<1x32x128xbf16> to vector<32x128xbf16>
    %172 = arith.truncf %169 : vector<8x32xf32> to vector<8x32xbf16>
    %cst_72 = arith.constant dense<0.000000e+00> : vector<8x128xf32>
    %173 = tpu.matmul %172, %171, %cst_72 {dimension_numbers = #tpu.dot_dimension_numbers<[1], [0], [0], [1], [0, 0, 1, 1], [], []>} : vector<8x32xbf16>, vector<32x128xbf16>, vector<8x128xf32> -> vector<8x128xf32>
    %c1_73 = arith.constant 1 : index
    %c0_74 = arith.constant 0 : index
    %c0_75 = arith.constant 0 : index
    %174 = vector.load %arg4[%c1_73, %c0_74, %c0_75] : memref<2x1x128xf32, #tpu.memory_space<vmem>>, vector<1x1x128xf32>
    %175 = vector.shape_cast %174 : vector<1x1x128xf32> to vector<1x128xf32>
    %176 = vector.broadcast %175 : vector<1x128xf32> to vector<8x128xf32>
    %177 = arith.addf %173, %176 : vector<8x128xf32>
    %178 = vector.extract_strided_slice %177 {offsets = [0, 0], sizes = [8, 64], strides = [1, 1]} : vector<8x128xf32> to vector<8x64xf32>
    %cst_76 = arith.constant 2.500000e-01 : f32
    %179 = vector.broadcast %cst_76 : f32 to vector<8x64xf32>
    %180 = arith.mulf %178, %179 : vector<8x64xf32>
    %181 = vector.extract_strided_slice %177 {offsets = [0, 64], sizes = [8, 32], strides = [1, 1]} : vector<8x128xf32> to vector<8x32xf32>
    %182 = vector.extract_strided_slice %177 {offsets = [0, 96], sizes = [8, 32], strides = [1, 1]} : vector<8x128xf32> to vector<8x32xf32>
    %c1_77 = arith.constant 1 : index
    %c0_78 = arith.constant 0 : index
    %c0_79 = arith.constant 0 : index
    %183 = vector.load %arg5[%c1_77, %c0_78, %c0_79] : memref<2x64x32xbf16, #tpu.memory_space<vmem>>, vector<1x64x32xbf16>
    %184 = vector.shape_cast %183 : vector<1x64x32xbf16> to vector<64x32xbf16>
    %c1_80 = arith.constant 1 : index
    %c0_81 = arith.constant 0 : index
    %c0_82 = arith.constant 0 : index
    %185 = vector.load %arg6[%c1_80, %c0_81, %c0_82] : memref<2x1x32xf32, #tpu.memory_space<vmem>>, vector<1x1x32xf32>
    %186 = vector.shape_cast %185 : vector<1x1x32xf32> to vector<1x32xf32>
    %187 = arith.truncf %180 : vector<8x64xf32> to vector<8x64xbf16>
    %188 = arith.truncf %181 : vector<8x32xf32> to vector<8x32xbf16>
    %189 = arith.truncf %182 : vector<8x32xf32> to vector<8x32xbf16>
    %190 = vector.extract_strided_slice %187 {offsets = [0, 0], sizes = [8, 16], strides = [1, 1]} : vector<8x64xbf16> to vector<8x16xbf16>
    %191 = vector.extract_strided_slice %188 {offsets = [0, 0], sizes = [8, 16], strides = [1, 1]} : vector<8x32xbf16> to vector<8x16xbf16>
    %192 = vector.extract_strided_slice %189 {offsets = [0, 0], sizes = [8, 16], strides = [1, 1]} : vector<8x32xbf16> to vector<8x16xbf16>
    %cst_83 = arith.constant dense<0.000000e+00> : vector<8x8xf32>
    %193 = tpu.matmul %190, %191, %cst_83 {dimension_numbers = #tpu.dot_dimension_numbers<[1], [1], [0], [0], [0, 0, 1, 0], [], []>} : vector<8x16xbf16>, vector<8x16xbf16>, vector<8x8xf32> -> vector<8x8xf32>
    %cst_84 = arith.constant dense<0xFF800000> : vector<8xf32>
    %194 = vector.multi_reduction <maximumf>, %193, %cst_84 [1] : vector<8x8xf32> to vector<8xf32>
    %195 = vector.shape_cast %194 : vector<8xf32> to vector<8x1xf32>
    %196 = vector.broadcast %195 : vector<8x1xf32> to vector<8x8xf32>
    %197 = arith.subf %193, %196 : vector<8x8xf32>
    %198 = math.exp %197 : vector<8x8xf32>
    %cst_85 = arith.constant dense<0.000000e+00> : vector<8xf32>
    %199 = vector.multi_reduction <add>, %198, %cst_85 [1] : vector<8x8xf32> to vector<8xf32>
    %200 = vector.shape_cast %199 : vector<8xf32> to vector<8x1xf32>
    %201 = tpu.reciprocal %200 {approx = true} : vector<8x1xf32> -> vector<8x1xf32>
    %202 = vector.broadcast %201 : vector<8x1xf32> to vector<8x8xf32>
    %203 = arith.mulf %198, %202 : vector<8x8xf32>
    %204 = arith.truncf %203 : vector<8x8xf32> to vector<8x8xbf16>
    %cst_86 = arith.constant dense<0.000000e+00> : vector<8x16xf32>
    %205 = tpu.matmul %204, %192, %cst_86 {dimension_numbers = #tpu.dot_dimension_numbers<[1], [0], [0], [1], [0, 0, 1, 1], [], []>} : vector<8x8xbf16>, vector<8x16xbf16>, vector<8x16xf32> -> vector<8x16xf32>
    %206 = vector.extract_strided_slice %187 {offsets = [0, 16], sizes = [8, 16], strides = [1, 1]} : vector<8x64xbf16> to vector<8x16xbf16>
    %207 = vector.extract_strided_slice %188 {offsets = [0, 0], sizes = [8, 16], strides = [1, 1]} : vector<8x32xbf16> to vector<8x16xbf16>
    %208 = vector.extract_strided_slice %189 {offsets = [0, 0], sizes = [8, 16], strides = [1, 1]} : vector<8x32xbf16> to vector<8x16xbf16>
    %cst_87 = arith.constant dense<0.000000e+00> : vector<8x8xf32>
    %209 = tpu.matmul %206, %207, %cst_87 {dimension_numbers = #tpu.dot_dimension_numbers<[1], [1], [0], [0], [0, 0, 1, 0], [], []>} : vector<8x16xbf16>, vector<8x16xbf16>, vector<8x8xf32> -> vector<8x8xf32>
    %cst_88 = arith.constant dense<0xFF800000> : vector<8xf32>
    %210 = vector.multi_reduction <maximumf>, %209, %cst_88 [1] : vector<8x8xf32> to vector<8xf32>
    %211 = vector.shape_cast %210 : vector<8xf32> to vector<8x1xf32>
    %212 = vector.broadcast %211 : vector<8x1xf32> to vector<8x8xf32>
    %213 = arith.subf %209, %212 : vector<8x8xf32>
    %214 = math.exp %213 : vector<8x8xf32>
    %cst_89 = arith.constant dense<0.000000e+00> : vector<8xf32>
    %215 = vector.multi_reduction <add>, %214, %cst_89 [1] : vector<8x8xf32> to vector<8xf32>
    %216 = vector.shape_cast %215 : vector<8xf32> to vector<8x1xf32>
    %217 = tpu.reciprocal %216 {approx = true} : vector<8x1xf32> -> vector<8x1xf32>
    %218 = vector.broadcast %217 : vector<8x1xf32> to vector<8x8xf32>
    %219 = arith.mulf %214, %218 : vector<8x8xf32>
    %220 = arith.truncf %219 : vector<8x8xf32> to vector<8x8xbf16>
    %cst_90 = arith.constant dense<0.000000e+00> : vector<8x16xf32>
    %221 = tpu.matmul %220, %208, %cst_90 {dimension_numbers = #tpu.dot_dimension_numbers<[1], [0], [0], [1], [0, 0, 1, 1], [], []>} : vector<8x8xbf16>, vector<8x16xbf16>, vector<8x16xf32> -> vector<8x16xf32>
    %222 = vector.extract_strided_slice %187 {offsets = [0, 32], sizes = [8, 16], strides = [1, 1]} : vector<8x64xbf16> to vector<8x16xbf16>
    %223 = vector.extract_strided_slice %188 {offsets = [0, 16], sizes = [8, 16], strides = [1, 1]} : vector<8x32xbf16> to vector<8x16xbf16>
    %224 = vector.extract_strided_slice %189 {offsets = [0, 16], sizes = [8, 16], strides = [1, 1]} : vector<8x32xbf16> to vector<8x16xbf16>
    %cst_91 = arith.constant dense<0.000000e+00> : vector<8x8xf32>
    %225 = tpu.matmul %222, %223, %cst_91 {dimension_numbers = #tpu.dot_dimension_numbers<[1], [1], [0], [0], [0, 0, 1, 0], [], []>} : vector<8x16xbf16>, vector<8x16xbf16>, vector<8x8xf32> -> vector<8x8xf32>
    %cst_92 = arith.constant dense<0xFF800000> : vector<8xf32>
    %226 = vector.multi_reduction <maximumf>, %225, %cst_92 [1] : vector<8x8xf32> to vector<8xf32>
    %227 = vector.shape_cast %226 : vector<8xf32> to vector<8x1xf32>
    %228 = vector.broadcast %227 : vector<8x1xf32> to vector<8x8xf32>
    %229 = arith.subf %225, %228 : vector<8x8xf32>
    %230 = math.exp %229 : vector<8x8xf32>
    %cst_93 = arith.constant dense<0.000000e+00> : vector<8xf32>
    %231 = vector.multi_reduction <add>, %230, %cst_93 [1] : vector<8x8xf32> to vector<8xf32>
    %232 = vector.shape_cast %231 : vector<8xf32> to vector<8x1xf32>
    %233 = tpu.reciprocal %232 {approx = true} : vector<8x1xf32> -> vector<8x1xf32>
    %234 = vector.broadcast %233 : vector<8x1xf32> to vector<8x8xf32>
    %235 = arith.mulf %230, %234 : vector<8x8xf32>
    %236 = arith.truncf %235 : vector<8x8xf32> to vector<8x8xbf16>
    %cst_94 = arith.constant dense<0.000000e+00> : vector<8x16xf32>
    %237 = tpu.matmul %236, %224, %cst_94 {dimension_numbers = #tpu.dot_dimension_numbers<[1], [0], [0], [1], [0, 0, 1, 1], [], []>} : vector<8x8xbf16>, vector<8x16xbf16>, vector<8x16xf32> -> vector<8x16xf32>
    %238 = vector.extract_strided_slice %187 {offsets = [0, 48], sizes = [8, 16], strides = [1, 1]} : vector<8x64xbf16> to vector<8x16xbf16>
    %239 = vector.extract_strided_slice %188 {offsets = [0, 16], sizes = [8, 16], strides = [1, 1]} : vector<8x32xbf16> to vector<8x16xbf16>
    %240 = vector.extract_strided_slice %189 {offsets = [0, 16], sizes = [8, 16], strides = [1, 1]} : vector<8x32xbf16> to vector<8x16xbf16>
    %cst_95 = arith.constant dense<0.000000e+00> : vector<8x8xf32>
    %241 = tpu.matmul %238, %239, %cst_95 {dimension_numbers = #tpu.dot_dimension_numbers<[1], [1], [0], [0], [0, 0, 1, 0], [], []>} : vector<8x16xbf16>, vector<8x16xbf16>, vector<8x8xf32> -> vector<8x8xf32>
    %cst_96 = arith.constant dense<0xFF800000> : vector<8xf32>
    %242 = vector.multi_reduction <maximumf>, %241, %cst_96 [1] : vector<8x8xf32> to vector<8xf32>
    %243 = vector.shape_cast %242 : vector<8xf32> to vector<8x1xf32>
    %244 = vector.broadcast %243 : vector<8x1xf32> to vector<8x8xf32>
    %245 = arith.subf %241, %244 : vector<8x8xf32>
    %246 = math.exp %245 : vector<8x8xf32>
    %cst_97 = arith.constant dense<0.000000e+00> : vector<8xf32>
    %247 = vector.multi_reduction <add>, %246, %cst_97 [1] : vector<8x8xf32> to vector<8xf32>
    %248 = vector.shape_cast %247 : vector<8xf32> to vector<8x1xf32>
    %249 = tpu.reciprocal %248 {approx = true} : vector<8x1xf32> -> vector<8x1xf32>
    %250 = vector.broadcast %249 : vector<8x1xf32> to vector<8x8xf32>
    %251 = arith.mulf %246, %250 : vector<8x8xf32>
    %252 = arith.truncf %251 : vector<8x8xf32> to vector<8x8xbf16>
    %cst_98 = arith.constant dense<0.000000e+00> : vector<8x16xf32>
    %253 = tpu.matmul %252, %240, %cst_98 {dimension_numbers = #tpu.dot_dimension_numbers<[1], [0], [0], [1], [0, 0, 1, 1], [], []>} : vector<8x8xbf16>, vector<8x16xbf16>, vector<8x16xf32> -> vector<8x16xf32>
    %254 = tpu.concatenate %205, %221, %237, %253 in 1 : vector<8x16xf32>, vector<8x16xf32>, vector<8x16xf32>, vector<8x16xf32> -> vector<8x64xf32>
    %255 = arith.truncf %254 : vector<8x64xf32> to vector<8x64xbf16>
    %cst_99 = arith.constant dense<0.000000e+00> : vector<8x32xf32>
    %256 = tpu.matmul %255, %184, %cst_99 {dimension_numbers = #tpu.dot_dimension_numbers<[1], [0], [0], [1], [0, 0, 1, 1], [], []>} : vector<8x64xbf16>, vector<64x32xbf16>, vector<8x32xf32> -> vector<8x32xf32>
    %257 = vector.broadcast %186 : vector<1x32xf32> to vector<8x32xf32>
    %258 = arith.addf %256, %257 : vector<8x32xf32>
    %259 = arith.addf %169, %258 : vector<8x32xf32>
    %c1_100 = arith.constant 1 : index
    %c0_101 = arith.constant 0 : index
    %c0_102 = arith.constant 0 : index
    %260 = vector.load %arg7[%c1_100, %c0_101, %c0_102] : memref<2x1x32xf32, #tpu.memory_space<vmem>>, vector<1x1x32xf32>
    %261 = vector.shape_cast %260 : vector<1x1x32xf32> to vector<1x32xf32>
    %c1_103 = arith.constant 1 : index
    %c0_104 = arith.constant 0 : index
    %c0_105 = arith.constant 0 : index
    %262 = vector.load %arg8[%c1_103, %c0_104, %c0_105] : memref<2x1x32xf32, #tpu.memory_space<vmem>>, vector<1x1x32xf32>
    %263 = vector.shape_cast %262 : vector<1x1x32xf32> to vector<1x32xf32>
    %cst_106 = arith.constant dense<0.000000e+00> : vector<8xf32>
    %264 = vector.multi_reduction <add>, %259, %cst_106 [1] : vector<8x32xf32> to vector<8xf32>
    %265 = vector.shape_cast %264 : vector<8xf32> to vector<8x1xf32>
    %cst_107 = arith.constant 3.200000e+01 : f32
    %266 = vector.broadcast %cst_107 : f32 to vector<8x1xf32>
    %267 = arith.divf %265, %266 : vector<8x1xf32>
    %268 = vector.broadcast %267 : vector<8x1xf32> to vector<8x32xf32>
    %269 = arith.subf %259, %268 : vector<8x32xf32>
    %270 = arith.mulf %269, %269 : vector<8x32xf32>
    %cst_108 = arith.constant dense<0.000000e+00> : vector<8xf32>
    %271 = vector.multi_reduction <add>, %270, %cst_108 [1] : vector<8x32xf32> to vector<8xf32>
    %272 = vector.shape_cast %271 : vector<8xf32> to vector<8x1xf32>
    %cst_109 = arith.constant 3.200000e+01 : f32
    %273 = vector.broadcast %cst_109 : f32 to vector<8x1xf32>
    %274 = arith.divf %272, %273 : vector<8x1xf32>
    %275 = vector.broadcast %267 : vector<8x1xf32> to vector<8x32xf32>
    %276 = arith.subf %259, %275 : vector<8x32xf32>
    %cst_110 = arith.constant 9.99999974E-6 : f32
    %277 = vector.broadcast %cst_110 : f32 to vector<8x1xf32>
    %278 = arith.addf %274, %277 : vector<8x1xf32>
    %279 = math.rsqrt %278 : vector<8x1xf32>
    %280 = vector.broadcast %279 : vector<8x1xf32> to vector<8x32xf32>
    %281 = arith.mulf %276, %280 : vector<8x32xf32>
    %282 = vector.broadcast %261 : vector<1x32xf32> to vector<8x32xf32>
    %283 = arith.mulf %281, %282 : vector<8x32xf32>
    %284 = vector.broadcast %263 : vector<1x32xf32> to vector<8x32xf32>
    %285 = arith.addf %283, %284 : vector<8x32xf32>
    %c1_111 = arith.constant 1 : index
    %c0_112 = arith.constant 0 : index
    %c0_113 = arith.constant 0 : index
    %286 = vector.load %arg9[%c1_111, %c0_112, %c0_113] : memref<2x32x128xbf16, #tpu.memory_space<vmem>>, vector<1x32x128xbf16>
    %287 = vector.shape_cast %286 : vector<1x32x128xbf16> to vector<32x128xbf16>
    %288 = arith.truncf %285 : vector<8x32xf32> to vector<8x32xbf16>
    %cst_114 = arith.constant dense<0.000000e+00> : vector<8x128xf32>
    %289 = tpu.matmul %288, %287, %cst_114 {dimension_numbers = #tpu.dot_dimension_numbers<[1], [0], [0], [1], [0, 0, 1, 1], [], []>} : vector<8x32xbf16>, vector<32x128xbf16>, vector<8x128xf32> -> vector<8x128xf32>
    %c1_115 = arith.constant 1 : index
    %c0_116 = arith.constant 0 : index
    %c0_117 = arith.constant 0 : index
    %290 = vector.load %arg10[%c1_115, %c0_116, %c0_117] : memref<2x1x128xf32, #tpu.memory_space<vmem>>, vector<1x1x128xf32>
    %291 = vector.shape_cast %290 : vector<1x1x128xf32> to vector<1x128xf32>
    %292 = vector.broadcast %291 : vector<1x128xf32> to vector<8x128xf32>
    %293 = arith.addf %289, %292 : vector<8x128xf32>
    %c1_118 = arith.constant 1 : index
    %294 = memref.load %arg11[%c1_118] : memref<2xf32, #tpu.memory_space<smem>>
    %cst_119 = arith.constant 0.000000e+00 : f32
    %295 = vector.broadcast %cst_119 : f32 to vector<8x128xf32>
    %296 = arith.cmpf oge, %293, %295 : vector<8x128xf32>
    %297 = vector.broadcast %294 : f32 to vector<8x128xf32>
    %298 = arith.mulf %297, %293 : vector<8x128xf32>
    %299 = arith.select %296, %293, %298 : vector<8x128xi1>, vector<8x128xf32>
    %c1_120 = arith.constant 1 : index
    %c0_121 = arith.constant 0 : index
    %c0_122 = arith.constant 0 : index
    %300 = vector.load %arg12[%c1_120, %c0_121, %c0_122] : memref<2x128x32xbf16, #tpu.memory_space<vmem>>, vector<1x128x32xbf16>
    %301 = vector.shape_cast %300 : vector<1x128x32xbf16> to vector<128x32xbf16>
    %302 = arith.truncf %299 : vector<8x128xf32> to vector<8x128xbf16>
    %cst_123 = arith.constant dense<0.000000e+00> : vector<8x32xf32>
    %303 = tpu.matmul %302, %301, %cst_123 {dimension_numbers = #tpu.dot_dimension_numbers<[1], [0], [0], [1], [0, 0, 1, 1], [], []>} : vector<8x128xbf16>, vector<128x32xbf16>, vector<8x32xf32> -> vector<8x32xf32>
    %c1_124 = arith.constant 1 : index
    %c0_125 = arith.constant 0 : index
    %c0_126 = arith.constant 0 : index
    %304 = vector.load %arg13[%c1_124, %c0_125, %c0_126] : memref<2x1x32xf32, #tpu.memory_space<vmem>>, vector<1x1x32xf32>
    %305 = vector.shape_cast %304 : vector<1x1x32xf32> to vector<1x32xf32>
    %306 = vector.broadcast %305 : vector<1x32xf32> to vector<8x32xf32>
    %307 = arith.addf %303, %306 : vector<8x32xf32>
    %308 = arith.addf %285, %307 : vector<8x32xf32>
    %c1_127 = arith.constant 1 : index
    %c0_128 = arith.constant 0 : index
    %c0_129 = arith.constant 0 : index
    %309 = vector.load %arg14[%c1_127, %c0_128, %c0_129] : memref<2x1x32xf32, #tpu.memory_space<vmem>>, vector<1x1x32xf32>
    %310 = vector.shape_cast %309 : vector<1x1x32xf32> to vector<1x32xf32>
    %c1_130 = arith.constant 1 : index
    %c0_131 = arith.constant 0 : index
    %c0_132 = arith.constant 0 : index
    %311 = vector.load %arg15[%c1_130, %c0_131, %c0_132] : memref<2x1x32xf32, #tpu.memory_space<vmem>>, vector<1x1x32xf32>
    %312 = vector.shape_cast %311 : vector<1x1x32xf32> to vector<1x32xf32>
    %cst_133 = arith.constant dense<0.000000e+00> : vector<8xf32>
    %313 = vector.multi_reduction <add>, %308, %cst_133 [1] : vector<8x32xf32> to vector<8xf32>
    %314 = vector.shape_cast %313 : vector<8xf32> to vector<8x1xf32>
    %cst_134 = arith.constant 3.200000e+01 : f32
    %315 = vector.broadcast %cst_134 : f32 to vector<8x1xf32>
    %316 = arith.divf %314, %315 : vector<8x1xf32>
    %317 = vector.broadcast %316 : vector<8x1xf32> to vector<8x32xf32>
    %318 = arith.subf %308, %317 : vector<8x32xf32>
    %319 = arith.mulf %318, %318 : vector<8x32xf32>
    %cst_135 = arith.constant dense<0.000000e+00> : vector<8xf32>
    %320 = vector.multi_reduction <add>, %319, %cst_135 [1] : vector<8x32xf32> to vector<8xf32>
    %321 = vector.shape_cast %320 : vector<8xf32> to vector<8x1xf32>
    %cst_136 = arith.constant 3.200000e+01 : f32
    %322 = vector.broadcast %cst_136 : f32 to vector<8x1xf32>
    %323 = arith.divf %321, %322 : vector<8x1xf32>
    %324 = vector.broadcast %316 : vector<8x1xf32> to vector<8x32xf32>
    %325 = arith.subf %308, %324 : vector<8x32xf32>
    %cst_137 = arith.constant 9.99999974E-6 : f32
    %326 = vector.broadcast %cst_137 : f32 to vector<8x1xf32>
    %327 = arith.addf %323, %326 : vector<8x1xf32>
    %328 = math.rsqrt %327 : vector<8x1xf32>
    %329 = vector.broadcast %328 : vector<8x1xf32> to vector<8x32xf32>
    %330 = arith.mulf %325, %329 : vector<8x32xf32>
    %331 = vector.broadcast %310 : vector<1x32xf32> to vector<8x32xf32>
    %332 = arith.mulf %330, %331 : vector<8x32xf32>
    %333 = vector.broadcast %312 : vector<1x32xf32> to vector<8x32xf32>
    %334 = arith.addf %332, %333 : vector<8x32xf32>
    %c0_138 = arith.constant 0 : index
    %c0_139 = arith.constant 0 : index
    %c0_140 = arith.constant 0 : index
    %335 = vector.load %arg2[%c0_138, %c0_139, %c0_140] : memref<1x8x32xf32, #tpu.memory_space<vmem>>, vector<1x8x32xf32>
    %336 = vector.shape_cast %335 : vector<1x8x32xf32> to vector<8x32xf32>
    %c0_141 = arith.constant 0 : index
    %c0_142 = arith.constant 0 : index
    %c0_143 = arith.constant 0 : index
    %337 = vector.load %arg16[%c0_141, %c0_142, %c0_143] : memref<2x32x128xbf16, #tpu.memory_space<vmem>>, vector<1x32x128xbf16>
    %338 = vector.shape_cast %337 : vector<1x32x128xbf16> to vector<32x128xbf16>
    %339 = arith.truncf %336 : vector<8x32xf32> to vector<8x32xbf16>
    %cst_144 = arith.constant dense<0.000000e+00> : vector<8x128xf32>
    %340 = tpu.matmul %339, %338, %cst_144 {dimension_numbers = #tpu.dot_dimension_numbers<[1], [0], [0], [1], [0, 0, 1, 1], [], []>} : vector<8x32xbf16>, vector<32x128xbf16>, vector<8x128xf32> -> vector<8x128xf32>
    %c0_145 = arith.constant 0 : index
    %c0_146 = arith.constant 0 : index
    %c0_147 = arith.constant 0 : index
    %341 = vector.load %arg17[%c0_145, %c0_146, %c0_147] : memref<2x1x128xf32, #tpu.memory_space<vmem>>, vector<1x1x128xf32>
    %342 = vector.shape_cast %341 : vector<1x1x128xf32> to vector<1x128xf32>
    %343 = vector.broadcast %342 : vector<1x128xf32> to vector<8x128xf32>
    %344 = arith.addf %340, %343 : vector<8x128xf32>
    %345 = vector.extract_strided_slice %344 {offsets = [0, 0], sizes = [8, 64], strides = [1, 1]} : vector<8x128xf32> to vector<8x64xf32>
    %cst_148 = arith.constant 2.500000e-01 : f32
    %346 = vector.broadcast %cst_148 : f32 to vector<8x64xf32>
    %347 = arith.mulf %345, %346 : vector<8x64xf32>
    %348 = vector.extract_strided_slice %344 {offsets = [0, 64], sizes = [8, 32], strides = [1, 1]} : vector<8x128xf32> to vector<8x32xf32>
    %349 = vector.extract_strided_slice %344 {offsets = [0, 96], sizes = [8, 32], strides = [1, 1]} : vector<8x128xf32> to vector<8x32xf32>
    %c0_149 = arith.constant 0 : index
    %c0_150 = arith.constant 0 : index
    %c0_151 = arith.constant 0 : index
    %350 = vector.load %arg18[%c0_149, %c0_150, %c0_151] : memref<2x64x32xbf16, #tpu.memory_space<vmem>>, vector<1x64x32xbf16>
    %351 = vector.shape_cast %350 : vector<1x64x32xbf16> to vector<64x32xbf16>
    %c0_152 = arith.constant 0 : index
    %c0_153 = arith.constant 0 : index
    %c0_154 = arith.constant 0 : index
    %352 = vector.load %arg19[%c0_152, %c0_153, %c0_154] : memref<2x1x32xf32, #tpu.memory_space<vmem>>, vector<1x1x32xf32>
    %353 = vector.shape_cast %352 : vector<1x1x32xf32> to vector<1x32xf32>
    %354 = arith.truncf %347 : vector<8x64xf32> to vector<8x64xbf16>
    %355 = arith.truncf %348 : vector<8x32xf32> to vector<8x32xbf16>
    %356 = arith.truncf %349 : vector<8x32xf32> to vector<8x32xbf16>
    %357 = vector.extract_strided_slice %354 {offsets = [0, 0], sizes = [8, 16], strides = [1, 1]} : vector<8x64xbf16> to vector<8x16xbf16>
    %358 = vector.extract_strided_slice %355 {offsets = [0, 0], sizes = [8, 16], strides = [1, 1]} : vector<8x32xbf16> to vector<8x16xbf16>
    %359 = vector.extract_strided_slice %356 {offsets = [0, 0], sizes = [8, 16], strides = [1, 1]} : vector<8x32xbf16> to vector<8x16xbf16>
    %cst_155 = arith.constant dense<0.000000e+00> : vector<8x8xf32>
    %360 = tpu.matmul %357, %358, %cst_155 {dimension_numbers = #tpu.dot_dimension_numbers<[1], [1], [0], [0], [0, 0, 1, 0], [], []>} : vector<8x16xbf16>, vector<8x16xbf16>, vector<8x8xf32> -> vector<8x8xf32>
    %cst_156 = arith.constant -1.000000e+30 : f32
    %361 = vector.broadcast %cst_156 : f32 to vector<8x8xf32>
    %362 = arith.select %2, %360, %361 : vector<8x8xi1>, vector<8x8xf32>
    %cst_157 = arith.constant dense<0xFF800000> : vector<8xf32>
    %363 = vector.multi_reduction <maximumf>, %362, %cst_157 [1] : vector<8x8xf32> to vector<8xf32>
    %364 = vector.shape_cast %363 : vector<8xf32> to vector<8x1xf32>
    %365 = vector.broadcast %364 : vector<8x1xf32> to vector<8x8xf32>
    %366 = arith.subf %362, %365 : vector<8x8xf32>
    %367 = math.exp %366 : vector<8x8xf32>
    %cst_158 = arith.constant dense<0.000000e+00> : vector<8xf32>
    %368 = vector.multi_reduction <add>, %367, %cst_158 [1] : vector<8x8xf32> to vector<8xf32>
    %369 = vector.shape_cast %368 : vector<8xf32> to vector<8x1xf32>
    %370 = tpu.reciprocal %369 {approx = true} : vector<8x1xf32> -> vector<8x1xf32>
    %371 = vector.broadcast %370 : vector<8x1xf32> to vector<8x8xf32>
    %372 = arith.mulf %367, %371 : vector<8x8xf32>
    %373 = arith.truncf %372 : vector<8x8xf32> to vector<8x8xbf16>
    %cst_159 = arith.constant dense<0.000000e+00> : vector<8x16xf32>
    %374 = tpu.matmul %373, %359, %cst_159 {dimension_numbers = #tpu.dot_dimension_numbers<[1], [0], [0], [1], [0, 0, 1, 1], [], []>} : vector<8x8xbf16>, vector<8x16xbf16>, vector<8x16xf32> -> vector<8x16xf32>
    %375 = vector.extract_strided_slice %354 {offsets = [0, 16], sizes = [8, 16], strides = [1, 1]} : vector<8x64xbf16> to vector<8x16xbf16>
    %376 = vector.extract_strided_slice %355 {offsets = [0, 0], sizes = [8, 16], strides = [1, 1]} : vector<8x32xbf16> to vector<8x16xbf16>
    %377 = vector.extract_strided_slice %356 {offsets = [0, 0], sizes = [8, 16], strides = [1, 1]} : vector<8x32xbf16> to vector<8x16xbf16>
    %cst_160 = arith.constant dense<0.000000e+00> : vector<8x8xf32>
    %378 = tpu.matmul %375, %376, %cst_160 {dimension_numbers = #tpu.dot_dimension_numbers<[1], [1], [0], [0], [0, 0, 1, 0], [], []>} : vector<8x16xbf16>, vector<8x16xbf16>, vector<8x8xf32> -> vector<8x8xf32>
    %cst_161 = arith.constant -1.000000e+30 : f32
    %379 = vector.broadcast %cst_161 : f32 to vector<8x8xf32>
    %380 = arith.select %2, %378, %379 : vector<8x8xi1>, vector<8x8xf32>
    %cst_162 = arith.constant dense<0xFF800000> : vector<8xf32>
    %381 = vector.multi_reduction <maximumf>, %380, %cst_162 [1] : vector<8x8xf32> to vector<8xf32>
    %382 = vector.shape_cast %381 : vector<8xf32> to vector<8x1xf32>
    %383 = vector.broadcast %382 : vector<8x1xf32> to vector<8x8xf32>
    %384 = arith.subf %380, %383 : vector<8x8xf32>
    %385 = math.exp %384 : vector<8x8xf32>
    %cst_163 = arith.constant dense<0.000000e+00> : vector<8xf32>
    %386 = vector.multi_reduction <add>, %385, %cst_163 [1] : vector<8x8xf32> to vector<8xf32>
    %387 = vector.shape_cast %386 : vector<8xf32> to vector<8x1xf32>
    %388 = tpu.reciprocal %387 {approx = true} : vector<8x1xf32> -> vector<8x1xf32>
    %389 = vector.broadcast %388 : vector<8x1xf32> to vector<8x8xf32>
    %390 = arith.mulf %385, %389 : vector<8x8xf32>
    %391 = arith.truncf %390 : vector<8x8xf32> to vector<8x8xbf16>
    %cst_164 = arith.constant dense<0.000000e+00> : vector<8x16xf32>
    %392 = tpu.matmul %391, %377, %cst_164 {dimension_numbers = #tpu.dot_dimension_numbers<[1], [0], [0], [1], [0, 0, 1, 1], [], []>} : vector<8x8xbf16>, vector<8x16xbf16>, vector<8x16xf32> -> vector<8x16xf32>
    %393 = vector.extract_strided_slice %354 {offsets = [0, 32], sizes = [8, 16], strides = [1, 1]} : vector<8x64xbf16> to vector<8x16xbf16>
    %394 = vector.extract_strided_slice %355 {offsets = [0, 16], sizes = [8, 16], strides = [1, 1]} : vector<8x32xbf16> to vector<8x16xbf16>
    %395 = vector.extract_strided_slice %356 {offsets = [0, 16], sizes = [8, 16], strides = [1, 1]} : vector<8x32xbf16> to vector<8x16xbf16>
    %cst_165 = arith.constant dense<0.000000e+00> : vector<8x8xf32>
    %396 = tpu.matmul %393, %394, %cst_165 {dimension_numbers = #tpu.dot_dimension_numbers<[1], [1], [0], [0], [0, 0, 1, 0], [], []>} : vector<8x16xbf16>, vector<8x16xbf16>, vector<8x8xf32> -> vector<8x8xf32>
    %cst_166 = arith.constant -1.000000e+30 : f32
    %397 = vector.broadcast %cst_166 : f32 to vector<8x8xf32>
    %398 = arith.select %2, %396, %397 : vector<8x8xi1>, vector<8x8xf32>
    %cst_167 = arith.constant dense<0xFF800000> : vector<8xf32>
    %399 = vector.multi_reduction <maximumf>, %398, %cst_167 [1] : vector<8x8xf32> to vector<8xf32>
    %400 = vector.shape_cast %399 : vector<8xf32> to vector<8x1xf32>
    %401 = vector.broadcast %400 : vector<8x1xf32> to vector<8x8xf32>
    %402 = arith.subf %398, %401 : vector<8x8xf32>
    %403 = math.exp %402 : vector<8x8xf32>
    %cst_168 = arith.constant dense<0.000000e+00> : vector<8xf32>
    %404 = vector.multi_reduction <add>, %403, %cst_168 [1] : vector<8x8xf32> to vector<8xf32>
    %405 = vector.shape_cast %404 : vector<8xf32> to vector<8x1xf32>
    %406 = tpu.reciprocal %405 {approx = true} : vector<8x1xf32> -> vector<8x1xf32>
    %407 = vector.broadcast %406 : vector<8x1xf32> to vector<8x8xf32>
    %408 = arith.mulf %403, %407 : vector<8x8xf32>
    %409 = arith.truncf %408 : vector<8x8xf32> to vector<8x8xbf16>
    %cst_169 = arith.constant dense<0.000000e+00> : vector<8x16xf32>
    %410 = tpu.matmul %409, %395, %cst_169 {dimension_numbers = #tpu.dot_dimension_numbers<[1], [0], [0], [1], [0, 0, 1, 1], [], []>} : vector<8x8xbf16>, vector<8x16xbf16>, vector<8x16xf32> -> vector<8x16xf32>
    %411 = vector.extract_strided_slice %354 {offsets = [0, 48], sizes = [8, 16], strides = [1, 1]} : vector<8x64xbf16> to vector<8x16xbf16>
    %412 = vector.extract_strided_slice %355 {offsets = [0, 16], sizes = [8, 16], strides = [1, 1]} : vector<8x32xbf16> to vector<8x16xbf16>
    %413 = vector.extract_strided_slice %356 {offsets = [0, 16], sizes = [8, 16], strides = [1, 1]} : vector<8x32xbf16> to vector<8x16xbf16>
    %cst_170 = arith.constant dense<0.000000e+00> : vector<8x8xf32>
    %414 = tpu.matmul %411, %412, %cst_170 {dimension_numbers = #tpu.dot_dimension_numbers<[1], [1], [0], [0], [0, 0, 1, 0], [], []>} : vector<8x16xbf16>, vector<8x16xbf16>, vector<8x8xf32> -> vector<8x8xf32>
    %cst_171 = arith.constant -1.000000e+30 : f32
    %415 = vector.broadcast %cst_171 : f32 to vector<8x8xf32>
    %416 = arith.select %2, %414, %415 : vector<8x8xi1>, vector<8x8xf32>
    %cst_172 = arith.constant dense<0xFF800000> : vector<8xf32>
    %417 = vector.multi_reduction <maximumf>, %416, %cst_172 [1] : vector<8x8xf32> to vector<8xf32>
    %418 = vector.shape_cast %417 : vector<8xf32> to vector<8x1xf32>
    %419 = vector.broadcast %418 : vector<8x1xf32> to vector<8x8xf32>
    %420 = arith.subf %416, %419 : vector<8x8xf32>
    %421 = math.exp %420 : vector<8x8xf32>
    %cst_173 = arith.constant dense<0.000000e+00> : vector<8xf32>
    %422 = vector.multi_reduction <add>, %421, %cst_173 [1] : vector<8x8xf32> to vector<8xf32>
    %423 = vector.shape_cast %422 : vector<8xf32> to vector<8x1xf32>
    %424 = tpu.reciprocal %423 {approx = true} : vector<8x1xf32> -> vector<8x1xf32>
    %425 = vector.broadcast %424 : vector<8x1xf32> to vector<8x8xf32>
    %426 = arith.mulf %421, %425 : vector<8x8xf32>
    %427 = arith.truncf %426 : vector<8x8xf32> to vector<8x8xbf16>
    %cst_174 = arith.constant dense<0.000000e+00> : vector<8x16xf32>
    %428 = tpu.matmul %427, %413, %cst_174 {dimension_numbers = #tpu.dot_dimension_numbers<[1], [0], [0], [1], [0, 0, 1, 1], [], []>} : vector<8x8xbf16>, vector<8x16xbf16>, vector<8x16xf32> -> vector<8x16xf32>
    %429 = tpu.concatenate %374, %392, %410, %428 in 1 : vector<8x16xf32>, vector<8x16xf32>, vector<8x16xf32>, vector<8x16xf32> -> vector<8x64xf32>
    %430 = arith.truncf %429 : vector<8x64xf32> to vector<8x64xbf16>
    %cst_175 = arith.constant dense<0.000000e+00> : vector<8x32xf32>
    %431 = tpu.matmul %430, %351, %cst_175 {dimension_numbers = #tpu.dot_dimension_numbers<[1], [0], [0], [1], [0, 0, 1, 1], [], []>} : vector<8x64xbf16>, vector<64x32xbf16>, vector<8x32xf32> -> vector<8x32xf32>
    %432 = vector.broadcast %353 : vector<1x32xf32> to vector<8x32xf32>
    %433 = arith.addf %431, %432 : vector<8x32xf32>
    %434 = arith.addf %433, %336 : vector<8x32xf32>
    %c0_176 = arith.constant 0 : index
    %c0_177 = arith.constant 0 : index
    %c0_178 = arith.constant 0 : index
    %435 = vector.load %arg20[%c0_176, %c0_177, %c0_178] : memref<2x1x32xf32, #tpu.memory_space<vmem>>, vector<1x1x32xf32>
    %436 = vector.shape_cast %435 : vector<1x1x32xf32> to vector<1x32xf32>
    %437 = arith.mulf %434, %434 : vector<8x32xf32>
    %cst_179 = arith.constant dense<0.000000e+00> : vector<8xf32>
    %438 = vector.multi_reduction <add>, %437, %cst_179 [1] : vector<8x32xf32> to vector<8xf32>
    %439 = vector.shape_cast %438 : vector<8xf32> to vector<8x1xf32>
    %cst_180 = arith.constant 3.200000e+01 : f32
    %440 = vector.broadcast %cst_180 : f32 to vector<8x1xf32>
    %441 = arith.divf %439, %440 : vector<8x1xf32>
    %cst_181 = arith.constant 9.99999997E-7 : f32
    %442 = vector.broadcast %cst_181 : f32 to vector<8x1xf32>
    %443 = arith.addf %441, %442 : vector<8x1xf32>
    %444 = math.rsqrt %443 : vector<8x1xf32>
    %445 = vector.broadcast %444 : vector<8x1xf32> to vector<8x32xf32>
    %446 = arith.mulf %434, %445 : vector<8x32xf32>
    %447 = vector.broadcast %436 : vector<1x32xf32> to vector<8x32xf32>
    %448 = arith.mulf %446, %447 : vector<8x32xf32>
    %c0_182 = arith.constant 0 : index
    %c0_183 = arith.constant 0 : index
    %c0_184 = arith.constant 0 : index
    %449 = vector.load %arg21[%c0_182, %c0_183, %c0_184] : memref<2x32x64xbf16, #tpu.memory_space<vmem>>, vector<1x32x64xbf16>
    %450 = vector.shape_cast %449 : vector<1x32x64xbf16> to vector<32x64xbf16>
    %451 = arith.truncf %448 : vector<8x32xf32> to vector<8x32xbf16>
    %cst_185 = arith.constant dense<0.000000e+00> : vector<8x64xf32>
    %452 = tpu.matmul %451, %450, %cst_185 {dimension_numbers = #tpu.dot_dimension_numbers<[1], [0], [0], [1], [0, 0, 1, 1], [], []>} : vector<8x32xbf16>, vector<32x64xbf16>, vector<8x64xf32> -> vector<8x64xf32>
    %c0_186 = arith.constant 0 : index
    %c0_187 = arith.constant 0 : index
    %c0_188 = arith.constant 0 : index
    %453 = vector.load %arg22[%c0_186, %c0_187, %c0_188] : memref<2x1x64xf32, #tpu.memory_space<vmem>>, vector<1x1x64xf32>
    %454 = vector.shape_cast %453 : vector<1x1x64xf32> to vector<1x64xf32>
    %455 = vector.broadcast %454 : vector<1x64xf32> to vector<8x64xf32>
    %456 = arith.addf %452, %455 : vector<8x64xf32>
    %cst_189 = arith.constant 2.500000e-01 : f32
    %457 = vector.broadcast %cst_189 : f32 to vector<8x64xf32>
    %458 = arith.mulf %456, %457 : vector<8x64xf32>
    %c0_190 = arith.constant 0 : index
    %c0_191 = arith.constant 0 : index
    %c0_192 = arith.constant 0 : index
    %459 = vector.load %arg23[%c0_190, %c0_191, %c0_192] : memref<2x32x64xbf16, #tpu.memory_space<vmem>>, vector<1x32x64xbf16>
    %460 = vector.shape_cast %459 : vector<1x32x64xbf16> to vector<32x64xbf16>
    %461 = arith.truncf %334 : vector<8x32xf32> to vector<8x32xbf16>
    %cst_193 = arith.constant dense<0.000000e+00> : vector<8x64xf32>
    %462 = tpu.matmul %461, %460, %cst_193 {dimension_numbers = #tpu.dot_dimension_numbers<[1], [0], [0], [1], [0, 0, 1, 1], [], []>} : vector<8x32xbf16>, vector<32x64xbf16>, vector<8x64xf32> -> vector<8x64xf32>
    %c0_194 = arith.constant 0 : index
    %c0_195 = arith.constant 0 : index
    %c0_196 = arith.constant 0 : index
    %463 = vector.load %arg24[%c0_194, %c0_195, %c0_196] : memref<2x1x64xf32, #tpu.memory_space<vmem>>, vector<1x1x64xf32>
    %464 = vector.shape_cast %463 : vector<1x1x64xf32> to vector<1x64xf32>
    %465 = vector.broadcast %464 : vector<1x64xf32> to vector<8x64xf32>
    %466 = arith.addf %462, %465 : vector<8x64xf32>
    %467 = vector.extract_strided_slice %466 {offsets = [0, 0], sizes = [8, 32], strides = [1, 1]} : vector<8x64xf32> to vector<8x32xf32>
    %468 = vector.extract_strided_slice %466 {offsets = [0, 32], sizes = [8, 32], strides = [1, 1]} : vector<8x64xf32> to vector<8x32xf32>
    %c0_197 = arith.constant 0 : index
    %c0_198 = arith.constant 0 : index
    %c0_199 = arith.constant 0 : index
    %469 = vector.load %arg25[%c0_197, %c0_198, %c0_199] : memref<2x64x32xbf16, #tpu.memory_space<vmem>>, vector<1x64x32xbf16>
    %470 = vector.shape_cast %469 : vector<1x64x32xbf16> to vector<64x32xbf16>
    %c0_200 = arith.constant 0 : index
    %c0_201 = arith.constant 0 : index
    %c0_202 = arith.constant 0 : index
    %471 = vector.load %arg26[%c0_200, %c0_201, %c0_202] : memref<2x1x32xf32, #tpu.memory_space<vmem>>, vector<1x1x32xf32>
    %472 = vector.shape_cast %471 : vector<1x1x32xf32> to vector<1x32xf32>
    %473 = arith.truncf %458 : vector<8x64xf32> to vector<8x64xbf16>
    %474 = arith.truncf %467 : vector<8x32xf32> to vector<8x32xbf16>
    %475 = arith.truncf %468 : vector<8x32xf32> to vector<8x32xbf16>
    %476 = vector.extract_strided_slice %473 {offsets = [0, 0], sizes = [8, 16], strides = [1, 1]} : vector<8x64xbf16> to vector<8x16xbf16>
    %477 = vector.extract_strided_slice %474 {offsets = [0, 0], sizes = [8, 16], strides = [1, 1]} : vector<8x32xbf16> to vector<8x16xbf16>
    %478 = vector.extract_strided_slice %475 {offsets = [0, 0], sizes = [8, 16], strides = [1, 1]} : vector<8x32xbf16> to vector<8x16xbf16>
    %cst_203 = arith.constant dense<0.000000e+00> : vector<8x8xf32>
    %479 = tpu.matmul %476, %477, %cst_203 {dimension_numbers = #tpu.dot_dimension_numbers<[1], [1], [0], [0], [0, 0, 1, 0], [], []>} : vector<8x16xbf16>, vector<8x16xbf16>, vector<8x8xf32> -> vector<8x8xf32>
    %cst_204 = arith.constant dense<0xFF800000> : vector<8xf32>
    %480 = vector.multi_reduction <maximumf>, %479, %cst_204 [1] : vector<8x8xf32> to vector<8xf32>
    %481 = vector.shape_cast %480 : vector<8xf32> to vector<8x1xf32>
    %482 = vector.broadcast %481 : vector<8x1xf32> to vector<8x8xf32>
    %483 = arith.subf %479, %482 : vector<8x8xf32>
    %484 = math.exp %483 : vector<8x8xf32>
    %cst_205 = arith.constant dense<0.000000e+00> : vector<8xf32>
    %485 = vector.multi_reduction <add>, %484, %cst_205 [1] : vector<8x8xf32> to vector<8xf32>
    %486 = vector.shape_cast %485 : vector<8xf32> to vector<8x1xf32>
    %487 = tpu.reciprocal %486 {approx = true} : vector<8x1xf32> -> vector<8x1xf32>
    %488 = vector.broadcast %487 : vector<8x1xf32> to vector<8x8xf32>
    %489 = arith.mulf %484, %488 : vector<8x8xf32>
    %490 = arith.truncf %489 : vector<8x8xf32> to vector<8x8xbf16>
    %cst_206 = arith.constant dense<0.000000e+00> : vector<8x16xf32>
    %491 = tpu.matmul %490, %478, %cst_206 {dimension_numbers = #tpu.dot_dimension_numbers<[1], [0], [0], [1], [0, 0, 1, 1], [], []>} : vector<8x8xbf16>, vector<8x16xbf16>, vector<8x16xf32> -> vector<8x16xf32>
    %492 = vector.extract_strided_slice %473 {offsets = [0, 16], sizes = [8, 16], strides = [1, 1]} : vector<8x64xbf16> to vector<8x16xbf16>
    %493 = vector.extract_strided_slice %474 {offsets = [0, 0], sizes = [8, 16], strides = [1, 1]} : vector<8x32xbf16> to vector<8x16xbf16>
    %494 = vector.extract_strided_slice %475 {offsets = [0, 0], sizes = [8, 16], strides = [1, 1]} : vector<8x32xbf16> to vector<8x16xbf16>
    %cst_207 = arith.constant dense<0.000000e+00> : vector<8x8xf32>
    %495 = tpu.matmul %492, %493, %cst_207 {dimension_numbers = #tpu.dot_dimension_numbers<[1], [1], [0], [0], [0, 0, 1, 0], [], []>} : vector<8x16xbf16>, vector<8x16xbf16>, vector<8x8xf32> -> vector<8x8xf32>
    %cst_208 = arith.constant dense<0xFF800000> : vector<8xf32>
    %496 = vector.multi_reduction <maximumf>, %495, %cst_208 [1] : vector<8x8xf32> to vector<8xf32>
    %497 = vector.shape_cast %496 : vector<8xf32> to vector<8x1xf32>
    %498 = vector.broadcast %497 : vector<8x1xf32> to vector<8x8xf32>
    %499 = arith.subf %495, %498 : vector<8x8xf32>
    %500 = math.exp %499 : vector<8x8xf32>
    %cst_209 = arith.constant dense<0.000000e+00> : vector<8xf32>
    %501 = vector.multi_reduction <add>, %500, %cst_209 [1] : vector<8x8xf32> to vector<8xf32>
    %502 = vector.shape_cast %501 : vector<8xf32> to vector<8x1xf32>
    %503 = tpu.reciprocal %502 {approx = true} : vector<8x1xf32> -> vector<8x1xf32>
    %504 = vector.broadcast %503 : vector<8x1xf32> to vector<8x8xf32>
    %505 = arith.mulf %500, %504 : vector<8x8xf32>
    %506 = arith.truncf %505 : vector<8x8xf32> to vector<8x8xbf16>
    %cst_210 = arith.constant dense<0.000000e+00> : vector<8x16xf32>
    %507 = tpu.matmul %506, %494, %cst_210 {dimension_numbers = #tpu.dot_dimension_numbers<[1], [0], [0], [1], [0, 0, 1, 1], [], []>} : vector<8x8xbf16>, vector<8x16xbf16>, vector<8x16xf32> -> vector<8x16xf32>
    %508 = vector.extract_strided_slice %473 {offsets = [0, 32], sizes = [8, 16], strides = [1, 1]} : vector<8x64xbf16> to vector<8x16xbf16>
    %509 = vector.extract_strided_slice %474 {offsets = [0, 16], sizes = [8, 16], strides = [1, 1]} : vector<8x32xbf16> to vector<8x16xbf16>
    %510 = vector.extract_strided_slice %475 {offsets = [0, 16], sizes = [8, 16], strides = [1, 1]} : vector<8x32xbf16> to vector<8x16xbf16>
    %cst_211 = arith.constant dense<0.000000e+00> : vector<8x8xf32>
    %511 = tpu.matmul %508, %509, %cst_211 {dimension_numbers = #tpu.dot_dimension_numbers<[1], [1], [0], [0], [0, 0, 1, 0], [], []>} : vector<8x16xbf16>, vector<8x16xbf16>, vector<8x8xf32> -> vector<8x8xf32>
    %cst_212 = arith.constant dense<0xFF800000> : vector<8xf32>
    %512 = vector.multi_reduction <maximumf>, %511, %cst_212 [1] : vector<8x8xf32> to vector<8xf32>
    %513 = vector.shape_cast %512 : vector<8xf32> to vector<8x1xf32>
    %514 = vector.broadcast %513 : vector<8x1xf32> to vector<8x8xf32>
    %515 = arith.subf %511, %514 : vector<8x8xf32>
    %516 = math.exp %515 : vector<8x8xf32>
    %cst_213 = arith.constant dense<0.000000e+00> : vector<8xf32>
    %517 = vector.multi_reduction <add>, %516, %cst_213 [1] : vector<8x8xf32> to vector<8xf32>
    %518 = vector.shape_cast %517 : vector<8xf32> to vector<8x1xf32>
    %519 = tpu.reciprocal %518 {approx = true} : vector<8x1xf32> -> vector<8x1xf32>
    %520 = vector.broadcast %519 : vector<8x1xf32> to vector<8x8xf32>
    %521 = arith.mulf %516, %520 : vector<8x8xf32>
    %522 = arith.truncf %521 : vector<8x8xf32> to vector<8x8xbf16>
    %cst_214 = arith.constant dense<0.000000e+00> : vector<8x16xf32>
    %523 = tpu.matmul %522, %510, %cst_214 {dimension_numbers = #tpu.dot_dimension_numbers<[1], [0], [0], [1], [0, 0, 1, 1], [], []>} : vector<8x8xbf16>, vector<8x16xbf16>, vector<8x16xf32> -> vector<8x16xf32>
    %524 = vector.extract_strided_slice %473 {offsets = [0, 48], sizes = [8, 16], strides = [1, 1]} : vector<8x64xbf16> to vector<8x16xbf16>
    %525 = vector.extract_strided_slice %474 {offsets = [0, 16], sizes = [8, 16], strides = [1, 1]} : vector<8x32xbf16> to vector<8x16xbf16>
    %526 = vector.extract_strided_slice %475 {offsets = [0, 16], sizes = [8, 16], strides = [1, 1]} : vector<8x32xbf16> to vector<8x16xbf16>
    %cst_215 = arith.constant dense<0.000000e+00> : vector<8x8xf32>
    %527 = tpu.matmul %524, %525, %cst_215 {dimension_numbers = #tpu.dot_dimension_numbers<[1], [1], [0], [0], [0, 0, 1, 0], [], []>} : vector<8x16xbf16>, vector<8x16xbf16>, vector<8x8xf32> -> vector<8x8xf32>
    %cst_216 = arith.constant dense<0xFF800000> : vector<8xf32>
    %528 = vector.multi_reduction <maximumf>, %527, %cst_216 [1] : vector<8x8xf32> to vector<8xf32>
    %529 = vector.shape_cast %528 : vector<8xf32> to vector<8x1xf32>
    %530 = vector.broadcast %529 : vector<8x1xf32> to vector<8x8xf32>
    %531 = arith.subf %527, %530 : vector<8x8xf32>
    %532 = math.exp %531 : vector<8x8xf32>
    %cst_217 = arith.constant dense<0.000000e+00> : vector<8xf32>
    %533 = vector.multi_reduction <add>, %532, %cst_217 [1] : vector<8x8xf32> to vector<8xf32>
    %534 = vector.shape_cast %533 : vector<8xf32> to vector<8x1xf32>
    %535 = tpu.reciprocal %534 {approx = true} : vector<8x1xf32> -> vector<8x1xf32>
    %536 = vector.broadcast %535 : vector<8x1xf32> to vector<8x8xf32>
    %537 = arith.mulf %532, %536 : vector<8x8xf32>
    %538 = arith.truncf %537 : vector<8x8xf32> to vector<8x8xbf16>
    %cst_218 = arith.constant dense<0.000000e+00> : vector<8x16xf32>
    %539 = tpu.matmul %538, %526, %cst_218 {dimension_numbers = #tpu.dot_dimension_numbers<[1], [0], [0], [1], [0, 0, 1, 1], [], []>} : vector<8x8xbf16>, vector<8x16xbf16>, vector<8x16xf32> -> vector<8x16xf32>
    %540 = tpu.concatenate %491, %507, %523, %539 in 1 : vector<8x16xf32>, vector<8x16xf32>, vector<8x16xf32>, vector<8x16xf32> -> vector<8x64xf32>
    %541 = arith.truncf %540 : vector<8x64xf32> to vector<8x64xbf16>
    %cst_219 = arith.constant dense<0.000000e+00> : vector<8x32xf32>
    %542 = tpu.matmul %541, %470, %cst_219 {dimension_numbers = #tpu.dot_dimension_numbers<[1], [0], [0], [1], [0, 0, 1, 1], [], []>} : vector<8x64xbf16>, vector<64x32xbf16>, vector<8x32xf32> -> vector<8x32xf32>
    %543 = vector.broadcast %472 : vector<1x32xf32> to vector<8x32xf32>
    %544 = arith.addf %542, %543 : vector<8x32xf32>
    %545 = arith.addf %448, %544 : vector<8x32xf32>
    %c0_220 = arith.constant 0 : index
    %c0_221 = arith.constant 0 : index
    %c0_222 = arith.constant 0 : index
    %546 = vector.load %arg27[%c0_220, %c0_221, %c0_222] : memref<2x1x32xf32, #tpu.memory_space<vmem>>, vector<1x1x32xf32>
    %547 = vector.shape_cast %546 : vector<1x1x32xf32> to vector<1x32xf32>
    %c0_223 = arith.constant 0 : index
    %c0_224 = arith.constant 0 : index
    %c0_225 = arith.constant 0 : index
    %548 = vector.load %arg28[%c0_223, %c0_224, %c0_225] : memref<2x1x32xf32, #tpu.memory_space<vmem>>, vector<1x1x32xf32>
    %549 = vector.shape_cast %548 : vector<1x1x32xf32> to vector<1x32xf32>
    %cst_226 = arith.constant dense<0.000000e+00> : vector<8xf32>
    %550 = vector.multi_reduction <add>, %545, %cst_226 [1] : vector<8x32xf32> to vector<8xf32>
    %551 = vector.shape_cast %550 : vector<8xf32> to vector<8x1xf32>
    %cst_227 = arith.constant 3.200000e+01 : f32
    %552 = vector.broadcast %cst_227 : f32 to vector<8x1xf32>
    %553 = arith.divf %551, %552 : vector<8x1xf32>
    %554 = vector.broadcast %553 : vector<8x1xf32> to vector<8x32xf32>
    %555 = arith.subf %545, %554 : vector<8x32xf32>
    %556 = arith.mulf %555, %555 : vector<8x32xf32>
    %cst_228 = arith.constant dense<0.000000e+00> : vector<8xf32>
    %557 = vector.multi_reduction <add>, %556, %cst_228 [1] : vector<8x32xf32> to vector<8xf32>
    %558 = vector.shape_cast %557 : vector<8xf32> to vector<8x1xf32>
    %cst_229 = arith.constant 3.200000e+01 : f32
    %559 = vector.broadcast %cst_229 : f32 to vector<8x1xf32>
    %560 = arith.divf %558, %559 : vector<8x1xf32>
    %561 = vector.broadcast %553 : vector<8x1xf32> to vector<8x32xf32>
    %562 = arith.subf %545, %561 : vector<8x32xf32>
    %cst_230 = arith.constant 9.99999974E-6 : f32
    %563 = vector.broadcast %cst_230 : f32 to vector<8x1xf32>
    %564 = arith.addf %560, %563 : vector<8x1xf32>
    %565 = math.rsqrt %564 : vector<8x1xf32>
    %566 = vector.broadcast %565 : vector<8x1xf32> to vector<8x32xf32>
    %567 = arith.mulf %562, %566 : vector<8x32xf32>
    %568 = vector.broadcast %547 : vector<1x32xf32> to vector<8x32xf32>
    %569 = arith.mulf %567, %568 : vector<8x32xf32>
    %570 = vector.broadcast %549 : vector<1x32xf32> to vector<8x32xf32>
    %571 = arith.addf %569, %570 : vector<8x32xf32>
    %c0_231 = arith.constant 0 : index
    %c0_232 = arith.constant 0 : index
    %c0_233 = arith.constant 0 : index
    %572 = vector.load %arg29[%c0_231, %c0_232, %c0_233] : memref<2x32x128xbf16, #tpu.memory_space<vmem>>, vector<1x32x128xbf16>
    %573 = vector.shape_cast %572 : vector<1x32x128xbf16> to vector<32x128xbf16>
    %574 = arith.truncf %571 : vector<8x32xf32> to vector<8x32xbf16>
    %cst_234 = arith.constant dense<0.000000e+00> : vector<8x128xf32>
    %575 = tpu.matmul %574, %573, %cst_234 {dimension_numbers = #tpu.dot_dimension_numbers<[1], [0], [0], [1], [0, 0, 1, 1], [], []>} : vector<8x32xbf16>, vector<32x128xbf16>, vector<8x128xf32> -> vector<8x128xf32>
    %c0_235 = arith.constant 0 : index
    %c0_236 = arith.constant 0 : index
    %c0_237 = arith.constant 0 : index
    %576 = vector.load %arg30[%c0_235, %c0_236, %c0_237] : memref<2x1x128xf32, #tpu.memory_space<vmem>>, vector<1x1x128xf32>
    %577 = vector.shape_cast %576 : vector<1x1x128xf32> to vector<1x128xf32>
    %578 = vector.broadcast %577 : vector<1x128xf32> to vector<8x128xf32>
    %579 = arith.addf %575, %578 : vector<8x128xf32>
    %c0_238 = arith.constant 0 : index
    %580 = memref.load %arg31[%c0_238] : memref<2xf32, #tpu.memory_space<smem>>
    %cst_239 = arith.constant 0.000000e+00 : f32
    %581 = vector.broadcast %cst_239 : f32 to vector<8x128xf32>
    %582 = arith.cmpf oge, %579, %581 : vector<8x128xf32>
    %583 = vector.broadcast %580 : f32 to vector<8x128xf32>
    %584 = arith.mulf %583, %579 : vector<8x128xf32>
    %585 = arith.select %582, %579, %584 : vector<8x128xi1>, vector<8x128xf32>
    %c0_240 = arith.constant 0 : index
    %c0_241 = arith.constant 0 : index
    %c0_242 = arith.constant 0 : index
    %586 = vector.load %arg32[%c0_240, %c0_241, %c0_242] : memref<2x128x32xbf16, #tpu.memory_space<vmem>>, vector<1x128x32xbf16>
    %587 = vector.shape_cast %586 : vector<1x128x32xbf16> to vector<128x32xbf16>
    %588 = arith.truncf %585 : vector<8x128xf32> to vector<8x128xbf16>
    %cst_243 = arith.constant dense<0.000000e+00> : vector<8x32xf32>
    %589 = tpu.matmul %588, %587, %cst_243 {dimension_numbers = #tpu.dot_dimension_numbers<[1], [0], [0], [1], [0, 0, 1, 1], [], []>} : vector<8x128xbf16>, vector<128x32xbf16>, vector<8x32xf32> -> vector<8x32xf32>
    %c0_244 = arith.constant 0 : index
    %c0_245 = arith.constant 0 : index
    %c0_246 = arith.constant 0 : index
    %590 = vector.load %arg33[%c0_244, %c0_245, %c0_246] : memref<2x1x32xf32, #tpu.memory_space<vmem>>, vector<1x1x32xf32>
    %591 = vector.shape_cast %590 : vector<1x1x32xf32> to vector<1x32xf32>
    %592 = vector.broadcast %591 : vector<1x32xf32> to vector<8x32xf32>
    %593 = arith.addf %589, %592 : vector<8x32xf32>
    %594 = arith.addf %571, %593 : vector<8x32xf32>
    %c0_247 = arith.constant 0 : index
    %c0_248 = arith.constant 0 : index
    %c0_249 = arith.constant 0 : index
    %595 = vector.load %arg34[%c0_247, %c0_248, %c0_249] : memref<2x1x32xf32, #tpu.memory_space<vmem>>, vector<1x1x32xf32>
    %596 = vector.shape_cast %595 : vector<1x1x32xf32> to vector<1x32xf32>
    %c0_250 = arith.constant 0 : index
    %c0_251 = arith.constant 0 : index
    %c0_252 = arith.constant 0 : index
    %597 = vector.load %arg35[%c0_250, %c0_251, %c0_252] : memref<2x1x32xf32, #tpu.memory_space<vmem>>, vector<1x1x32xf32>
    %598 = vector.shape_cast %597 : vector<1x1x32xf32> to vector<1x32xf32>
    %cst_253 = arith.constant dense<0.000000e+00> : vector<8xf32>
    %599 = vector.multi_reduction <add>, %594, %cst_253 [1] : vector<8x32xf32> to vector<8xf32>
    %600 = vector.shape_cast %599 : vector<8xf32> to vector<8x1xf32>
    %cst_254 = arith.constant 3.200000e+01 : f32
    %601 = vector.broadcast %cst_254 : f32 to vector<8x1xf32>
    %602 = arith.divf %600, %601 : vector<8x1xf32>
    %603 = vector.broadcast %602 : vector<8x1xf32> to vector<8x32xf32>
    %604 = arith.subf %594, %603 : vector<8x32xf32>
    %605 = arith.mulf %604, %604 : vector<8x32xf32>
    %cst_255 = arith.constant dense<0.000000e+00> : vector<8xf32>
    %606 = vector.multi_reduction <add>, %605, %cst_255 [1] : vector<8x32xf32> to vector<8xf32>
    %607 = vector.shape_cast %606 : vector<8xf32> to vector<8x1xf32>
    %cst_256 = arith.constant 3.200000e+01 : f32
    %608 = vector.broadcast %cst_256 : f32 to vector<8x1xf32>
    %609 = arith.divf %607, %608 : vector<8x1xf32>
    %610 = vector.broadcast %602 : vector<8x1xf32> to vector<8x32xf32>
    %611 = arith.subf %594, %610 : vector<8x32xf32>
    %cst_257 = arith.constant 9.99999974E-6 : f32
    %612 = vector.broadcast %cst_257 : f32 to vector<8x1xf32>
    %613 = arith.addf %609, %612 : vector<8x1xf32>
    %614 = math.rsqrt %613 : vector<8x1xf32>
    %615 = vector.broadcast %614 : vector<8x1xf32> to vector<8x32xf32>
    %616 = arith.mulf %611, %615 : vector<8x32xf32>
    %617 = vector.broadcast %596 : vector<1x32xf32> to vector<8x32xf32>
    %618 = arith.mulf %616, %617 : vector<8x32xf32>
    %619 = vector.broadcast %598 : vector<1x32xf32> to vector<8x32xf32>
    %620 = arith.addf %618, %619 : vector<8x32xf32>
    %c1_258 = arith.constant 1 : index
    %c0_259 = arith.constant 0 : index
    %c0_260 = arith.constant 0 : index
    %621 = vector.load %arg16[%c1_258, %c0_259, %c0_260] : memref<2x32x128xbf16, #tpu.memory_space<vmem>>, vector<1x32x128xbf16>
    %622 = vector.shape_cast %621 : vector<1x32x128xbf16> to vector<32x128xbf16>
    %623 = arith.truncf %620 : vector<8x32xf32> to vector<8x32xbf16>
    %cst_261 = arith.constant dense<0.000000e+00> : vector<8x128xf32>
    %624 = tpu.matmul %623, %622, %cst_261 {dimension_numbers = #tpu.dot_dimension_numbers<[1], [0], [0], [1], [0, 0, 1, 1], [], []>} : vector<8x32xbf16>, vector<32x128xbf16>, vector<8x128xf32> -> vector<8x128xf32>
    %c1_262 = arith.constant 1 : index
    %c0_263 = arith.constant 0 : index
    %c0_264 = arith.constant 0 : index
    %625 = vector.load %arg17[%c1_262, %c0_263, %c0_264] : memref<2x1x128xf32, #tpu.memory_space<vmem>>, vector<1x1x128xf32>
    %626 = vector.shape_cast %625 : vector<1x1x128xf32> to vector<1x128xf32>
    %627 = vector.broadcast %626 : vector<1x128xf32> to vector<8x128xf32>
    %628 = arith.addf %624, %627 : vector<8x128xf32>
    %629 = vector.extract_strided_slice %628 {offsets = [0, 0], sizes = [8, 64], strides = [1, 1]} : vector<8x128xf32> to vector<8x64xf32>
    %cst_265 = arith.constant 2.500000e-01 : f32
    %630 = vector.broadcast %cst_265 : f32 to vector<8x64xf32>
    %631 = arith.mulf %629, %630 : vector<8x64xf32>
    %632 = vector.extract_strided_slice %628 {offsets = [0, 64], sizes = [8, 32], strides = [1, 1]} : vector<8x128xf32> to vector<8x32xf32>
    %633 = vector.extract_strided_slice %628 {offsets = [0, 96], sizes = [8, 32], strides = [1, 1]} : vector<8x128xf32> to vector<8x32xf32>
    %c1_266 = arith.constant 1 : index
    %c0_267 = arith.constant 0 : index
    %c0_268 = arith.constant 0 : index
    %634 = vector.load %arg18[%c1_266, %c0_267, %c0_268] : memref<2x64x32xbf16, #tpu.memory_space<vmem>>, vector<1x64x32xbf16>
    %635 = vector.shape_cast %634 : vector<1x64x32xbf16> to vector<64x32xbf16>
    %c1_269 = arith.constant 1 : index
    %c0_270 = arith.constant 0 : index
    %c0_271 = arith.constant 0 : index
    %636 = vector.load %arg19[%c1_269, %c0_270, %c0_271] : memref<2x1x32xf32, #tpu.memory_space<vmem>>, vector<1x1x32xf32>
    %637 = vector.shape_cast %636 : vector<1x1x32xf32> to vector<1x32xf32>
    %638 = arith.truncf %631 : vector<8x64xf32> to vector<8x64xbf16>
    %639 = arith.truncf %632 : vector<8x32xf32> to vector<8x32xbf16>
    %640 = arith.truncf %633 : vector<8x32xf32> to vector<8x32xbf16>
    %641 = vector.extract_strided_slice %638 {offsets = [0, 0], sizes = [8, 16], strides = [1, 1]} : vector<8x64xbf16> to vector<8x16xbf16>
    %642 = vector.extract_strided_slice %639 {offsets = [0, 0], sizes = [8, 16], strides = [1, 1]} : vector<8x32xbf16> to vector<8x16xbf16>
    %643 = vector.extract_strided_slice %640 {offsets = [0, 0], sizes = [8, 16], strides = [1, 1]} : vector<8x32xbf16> to vector<8x16xbf16>
    %cst_272 = arith.constant dense<0.000000e+00> : vector<8x8xf32>
    %644 = tpu.matmul %641, %642, %cst_272 {dimension_numbers = #tpu.dot_dimension_numbers<[1], [1], [0], [0], [0, 0, 1, 0], [], []>} : vector<8x16xbf16>, vector<8x16xbf16>, vector<8x8xf32> -> vector<8x8xf32>
    %cst_273 = arith.constant -1.000000e+30 : f32
    %645 = vector.broadcast %cst_273 : f32 to vector<8x8xf32>
    %646 = arith.select %2, %644, %645 : vector<8x8xi1>, vector<8x8xf32>
    %cst_274 = arith.constant dense<0xFF800000> : vector<8xf32>
    %647 = vector.multi_reduction <maximumf>, %646, %cst_274 [1] : vector<8x8xf32> to vector<8xf32>
    %648 = vector.shape_cast %647 : vector<8xf32> to vector<8x1xf32>
    %649 = vector.broadcast %648 : vector<8x1xf32> to vector<8x8xf32>
    %650 = arith.subf %646, %649 : vector<8x8xf32>
    %651 = math.exp %650 : vector<8x8xf32>
    %cst_275 = arith.constant dense<0.000000e+00> : vector<8xf32>
    %652 = vector.multi_reduction <add>, %651, %cst_275 [1] : vector<8x8xf32> to vector<8xf32>
    %653 = vector.shape_cast %652 : vector<8xf32> to vector<8x1xf32>
    %654 = tpu.reciprocal %653 {approx = true} : vector<8x1xf32> -> vector<8x1xf32>
    %655 = vector.broadcast %654 : vector<8x1xf32> to vector<8x8xf32>
    %656 = arith.mulf %651, %655 : vector<8x8xf32>
    %657 = arith.truncf %656 : vector<8x8xf32> to vector<8x8xbf16>
    %cst_276 = arith.constant dense<0.000000e+00> : vector<8x16xf32>
    %658 = tpu.matmul %657, %643, %cst_276 {dimension_numbers = #tpu.dot_dimension_numbers<[1], [0], [0], [1], [0, 0, 1, 1], [], []>} : vector<8x8xbf16>, vector<8x16xbf16>, vector<8x16xf32> -> vector<8x16xf32>
    %659 = vector.extract_strided_slice %638 {offsets = [0, 16], sizes = [8, 16], strides = [1, 1]} : vector<8x64xbf16> to vector<8x16xbf16>
    %660 = vector.extract_strided_slice %639 {offsets = [0, 0], sizes = [8, 16], strides = [1, 1]} : vector<8x32xbf16> to vector<8x16xbf16>
    %661 = vector.extract_strided_slice %640 {offsets = [0, 0], sizes = [8, 16], strides = [1, 1]} : vector<8x32xbf16> to vector<8x16xbf16>
    %cst_277 = arith.constant dense<0.000000e+00> : vector<8x8xf32>
    %662 = tpu.matmul %659, %660, %cst_277 {dimension_numbers = #tpu.dot_dimension_numbers<[1], [1], [0], [0], [0, 0, 1, 0], [], []>} : vector<8x16xbf16>, vector<8x16xbf16>, vector<8x8xf32> -> vector<8x8xf32>
    %cst_278 = arith.constant -1.000000e+30 : f32
    %663 = vector.broadcast %cst_278 : f32 to vector<8x8xf32>
    %664 = arith.select %2, %662, %663 : vector<8x8xi1>, vector<8x8xf32>
    %cst_279 = arith.constant dense<0xFF800000> : vector<8xf32>
    %665 = vector.multi_reduction <maximumf>, %664, %cst_279 [1] : vector<8x8xf32> to vector<8xf32>
    %666 = vector.shape_cast %665 : vector<8xf32> to vector<8x1xf32>
    %667 = vector.broadcast %666 : vector<8x1xf32> to vector<8x8xf32>
    %668 = arith.subf %664, %667 : vector<8x8xf32>
    %669 = math.exp %668 : vector<8x8xf32>
    %cst_280 = arith.constant dense<0.000000e+00> : vector<8xf32>
    %670 = vector.multi_reduction <add>, %669, %cst_280 [1] : vector<8x8xf32> to vector<8xf32>
    %671 = vector.shape_cast %670 : vector<8xf32> to vector<8x1xf32>
    %672 = tpu.reciprocal %671 {approx = true} : vector<8x1xf32> -> vector<8x1xf32>
    %673 = vector.broadcast %672 : vector<8x1xf32> to vector<8x8xf32>
    %674 = arith.mulf %669, %673 : vector<8x8xf32>
    %675 = arith.truncf %674 : vector<8x8xf32> to vector<8x8xbf16>
    %cst_281 = arith.constant dense<0.000000e+00> : vector<8x16xf32>
    %676 = tpu.matmul %675, %661, %cst_281 {dimension_numbers = #tpu.dot_dimension_numbers<[1], [0], [0], [1], [0, 0, 1, 1], [], []>} : vector<8x8xbf16>, vector<8x16xbf16>, vector<8x16xf32> -> vector<8x16xf32>
    %677 = vector.extract_strided_slice %638 {offsets = [0, 32], sizes = [8, 16], strides = [1, 1]} : vector<8x64xbf16> to vector<8x16xbf16>
    %678 = vector.extract_strided_slice %639 {offsets = [0, 16], sizes = [8, 16], strides = [1, 1]} : vector<8x32xbf16> to vector<8x16xbf16>
    %679 = vector.extract_strided_slice %640 {offsets = [0, 16], sizes = [8, 16], strides = [1, 1]} : vector<8x32xbf16> to vector<8x16xbf16>
    %cst_282 = arith.constant dense<0.000000e+00> : vector<8x8xf32>
    %680 = tpu.matmul %677, %678, %cst_282 {dimension_numbers = #tpu.dot_dimension_numbers<[1], [1], [0], [0], [0, 0, 1, 0], [], []>} : vector<8x16xbf16>, vector<8x16xbf16>, vector<8x8xf32> -> vector<8x8xf32>
    %cst_283 = arith.constant -1.000000e+30 : f32
    %681 = vector.broadcast %cst_283 : f32 to vector<8x8xf32>
    %682 = arith.select %2, %680, %681 : vector<8x8xi1>, vector<8x8xf32>
    %cst_284 = arith.constant dense<0xFF800000> : vector<8xf32>
    %683 = vector.multi_reduction <maximumf>, %682, %cst_284 [1] : vector<8x8xf32> to vector<8xf32>
    %684 = vector.shape_cast %683 : vector<8xf32> to vector<8x1xf32>
    %685 = vector.broadcast %684 : vector<8x1xf32> to vector<8x8xf32>
    %686 = arith.subf %682, %685 : vector<8x8xf32>
    %687 = math.exp %686 : vector<8x8xf32>
    %cst_285 = arith.constant dense<0.000000e+00> : vector<8xf32>
    %688 = vector.multi_reduction <add>, %687, %cst_285 [1] : vector<8x8xf32> to vector<8xf32>
    %689 = vector.shape_cast %688 : vector<8xf32> to vector<8x1xf32>
    %690 = tpu.reciprocal %689 {approx = true} : vector<8x1xf32> -> vector<8x1xf32>
    %691 = vector.broadcast %690 : vector<8x1xf32> to vector<8x8xf32>
    %692 = arith.mulf %687, %691 : vector<8x8xf32>
    %693 = arith.truncf %692 : vector<8x8xf32> to vector<8x8xbf16>
    %cst_286 = arith.constant dense<0.000000e+00> : vector<8x16xf32>
    %694 = tpu.matmul %693, %679, %cst_286 {dimension_numbers = #tpu.dot_dimension_numbers<[1], [0], [0], [1], [0, 0, 1, 1], [], []>} : vector<8x8xbf16>, vector<8x16xbf16>, vector<8x16xf32> -> vector<8x16xf32>
    %695 = vector.extract_strided_slice %638 {offsets = [0, 48], sizes = [8, 16], strides = [1, 1]} : vector<8x64xbf16> to vector<8x16xbf16>
    %696 = vector.extract_strided_slice %639 {offsets = [0, 16], sizes = [8, 16], strides = [1, 1]} : vector<8x32xbf16> to vector<8x16xbf16>
    %697 = vector.extract_strided_slice %640 {offsets = [0, 16], sizes = [8, 16], strides = [1, 1]} : vector<8x32xbf16> to vector<8x16xbf16>
    %cst_287 = arith.constant dense<0.000000e+00> : vector<8x8xf32>
    %698 = tpu.matmul %695, %696, %cst_287 {dimension_numbers = #tpu.dot_dimension_numbers<[1], [1], [0], [0], [0, 0, 1, 0], [], []>} : vector<8x16xbf16>, vector<8x16xbf16>, vector<8x8xf32> -> vector<8x8xf32>
    %cst_288 = arith.constant -1.000000e+30 : f32
    %699 = vector.broadcast %cst_288 : f32 to vector<8x8xf32>
    %700 = arith.select %2, %698, %699 : vector<8x8xi1>, vector<8x8xf32>
    %cst_289 = arith.constant dense<0xFF800000> : vector<8xf32>
    %701 = vector.multi_reduction <maximumf>, %700, %cst_289 [1] : vector<8x8xf32> to vector<8xf32>
    %702 = vector.shape_cast %701 : vector<8xf32> to vector<8x1xf32>
    %703 = vector.broadcast %702 : vector<8x1xf32> to vector<8x8xf32>
    %704 = arith.subf %700, %703 : vector<8x8xf32>
    %705 = math.exp %704 : vector<8x8xf32>
    %cst_290 = arith.constant dense<0.000000e+00> : vector<8xf32>
    %706 = vector.multi_reduction <add>, %705, %cst_290 [1] : vector<8x8xf32> to vector<8xf32>
    %707 = vector.shape_cast %706 : vector<8xf32> to vector<8x1xf32>
    %708 = tpu.reciprocal %707 {approx = true} : vector<8x1xf32> -> vector<8x1xf32>
    %709 = vector.broadcast %708 : vector<8x1xf32> to vector<8x8xf32>
    %710 = arith.mulf %705, %709 : vector<8x8xf32>
    %711 = arith.truncf %710 : vector<8x8xf32> to vector<8x8xbf16>
    %cst_291 = arith.constant dense<0.000000e+00> : vector<8x16xf32>
    %712 = tpu.matmul %711, %697, %cst_291 {dimension_numbers = #tpu.dot_dimension_numbers<[1], [0], [0], [1], [0, 0, 1, 1], [], []>} : vector<8x8xbf16>, vector<8x16xbf16>, vector<8x16xf32> -> vector<8x16xf32>
    %713 = tpu.concatenate %658, %676, %694, %712 in 1 : vector<8x16xf32>, vector<8x16xf32>, vector<8x16xf32>, vector<8x16xf32> -> vector<8x64xf32>
    %714 = arith.truncf %713 : vector<8x64xf32> to vector<8x64xbf16>
    %cst_292 = arith.constant dense<0.000000e+00> : vector<8x32xf32>
    %715 = tpu.matmul %714, %635, %cst_292 {dimension_numbers = #tpu.dot_dimension_numbers<[1], [0], [0], [1], [0, 0, 1, 1], [], []>} : vector<8x64xbf16>, vector<64x32xbf16>, vector<8x32xf32> -> vector<8x32xf32>
    %716 = vector.broadcast %637 : vector<1x32xf32> to vector<8x32xf32>
    %717 = arith.addf %715, %716 : vector<8x32xf32>
    %718 = arith.addf %717, %620 : vector<8x32xf32>
    %c1_293 = arith.constant 1 : index
    %c0_294 = arith.constant 0 : index
    %c0_295 = arith.constant 0 : index
    %719 = vector.load %arg20[%c1_293, %c0_294, %c0_295] : memref<2x1x32xf32, #tpu.memory_space<vmem>>, vector<1x1x32xf32>
    %720 = vector.shape_cast %719 : vector<1x1x32xf32> to vector<1x32xf32>
    %721 = arith.mulf %718, %718 : vector<8x32xf32>
    %cst_296 = arith.constant dense<0.000000e+00> : vector<8xf32>
    %722 = vector.multi_reduction <add>, %721, %cst_296 [1] : vector<8x32xf32> to vector<8xf32>
    %723 = vector.shape_cast %722 : vector<8xf32> to vector<8x1xf32>
    %cst_297 = arith.constant 3.200000e+01 : f32
    %724 = vector.broadcast %cst_297 : f32 to vector<8x1xf32>
    %725 = arith.divf %723, %724 : vector<8x1xf32>
    %cst_298 = arith.constant 9.99999997E-7 : f32
    %726 = vector.broadcast %cst_298 : f32 to vector<8x1xf32>
    %727 = arith.addf %725, %726 : vector<8x1xf32>
    %728 = math.rsqrt %727 : vector<8x1xf32>
    %729 = vector.broadcast %728 : vector<8x1xf32> to vector<8x32xf32>
    %730 = arith.mulf %718, %729 : vector<8x32xf32>
    %731 = vector.broadcast %720 : vector<1x32xf32> to vector<8x32xf32>
    %732 = arith.mulf %730, %731 : vector<8x32xf32>
    %c1_299 = arith.constant 1 : index
    %c0_300 = arith.constant 0 : index
    %c0_301 = arith.constant 0 : index
    %733 = vector.load %arg21[%c1_299, %c0_300, %c0_301] : memref<2x32x64xbf16, #tpu.memory_space<vmem>>, vector<1x32x64xbf16>
    %734 = vector.shape_cast %733 : vector<1x32x64xbf16> to vector<32x64xbf16>
    %735 = arith.truncf %732 : vector<8x32xf32> to vector<8x32xbf16>
    %cst_302 = arith.constant dense<0.000000e+00> : vector<8x64xf32>
    %736 = tpu.matmul %735, %734, %cst_302 {dimension_numbers = #tpu.dot_dimension_numbers<[1], [0], [0], [1], [0, 0, 1, 1], [], []>} : vector<8x32xbf16>, vector<32x64xbf16>, vector<8x64xf32> -> vector<8x64xf32>
    %c1_303 = arith.constant 1 : index
    %c0_304 = arith.constant 0 : index
    %c0_305 = arith.constant 0 : index
    %737 = vector.load %arg22[%c1_303, %c0_304, %c0_305] : memref<2x1x64xf32, #tpu.memory_space<vmem>>, vector<1x1x64xf32>
    %738 = vector.shape_cast %737 : vector<1x1x64xf32> to vector<1x64xf32>
    %739 = vector.broadcast %738 : vector<1x64xf32> to vector<8x64xf32>
    %740 = arith.addf %736, %739 : vector<8x64xf32>
    %cst_306 = arith.constant 2.500000e-01 : f32
    %741 = vector.broadcast %cst_306 : f32 to vector<8x64xf32>
    %742 = arith.mulf %740, %741 : vector<8x64xf32>
    %c1_307 = arith.constant 1 : index
    %c0_308 = arith.constant 0 : index
    %c0_309 = arith.constant 0 : index
    %743 = vector.load %arg23[%c1_307, %c0_308, %c0_309] : memref<2x32x64xbf16, #tpu.memory_space<vmem>>, vector<1x32x64xbf16>
    %744 = vector.shape_cast %743 : vector<1x32x64xbf16> to vector<32x64xbf16>
    %745 = arith.truncf %334 : vector<8x32xf32> to vector<8x32xbf16>
    %cst_310 = arith.constant dense<0.000000e+00> : vector<8x64xf32>
    %746 = tpu.matmul %745, %744, %cst_310 {dimension_numbers = #tpu.dot_dimension_numbers<[1], [0], [0], [1], [0, 0, 1, 1], [], []>} : vector<8x32xbf16>, vector<32x64xbf16>, vector<8x64xf32> -> vector<8x64xf32>
    %c1_311 = arith.constant 1 : index
    %c0_312 = arith.constant 0 : index
    %c0_313 = arith.constant 0 : index
    %747 = vector.load %arg24[%c1_311, %c0_312, %c0_313] : memref<2x1x64xf32, #tpu.memory_space<vmem>>, vector<1x1x64xf32>
    %748 = vector.shape_cast %747 : vector<1x1x64xf32> to vector<1x64xf32>
    %749 = vector.broadcast %748 : vector<1x64xf32> to vector<8x64xf32>
    %750 = arith.addf %746, %749 : vector<8x64xf32>
    %751 = vector.extract_strided_slice %750 {offsets = [0, 0], sizes = [8, 32], strides = [1, 1]} : vector<8x64xf32> to vector<8x32xf32>
    %752 = vector.extract_strided_slice %750 {offsets = [0, 32], sizes = [8, 32], strides = [1, 1]} : vector<8x64xf32> to vector<8x32xf32>
    %c1_314 = arith.constant 1 : index
    %c0_315 = arith.constant 0 : index
    %c0_316 = arith.constant 0 : index
    %753 = vector.load %arg25[%c1_314, %c0_315, %c0_316] : memref<2x64x32xbf16, #tpu.memory_space<vmem>>, vector<1x64x32xbf16>
    %754 = vector.shape_cast %753 : vector<1x64x32xbf16> to vector<64x32xbf16>
    %c1_317 = arith.constant 1 : index
    %c0_318 = arith.constant 0 : index
    %c0_319 = arith.constant 0 : index
    %755 = vector.load %arg26[%c1_317, %c0_318, %c0_319] : memref<2x1x32xf32, #tpu.memory_space<vmem>>, vector<1x1x32xf32>
    %756 = vector.shape_cast %755 : vector<1x1x32xf32> to vector<1x32xf32>
    %757 = arith.truncf %742 : vector<8x64xf32> to vector<8x64xbf16>
    %758 = arith.truncf %751 : vector<8x32xf32> to vector<8x32xbf16>
    %759 = arith.truncf %752 : vector<8x32xf32> to vector<8x32xbf16>
    %760 = vector.extract_strided_slice %757 {offsets = [0, 0], sizes = [8, 16], strides = [1, 1]} : vector<8x64xbf16> to vector<8x16xbf16>
    %761 = vector.extract_strided_slice %758 {offsets = [0, 0], sizes = [8, 16], strides = [1, 1]} : vector<8x32xbf16> to vector<8x16xbf16>
    %762 = vector.extract_strided_slice %759 {offsets = [0, 0], sizes = [8, 16], strides = [1, 1]} : vector<8x32xbf16> to vector<8x16xbf16>
    %cst_320 = arith.constant dense<0.000000e+00> : vector<8x8xf32>
    %763 = tpu.matmul %760, %761, %cst_320 {dimension_numbers = #tpu.dot_dimension_numbers<[1], [1], [0], [0], [0, 0, 1, 0], [], []>} : vector<8x16xbf16>, vector<8x16xbf16>, vector<8x8xf32> -> vector<8x8xf32>
    %cst_321 = arith.constant dense<0xFF800000> : vector<8xf32>
    %764 = vector.multi_reduction <maximumf>, %763, %cst_321 [1] : vector<8x8xf32> to vector<8xf32>
    %765 = vector.shape_cast %764 : vector<8xf32> to vector<8x1xf32>
    %766 = vector.broadcast %765 : vector<8x1xf32> to vector<8x8xf32>
    %767 = arith.subf %763, %766 : vector<8x8xf32>
    %768 = math.exp %767 : vector<8x8xf32>
    %cst_322 = arith.constant dense<0.000000e+00> : vector<8xf32>
    %769 = vector.multi_reduction <add>, %768, %cst_322 [1] : vector<8x8xf32> to vector<8xf32>
    %770 = vector.shape_cast %769 : vector<8xf32> to vector<8x1xf32>
    %771 = tpu.reciprocal %770 {approx = true} : vector<8x1xf32> -> vector<8x1xf32>
    %772 = vector.broadcast %771 : vector<8x1xf32> to vector<8x8xf32>
    %773 = arith.mulf %768, %772 : vector<8x8xf32>
    %774 = arith.truncf %773 : vector<8x8xf32> to vector<8x8xbf16>
    %cst_323 = arith.constant dense<0.000000e+00> : vector<8x16xf32>
    %775 = tpu.matmul %774, %762, %cst_323 {dimension_numbers = #tpu.dot_dimension_numbers<[1], [0], [0], [1], [0, 0, 1, 1], [], []>} : vector<8x8xbf16>, vector<8x16xbf16>, vector<8x16xf32> -> vector<8x16xf32>
    %776 = vector.extract_strided_slice %757 {offsets = [0, 16], sizes = [8, 16], strides = [1, 1]} : vector<8x64xbf16> to vector<8x16xbf16>
    %777 = vector.extract_strided_slice %758 {offsets = [0, 0], sizes = [8, 16], strides = [1, 1]} : vector<8x32xbf16> to vector<8x16xbf16>
    %778 = vector.extract_strided_slice %759 {offsets = [0, 0], sizes = [8, 16], strides = [1, 1]} : vector<8x32xbf16> to vector<8x16xbf16>
    %cst_324 = arith.constant dense<0.000000e+00> : vector<8x8xf32>
    %779 = tpu.matmul %776, %777, %cst_324 {dimension_numbers = #tpu.dot_dimension_numbers<[1], [1], [0], [0], [0, 0, 1, 0], [], []>} : vector<8x16xbf16>, vector<8x16xbf16>, vector<8x8xf32> -> vector<8x8xf32>
    %cst_325 = arith.constant dense<0xFF800000> : vector<8xf32>
    %780 = vector.multi_reduction <maximumf>, %779, %cst_325 [1] : vector<8x8xf32> to vector<8xf32>
    %781 = vector.shape_cast %780 : vector<8xf32> to vector<8x1xf32>
    %782 = vector.broadcast %781 : vector<8x1xf32> to vector<8x8xf32>
    %783 = arith.subf %779, %782 : vector<8x8xf32>
    %784 = math.exp %783 : vector<8x8xf32>
    %cst_326 = arith.constant dense<0.000000e+00> : vector<8xf32>
    %785 = vector.multi_reduction <add>, %784, %cst_326 [1] : vector<8x8xf32> to vector<8xf32>
    %786 = vector.shape_cast %785 : vector<8xf32> to vector<8x1xf32>
    %787 = tpu.reciprocal %786 {approx = true} : vector<8x1xf32> -> vector<8x1xf32>
    %788 = vector.broadcast %787 : vector<8x1xf32> to vector<8x8xf32>
    %789 = arith.mulf %784, %788 : vector<8x8xf32>
    %790 = arith.truncf %789 : vector<8x8xf32> to vector<8x8xbf16>
    %cst_327 = arith.constant dense<0.000000e+00> : vector<8x16xf32>
    %791 = tpu.matmul %790, %778, %cst_327 {dimension_numbers = #tpu.dot_dimension_numbers<[1], [0], [0], [1], [0, 0, 1, 1], [], []>} : vector<8x8xbf16>, vector<8x16xbf16>, vector<8x16xf32> -> vector<8x16xf32>
    %792 = vector.extract_strided_slice %757 {offsets = [0, 32], sizes = [8, 16], strides = [1, 1]} : vector<8x64xbf16> to vector<8x16xbf16>
    %793 = vector.extract_strided_slice %758 {offsets = [0, 16], sizes = [8, 16], strides = [1, 1]} : vector<8x32xbf16> to vector<8x16xbf16>
    %794 = vector.extract_strided_slice %759 {offsets = [0, 16], sizes = [8, 16], strides = [1, 1]} : vector<8x32xbf16> to vector<8x16xbf16>
    %cst_328 = arith.constant dense<0.000000e+00> : vector<8x8xf32>
    %795 = tpu.matmul %792, %793, %cst_328 {dimension_numbers = #tpu.dot_dimension_numbers<[1], [1], [0], [0], [0, 0, 1, 0], [], []>} : vector<8x16xbf16>, vector<8x16xbf16>, vector<8x8xf32> -> vector<8x8xf32>
    %cst_329 = arith.constant dense<0xFF800000> : vector<8xf32>
    %796 = vector.multi_reduction <maximumf>, %795, %cst_329 [1] : vector<8x8xf32> to vector<8xf32>
    %797 = vector.shape_cast %796 : vector<8xf32> to vector<8x1xf32>
    %798 = vector.broadcast %797 : vector<8x1xf32> to vector<8x8xf32>
    %799 = arith.subf %795, %798 : vector<8x8xf32>
    %800 = math.exp %799 : vector<8x8xf32>
    %cst_330 = arith.constant dense<0.000000e+00> : vector<8xf32>
    %801 = vector.multi_reduction <add>, %800, %cst_330 [1] : vector<8x8xf32> to vector<8xf32>
    %802 = vector.shape_cast %801 : vector<8xf32> to vector<8x1xf32>
    %803 = tpu.reciprocal %802 {approx = true} : vector<8x1xf32> -> vector<8x1xf32>
    %804 = vector.broadcast %803 : vector<8x1xf32> to vector<8x8xf32>
    %805 = arith.mulf %800, %804 : vector<8x8xf32>
    %806 = arith.truncf %805 : vector<8x8xf32> to vector<8x8xbf16>
    %cst_331 = arith.constant dense<0.000000e+00> : vector<8x16xf32>
    %807 = tpu.matmul %806, %794, %cst_331 {dimension_numbers = #tpu.dot_dimension_numbers<[1], [0], [0], [1], [0, 0, 1, 1], [], []>} : vector<8x8xbf16>, vector<8x16xbf16>, vector<8x16xf32> -> vector<8x16xf32>
    %808 = vector.extract_strided_slice %757 {offsets = [0, 48], sizes = [8, 16], strides = [1, 1]} : vector<8x64xbf16> to vector<8x16xbf16>
    %809 = vector.extract_strided_slice %758 {offsets = [0, 16], sizes = [8, 16], strides = [1, 1]} : vector<8x32xbf16> to vector<8x16xbf16>
    %810 = vector.extract_strided_slice %759 {offsets = [0, 16], sizes = [8, 16], strides = [1, 1]} : vector<8x32xbf16> to vector<8x16xbf16>
    %cst_332 = arith.constant dense<0.000000e+00> : vector<8x8xf32>
    %811 = tpu.matmul %808, %809, %cst_332 {dimension_numbers = #tpu.dot_dimension_numbers<[1], [1], [0], [0], [0, 0, 1, 0], [], []>} : vector<8x16xbf16>, vector<8x16xbf16>, vector<8x8xf32> -> vector<8x8xf32>
    %cst_333 = arith.constant dense<0xFF800000> : vector<8xf32>
    %812 = vector.multi_reduction <maximumf>, %811, %cst_333 [1] : vector<8x8xf32> to vector<8xf32>
    %813 = vector.shape_cast %812 : vector<8xf32> to vector<8x1xf32>
    %814 = vector.broadcast %813 : vector<8x1xf32> to vector<8x8xf32>
    %815 = arith.subf %811, %814 : vector<8x8xf32>
    %816 = math.exp %815 : vector<8x8xf32>
    %cst_334 = arith.constant dense<0.000000e+00> : vector<8xf32>
    %817 = vector.multi_reduction <add>, %816, %cst_334 [1] : vector<8x8xf32> to vector<8xf32>
    %818 = vector.shape_cast %817 : vector<8xf32> to vector<8x1xf32>
    %819 = tpu.reciprocal %818 {approx = true} : vector<8x1xf32> -> vector<8x1xf32>
    %820 = vector.broadcast %819 : vector<8x1xf32> to vector<8x8xf32>
    %821 = arith.mulf %816, %820 : vector<8x8xf32>
    %822 = arith.truncf %821 : vector<8x8xf32> to vector<8x8xbf16>
    %cst_335 = arith.constant dense<0.000000e+00> : vector<8x16xf32>
    %823 = tpu.matmul %822, %810, %cst_335 {dimension_numbers = #tpu.dot_dimension_numbers<[1], [0], [0], [1], [0, 0, 1, 1], [], []>} : vector<8x8xbf16>, vector<8x16xbf16>, vector<8x16xf32> -> vector<8x16xf32>
    %824 = tpu.concatenate %775, %791, %807, %823 in 1 : vector<8x16xf32>, vector<8x16xf32>, vector<8x16xf32>, vector<8x16xf32> -> vector<8x64xf32>
    %825 = arith.truncf %824 : vector<8x64xf32> to vector<8x64xbf16>
    %cst_336 = arith.constant dense<0.000000e+00> : vector<8x32xf32>
    %826 = tpu.matmul %825, %754, %cst_336 {dimension_numbers = #tpu.dot_dimension_numbers<[1], [0], [0], [1], [0, 0, 1, 1], [], []>} : vector<8x64xbf16>, vector<64x32xbf16>, vector<8x32xf32> -> vector<8x32xf32>
    %827 = vector.broadcast %756 : vector<1x32xf32> to vector<8x32xf32>
    %828 = arith.addf %826, %827 : vector<8x32xf32>
    %829 = arith.addf %732, %828 : vector<8x32xf32>
    %c1_337 = arith.constant 1 : index
    %c0_338 = arith.constant 0 : index
    %c0_339 = arith.constant 0 : index
    %830 = vector.load %arg27[%c1_337, %c0_338, %c0_339] : memref<2x1x32xf32, #tpu.memory_space<vmem>>, vector<1x1x32xf32>
    %831 = vector.shape_cast %830 : vector<1x1x32xf32> to vector<1x32xf32>
    %c1_340 = arith.constant 1 : index
    %c0_341 = arith.constant 0 : index
    %c0_342 = arith.constant 0 : index
    %832 = vector.load %arg28[%c1_340, %c0_341, %c0_342] : memref<2x1x32xf32, #tpu.memory_space<vmem>>, vector<1x1x32xf32>
    %833 = vector.shape_cast %832 : vector<1x1x32xf32> to vector<1x32xf32>
    %cst_343 = arith.constant dense<0.000000e+00> : vector<8xf32>
    %834 = vector.multi_reduction <add>, %829, %cst_343 [1] : vector<8x32xf32> to vector<8xf32>
    %835 = vector.shape_cast %834 : vector<8xf32> to vector<8x1xf32>
    %cst_344 = arith.constant 3.200000e+01 : f32
    %836 = vector.broadcast %cst_344 : f32 to vector<8x1xf32>
    %837 = arith.divf %835, %836 : vector<8x1xf32>
    %838 = vector.broadcast %837 : vector<8x1xf32> to vector<8x32xf32>
    %839 = arith.subf %829, %838 : vector<8x32xf32>
    %840 = arith.mulf %839, %839 : vector<8x32xf32>
    %cst_345 = arith.constant dense<0.000000e+00> : vector<8xf32>
    %841 = vector.multi_reduction <add>, %840, %cst_345 [1] : vector<8x32xf32> to vector<8xf32>
    %842 = vector.shape_cast %841 : vector<8xf32> to vector<8x1xf32>
    %cst_346 = arith.constant 3.200000e+01 : f32
    %843 = vector.broadcast %cst_346 : f32 to vector<8x1xf32>
    %844 = arith.divf %842, %843 : vector<8x1xf32>
    %845 = vector.broadcast %837 : vector<8x1xf32> to vector<8x32xf32>
    %846 = arith.subf %829, %845 : vector<8x32xf32>
    %cst_347 = arith.constant 9.99999974E-6 : f32
    %847 = vector.broadcast %cst_347 : f32 to vector<8x1xf32>
    %848 = arith.addf %844, %847 : vector<8x1xf32>
    %849 = math.rsqrt %848 : vector<8x1xf32>
    %850 = vector.broadcast %849 : vector<8x1xf32> to vector<8x32xf32>
    %851 = arith.mulf %846, %850 : vector<8x32xf32>
    %852 = vector.broadcast %831 : vector<1x32xf32> to vector<8x32xf32>
    %853 = arith.mulf %851, %852 : vector<8x32xf32>
    %854 = vector.broadcast %833 : vector<1x32xf32> to vector<8x32xf32>
    %855 = arith.addf %853, %854 : vector<8x32xf32>
    %c1_348 = arith.constant 1 : index
    %c0_349 = arith.constant 0 : index
    %c0_350 = arith.constant 0 : index
    %856 = vector.load %arg29[%c1_348, %c0_349, %c0_350] : memref<2x32x128xbf16, #tpu.memory_space<vmem>>, vector<1x32x128xbf16>
    %857 = vector.shape_cast %856 : vector<1x32x128xbf16> to vector<32x128xbf16>
    %858 = arith.truncf %855 : vector<8x32xf32> to vector<8x32xbf16>
    %cst_351 = arith.constant dense<0.000000e+00> : vector<8x128xf32>
    %859 = tpu.matmul %858, %857, %cst_351 {dimension_numbers = #tpu.dot_dimension_numbers<[1], [0], [0], [1], [0, 0, 1, 1], [], []>} : vector<8x32xbf16>, vector<32x128xbf16>, vector<8x128xf32> -> vector<8x128xf32>
    %c1_352 = arith.constant 1 : index
    %c0_353 = arith.constant 0 : index
    %c0_354 = arith.constant 0 : index
    %860 = vector.load %arg30[%c1_352, %c0_353, %c0_354] : memref<2x1x128xf32, #tpu.memory_space<vmem>>, vector<1x1x128xf32>
    %861 = vector.shape_cast %860 : vector<1x1x128xf32> to vector<1x128xf32>
    %862 = vector.broadcast %861 : vector<1x128xf32> to vector<8x128xf32>
    %863 = arith.addf %859, %862 : vector<8x128xf32>
    %c1_355 = arith.constant 1 : index
    %864 = memref.load %arg31[%c1_355] : memref<2xf32, #tpu.memory_space<smem>>
    %cst_356 = arith.constant 0.000000e+00 : f32
    %865 = vector.broadcast %cst_356 : f32 to vector<8x128xf32>
    %866 = arith.cmpf oge, %863, %865 : vector<8x128xf32>
    %867 = vector.broadcast %864 : f32 to vector<8x128xf32>
    %868 = arith.mulf %867, %863 : vector<8x128xf32>
    %869 = arith.select %866, %863, %868 : vector<8x128xi1>, vector<8x128xf32>
    %c1_357 = arith.constant 1 : index
    %c0_358 = arith.constant 0 : index
    %c0_359 = arith.constant 0 : index
    %870 = vector.load %arg32[%c1_357, %c0_358, %c0_359] : memref<2x128x32xbf16, #tpu.memory_space<vmem>>, vector<1x128x32xbf16>
    %871 = vector.shape_cast %870 : vector<1x128x32xbf16> to vector<128x32xbf16>
    %872 = arith.truncf %869 : vector<8x128xf32> to vector<8x128xbf16>
    %cst_360 = arith.constant dense<0.000000e+00> : vector<8x32xf32>
    %873 = tpu.matmul %872, %871, %cst_360 {dimension_numbers = #tpu.dot_dimension_numbers<[1], [0], [0], [1], [0, 0, 1, 1], [], []>} : vector<8x128xbf16>, vector<128x32xbf16>, vector<8x32xf32> -> vector<8x32xf32>
    %c1_361 = arith.constant 1 : index
    %c0_362 = arith.constant 0 : index
    %c0_363 = arith.constant 0 : index
    %874 = vector.load %arg33[%c1_361, %c0_362, %c0_363] : memref<2x1x32xf32, #tpu.memory_space<vmem>>, vector<1x1x32xf32>
    %875 = vector.shape_cast %874 : vector<1x1x32xf32> to vector<1x32xf32>
    %876 = vector.broadcast %875 : vector<1x32xf32> to vector<8x32xf32>
    %877 = arith.addf %873, %876 : vector<8x32xf32>
    %878 = arith.addf %855, %877 : vector<8x32xf32>
    %c1_364 = arith.constant 1 : index
    %c0_365 = arith.constant 0 : index
    %c0_366 = arith.constant 0 : index
    %879 = vector.load %arg34[%c1_364, %c0_365, %c0_366] : memref<2x1x32xf32, #tpu.memory_space<vmem>>, vector<1x1x32xf32>
    %880 = vector.shape_cast %879 : vector<1x1x32xf32> to vector<1x32xf32>
    %c1_367 = arith.constant 1 : index
    %c0_368 = arith.constant 0 : index
    %c0_369 = arith.constant 0 : index
    %881 = vector.load %arg35[%c1_367, %c0_368, %c0_369] : memref<2x1x32xf32, #tpu.memory_space<vmem>>, vector<1x1x32xf32>
    %882 = vector.shape_cast %881 : vector<1x1x32xf32> to vector<1x32xf32>
    %cst_370 = arith.constant dense<0.000000e+00> : vector<8xf32>
    %883 = vector.multi_reduction <add>, %878, %cst_370 [1] : vector<8x32xf32> to vector<8xf32>
    %884 = vector.shape_cast %883 : vector<8xf32> to vector<8x1xf32>
    %cst_371 = arith.constant 3.200000e+01 : f32
    %885 = vector.broadcast %cst_371 : f32 to vector<8x1xf32>
    %886 = arith.divf %884, %885 : vector<8x1xf32>
    %887 = vector.broadcast %886 : vector<8x1xf32> to vector<8x32xf32>
    %888 = arith.subf %878, %887 : vector<8x32xf32>
    %889 = arith.mulf %888, %888 : vector<8x32xf32>
    %cst_372 = arith.constant dense<0.000000e+00> : vector<8xf32>
    %890 = vector.multi_reduction <add>, %889, %cst_372 [1] : vector<8x32xf32> to vector<8xf32>
    %891 = vector.shape_cast %890 : vector<8xf32> to vector<8x1xf32>
    %cst_373 = arith.constant 3.200000e+01 : f32
    %892 = vector.broadcast %cst_373 : f32 to vector<8x1xf32>
    %893 = arith.divf %891, %892 : vector<8x1xf32>
    %894 = vector.broadcast %886 : vector<8x1xf32> to vector<8x32xf32>
    %895 = arith.subf %878, %894 : vector<8x32xf32>
    %cst_374 = arith.constant 9.99999974E-6 : f32
    %896 = vector.broadcast %cst_374 : f32 to vector<8x1xf32>
    %897 = arith.addf %893, %896 : vector<8x1xf32>
    %898 = math.rsqrt %897 : vector<8x1xf32>
    %899 = vector.broadcast %898 : vector<8x1xf32> to vector<8x32xf32>
    %900 = arith.mulf %895, %899 : vector<8x32xf32>
    %901 = vector.broadcast %880 : vector<1x32xf32> to vector<8x32xf32>
    %902 = arith.mulf %900, %901 : vector<8x32xf32>
    %903 = vector.broadcast %882 : vector<1x32xf32> to vector<8x32xf32>
    %904 = arith.addf %902, %903 : vector<8x32xf32>
    %c0_375 = arith.constant 0 : index
    %c0_376 = arith.constant 0 : index
    %c0_377 = arith.constant 0 : index
    %905 = vector.load %arg36[%c0_375, %c0_376, %c0_377] : memref<1x8x32xf32, #tpu.memory_space<vmem>>, vector<1x8x32xf32>
    %906 = vector.shape_cast %905 : vector<1x8x32xf32> to vector<8x32xf32>
    %907 = vector.shape_cast %904 : vector<8x32xf32> to vector<1x8x32xf32>
    tpu.vector_store %arg36[%c0_375, %c0_376, %c0_377], %907 {strides = array<i32>} : memref<1x8x32xf32, #tpu.memory_space<vmem>>, vector<1x8x32xf32>,
    return
  }
  func.func @transform_0(%arg0: i32) -> (i32, i32, i32) {
    %c0_i32 = arith.constant 0 : i32
    %c0_i32_0 = arith.constant 0 : i32
    %c0_i32_1 = arith.constant 0 : i32
    return %arg0, %c0_i32, %c0_i32_0 : i32, i32, i32
  }
  func.func @transform_1(%arg0: i32) -> (i32, i32, i32) {
    %c0_i32 = arith.constant 0 : i32
    %c0_i32_0 = arith.constant 0 : i32
    %c0_i32_1 = arith.constant 0 : i32
    return %arg0, %c0_i32, %c0_i32_0 : i32, i32, i32
  }
  func.func @transform_2(%arg0: i32) -> (i32, i32, i32) {
    %c0_i32 = arith.constant 0 : i32
    %c0_i32_0 = arith.constant 0 : i32
    %c0_i32_1 = arith.constant 0 : i32
    %c0_i32_2 = arith.constant 0 : i32
    return %c0_i32, %c0_i32_0, %c0_i32_1 : i32, i32, i32
  }
  func.func @transform_3(%arg0: i32) -> (i32, i32, i32) {
    %c0_i32 = arith.constant 0 : i32
    %c0_i32_0 = arith.constant 0 : i32
    %c0_i32_1 = arith.constant 0 : i32
    %c0_i32_2 = arith.constant 0 : i32
    return %c0_i32, %c0_i32_0, %c0_i32_1 : i32, i32, i32
  }
  func.func @transform_4(%arg0: i32) -> (i32, i32, i32) {
    %c0_i32 = arith.constant 0 : i32
    %c0_i32_0 = arith.constant 0 : i32
    %c0_i32_1 = arith.constant 0 : i32
    %c0_i32_2 = arith.constant 0 : i32
    return %c0_i32, %c0_i32_0, %c0_i32_1 : i32, i32, i32
  }
  func.func @transform_5(%arg0: i32) -> (i32, i32, i32) {
    %c0_i32 = arith.constant 0 : i32
    %c0_i32_0 = arith.constant 0 : i32
    %c0_i32_1 = arith.constant 0 : i32
    %c0_i32_2 = arith.constant 0 : i32
    return %c0_i32, %c0_i32_0, %c0_i32_1 : i32, i32, i32
  }
  func.func @transform_6(%arg0: i32) -> (i32, i32, i32) {
    %c0_i32 = arith.constant 0 : i32
    %c0_i32_0 = arith.constant 0 : i32
    %c0_i32_1 = arith.constant 0 : i32
    %c0_i32_2 = arith.constant 0 : i32
    return %c0_i32, %c0_i32_0, %c0_i32_1 : i32, i32, i32
  }
  func.func @transform_7(%arg0: i32) -> (i32, i32, i32) {
    %c0_i32 = arith.constant 0 : i32
    %c0_i32_0 = arith.constant 0 : i32
    %c0_i32_1 = arith.constant 0 : i32
    %c0_i32_2 = arith.constant 0 : i32
    return %c0_i32, %c0_i32_0, %c0_i32_1 : i32, i32, i32
  }
  func.func @transform_8(%arg0: i32) -> (i32, i32, i32) {
    %c0_i32 = arith.constant 0 : i32
    %c0_i32_0 = arith.constant 0 : i32
    %c0_i32_1 = arith.constant 0 : i32
    %c0_i32_2 = arith.constant 0 : i32
    return %c0_i32, %c0_i32_0, %c0_i32_1 : i32, i32, i32
  }
  func.func @transform_9(%arg0: i32) -> (i32, i32, i32) {
    %c0_i32 = arith.constant 0 : i32
    %c0_i32_0 = arith.constant 0 : i32
    %c0_i32_1 = arith.constant 0 : i32
    %c0_i32_2 = arith.constant 0 : i32
    return %c0_i32, %c0_i32_0, %c0_i32_1 : i32, i32, i32
  }
  func.func @transform_10(%arg0: i32) -> i32 {
    %c0_i32 = arith.constant 0 : i32
    %c0_i32_0 = arith.constant 0 : i32
    return %c0_i32 : i32
  }
  func.func @transform_11(%arg0: i32) -> (i32, i32, i32) {
    %c0_i32 = arith.constant 0 : i32
    %c0_i32_0 = arith.constant 0 : i32
    %c0_i32_1 = arith.constant 0 : i32
    %c0_i32_2 = arith.constant 0 : i32
    return %c0_i32, %c0_i32_0, %c0_i32_1 : i32, i32, i32
  }
  func.func @transform_12(%arg0: i32) -> (i32, i32, i32) {
    %c0_i32 = arith.constant 0 : i32
    %c0_i32_0 = arith.constant 0 : i32
    %c0_i32_1 = arith.constant 0 : i32
    %c0_i32_2 = arith.constant 0 : i32
    return %c0_i32, %c0_i32_0, %c0_i32_1 : i32, i32, i32
  }
  func.func @transform_13(%arg0: i32) -> (i32, i32, i32) {
    %c0_i32 = arith.constant 0 : i32
    %c0_i32_0 = arith.constant 0 : i32
    %c0_i32_1 = arith.constant 0 : i32
    %c0_i32_2 = arith.constant 0 : i32
    return %c0_i32, %c0_i32_0, %c0_i32_1 : i32, i32, i32
  }
  func.func @transform_14(%arg0: i32) -> (i32, i32, i32) {
    %c0_i32 = arith.constant 0 : i32
    %c0_i32_0 = arith.constant 0 : i32
    %c0_i32_1 = arith.constant 0 : i32
    %c0_i32_2 = arith.constant 0 : i32
    return %c0_i32, %c0_i32_0, %c0_i32_1 : i32, i32, i32
  }
  func.func @transform_15(%arg0: i32) -> (i32, i32, i32) {
    %c0_i32 = arith.constant 0 : i32
    %c0_i32_0 = arith.constant 0 : i32
    %c0_i32_1 = arith.constant 0 : i32
    %c0_i32_2 = arith.constant 0 : i32
    return %c0_i32, %c0_i32_0, %c0_i32_1 : i32, i32, i32
  }
  func.func @transform_16(%arg0: i32) -> (i32, i32, i32) {
    %c0_i32 = arith.constant 0 : i32
    %c0_i32_0 = arith.constant 0 : i32
    %c0_i32_1 = arith.constant 0 : i32
    %c0_i32_2 = arith.constant 0 : i32
    return %c0_i32, %c0_i32_0, %c0_i32_1 : i32, i32, i32
  }
  func.func @transform_17(%arg0: i32) -> (i32, i32, i32) {
    %c0_i32 = arith.constant 0 : i32
    %c0_i32_0 = arith.constant 0 : i32
    %c0_i32_1 = arith.constant 0 : i32
    %c0_i32_2 = arith.constant 0 : i32
    return %c0_i32, %c0_i32_0, %c0_i32_1 : i32, i32, i32
  }
  func.func @transform_18(%arg0: i32) -> (i32, i32, i32) {
    %c0_i32 = arith.constant 0 : i32
    %c0_i32_0 = arith.constant 0 : i32
    %c0_i32_1 = arith.constant 0 : i32
    %c0_i32_2 = arith.constant 0 : i32
    return %c0_i32, %c0_i32_0, %c0_i32_1 : i32, i32, i32
  }
  func.func @transform_19(%arg0: i32) -> (i32, i32, i32) {
    %c0_i32 = arith.constant 0 : i32
    %c0_i32_0 = arith.constant 0 : i32
    %c0_i32_1 = arith.constant 0 : i32
    %c0_i32_2 = arith.constant 0 : i32
    return %c0_i32, %c0_i32_0, %c0_i32_1 : i32, i32, i32
  }
  func.func @transform_20(%arg0: i32) -> (i32, i32, i32) {
    %c0_i32 = arith.constant 0 : i32
    %c0_i32_0 = arith.constant 0 : i32
    %c0_i32_1 = arith.constant 0 : i32
    %c0_i32_2 = arith.constant 0 : i32
    return %c0_i32, %c0_i32_0, %c0_i32_1 : i32, i32, i32
  }
  func.func @transform_21(%arg0: i32) -> (i32, i32, i32) {
    %c0_i32 = arith.constant 0 : i32
    %c0_i32_0 = arith.constant 0 : i32
    %c0_i32_1 = arith.constant 0 : i32
    %c0_i32_2 = arith.constant 0 : i32
    return %c0_i32, %c0_i32_0, %c0_i32_1 : i32, i32, i32
  }
  func.func @transform_22(%arg0: i32) -> (i32, i32, i32) {
    %c0_i32 = arith.constant 0 : i32
    %c0_i32_0 = arith.constant 0 : i32
    %c0_i32_1 = arith.constant 0 : i32
    %c0_i32_2 = arith.constant 0 : i32
    return %c0_i32, %c0_i32_0, %c0_i32_1 : i32, i32, i32
  }
  func.func @transform_23(%arg0: i32) -> (i32, i32, i32) {
    %c0_i32 = arith.constant 0 : i32
    %c0_i32_0 = arith.constant 0 : i32
    %c0_i32_1 = arith.constant 0 : i32
    %c0_i32_2 = arith.constant 0 : i32
    return %c0_i32, %c0_i32_0, %c0_i32_1 : i32, i32, i32
  }
  func.func @transform_24(%arg0: i32) -> (i32, i32, i32) {
    %c0_i32 = arith.constant 0 : i32
    %c0_i32_0 = arith.constant 0 : i32
    %c0_i32_1 = arith.constant 0 : i32
    %c0_i32_2 = arith.constant 0 : i32
    return %c0_i32, %c0_i32_0, %c0_i32_1 : i32, i32, i32
  }
  func.func @transform_25(%arg0: i32) -> (i32, i32, i32) {
    %c0_i32 = arith.constant 0 : i32
    %c0_i32_0 = arith.constant 0 : i32
    %c0_i32_1 = arith.constant 0 : i32
    %c0_i32_2 = arith.constant 0 : i32
    return %c0_i32, %c0_i32_0, %c0_i32_1 : i32, i32, i32
  }
  func.func @transform_26(%arg0: i32) -> (i32, i32, i32) {
    %c0_i32 = arith.constant 0 : i32
    %c0_i32_0 = arith.constant 0 : i32
    %c0_i32_1 = arith.constant 0 : i32
    %c0_i32_2 = arith.constant 0 : i32
    return %c0_i32, %c0_i32_0, %c0_i32_1 : i32, i32, i32
  }
  func.func @transform_27(%arg0: i32) -> (i32, i32, i32) {
    %c0_i32 = arith.constant 0 : i32
    %c0_i32_0 = arith.constant 0 : i32
    %c0_i32_1 = arith.constant 0 : i32
    %c0_i32_2 = arith.constant 0 : i32
    return %c0_i32, %c0_i32_0, %c0_i32_1 : i32, i32, i32
  }
  func.func @transform_28(%arg0: i32) -> (i32, i32, i32) {
    %c0_i32 = arith.constant 0 : i32
    %c0_i32_0 = arith.constant 0 : i32
    %c0_i32_1 = arith.constant 0 : i32
    %c0_i32_2 = arith.constant 0 : i32
    return %c0_i32, %c0_i32_0, %c0_i32_1 : i32, i32, i32
  }
  func.func @transform_29(%arg0: i32) -> (i32, i32, i32) {
    %c0_i32 = arith.constant 0 : i32
    %c0_i32_0 = arith.constant 0 : i32
    %c0_i32_1 = arith.constant 0 : i32
    %c0_i32_2 = arith.constant 0 : i32
    return %c0_i32, %c0_i32_0, %c0_i32_1 : i32, i32, i32
  }
  func.func @transform_30(%arg0: i32) -> i32 {
    %c0_i32 = arith.constant 0 : i32
    %c0_i32_0 = arith.constant 0 : i32
    return %c0_i32 : i32
  }
  func.func @transform_31(%arg0: i32) -> (i32, i32, i32) {
    %c0_i32 = arith.constant 0 : i32
    %c0_i32_0 = arith.constant 0 : i32
    %c0_i32_1 = arith.constant 0 : i32
    %c0_i32_2 = arith.constant 0 : i32
    return %c0_i32, %c0_i32_0, %c0_i32_1 : i32, i32, i32
  }
  func.func @transform_32(%arg0: i32) -> (i32, i32, i32) {
    %c0_i32 = arith.constant 0 : i32
    %c0_i32_0 = arith.constant 0 : i32
    %c0_i32_1 = arith.constant 0 : i32
    %c0_i32_2 = arith.constant 0 : i32
    return %c0_i32, %c0_i32_0, %c0_i32_1 : i32, i32, i32
  }
  func.func @transform_33(%arg0: i32) -> (i32, i32, i32) {
    %c0_i32 = arith.constant 0 : i32
    %c0_i32_0 = arith.constant 0 : i32
    %c0_i32_1 = arith.constant 0 : i32
    %c0_i32_2 = arith.constant 0 : i32
    return %c0_i32, %c0_i32_0, %c0_i32_1 : i32, i32, i32
  }
  func.func @transform_34(%arg0: i32) -> (i32, i32, i32) {
    %c0_i32 = arith.constant 0 : i32
    %c0_i32_0 = arith.constant 0 : i32
    %c0_i32_1 = arith.constant 0 : i32
    %c0_i32_2 = arith.constant 0 : i32
    return %c0_i32, %c0_i32_0, %c0_i32_1 : i32, i32, i32
  }
  func.func @transform_35(%arg0: i32) -> (i32, i32, i32) {
    %c0_i32 = arith.constant 0 : i32
    %c0_i32_0 = arith.constant 0 : i32
    %c0_i32_1 = arith.constant 0 : i32
    return %arg0, %c0_i32, %c0_i32_0 : i32, i32, i32
  }
}

</mosaic_0001>

<llo_original>
// kernel: transformer_forward.1
$region0: #{transformer_forward.1}
  #allocation0 [shape = 'u32[]', space=smem, size = 0x4, offset = 0x4, fixed_abs, tag = 'smem constant byte address 0x4 - core index']
  #allocation1 [shape = 'u32[144,128]{1,0:T(1,128)}', space=vmem, size = 0x12000, scoped, tag = 'internal scratch']
  %s0 = inlined_call_operand.smem [shape: u32[36], index: -1, kind: input, shape index: {}]
  %s1 = sld [smem:[%s0]]
  %s2 = scalar_lea.smem %s0, 1
  %s3 = sld [smem:[%s2]]
  %s4 = scalar_lea.smem %s0, 2
  %s5 = sld [smem:[%s4]]
  %s6 = scalar_lea.smem %s0, 3
  %s7 = sld [smem:[%s6]]
  %s8 = scalar_lea.smem %s0, 4
  %s9 = sld [smem:[%s8]]
  %s10 = scalar_lea.smem %s0, 5
  %s11 = sld [smem:[%s10]]
  %s12 = scalar_lea.smem %s0, 6
  %s13 = sld [smem:[%s12]]
  %s14 = scalar_lea.smem %s0, 7
  %s15 = sld [smem:[%s14]]
  %s16 = scalar_lea.smem %s0, 8
  %s17 = sld [smem:[%s16]]
  %s18 = scalar_lea.smem %s0, 9
  %s19 = sld [smem:[%s18]]
  %s20 = scalar_lea.smem %s0, 10
  %s21 = sld [smem:[%s20]]
  %s22 = scalar_lea.smem %s0, 11
  %s23 = sld [smem:[%s22]]
  %s24 = scalar_lea.smem %s0, 12
  %s25 = sld [smem:[%s24]]
  %s26 = scalar_lea.smem %s0, 13
  %s27 = sld [smem:[%s26]]
  %s28 = scalar_lea.smem %s0, 14
  %s29 = sld [smem:[%s28]]
  %s30 = scalar_lea.smem %s0, 15
  %s31 = sld [smem:[%s30]]
  %s32 = scalar_lea.smem %s0, 16
  %s33 = sld [smem:[%s32]]
  %s34 = scalar_lea.smem %s0, 17
  %s35 = sld [smem:[%s34]]
  %s36 = scalar_lea.smem %s0, 18
  %s37 = sld [smem:[%s36]]
  %s38 = scalar_lea.smem %s0, 19
  %s39 = sld [smem:[%s38]]
  %s40 = scalar_lea.smem %s0, 20
  %s41 = sld [smem:[%s40]]
  %s42 = scalar_lea.smem %s0, 21
  %s43 = sld [smem:[%s42]]
  %s44 = scalar_lea.smem %s0, 22
  %s45 = sld [smem:[%s44]]
  %s46 = scalar_lea.smem %s0, 23
  %s47 = sld [smem:[%s46]]
  %s48 = scalar_lea.smem %s0, 24
  %s49 = sld [smem:[%s48]]
  %s50 = scalar_lea.smem %s0, 25
  %s51 = sld [smem:[%s50]]
  %s52 = scalar_lea.smem %s0, 26
  %s53 = sld [smem:[%s52]]
  %s54 = scalar_lea.smem %s0, 27
  %s55 = sld [smem:[%s54]]
  %s56 = scalar_lea.smem %s0, 28
  %s57 = sld [smem:[%s56]]
  %s58 = scalar_lea.smem %s0, 29
  %s59 = sld [smem:[%s58]]
  %s60 = scalar_lea.smem %s0, 30
  %s61 = sld [smem:[%s60]]
  %s62 = scalar_lea.smem %s0, 31
  %s63 = sld [smem:[%s62]]
  %s64 = scalar_lea.smem %s0, 32
  %s65 = sld [smem:[%s64]]
  %s66 = scalar_lea.smem %s0, 33
  %s67 = sld [smem:[%s66]]
  %s68 = scalar_lea.smem %s0, 34
  %s69 = sld [smem:[%s68]]
  %s70 = scalar_lea.smem %s0, 35
  %s71 = sld [smem:[%s70]]
  %s72 = sld [smem:[#allocation0]]
  $region181: #{transformer_forward.1} parent=0
    _
  %s74 = ssub.s32 1, %s72
  %s75 = scalar_select 0, %s74, %s72
  $region1: #{transformer_forward.1} parent=0
    #allocation2 [shape = 'u8[512]{0}', space=smem, size = 0x200, scoped, tag = 'input window, operand 10, single buffered']
    #allocation3 [shape = 's32[2]{0}', space=sflag, size = 0x8, scoped, tag = 'scoped memory for transformer_forward.1']
    #allocation4 [shape = 's32[2]{0}', space=sflag, size = 0x8, scoped, tag = 'scoped memory for transformer_forward.1']
    #allocation5 [shape = 'u8[512]{0}', space=smem, size = 0x200, scoped, tag = 'input window, operand 30, single buffered']
    #allocation6 [shape = 's32[1]{0}', space=sflag, size = 0x4, scoped, tag = 'scoped memory for transformer_forward.1']
    #allocation7 [shape = 'u8[8192]{0}', space=vmem, size = 0x2000, scoped, tag = 'output window, operand 0']
    %76 = vsyncpa [#allocation4], 0
    %77 = vsyncpa [#allocation6], 0
    %78 = vsyncpa [#allocation3], 0
    %s79 = scalar_lea.sflag [#allocation3], 1
    %80 = vsyncpa %s79, 0
    loop: start=0, step=1, limit=4
    $region2: #{transformer_forward.1} parent=1 // loop_pre_header
      _
    $region3: #{transformer_forward.1} parent=1 // loop_header
      %s82 = sphi 0, %s86
      %p83 = scmp.ge.s32.totalorder %s82, 4
      %s92 = sphi 0, %s94
      %s95 = sphi 0, %s92
      %s96 = sphi 0, %s95
      %s112 = sphi 0, %s96
      %s118 = sphi 0, %s120
      %s121 = sphi 0, %s118
      %s122 = sphi 0, %s121
      %s138 = sphi 0, %s122
      %s142 = sphi 0, %s142
      %s144 = sphi 0, %s142
      %s145 = sphi 0, %s144
      %s159 = sphi 0, %s145
      %s163 = sphi 0, %s163
      %s165 = sphi 0, %s163
      %s166 = sphi 0, %s165
      %s180 = sphi 0, %s166
      %s184 = sphi 0, %s184
      %s186 = sphi 0, %s184
      %s187 = sphi 0, %s186
      %s201 = sphi 0, %s187
      %s205 = sphi 0, %s205
      %s207 = sphi 0, %s205
      %s208 = sphi 0, %s207
      %s222 = sphi 0, %s208
      %s226 = sphi 0, %s226
      %s228 = sphi 0, %s226
      %s229 = sphi 0, %s228
      %s243 = sphi 0, %s229
      %s247 = sphi 0, %s247
      %s249 = sphi 0, %s247
      %s250 = sphi 0, %s249
      %s264 = sphi 0, %s250
      %s268 = sphi 0, %s268
      %s270 = sphi 0, %s268
      %s271 = sphi 0, %s270
      %s285 = sphi 0, %s271
      %s289 = sphi 0, %s289
      %s291 = sphi 0, %s289
      %s292 = sphi 0, %s291
      %s306 = sphi 0, %s292
      %s310 = sphi 0, %s310
      %s312 = sphi 0, %s310
      %s313 = sphi 0, %s312
      %s327 = sphi 0, %s313
      %s331 = sphi 0, %s331
      %s333 = sphi 0, %s331
      %s334 = sphi 0, %s333
      %s348 = sphi 0, %s334
      %s352 = sphi 0, %s352
      %s354 = sphi 0, %s352
      %s355 = sphi 0, %s354
      %s369 = sphi 0, %s355
      %s373 = sphi 0, %s373
      %s375 = sphi 0, %s373
      %s376 = sphi 0, %s375
      %s390 = sphi 0, %s376
      %s394 = sphi 0, %s394
      %s396 = sphi 0, %s394
      %s397 = sphi 0, %s396
      %s411 = sphi 0, %s397
      %s415 = sphi 0, %s415
      %s417 = sphi 0, %s415
      %s418 = sphi 0, %s417
      %s432 = sphi 0, %s418
      %s436 = sphi 0, %s436
      %s438 = sphi 0, %s436
      %s439 = sphi 0, %s438
      %s453 = sphi 0, %s439
      %s457 = sphi 0, %s457
      %s459 = sphi 0, %s457
      %s460 = sphi 0, %s459
      %s474 = sphi 0, %s460
      %s478 = sphi 0, %s478
      %s480 = sphi 0, %s478
      %s481 = sphi 0, %s480
      %s495 = sphi 0, %s481
      %s499 = sphi 0, %s499
      %s501 = sphi 0, %s499
      %s502 = sphi 0, %s501
      %s516 = sphi 0, %s502
      %s520 = sphi 0, %s520
      %s522 = sphi 0, %s520
      %s523 = sphi 0, %s522
      %s537 = sphi 0, %s523
      %s541 = sphi 0, %s541
      %s543 = sphi 0, %s541
      %s544 = sphi 0, %s543
      %s558 = sphi 0, %s544
      %s562 = sphi 0, %s562
      %s564 = sphi 0, %s562
      %s565 = sphi 0, %s564
      %s579 = sphi 0, %s565
      %s583 = sphi 0, %s583
      %s585 = sphi 0, %s583
      %s586 = sphi 0, %s585
      %s600 = sphi 0, %s586
      %s604 = sphi 0, %s604
      %s606 = sphi 0, %s604
      %s607 = sphi 0, %s606
      %s621 = sphi 0, %s607
      %s625 = sphi 0, %s625
      %s627 = sphi 0, %s625
      %s628 = sphi 0, %s627
      %s642 = sphi 0, %s628
      %s646 = sphi 0, %s646
      %s648 = sphi 0, %s646
      %s649 = sphi 0, %s648
      %s663 = sphi 0, %s649
      %s667 = sphi 0, %s667
      %s669 = sphi 0, %s667
      %s670 = sphi 0, %s669
      %s684 = sphi 0, %s670
      %s688 = sphi 0, %s688
      %s690 = sphi 0, %s688
      %s691 = sphi 0, %s690
      %s705 = sphi 0, %s691
      %s709 = sphi 0, %s709
      %s711 = sphi 0, %s709
      %s712 = sphi 0, %s711
      %s726 = sphi 0, %s712
      %s730 = sphi 0, %s730
      %s732 = sphi 0, %s730
      %s733 = sphi 0, %s732
      %s747 = sphi 0, %s733
      %s751 = sphi 0, %s751
      %s753 = sphi 0, %s751
      %s754 = sphi 0, %s753
      %s768 = sphi 0, %s754
      %s772 = sphi 0, %s772
      %s774 = sphi 0, %s772
      %s775 = sphi 0, %s774
      %s789 = sphi 0, %s775
      %s793 = sphi 0, %s793
      %s795 = sphi 0, %s793
      %s796 = sphi 0, %s795
      %s810 = sphi 0, %s796
      %s814 = sphi 0, %s814
      %s816 = sphi 0, %s814
      %s817 = sphi 0, %s816
      %s831 = sphi 0, %s817
      %s837 = sphi 0, %s839
      %s840 = sphi 0, %s837
      %s841 = sphi 0, %s840
      %s857 = sphi 0, %s841
    $region4: #{transformer_forward.1} parent=1 // loop_header_branch
      %85 = sbr.rel (%p83) target = $region8
    $region5: #{transformer_forward.1} parent=1 // loop_body
      %s87 = ssub.s32 %s82, 1
      %s88 = ssub.s32 %s82, 2
      %s89 = sadd.s32 %s82, 1
      %s90 = ssub.s32 %s82, %s89
      %p91 = scmp.eq.s32.totalorder %s90, 0
      %s93 = sadd.s32 %s92, 1
      %s94 = scalar_select %p91, %s92, %s93
      %p97 = pneg %p91
      %p98 = scmp.eq.s32.totalorder %s82, 1
      %p99 = por %p97, %p98
      %p100 = scmp.ne.s32.totalorder %s92, %s95
      %p101 = scmp.eq.s32.totalorder %s82, 0
      %p102 = por %p100, %p101
      %p103 = scmp.ne.s32.totalorder %s92, %s95
      %p104 = scmp.eq.s32.totalorder %s87, 1
      %p105 = por %p103, %p104
      %p106 = scmp.ne.s32.totalorder %s95, %s96
      %p107 = scmp.eq.s32.totalorder %s87, 0
      %p108 = por %p106, %p107
      %p109 = scmp.ne.s32.totalorder %s95, %s96
      %p110 = scmp.eq.s32.totalorder %s88, 1
      %p111 = por %p109, %p110
      %p113 = scmp.ne.s32.totalorder %s96, %s112
      %p114 = scmp.eq.s32.totalorder %s88, 0
      %p115 = por %p113, %p114
      %s116 = ssub.s32 %s82, %s89
      %p117 = scmp.eq.s32.totalorder %s116, 0
      %s119 = sadd.s32 %s118, 1
      %s120 = scalar_select %p117, %s118, %s119
      %p123 = pneg %p117
      %p124 = scmp.eq.s32.totalorder %s82, 1
      %p125 = por %p123, %p124
      %p126 = scmp.ne.s32.totalorder %s118, %s121
      %p127 = scmp.eq.s32.totalorder %s82, 0
      %p128 = por %p126, %p127
      %p129 = scmp.ne.s32.totalorder %s118, %s121
      %p130 = scmp.eq.s32.totalorder %s87, 1
      %p131 = por %p129, %p130
      %p132 = scmp.ne.s32.totalorder %s121, %s122
      %p133 = scmp.eq.s32.totalorder %s87, 0
      %p134 = por %p132, %p133
      %p135 = scmp.ne.s32.totalorder %s121, %s122
      %p136 = scmp.eq.s32.totalorder %s88, 1
      %p137 = por %p135, %p136
      %p139 = scmp.ne.s32.totalorder %s122, %s138
      %p140 = scmp.eq.s32.totalorder %s88, 0
      %p141 = por %p139, %p140
      %s143 = sadd.s32 %s142, 1
      %p146 = scmp.eq.s32.totalorder %s82, 1
      %p147 = scmp.ne.s32.totalorder %s142, %s144
      %p148 = scmp.eq.s32.totalorder %s82, 0
      %p149 = por %p147, %p148
      %p150 = scmp.ne.s32.totalorder %s142, %s144
      %p151 = scmp.eq.s32.totalorder %s87, 1
      %p152 = por %p150, %p151
      %p153 = scmp.ne.s32.totalorder %s144, %s145
      %p154 = scmp.eq.s32.totalorder %s87, 0
      %p155 = por %p153, %p154
      %p156 = scmp.ne.s32.totalorder %s144, %s145
      %p157 = scmp.eq.s32.totalorder %s88, 1
      %p158 = por %p156, %p157
      %p160 = scmp.ne.s32.totalorder %s145, %s159
      %p161 = scmp.eq.s32.totalorder %s88, 0
      %p162 = por %p160, %p161
      %s164 = sadd.s32 %s163, 1
      %p167 = scmp.eq.s32.totalorder %s82, 1
      %p168 = scmp.ne.s32.totalorder %s163, %s165
      %p169 = scmp.eq.s32.totalorder %s82, 0
      %p170 = por %p168, %p169
      %p171 = scmp.ne.s32.totalorder %s163, %s165
      %p172 = scmp.eq.s32.totalorder %s87, 1
      %p173 = por %p171, %p172
      %p174 = scmp.ne.s32.totalorder %s165, %s166
      %p175 = scmp.eq.s32.totalorder %s87, 0
      %p176 = por %p174, %p175
      %p177 = scmp.ne.s32.totalorder %s165, %s166
      %p178 = scmp.eq.s32.totalorder %s88, 1
      %p179 = por %p177, %p178
      %p181 = scmp.ne.s32.totalorder %s166, %s180
      %p182 = scmp.eq.s32.totalorder %s88, 0
      %p183 = por %p181, %p182
      %s185 = sadd.s32 %s184, 1
      %p188 = scmp.eq.s32.totalorder %s82, 1
      %p189 = scmp.ne.s32.totalorder %s184, %s186
      %p190 = scmp.eq.s32.totalorder %s82, 0
      %p191 = por %p189, %p190
      %p192 = scmp.ne.s32.totalorder %s184, %s186
      %p193 = scmp.eq.s32.totalorder %s87, 1
      %p194 = por %p192, %p193
      %p195 = scmp.ne.s32.totalorder %s186, %s187
      %p196 = scmp.eq.s32.totalorder %s87, 0
      %p197 = por %p195, %p196
      %p198 = scmp.ne.s32.totalorder %s186, %s187
      %p199 = scmp.eq.s32.totalorder %s88, 1
      %p200 = por %p198, %p199
      %p202 = scmp.ne.s32.totalorder %s187, %s201
      %p203 = scmp.eq.s32.totalorder %s88, 0
      %p204 = por %p202, %p203
      %s206 = sadd.s32 %s205, 1
      %p209 = scmp.eq.s32.totalorder %s82, 1
      %p210 = scmp.ne.s32.totalorder %s205, %s207
      %p211 = scmp.eq.s32.totalorder %s82, 0
      %p212 = por %p210, %p211
      %p213 = scmp.ne.s32.totalorder %s205, %s207
      %p214 = scmp.eq.s32.totalorder %s87, 1
      %p215 = por %p213, %p214
      %p216 = scmp.ne.s32.totalorder %s207, %s208
      %p217 = scmp.eq.s32.totalorder %s87, 0
      %p218 = por %p216, %p217
      %p219 = scmp.ne.s32.totalorder %s207, %s208
      %p220 = scmp.eq.s32.totalorder %s88, 1
      %p221 = por %p219, %p220
      %p223 = scmp.ne.s32.totalorder %s208, %s222
      %p224 = scmp.eq.s32.totalorder %s88, 0
      %p225 = por %p223, %p224
      %s227 = sadd.s32 %s226, 1
      %p230 = scmp.eq.s32.totalorder %s82, 1
      %p231 = scmp.ne.s32.totalorder %s226, %s228
      %p232 = scmp.eq.s32.totalorder %s82, 0
      %p233 = por %p231, %p232
      %p234 = scmp.ne.s32.totalorder %s226, %s228
      %p235 = scmp.eq.s32.totalorder %s87, 1
      %p236 = por %p234, %p235
      %p237 = scmp.ne.s32.totalorder %s228, %s229
      %p238 = scmp.eq.s32.totalorder %s87, 0
      %p239 = por %p237, %p238
      %p240 = scmp.ne.s32.totalorder %s228, %s229
      %p241 = scmp.eq.s32.totalorder %s88, 1
      %p242 = por %p240, %p241
      %p244 = scmp.ne.s32.totalorder %s229, %s243
      %p245 = scmp.eq.s32.totalorder %s88, 0
      %p246 = por %p244, %p245
      %s248 = sadd.s32 %s247, 1
      %p251 = scmp.eq.s32.totalorder %s82, 1
      %p252 = scmp.ne.s32.totalorder %s247, %s249
      %p253 = scmp.eq.s32.totalorder %s82, 0
      %p254 = por %p252, %p253
      %p255 = scmp.ne.s32.totalorder %s247, %s249
      %p256 = scmp.eq.s32.totalorder %s87, 1
      %p257 = por %p255, %p256
      %p258 = scmp.ne.s32.totalorder %s249, %s250
      %p259 = scmp.eq.s32.totalorder %s87, 0
      %p260 = por %p258, %p259
      %p261 = scmp.ne.s32.totalorder %s249, %s250
      %p262 = scmp.eq.s32.totalorder %s88, 1
      %p263 = por %p261, %p262
      %p265 = scmp.ne.s32.totalorder %s250, %s264
      %p266 = scmp.eq.s32.totalorder %s88, 0
      %p267 = por %p265, %p266
      %s269 = sadd.s32 %s268, 1
      %p272 = scmp.eq.s32.totalorder %s82, 1
      %p273 = scmp.ne.s32.totalorder %s268, %s270
      %p274 = scmp.eq.s32.totalorder %s82, 0
      %p275 = por %p273, %p274
      %p276 = scmp.ne.s32.totalorder %s268, %s270
      %p277 = scmp.eq.s32.totalorder %s87, 1
      %p278 = por %p276, %p277
      %p279 = scmp.ne.s32.totalorder %s270, %s271
      %p280 = scmp.eq.s32.totalorder %s87, 0
      %p281 = por %p279, %p280
      %p282 = scmp.ne.s32.totalorder %s270, %s271
      %p283 = scmp.eq.s32.totalorder %s88, 1
      %p284 = por %p282, %p283
      %p286 = scmp.ne.s32.totalorder %s271, %s285
      %p287 = scmp.eq.s32.totalorder %s88, 0
      %p288 = por %p286, %p287
      %s290 = sadd.s32 %s289, 1
      %p293 = scmp.eq.s32.totalorder %s82, 1
      %p294 = scmp.ne.s32.totalorder %s289, %s291
      %p295 = scmp.eq.s32.totalorder %s82, 0
      %p296 = por %p294, %p295
      %p297 = scmp.ne.s32.totalorder %s289, %s291
      %p298 = scmp.eq.s32.totalorder %s87, 1
      %p299 = por %p297, %p298
      %p300 = scmp.ne.s32.totalorder %s291, %s292
      %p301 = scmp.eq.s32.totalorder %s87, 0
      %p302 = por %p300, %p301
      %p303 = scmp.ne.s32.totalorder %s291, %s292
      %p304 = scmp.eq.s32.totalorder %s88, 1
      %p305 = por %p303, %p304
      %p307 = scmp.ne.s32.totalorder %s292, %s306
      %p308 = scmp.eq.s32.totalorder %s88, 0
      %p309 = por %p307, %p308
      %s311 = sadd.s32 %s310, 1
      %p314 = scmp.eq.s32.totalorder %s82, 1
      %p315 = scmp.ne.s32.totalorder %s310, %s312
      %p316 = scmp.eq.s32.totalorder %s82, 0
      %p317 = por %p315, %p316
      %p318 = scmp.ne.s32.totalorder %s310, %s312
      %p319 = scmp.eq.s32.totalorder %s87, 1
      %p320 = por %p318, %p319
      %p321 = scmp.ne.s32.totalorder %s312, %s313
      %p322 = scmp.eq.s32.totalorder %s87, 0
      %p323 = por %p321, %p322
      %p324 = scmp.ne.s32.totalorder %s312, %s313
      %p325 = scmp.eq.s32.totalorder %s88, 1
      %p326 = por %p324, %p325
      %p328 = scmp.ne.s32.totalorder %s313, %s327
      %p329 = scmp.eq.s32.totalorder %s88, 0
      %p330 = por %p328, %p329
      %s332 = sadd.s32 %s331, 1
      %p335 = scmp.eq.s32.totalorder %s82, 1
      %p336 = scmp.ne.s32.totalorder %s331, %s333
      %p337 = scmp.eq.s32.totalorder %s82, 0
      %p338 = por %p336, %p337
      %p339 = scmp.ne.s32.totalorder %s331, %s333
      %p340 = scmp.eq.s32.totalorder %s87, 1
      %p341 = por %p339, %p340
      %p342 = scmp.ne.s32.totalorder %s333, %s334
      %p343 = scmp.eq.s32.totalorder %s87, 0
      %p344 = por %p342, %p343
      %p345 = scmp.ne.s32.totalorder %s333, %s334
      %p346 = scmp.eq.s32.totalorder %s88, 1
      %p347 = por %p345, %p346
      %p349 = scmp.ne.s32.totalorder %s334, %s348
      %p350 = scmp.eq.s32.totalorder %s88, 0
      %p351 = por %p349, %p350
      %s353 = sadd.s32 %s352, 1
      %p356 = scmp.eq.s32.totalorder %s82, 1
      %p357 = scmp.ne.s32.totalorder %s352, %s354
      %p358 = scmp.eq.s32.totalorder %s82, 0
      %p359 = por %p357, %p358
      %p360 = scmp.ne.s32.totalorder %s352, %s354
      %p361 = scmp.eq.s32.totalorder %s87, 1
      %p362 = por %p360, %p361
      %p363 = scmp.ne.s32.totalorder %s354, %s355
      %p364 = scmp.eq.s32.totalorder %s87, 0
      %p365 = por %p363, %p364
      %p366 = scmp.ne.s32.totalorder %s354, %s355
      %p367 = scmp.eq.s32.totalorder %s88, 1
      %p368 = por %p366, %p367
      %p370 = scmp.ne.s32.totalorder %s355, %s369
      %p371 = scmp.eq.s32.totalorder %s88, 0
      %p372 = por %p370, %p371
      %s374 = sadd.s32 %s373, 1
      %p377 = scmp.eq.s32.totalorder %s82, 1
      %p378 = scmp.ne.s32.totalorder %s373, %s375
      %p379 = scmp.eq.s32.totalorder %s82, 0
      %p380 = por %p378, %p379
      %p381 = scmp.ne.s32.totalorder %s373, %s375
      %p382 = scmp.eq.s32.totalorder %s87, 1
      %p383 = por %p381, %p382
      %p384 = scmp.ne.s32.totalorder %s375, %s376
      %p385 = scmp.eq.s32.totalorder %s87, 0
      %p386 = por %p384, %p385
      %p387 = scmp.ne.s32.totalorder %s375, %s376
      %p388 = scmp.eq.s32.totalorder %s88, 1
      %p389 = por %p387, %p388
      %p391 = scmp.ne.s32.totalorder %s376, %s390
      %p392 = scmp.eq.s32.totalorder %s88, 0
      %p393 = por %p391, %p392
      %s395 = sadd.s32 %s394, 1
      %p398 = scmp.eq.s32.totalorder %s82, 1
      %p399 = scmp.ne.s32.totalorder %s394, %s396
      %p400 = scmp.eq.s32.totalorder %s82, 0
      %p401 = por %p399, %p400
      %p402 = scmp.ne.s32.totalorder %s394, %s396
      %p403 = scmp.eq.s32.totalorder %s87, 1
      %p404 = por %p402, %p403
      %p405 = scmp.ne.s32.totalorder %s396, %s397
      %p406 = scmp.eq.s32.totalorder %s87, 0
      %p407 = por %p405, %p406
      %p408 = scmp.ne.s32.totalorder %s396, %s397
      %p409 = scmp.eq.s32.totalorder %s88, 1
      %p410 = por %p408, %p409
      %p412 = scmp.ne.s32.totalorder %s397, %s411
      %p413 = scmp.eq.s32.totalorder %s88, 0
      %p414 = por %p412, %p413
      %s416 = sadd.s32 %s415, 1
      %p419 = scmp.eq.s32.totalorder %s82, 1
      %p420 = scmp.ne.s32.totalorder %s415, %s417
      %p421 = scmp.eq.s32.totalorder %s82, 0
      %p422 = por %p420, %p421
      %p423 = scmp.ne.s32.totalorder %s415, %s417
      %p424 = scmp.eq.s32.totalorder %s87, 1
      %p425 = por %p423, %p424
      %p426 = scmp.ne.s32.totalorder %s417, %s418
      %p427 = scmp.eq.s32.totalorder %s87, 0
      %p428 = por %p426, %p427
      %p429 = scmp.ne.s32.totalorder %s417, %s418
      %p430 = scmp.eq.s32.totalorder %s88, 1
      %p431 = por %p429, %p430
      %p433 = scmp.ne.s32.totalorder %s418, %s432
      %p434 = scmp.eq.s32.totalorder %s88, 0
      %p435 = por %p433, %p434
      %s437 = sadd.s32 %s436, 1
      %p440 = scmp.eq.s32.totalorder %s82, 1
      %p441 = scmp.ne.s32.totalorder %s436, %s438
      %p442 = scmp.eq.s32.totalorder %s82, 0
      %p443 = por %p441, %p442
      %p444 = scmp.ne.s32.totalorder %s436, %s438
      %p445 = scmp.eq.s32.totalorder %s87, 1
      %p446 = por %p444, %p445
      %p447 = scmp.ne.s32.totalorder %s438, %s439
      %p448 = scmp.eq.s32.totalorder %s87, 0
      %p449 = por %p447, %p448
      %p450 = scmp.ne.s32.totalorder %s438, %s439
      %p451 = scmp.eq.s32.totalorder %s88, 1
      %p452 = por %p450, %p451
      %p454 = scmp.ne.s32.totalorder %s439, %s453
      %p455 = scmp.eq.s32.totalorder %s88, 0
      %p456 = por %p454, %p455
      %s458 = sadd.s32 %s457, 1
      %p461 = scmp.eq.s32.totalorder %s82, 1
      %p462 = scmp.ne.s32.totalorder %s457, %s459
      %p463 = scmp.eq.s32.totalorder %s82, 0
      %p464 = por %p462, %p463
      %p465 = scmp.ne.s32.totalorder %s457, %s459
      %p466 = scmp.eq.s32.totalorder %s87, 1
      %p467 = por %p465, %p466
      %p468 = scmp.ne.s32.totalorder %s459, %s460
      %p469 = scmp.eq.s32.totalorder %s87, 0
      %p470 = por %p468, %p469
      %p471 = scmp.ne.s32.totalorder %s459, %s460
      %p472 = scmp.eq.s32.totalorder %s88, 1
      %p473 = por %p471, %p472
      %p475 = scmp.ne.s32.totalorder %s460, %s474
      %p476 = scmp.eq.s32.totalorder %s88, 0
      %p477 = por %p475, %p476
      %s479 = sadd.s32 %s478, 1
      %p482 = scmp.eq.s32.totalorder %s82, 1
      %p483 = scmp.ne.s32.totalorder %s478, %s480
      %p484 = scmp.eq.s32.totalorder %s82, 0
      %p485 = por %p483, %p484
      %p486 = scmp.ne.s32.totalorder %s478, %s480
      %p487 = scmp.eq.s32.totalorder %s87, 1
      %p488 = por %p486, %p487
      %p489 = scmp.ne.s32.totalorder %s480, %s481
      %p490 = scmp.eq.s32.totalorder %s87, 0
      %p491 = por %p489, %p490
      %p492 = scmp.ne.s32.totalorder %s480, %s481
      %p493 = scmp.eq.s32.totalorder %s88, 1
      %p494 = por %p492, %p493
      %p496 = scmp.ne.s32.totalorder %s481, %s495
      %p497 = scmp.eq.s32.totalorder %s88, 0
      %p498 = por %p496, %p497
      %s500 = sadd.s32 %s499, 1
      %p503 = scmp.eq.s32.totalorder %s82, 1
      %p504 = scmp.ne.s32.totalorder %s499, %s501
      %p505 = scmp.eq.s32.totalorder %s82, 0
      %p506 = por %p504, %p505
      %p507 = scmp.ne.s32.totalorder %s499, %s501
      %p508 = scmp.eq.s32.totalorder %s87, 1
      %p509 = por %p507, %p508
      %p510 = scmp.ne.s32.totalorder %s501, %s502
      %p511 = scmp.eq.s32.totalorder %s87, 0
      %p512 = por %p510, %p511
      %p513 = scmp.ne.s32.totalorder %s501, %s502
      %p514 = scmp.eq.s32.totalorder %s88, 1
      %p515 = por %p513, %p514
      %p517 = scmp.ne.s32.totalorder %s502, %s516
      %p518 = scmp.eq.s32.totalorder %s88, 0
      %p519 = por %p517, %p518
      %s521 = sadd.s32 %s520, 1
      %p524 = scmp.eq.s32.totalorder %s82, 1
      %p525 = scmp.ne.s32.totalorder %s520, %s522
      %p526 = scmp.eq.s32.totalorder %s82, 0
      %p527 = por %p525, %p526
      %p528 = scmp.ne.s32.totalorder %s520, %s522
      %p529 = scmp.eq.s32.totalorder %s87, 1
      %p530 = por %p528, %p529
      %p531 = scmp.ne.s32.totalorder %s522, %s523
      %p532 = scmp.eq.s32.totalorder %s87, 0
      %p533 = por %p531, %p532
      %p534 = scmp.ne.s32.totalorder %s522, %s523
      %p535 = scmp.eq.s32.totalorder %s88, 1
      %p536 = por %p534, %p535
      %p538 = scmp.ne.s32.totalorder %s523, %s537
      %p539 = scmp.eq.s32.totalorder %s88, 0
      %p540 = por %p538, %p539
      %s542 = sadd.s32 %s541, 1
      %p545 = scmp.eq.s32.totalorder %s82, 1
      %p546 = scmp.ne.s32.totalorder %s541, %s543
      %p547 = scmp.eq.s32.totalorder %s82, 0
      %p548 = por %p546, %p547
      %p549 = scmp.ne.s32.totalorder %s541, %s543
      %p550 = scmp.eq.s32.totalorder %s87, 1
      %p551 = por %p549, %p550
      %p552 = scmp.ne.s32.totalorder %s543, %s544
      %p553 = scmp.eq.s32.totalorder %s87, 0
      %p554 = por %p552, %p553
      %p555 = scmp.ne.s32.totalorder %s543, %s544
      %p556 = scmp.eq.s32.totalorder %s88, 1
      %p557 = por %p555, %p556
      %p559 = scmp.ne.s32.totalorder %s544, %s558
      %p560 = scmp.eq.s32.totalorder %s88, 0
      %p561 = por %p559, %p560
      %s563 = sadd.s32 %s562, 1
      %p566 = scmp.eq.s32.totalorder %s82, 1
      %p567 = scmp.ne.s32.totalorder %s562, %s564
      %p568 = scmp.eq.s32.totalorder %s82, 0
      %p569 = por %p567, %p568
      %p570 = scmp.ne.s32.totalorder %s562, %s564
      %p571 = scmp.eq.s32.totalorder %s87, 1
      %p572 = por %p570, %p571
      %p573 = scmp.ne.s32.totalorder %s564, %s565
      %p574 = scmp.eq.s32.totalorder %s87, 0
      %p575 = por %p573, %p574
      %p576 = scmp.ne.s32.totalorder %s564, %s565
      %p577 = scmp.eq.s32.totalorder %s88, 1
      %p578 = por %p576, %p577
      %p580 = scmp.ne.s32.totalorder %s565, %s579
      %p581 = scmp.eq.s32.totalorder %s88, 0
      %p582 = por %p580, %p581
      %s584 = sadd.s32 %s583, 1
      %p587 = scmp.eq.s32.totalorder %s82, 1
      %p588 = scmp.ne.s32.totalorder %s583, %s585
      %p589 = scmp.eq.s32.totalorder %s82, 0
      %p590 = por %p588, %p589
      %p591 = scmp.ne.s32.totalorder %s583, %s585
      %p592 = scmp.eq.s32.totalorder %s87, 1
      %p593 = por %p591, %p592
      %p594 = scmp.ne.s32.totalorder %s585, %s586
      %p595 = scmp.eq.s32.totalorder %s87, 0
      %p596 = por %p594, %p595
      %p597 = scmp.ne.s32.totalorder %s585, %s586
      %p598 = scmp.eq.s32.totalorder %s88, 1
      %p599 = por %p597, %p598
      %p601 = scmp.ne.s32.totalorder %s586, %s600
      %p602 = scmp.eq.s32.totalorder %s88, 0
      %p603 = por %p601, %p602
      %s605 = sadd.s32 %s604, 1
      %p608 = scmp.eq.s32.totalorder %s82, 1
      %p609 = scmp.ne.s32.totalorder %s604, %s606
      %p610 = scmp.eq.s32.totalorder %s82, 0
      %p611 = por %p609, %p610
      %p612 = scmp.ne.s32.totalorder %s604, %s606
      %p613 = scmp.eq.s32.totalorder %s87, 1
      %p614 = por %p612, %p613
      %p615 = scmp.ne.s32.totalorder %s606, %s607
      %p616 = scmp.eq.s32.totalorder %s87, 0
      %p617 = por %p615, %p616
      %p618 = scmp.ne.s32.totalorder %s606, %s607
      %p619 = scmp.eq.s32.totalorder %s88, 1
      %p620 = por %p618, %p619
      %p622 = scmp.ne.s32.totalorder %s607, %s621
      %p623 = scmp.eq.s32.totalorder %s88, 0
      %p624 = por %p622, %p623
      %s626 = sadd.s32 %s625, 1
      %p629 = scmp.eq.s32.totalorder %s82, 1
      %p630 = scmp.ne.s32.totalorder %s625, %s627
      %p631 = scmp.eq.s32.totalorder %s82, 0
      %p632 = por %p630, %p631
      %p633 = scmp.ne.s32.totalorder %s625, %s627
      %p634 = scmp.eq.s32.totalorder %s87, 1
      %p635 = por %p633, %p634
      %p636 = scmp.ne.s32.totalorder %s627, %s628
      %p637 = scmp.eq.s32.totalorder %s87, 0
      %p638 = por %p636, %p637
      %p639 = scmp.ne.s32.totalorder %s627, %s628
      %p640 = scmp.eq.s32.totalorder %s88, 1
      %p641 = por %p639, %p640
      %p643 = scmp.ne.s32.totalorder %s628, %s642
      %p644 = scmp.eq.s32.totalorder %s88, 0
      %p645 = por %p643, %p644
      %s647 = sadd.s32 %s646, 1
      %p650 = scmp.eq.s32.totalorder %s82, 1
      %p651 = scmp.ne.s32.totalorder %s646, %s648
      %p652 = scmp.eq.s32.totalorder %s82, 0
      %p653 = por %p651, %p652
      %p654 = scmp.ne.s32.totalorder %s646, %s648
      %p655 = scmp.eq.s32.totalorder %s87, 1
      %p656 = por %p654, %p655
      %p657 = scmp.ne.s32.totalorder %s648, %s649
      %p658 = scmp.eq.s32.totalorder %s87, 0
      %p659 = por %p657, %p658
      %p660 = scmp.ne.s32.totalorder %s648, %s649
      %p661 = scmp.eq.s32.totalorder %s88, 1
      %p662 = por %p660, %p661
      %p664 = scmp.ne.s32.totalorder %s649, %s663
      %p665 = scmp.eq.s32.totalorder %s88, 0
      %p666 = por %p664, %p665
      %s668 = sadd.s32 %s667, 1
      %p671 = scmp.eq.s32.totalorder %s82, 1
      %p672 = scmp.ne.s32.totalorder %s667, %s669
      %p673 = scmp.eq.s32.totalorder %s82, 0
      %p674 = por %p672, %p673
      %p675 = scmp.ne.s32.totalorder %s667, %s669
      %p676 = scmp.eq.s32.totalorder %s87, 1
      %p677 = por %p675, %p676
      %p678 = scmp.ne.s32.totalorder %s669, %s670
      %p679 = scmp.eq.s32.totalorder %s87, 0
      %p680 = por %p678, %p679
      %p681 = scmp.ne.s32.totalorder %s669, %s670
      %p682 = scmp.eq.s32.totalorder %s88, 1
      %p683 = por %p681, %p682
      %p685 = scmp.ne.s32.totalorder %s670, %s684
      %p686 = scmp.eq.s32.totalorder %s88, 0
      %p687 = por %p685, %p686
      %s689 = sadd.s32 %s688, 1
      %p692 = scmp.eq.s32.totalorder %s82, 1
      %p693 = scmp.ne.s32.totalorder %s688, %s690
      %p694 = scmp.eq.s32.totalorder %s82, 0
      %p695 = por %p693, %p694
      %p696 = scmp.ne.s32.totalorder %s688, %s690
      %p697 = scmp.eq.s32.totalorder %s87, 1
      %p698 = por %p696, %p697
      %p699 = scmp.ne.s32.totalorder %s690, %s691
      %p700 = scmp.eq.s32.totalorder %s87, 0
      %p701 = por %p699, %p700
      %p702 = scmp.ne.s32.totalorder %s690, %s691
      %p703 = scmp.eq.s32.totalorder %s88, 1
      %p704 = por %p702, %p703
      %p706 = scmp.ne.s32.totalorder %s691, %s705
      %p707 = scmp.eq.s32.totalorder %s88, 0
      %p708 = por %p706, %p707
      %s710 = sadd.s32 %s709, 1
      %p713 = scmp.eq.s32.totalorder %s82, 1
      %p714 = scmp.ne.s32.totalorder %s709, %s711
      %p715 = scmp.eq.s32.totalorder %s82, 0
      %p716 = por %p714, %p715
      %p717 = scmp.ne.s32.totalorder %s709, %s711
      %p718 = scmp.eq.s32.totalorder %s87, 1
      %p719 = por %p717, %p718
      %p720 = scmp.ne.s32.totalorder %s711, %s712
      %p721 = scmp.eq.s32.totalorder %s87, 0
      %p722 = por %p720, %p721
      %p723 = scmp.ne.s32.totalorder %s711, %s712
      %p724 = scmp.eq.s32.totalorder %s88, 1
      %p725 = por %p723, %p724
      %p727 = scmp.ne.s32.totalorder %s712, %s726
      %p728 = scmp.eq.s32.totalorder %s88, 0
      %p729 = por %p727, %p728
      %s731 = sadd.s32 %s730, 1
      %p734 = scmp.eq.s32.totalorder %s82, 1
      %p735 = scmp.ne.s32.totalorder %s730, %s732
      %p736 = scmp.eq.s32.totalorder %s82, 0
      %p737 = por %p735, %p736
      %p738 = scmp.ne.s32.totalorder %s730, %s732
      %p739 = scmp.eq.s32.totalorder %s87, 1
      %p740 = por %p738, %p739
      %p741 = scmp.ne.s32.totalorder %s732, %s733
      %p742 = scmp.eq.s32.totalorder %s87, 0
      %p743 = por %p741, %p742
      %p744 = scmp.ne.s32.totalorder %s732, %s733
      %p745 = scmp.eq.s32.totalorder %s88, 1
      %p746 = por %p744, %p745
      %p748 = scmp.ne.s32.totalorder %s733, %s747
      %p749 = scmp.eq.s32.totalorder %s88, 0
      %p750 = por %p748, %p749
      %s752 = sadd.s32 %s751, 1
      %p755 = scmp.eq.s32.totalorder %s82, 1
      %p756 = scmp.ne.s32.totalorder %s751, %s753
      %p757 = scmp.eq.s32.totalorder %s82, 0
      %p758 = por %p756, %p757
      %p759 = scmp.ne.s32.totalorder %s751, %s753
      %p760 = scmp.eq.s32.totalorder %s87, 1
      %p761 = por %p759, %p760
      %p762 = scmp.ne.s32.totalorder %s753, %s754
      %p763 = scmp.eq.s32.totalorder %s87, 0
      %p764 = por %p762, %p763
      %p765 = scmp.ne.s32.totalorder %s753, %s754
      %p766 = scmp.eq.s32.totalorder %s88, 1
      %p767 = por %p765, %p766
      %p769 = scmp.ne.s32.totalorder %s754, %s768
      %p770 = scmp.eq.s32.totalorder %s88, 0
      %p771 = por %p769, %p770
      %s773 = sadd.s32 %s772, 1
      %p776 = scmp.eq.s32.totalorder %s82, 1
      %p777 = scmp.ne.s32.totalorder %s772, %s774
      %p778 = scmp.eq.s32.totalorder %s82, 0
      %p779 = por %p777, %p778
      %p780 = scmp.ne.s32.totalorder %s772, %s774
      %p781 = scmp.eq.s32.totalorder %s87, 1
      %p782 = por %p780, %p781
      %p783 = scmp.ne.s32.totalorder %s774, %s775
      %p784 = scmp.eq.s32.totalorder %s87, 0
      %p785 = por %p783, %p784
      %p786 = scmp.ne.s32.totalorder %s774, %s775
      %p787 = scmp.eq.s32.totalorder %s88, 1
      %p788 = por %p786, %p787
      %p790 = scmp.ne.s32.totalorder %s775, %s789
      %p791 = scmp.eq.s32.totalorder %s88, 0
      %p792 = por %p790, %p791
      %s794 = sadd.s32 %s793, 1
      %p797 = scmp.eq.s32.totalorder %s82, 1
      %p798 = scmp.ne.s32.totalorder %s793, %s795
      %p799 = scmp.eq.s32.totalorder %s82, 0
      %p800 = por %p798, %p799
      %p801 = scmp.ne.s32.totalorder %s793, %s795
      %p802 = scmp.eq.s32.totalorder %s87, 1
      %p803 = por %p801, %p802
      %p804 = scmp.ne.s32.totalorder %s795, %s796
      %p805 = scmp.eq.s32.totalorder %s87, 0
      %p806 = por %p804, %p805
      %p807 = scmp.ne.s32.totalorder %s795, %s796
      %p808 = scmp.eq.s32.totalorder %s88, 1
      %p809 = por %p807, %p808
      %p811 = scmp.ne.s32.totalorder %s796, %s810
      %p812 = scmp.eq.s32.totalorder %s88, 0
      %p813 = por %p811, %p812
      %s815 = sadd.s32 %s814, 1
      %p818 = scmp.eq.s32.totalorder %s82, 1
      %p819 = scmp.ne.s32.totalorder %s814, %s816
      %p820 = scmp.eq.s32.totalorder %s82, 0
      %p821 = por %p819, %p820
      %p822 = scmp.ne.s32.totalorder %s814, %s816
      %p823 = scmp.eq.s32.totalorder %s87, 1
      %p824 = por %p822, %p823
      %p825 = scmp.ne.s32.totalorder %s816, %s817
      %p826 = scmp.eq.s32.totalorder %s87, 0
      %p827 = por %p825, %p826
      %p828 = scmp.ne.s32.totalorder %s816, %s817
      %p829 = scmp.eq.s32.totalorder %s88, 1
      %p830 = por %p828, %p829
      %p832 = scmp.ne.s32.totalorder %s817, %s831
      %p833 = scmp.eq.s32.totalorder %s88, 0
      %p834 = por %p832, %p833
      %s835 = ssub.s32 %s82, %s89
      %p836 = scmp.eq.s32.totalorder %s835, 0
      %s838 = sadd.s32 %s837, 1
      %s839 = scalar_select %p836, %s837, %s838
      %p842 = pneg %p836
      %p843 = scmp.eq.s32.totalorder %s82, 1
      %p844 = por %p842, %p843
      %p845 = scmp.ne.s32.totalorder %s837, %s840
      %p846 = scmp.eq.s32.totalorder %s82, 0
      %p847 = por %p845, %p846
      %p848 = scmp.ne.s32.totalorder %s837, %s840
      %p849 = scmp.eq.s32.totalorder %s87, 1
      %p850 = por %p848, %p849
      %p851 = scmp.ne.s32.totalorder %s840, %s841
      %p852 = scmp.eq.s32.totalorder %s87, 0
      %p853 = por %p851, %p852
      %p854 = scmp.ne.s32.totalorder %s840, %s841
      %p855 = scmp.eq.s32.totalorder %s88, 1
      %p856 = por %p854, %p855
      %p858 = scmp.ne.s32.totalorder %s841, %s857
      %p859 = scmp.eq.s32.totalorder %s88, 0
      %p860 = por %p858, %p859
      %p861 = scmp.le.s32.totalorder 1, %s82
      %p862 = scmp.lt.s32.totalorder %s82, 3
      %p863 = pnand %p861, %p862
      %p864 = pneg %p863
      // Predicated region
      $region9: #{transformer_forward.1} parent=5 // pred_check
        _
      $region10: #{transformer_forward.1} parent=5 // pred_check_branch
        %866 = sbr.rel (%p863) target = $region12
      $region11: #{transformer_forward.1} parent=5 // pred_region
        %s867 = ssub.s32 %s82, 1
        // Predicated region
        $region13: #{transformer_forward.1} parent=11 // pred_check
          %p868 = pneg %p155
        $region14: #{transformer_forward.1} parent=11 // pred_check_branch
          %870 = sbr.rel (%p868) target = $region16
        $region15: #{transformer_forward.1} parent=11 // pred_region
          _
        $region16: #{transformer_forward.1} parent=11 // pred_fallthru
          _
        // Predicated region
        $region17: #{transformer_forward.1} parent=11 // pred_check
          %p871 = pneg %p176
        $region18: #{transformer_forward.1} parent=11 // pred_check_branch
          %873 = sbr.rel (%p871) target = $region20
        $region19: #{transformer_forward.1} parent=11 // pred_region
          _
        $region20: #{transformer_forward.1} parent=11 // pred_fallthru
          _
        // Predicated region
        $region21: #{transformer_forward.1} parent=11 // pred_check
          %p874 = pneg %p197
        $region22: #{transformer_forward.1} parent=11 // pred_check_branch
          %876 = sbr.rel (%p874) target = $region24
        $region23: #{transformer_forward.1} parent=11 // pred_region
          _
        $region24: #{transformer_forward.1} parent=11 // pred_fallthru
          _
        // Predicated region
        $region25: #{transformer_forward.1} parent=11 // pred_check
          %p877 = pneg %p218
        $region26: #{transformer_forward.1} parent=11 // pred_check_branch
          %879 = sbr.rel (%p877) target = $region28
        $region27: #{transformer_forward.1} parent=11 // pred_region
          _
        $region28: #{transformer_forward.1} parent=11 // pred_fallthru
          _
        // Predicated region
        $region29: #{transformer_forward.1} parent=11 // pred_check
          %p880 = pneg %p239
        $region30: #{transformer_forward.1} parent=11 // pred_check_branch
          %882 = sbr.rel (%p880) target = $region32
        $region31: #{transformer_forward.1} parent=11 // pred_region
          _
        $region32: #{transformer_forward.1} parent=11 // pred_fallthru
          _
        // Predicated region
        $region33: #{transformer_forward.1} parent=11 // pred_check
          %p883 = pneg %p260
        $region34: #{transformer_forward.1} parent=11 // pred_check_branch
          %885 = sbr.rel (%p883) target = $region36
        $region35: #{transformer_forward.1} parent=11 // pred_region
          _
        $region36: #{transformer_forward.1} parent=11 // pred_fallthru
          _
        // Predicated region
        $region37: #{transformer_forward.1} parent=11 // pred_check
          %p886 = pneg %p281
        $region38: #{transformer_forward.1} parent=11 // pred_check_branch
          %888 = sbr.rel (%p886) target = $region40
        $region39: #{transformer_forward.1} parent=11 // pred_region
          _
        $region40: #{transformer_forward.1} parent=11 // pred_fallthru
          _
        // Predicated region
        $region41: #{transformer_forward.1} parent=11 // pred_check
          %p889 = pneg %p302
        $region42: #{transformer_forward.1} parent=11 // pred_check_branch
          %891 = sbr.rel (%p889) target = $region44
        $region43: #{transformer_forward.1} parent=11 // pred_region
          _
        $region44: #{transformer_forward.1} parent=11 // pred_fallthru
          _
        // Predicated region
        $region45: #{transformer_forward.1} parent=11 // pred_check
          %p892 = pneg %p323
        $region46: #{transformer_forward.1} parent=11 // pred_check_branch
          %894 = sbr.rel (%p892) target = $region48
        $region47: #{transformer_forward.1} parent=11 // pred_region
          %s896 = ssub.s32 16, 16
          %897 = vsyncadd [#allocation4], %s896
          %s899 = sshll.u32 %s21, 4
          %s900 = int_to_ptr.vmem [resolvable:$true] %s899
          %902 = dma.vmem_to_smem %s900, 16, [#allocation2], [#allocation4]
        $region48: #{transformer_forward.1} parent=11 // pred_fallthru
          _
        // Predicated region
        $region49: #{transformer_forward.1} parent=11 // pred_check
          %p903 = pneg %p344
        $region50: #{transformer_forward.1} parent=11 // pred_check_branch
          %905 = sbr.rel (%p903) target = $region52
        $region51: #{transformer_forward.1} parent=11 // pred_region
          _
        $region52: #{transformer_forward.1} parent=11 // pred_fallthru
          _
        // Predicated region
        $region53: #{transformer_forward.1} parent=11 // pred_check
          %p906 = pneg %p365
        $region54: #{transformer_forward.1} parent=11 // pred_check_branch
          %908 = sbr.rel (%p906) target = $region56
        $region55: #{transformer_forward.1} parent=11 // pred_region
          _
        $region56: #{transformer_forward.1} parent=11 // pred_fallthru
          _
        // Predicated region
        $region57: #{transformer_forward.1} parent=11 // pred_check
          %p909 = pneg %p386
        $region58: #{transformer_forward.1} parent=11 // pred_check_branch
          %911 = sbr.rel (%p909) target = $region60
        $region59: #{transformer_forward.1} parent=11 // pred_region
          _
        $region60: #{transformer_forward.1} parent=11 // pred_fallthru
          _
        // Predicated region
        $region61: #{transformer_forward.1} parent=11 // pred_check
          %p912 = pneg %p407
        $region62: #{transformer_forward.1} parent=11 // pred_check_branch
          %914 = sbr.rel (%p912) target = $region64
        $region63: #{transformer_forward.1} parent=11 // pred_region
          _
        $region64: #{transformer_forward.1} parent=11 // pred_fallthru
          _
        // Predicated region
        $region65: #{transformer_forward.1} parent=11 // pred_check
          %p915 = pneg %p428
        $region66: #{transformer_forward.1} parent=11 // pred_check_branch
          %917 = sbr.rel (%p915) target = $region68
        $region67: #{transformer_forward.1} parent=11 // pred_region
          _
        $region68: #{transformer_forward.1} parent=11 // pred_fallthru
          _
        // Predicated region
        $region69: #{transformer_forward.1} parent=11 // pred_check
          %p918 = pneg %p449
        $region70: #{transformer_forward.1} parent=11 // pred_check_branch
          %920 = sbr.rel (%p918) target = $region72
        $region71: #{transformer_forward.1} parent=11 // pred_region
          _
        $region72: #{transformer_forward.1} parent=11 // pred_fallthru
          _
        // Predicated region
        $region73: #{transformer_forward.1} parent=11 // pred_check
          %p921 = pneg %p470
        $region74: #{transformer_forward.1} parent=11 // pred_check_branch
          %923 = sbr.rel (%p921) target = $region76
        $region75: #{transformer_forward.1} parent=11 // pred_region
          _
        $region76: #{transformer_forward.1} parent=11 // pred_fallthru
          _
        // Predicated region
        $region77: #{transformer_forward.1} parent=11 // pred_check
          %p924 = pneg %p491
        $region78: #{transformer_forward.1} parent=11 // pred_check_branch
          %926 = sbr.rel (%p924) target = $region80
        $region79: #{transformer_forward.1} parent=11 // pred_region
          _
        $region80: #{transformer_forward.1} parent=11 // pred_fallthru
          _
        // Predicated region
        $region81: #{transformer_forward.1} parent=11 // pred_check
          %p927 = pneg %p512
        $region82: #{transformer_forward.1} parent=11 // pred_check_branch
          %929 = sbr.rel (%p927) target = $region84
        $region83: #{transformer_forward.1} parent=11 // pred_region
          _
        $region84: #{transformer_forward.1} parent=11 // pred_fallthru
          _
        // Predicated region
        $region85: #{transformer_forward.1} parent=11 // pred_check
          %p930 = pneg %p533
        $region86: #{transformer_forward.1} parent=11 // pred_check_branch
          %932 = sbr.rel (%p930) target = $region88
        $region87: #{transformer_forward.1} parent=11 // pred_region
          _
        $region88: #{transformer_forward.1} parent=11 // pred_fallthru
          _
        // Predicated region
        $region89: #{transformer_forward.1} parent=11 // pred_check
          %p933 = pneg %p554
        $region90: #{transformer_forward.1} parent=11 // pred_check_branch
          %935 = sbr.rel (%p933) target = $region92
        $region91: #{transformer_forward.1} parent=11 // pred_region
          _
        $region92: #{transformer_forward.1} parent=11 // pred_fallthru
          _
        // Predicated region
        $region93: #{transformer_forward.1} parent=11 // pred_check
          %p936 = pneg %p575
        $region94: #{transformer_forward.1} parent=11 // pred_check_branch
          %938 = sbr.rel (%p936) target = $region96
        $region95: #{transformer_forward.1} parent=11 // pred_region
          _
        $region96: #{transformer_forward.1} parent=11 // pred_fallthru
          _
        // Predicated region
        $region97: #{transformer_forward.1} parent=11 // pred_check
          %p939 = pneg %p596
        $region98: #{transformer_forward.1} parent=11 // pred_check_branch
          %941 = sbr.rel (%p939) target = $region100
        $region99: #{transformer_forward.1} parent=11 // pred_region
          _
        $region100: #{transformer_forward.1} parent=11 // pred_fallthru
          _
        // Predicated region
        $region101: #{transformer_forward.1} parent=11 // pred_check
          %p942 = pneg %p617
        $region102: #{transformer_forward.1} parent=11 // pred_check_branch
          %944 = sbr.rel (%p942) target = $region104
        $region103: #{transformer_forward.1} parent=11 // pred_region
          _
        $region104: #{transformer_forward.1} parent=11 // pred_fallthru
          _
        // Predicated region
        $region105: #{transformer_forward.1} parent=11 // pred_check
          %p945 = pneg %p638
        $region106: #{transformer_forward.1} parent=11 // pred_check_branch
          %947 = sbr.rel (%p945) target = $region108
        $region107: #{transformer_forward.1} parent=11 // pred_region
          _
        $region108: #{transformer_forward.1} parent=11 // pred_fallthru
          _
        // Predicated region
        $region109: #{transformer_forward.1} parent=11 // pred_check
          %p948 = pneg %p659
        $region110: #{transformer_forward.1} parent=11 // pred_check_branch
          %950 = sbr.rel (%p948) target = $region112
        $region111: #{transformer_forward.1} parent=11 // pred_region
          _
        $region112: #{transformer_forward.1} parent=11 // pred_fallthru
          _
        // Predicated region
        $region113: #{transformer_forward.1} parent=11 // pred_check
          %p951 = pneg %p680
        $region114: #{transformer_forward.1} parent=11 // pred_check_branch
          %953 = sbr.rel (%p951) target = $region116
        $region115: #{transformer_forward.1} parent=11 // pred_region
          _
        $region116: #{transformer_forward.1} parent=11 // pred_fallthru
          _
        // Predicated region
        $region117: #{transformer_forward.1} parent=11 // pred_check
          %p954 = pneg %p701
        $region118: #{transformer_forward.1} parent=11 // pred_check_branch
          %956 = sbr.rel (%p954) target = $region120
        $region119: #{transformer_forward.1} parent=11 // pred_region
          _
        $region120: #{transformer_forward.1} parent=11 // pred_fallthru
          _
        // Predicated region
        $region121: #{transformer_forward.1} parent=11 // pred_check
          %p957 = pneg %p722
        $region122: #{transformer_forward.1} parent=11 // pred_check_branch
          %959 = sbr.rel (%p957) target = $region124
        $region123: #{transformer_forward.1} parent=11 // pred_region
          _
        $region124: #{transformer_forward.1} parent=11 // pred_fallthru
          _
        // Predicated region
        $region125: #{transformer_forward.1} parent=11 // pred_check
          %p960 = pneg %p743
        $region126: #{transformer_forward.1} parent=11 // pred_check_branch
          %962 = sbr.rel (%p960) target = $region128
        $region127: #{transformer_forward.1} parent=11 // pred_region
          %s964 = ssub.s32 16, 16
          %965 = vsyncadd [#allocation6], %s964
          %s967 = sshll.u32 %s61, 4
          %s968 = int_to_ptr.vmem [resolvable:$true] %s967
          %970 = dma.vmem_to_smem %s968, 16, [#allocation5], [#allocation6]
        $region128: #{transformer_forward.1} parent=11 // pred_fallthru
          _
        // Predicated region
        $region129: #{transformer_forward.1} parent=11 // pred_check
          %p971 = pneg %p764
        $region130: #{transformer_forward.1} parent=11 // pred_check_branch
          %973 = sbr.rel (%p971) target = $region132
        $region131: #{transformer_forward.1} parent=11 // pred_region
          _
        $region132: #{transformer_forward.1} parent=11 // pred_fallthru
          _
        // Predicated region
        $region133: #{transformer_forward.1} parent=11 // pred_check
          %p974 = pneg %p785
        $region134: #{transformer_forward.1} parent=11 // pred_check_branch
          %976 = sbr.rel (%p974) target = $region136
        $region135: #{transformer_forward.1} parent=11 // pred_region
          _
        $region136: #{transformer_forward.1} parent=11 // pred_fallthru
          _
        // Predicated region
        $region137: #{transformer_forward.1} parent=11 // pred_check
          %p977 = pneg %p806
        $region138: #{transformer_forward.1} parent=11 // pred_check_branch
          %979 = sbr.rel (%p977) target = $region140
        $region139: #{transformer_forward.1} parent=11 // pred_region
          _
        $region140: #{transformer_forward.1} parent=11 // pred_fallthru
          _
        // Predicated region
        $region141: #{transformer_forward.1} parent=11 // pred_check
          %p980 = pneg %p827
        $region142: #{transformer_forward.1} parent=11 // pred_check_branch
          %982 = sbr.rel (%p980) target = $region144
        $region143: #{transformer_forward.1} parent=11 // pred_region
          _
        $region144: #{transformer_forward.1} parent=11 // pred_fallthru
          _
      $region12: #{transformer_forward.1} parent=5 // pred_fallthru
        _
      %p983 = scmp.lt.s32.totalorder %s82, 2
      // Predicated region
      $region145: #{transformer_forward.1} parent=5 // pred_check
        %p984 = pneg %p983
      $region146: #{transformer_forward.1} parent=5 // pred_check_branch
        %986 = sbr.rel (%p984) target = $region148
      $region147: #{transformer_forward.1} parent=5 // pred_region
        // Predicated region
        $region149: #{transformer_forward.1} parent=147 // pred_check
          %p987 = pneg %p102
        $region150: #{transformer_forward.1} parent=147 // pred_check_branch
          %989 = sbr.rel (%p987) target = $region152
        $region151: #{transformer_forward.1} parent=147 // pred_region
          %p990 = scmp.lt.s32.totalorder %s82, 1
          %s991 = scalar_select %p990, %s82, 1
          %s992 = smul.addr %s991, 8
          %s993 = scalar_lea.vmem %s1, %s992
        $region152: #{transformer_forward.1} parent=147 // pred_fallthru
          _
        // Predicated region
        $region153: #{transformer_forward.1} parent=147 // pred_check
          %p994 = pneg %p128
        $region154: #{transformer_forward.1} parent=147 // pred_check_branch
          %996 = sbr.rel (%p994) target = $region156
        $region155: #{transformer_forward.1} parent=147 // pred_region
          %p997 = scmp.lt.s32.totalorder %s82, 1
          %s998 = scalar_select %p997, %s82, 1
          %s999 = smul.addr %s998, 8
          %s1000 = scalar_lea.vmem %s3, %s999
        $region156: #{transformer_forward.1} parent=147 // pred_fallthru
          _
      $region148: #{transformer_forward.1} parent=5 // pred_fallthru
        _
      %p1001 = scmp.le.s32.totalorder 1, %s82
      %p1002 = scmp.lt.s32.totalorder %s82, 3
      %p1003 = pnand %p1001, %p1002
      %p1004 = pneg %p1003
      // Predicated region
      $region157: #{transformer_forward.1} parent=5 // pred_check
        _
      $region158: #{transformer_forward.1} parent=5 // pred_check_branch
        %1006 = sbr.rel (%p1003) target = $region160
      $region159: #{transformer_forward.1} parent=5 // pred_region
        %s1007 = ssub.s32 %s82, 1
        // Predicated region
        $region161: #{transformer_forward.1} parent=159 // pred_check
          %p1008 = pneg %p323
        $region162: #{transformer_forward.1} parent=159 // pred_check_branch
          %1010 = sbr.rel (%p1008) target = $region164
        $region163: #{transformer_forward.1} parent=159 // pred_region
          %1011 = dma.done [#allocation4], 16
        $region164: #{transformer_forward.1} parent=159 // pred_fallthru
          _
        // Predicated region
        $region165: #{transformer_forward.1} parent=159 // pred_check
          %p1012 = pneg %p743
        $region166: #{transformer_forward.1} parent=159 // pred_check_branch
          %1014 = sbr.rel (%p1012) target = $region168
        $region167: #{transformer_forward.1} parent=159 // pred_region
          %1015 = dma.done [#allocation6], 16
        $region168: #{transformer_forward.1} parent=159 // pred_fallthru
          _
        %1016 = sfence
        %p1017 = scmp.lt.s32.totalorder %s87, 1
        %s1018 = scalar_select %p1017, %s87, 1
        %s1019 = smul.addr %s1018, 8
        %s1020 = scalar_lea.vmem %s1, %s1019
        %p1021 = pneg %p108
        %p1022 = pneg %p105
        %p1023 = scmp.lt.s32.totalorder %s87, 1
        %s1024 = scalar_select %p1023, %s87, 1
        %s1025 = smul.addr %s1024, 8
        %s1026 = scalar_lea.vmem %s3, %s1025
        %p1027 = pneg %p134
        %p1028 = pneg %p131
        %p1029 = pneg %p155
        %p1030 = pneg %p152
        %p1031 = pneg %p176
        %p1032 = pneg %p173
        %p1033 = pneg %p197
        %p1034 = pneg %p194
        %p1035 = pneg %p218
        %p1036 = pneg %p215
        %p1037 = pneg %p239
        %p1038 = pneg %p236
        %p1039 = pneg %p260
        %p1040 = pneg %p257
        %p1041 = pneg %p281
        %p1042 = pneg %p278
        %p1043 = pneg %p302
        %p1044 = pneg %p299
        %p1045 = pneg %p323
        %p1046 = pneg %p320
        %p1047 = pneg %p344
        %p1048 = pneg %p341
        %p1049 = pneg %p365
        %p1050 = pneg %p362
        %p1051 = pneg %p386
        %p1052 = pneg %p383
        %p1053 = pneg %p407
        %p1054 = pneg %p404
        %p1055 = pneg %p428
        %p1056 = pneg %p425
        %p1057 = pneg %p449
        %p1058 = pneg %p446
        %p1059 = pneg %p470
        %p1060 = pneg %p467
        %p1061 = pneg %p491
        %p1062 = pneg %p488
        %p1063 = pneg %p512
        %p1064 = pneg %p509
        %p1065 = pneg %p533
        %p1066 = pneg %p530
        %p1067 = pneg %p554
        %p1068 = pneg %p551
        %p1069 = pneg %p575
        %p1070 = pneg %p572
        %p1071 = pneg %p596
        %p1072 = pneg %p593
        %p1073 = pneg %p617
        %p1074 = pneg %p614
        %p1075 = pneg %p638
        %p1076 = pneg %p635
        %p1077 = pneg %p659
        %p1078 = pneg %p656
        %p1079 = pneg %p680
        %p1080 = pneg %p677
        %p1081 = pneg %p701
        %p1082 = pneg %p698
        %p1083 = pneg %p722
        %p1084 = pneg %p719
        %p1085 = pneg %p743
        %p1086 = pneg %p740
        %p1087 = pneg %p764
        %p1088 = pneg %p761
        %p1089 = pneg %p785
        %p1090 = pneg %p782
        %p1091 = pneg %p806
        %p1092 = pneg %p803
        %p1093 = pneg %p827
        %p1094 = pneg %p824
        %p1095 = pneg %p853
        %p1096 = pneg %p850
        %s1097 = sand.u32 %s840, 1
        %s1098 = scalar_lea.sflag [#allocation3], %s1097
        %s1099 = sand.u32 %s840, 1
        %s1100 = smul.addr %s1099, 8
        %s1101 = scalar_lea.vmem [#allocation7], %s1100
        %p1102 = scmp.lt.s32.totalorder %s87, 1
        %s1103 = scalar_select %p1102, %s87, 1
        %s1104 = smul.addr %s1103, 8
        %s1105 = scalar_lea.vmem %s1, %s1104
        %p1106 = scmp.lt.s32.totalorder %s87, 1
        %s1107 = scalar_select %p1106, %s87, 1
        %s1108 = smul.addr %s1107, 8
        %s1109 = scalar_lea.vmem %s3, %s1108
        %v1111 = vlaneseq
        %v1112 = vshrl.u32 %v1111, 7
        %v1113 = vlaneseq
        %v1114 = vand.u32 %v1113, 127
        %vm1115 = vcmp.le.s32.totalorder %v1114, %v1112
        %v1116 = vld [vmem:[%s1105] sm:$0xff]
        %v1117 = vld [vmem:[%s5] sm:$0xf]
        %v1118 = vld [vmem:[%s5 + $0x4] sm:$0xf]
        %v1119 = vld [vmem:[%s5 + $0x8] sm:$0xf]
        %v1120 = vld [vmem:[%s5 + $0xc] sm:$0xf]
        %v1121 = vpack.c.bf16 %v1116, %v1116
        %v1122 = vld [vmem:[%s7] sm:$0x1]
        %v1124 = vlaneseq
        %v1125 = vshrl.u32 %v1124, 7
        %v1126 = vsub.s32 0, %v1125
        %v1127 = vrot.slane %v1122, %v1126
        %v1133 = vunpack.c.l.b16 %v1117
        %v1134 = vunpack.c.l.b16 %v1118
        %v1135 = vunpack.c.l.b16 %v1119
        %v1136 = vunpack.c.l.b16 %v1120
        %v1137 = vpack.c.b16 %v1134, %v1133
        %v1138 = vpack.c.b16 %v1136, %v1135
        %vm1141 = vcmask 261120
        %v1143 = vsel %vm1141, %v1121, 0
        %1145 = vmatprep.subr.bf16.mxu0 0
        %1146 = vmatpush1.bf16.msra.mxu0 0
        %1147 = vmatprep.subr.bf16.mxu0 0
        %1148 = vmatpush1.bf16.msra.mxu0 0
        %1149 = vmatprep.subr.bf16.mxu0 0
        %1150 = vmatpush1.bf16.msra.mxu0 0
        %1151 = vmatprep.subr.bf16.mxu0 0
        %1152 = vmatpush1.bf16.msra.mxu0 0
        %1153 = vmatprep.subr.bf16.mxu0 0
        %1154 = vmatpush1.bf16.msra.mxu0 0
        %1155 = vmatprep.subr.bf16.mxu0 0
        %1156 = vmatpush1.bf16.msra.mxu0 0
        %1157 = vmatprep.subr.bf16.mxu0 0
        %1158 = vmatpush1.bf16.msra.mxu0 %v1138
        %1159 = vmatprep.subr.bf16.mxu0 0
        %1160 = vmatpush1.bf16.msra.mxu0 %v1137
        %1161 = vmatprep.subr.bf16.mxu0 0
        %1162 = vmatpush2.bf16.msra.mxu0 0
        %1163 = vmatprep.subr.bf16.mxu0 0
        %1164 = vmatpush2.bf16.msra.mxu0 0
        %1165 = vmatprep.subr.bf16.mxu0 0
        %1166 = vmatpush2.bf16.msra.mxu0 0
        %1167 = vmatprep.subr.bf16.mxu0 0
        %1168 = vmatpush2.bf16.msra.mxu0 0
        %1169 = vmatprep.subr.bf16.mxu0 0
        %1170 = vmatpush2.bf16.msra.mxu0 0
        %1171 = vmatprep.subr.bf16.mxu0 0
        %1172 = vmatpush2.bf16.msra.mxu0 0
        %1173 = vmatprep.subr.bf16.mxu0 0
        %1174 = vmatpush2.bf16.msra.mxu0 0
        %1175 = vmatprep.subr.bf16.mxu0 0
        %1176 = vmatpush2.bf16.msra.mxu0 0
        %1177 = vmatprep.mubr.bf16.mxu0 0
        %1178 = vmatmul.mubr.bf16.gmra.mxu0 %v1143
        %v1179 = vpop.f32.mrf.mxu0
        %v1180 = vadd.f32 %v1127, %v1179
        %v1181 = vpop.f32.mrf.mxu0
        %v1182 = vpop.f32.mrf.mxu0
        %v1183 = vpop.f32.mrf.mxu0
        %1184 = vdwg.mxu0
        %v1185 = vmul.f32 %v1180, 0.25
        %v1186 = vld [vmem:[%s9] sm:$0xf]
        %v1187 = vld [vmem:[%s9 + $0x4] sm:$0xf]
        %v1188 = vld [vmem:[%s9 + $0x8] sm:$0xf]
        %v1189 = vld [vmem:[%s9 + $0xc] sm:$0xf]
        %v1190 = vld [vmem:[%s9 + $0x10] sm:$0xf]
        %v1191 = vld [vmem:[%s9 + $0x14] sm:$0xf]
        %v1192 = vld [vmem:[%s9 + $0x18] sm:$0xf]
        %v1193 = vld [vmem:[%s9 + $0x1c] sm:$0xf]
        %v1194 = vld [vmem:[%s11] sm:$0x1]
        %v1195 = vpack.c.bf16 %v1185, %v1185
        %v1196 = vpack.c.bf16 %v1180, %v1180
        %1198 = vrot.lane.b32.xlu0 %v1196, 64
        %v1199 = vpop.permute.xlu0 %1198
        %vm1200 = vcmask 130048
        %v1202 = vsel %vm1200, %v1195, 0
        %v1205 = vsel %vm1200, %v1199, 0
        %1207 = vmatprep.subr.bf16.mxu0 0
        %1208 = vmatpush1.bf16.xpose.msra.mxu0 0
        %1209 = vmatprep.subr.bf16.mxu0 0
        %1210 = vmatpush1.bf16.xpose.msra.mxu0 0
        %1211 = vmatprep.subr.bf16.mxu0 0
        %1212 = vmatpush1.bf16.xpose.msra.mxu0 0
        %1213 = vmatprep.subr.bf16.mxu0 0
        %1214 = vmatpush1.bf16.xpose.msra.mxu0 0
        %1215 = vmatprep.subr.bf16.mxu0 0
        %1216 = vmatpush1.bf16.xpose.msra.mxu0 0
        %1217 = vmatprep.subr.bf16.mxu0 0
        %1218 = vmatpush1.bf16.xpose.msra.mxu0 0
        %1219 = vmatprep.subr.bf16.mxu0 0
        %1220 = vmatpush1.bf16.xpose.msra.mxu0 0
        %1221 = vmatprep.subr.bf16.mxu0 0
        %1222 = vmatpush1.bf16.xpose.msra.mxu0 %v1205
        %1223 = vmatprep.subr.bf16.mxu0 0
        %1224 = vmatpush2.bf16.xpose.msra.mxu0 0
        %1225 = vmatprep.subr.bf16.mxu0 0
        %1226 = vmatpush2.bf16.xpose.msra.mxu0 0
        %1227 = vmatprep.subr.bf16.mxu0 0
        %1228 = vmatpush2.bf16.xpose.msra.mxu0 0
        %1229 = vmatprep.subr.bf16.mxu0 0
        %1230 = vmatpush2.bf16.xpose.msra.mxu0 0
        %1231 = vmatprep.subr.bf16.mxu0 0
        %1232 = vmatpush2.bf16.xpose.msra.mxu0 0
        %1233 = vmatprep.subr.bf16.mxu0 0
        %1234 = vmatpush2.bf16.xpose.msra.mxu0 0
        %1235 = vmatprep.subr.bf16.mxu0 0
        %1236 = vmatpush2.bf16.xpose.msra.mxu0 0
        %1237 = vmatprep.subr.bf16.mxu0 0
        %1238 = vmatpush2.bf16.xpose.msra.mxu0 0
        %1239 = vmatprep.mubr.bf16.mxu0 0
        %1240 = vmatmul.mubr.bf16.gmra.mxu0 %v1202
        %v1241 = vpop.f32.mrf.mxu0
        %v1242 = vadd.f32 0.0, %v1241
        %v1243 = vpop.f32.mrf.mxu0
        %v1244 = vpop.f32.mrf.mxu0
        %v1245 = vpop.f32.mrf.mxu0
        %1246 = vdwg.mxu0
        %vm1247 = vcmask 64512
        %v1248 = vsel %vm1247, %v1242, -inf
        %1249 = vmax.xlane.f32.xlu0 %v1248
        %v1250 = vpop.xlane.xlu0 %1249
        %v1251 = vsub.f32 %v1242, %v1250
        %v1252 = vmul.f32 %v1251, 1.442695
        %v1253 = vpow.pop %v1252
        %v1254 = vsel %vm1247, %v1253, 0.0
        %1255 = vadd.xlane.f32.xlu0 %v1254
        %v1256 = vpop.xlane.xlu0 %1255
        %v1257 = vrcp.pop %v1256
        %v1258 = vmul.f32 %v1253, %v1257
        %v1259 = vpack.c.bf16 %v1258, %v1258
        %1260 = vrot.lane.b32.xlu0 %v1196, 32
        %v1261 = vpop.permute.xlu0 %1260
        %v1263 = vsel %vm1247, %v1259, 0
        %vm1265 = vcmask 1043456
        %v1267 = vsel %vm1265, %v1261, 0
        %1269 = vmatprep.subr.bf16.mxu0 0
        %1270 = vmatpush1.bf16.msra.mxu0 0
        %1271 = vmatprep.subr.bf16.mxu0 0
        %1272 = vmatpush1.bf16.msra.mxu0 0
        %1273 = vmatprep.subr.bf16.mxu0 0
        %1274 = vmatpush1.bf16.msra.mxu0 0
        %1275 = vmatprep.subr.bf16.mxu0 0
        %1276 = vmatpush1.bf16.msra.mxu0 0
        %1277 = vmatprep.subr.bf16.mxu0 0
        %1278 = vmatpush1.bf16.msra.mxu0 0
        %1279 = vmatprep.subr.bf16.mxu0 0
        %1280 = vmatpush1.bf16.msra.mxu0 0
        %1281 = vmatprep.subr.bf16.mxu0 0
        %1282 = vmatpush1.bf16.msra.mxu0 0
        %1283 = vmatprep.subr.bf16.mxu0 0
        %1284 = vmatpush1.bf16.msra.mxu0 %v1267
        %1285 = vmatprep.subr.bf16.mxu0 0
        %1286 = vmatpush2.bf16.msra.mxu0 0
        %1287 = vmatprep.subr.bf16.mxu0 0
        %1288 = vmatpush2.bf16.msra.mxu0 0
        %1289 = vmatprep.subr.bf16.mxu0 0
        %1290 = vmatpush2.bf16.msra.mxu0 0
        %1291 = vmatprep.subr.bf16.mxu0 0
        %1292 = vmatpush2.bf16.msra.mxu0 0
        %1293 = vmatprep.subr.bf16.mxu0 0
        %1294 = vmatpush2.bf16.msra.mxu0 0
        %1295 = vmatprep.subr.bf16.mxu0 0
        %1296 = vmatpush2.bf16.msra.mxu0 0
        %1297 = vmatprep.subr.bf16.mxu0 0
        %1298 = vmatpush2.bf16.msra.mxu0 0
        %1299 = vmatprep.subr.bf16.mxu0 0
        %1300 = vmatpush2.bf16.msra.mxu0 0
        %1301 = vmatprep.mubr.bf16.mxu0 0
        %1302 = vmatmul.mubr.bf16.gmra.mxu0 %v1263
        %v1303 = vpop.f32.mrf.mxu0
        %v1304 = vadd.f32 0.0, %v1303
        %v1305 = vpop.f32.mrf.mxu0
        %v1306 = vpop.f32.mrf.mxu0
        %v1307 = vpop.f32.mrf.mxu0
        %1308 = vdwg.mxu0
        %1310 = vrot.lane.b32.xlu0 %v1195, 112
        %v1311 = vpop.permute.xlu0 %1310
        %v1313 = vsel %vm1200, %v1311, 0
        %1315 = vmatprep.subr.bf16.mxu0 0
        %1316 = vmatpush1.bf16.xpose.msra.mxu0 0
        %1317 = vmatprep.subr.bf16.mxu0 0
        %1318 = vmatpush1.bf16.xpose.msra.mxu0 0
        %1319 = vmatprep.subr.bf16.mxu0 0
        %1320 = vmatpush1.bf16.xpose.msra.mxu0 0
        %1321 = vmatprep.subr.bf16.mxu0 0
        %1322 = vmatpush1.bf16.xpose.msra.mxu0 0
        %1323 = vmatprep.subr.bf16.mxu0 0
        %1324 = vmatpush1.bf16.xpose.msra.mxu0 0
        %1325 = vmatprep.subr.bf16.mxu0 0
        %1326 = vmatpush1.bf16.xpose.msra.mxu0 0
        %1327 = vmatprep.subr.bf16.mxu0 0
        %1328 = vmatpush1.bf16.xpose.msra.mxu0 0
        %1329 = vmatprep.subr.bf16.mxu0 0
        %1330 = vmatpush1.bf16.xpose.msra.mxu0 %v1205
        %1331 = vmatprep.subr.bf16.mxu0 0
        %1332 = vmatpush2.bf16.xpose.msra.mxu0 0
        %1333 = vmatprep.subr.bf16.mxu0 0
        %1334 = vmatpush2.bf16.xpose.msra.mxu0 0
        %1335 = vmatprep.subr.bf16.mxu0 0
        %1336 = vmatpush2.bf16.xpose.msra.mxu0 0
        %1337 = vmatprep.subr.bf16.mxu0 0
        %1338 = vmatpush2.bf16.xpose.msra.mxu0 0
        %1339 = vmatprep.subr.bf16.mxu0 0
        %1340 = vmatpush2.bf16.xpose.msra.mxu0 0
        %1341 = vmatprep.subr.bf16.mxu0 0
        %1342 = vmatpush2.bf16.xpose.msra.mxu0 0
        %1343 = vmatprep.subr.bf16.mxu0 0
        %1344 = vmatpush2.bf16.xpose.msra.mxu0 0
        %1345 = vmatprep.subr.bf16.mxu0 0
        %1346 = vmatpush2.bf16.xpose.msra.mxu0 0
        %1347 = vmatprep.mubr.bf16.mxu0 0
        %1348 = vmatmul.mubr.bf16.gmra.mxu0 %v1313
        %v1349 = vpop.f32.mrf.mxu0
        %v1350 = vadd.f32 0.0, %v1349
        %v1351 = vpop.f32.mrf.mxu0
        %v1352 = vpop.f32.mrf.mxu0
        %v1353 = vpop.f32.mrf.mxu0
        %1354 = vdwg.mxu0
        %v1355 = vsel %vm1247, %v1350, -inf
        %1356 = vmax.xlane.f32.xlu0 %v1355
        %v1357 = vpop.xlane.xlu0 %1356
        %v1358 = vsub.f32 %v1350, %v1357
        %v1359 = vmul.f32 %v1358, 1.442695
        %v1360 = vpow.pop %v1359
        %v1361 = vsel %vm1247, %v1360, 0.0
        %1362 = vadd.xlane.f32.xlu0 %v1361
        %v1363 = vpop.xlane.xlu0 %1362
        %v1364 = vrcp.pop %v1363
        %v1365 = vmul.f32 %v1360, %v1364
        %v1366 = vpack.c.bf16 %v1365, %v1365
        %v1368 = vsel %vm1247, %v1366, 0
        %1370 = vmatprep.subr.bf16.mxu0 0
        %1371 = vmatpush1.bf16.msra.mxu0 0
        %1372 = vmatprep.subr.bf16.mxu0 0
        %1373 = vmatpush1.bf16.msra.mxu0 0
        %1374 = vmatprep.subr.bf16.mxu0 0
        %1375 = vmatpush1.bf16.msra.mxu0 0
        %1376 = vmatprep.subr.bf16.mxu0 0
        %1377 = vmatpush1.bf16.msra.mxu0 0
        %1378 = vmatprep.subr.bf16.mxu0 0
        %1379 = vmatpush1.bf16.msra.mxu0 0
        %1380 = vmatprep.subr.bf16.mxu0 0
        %1381 = vmatpush1.bf16.msra.mxu0 0
        %1382 = vmatprep.subr.bf16.mxu0 0
        %1383 = vmatpush1.bf16.msra.mxu0 0
        %1384 = vmatprep.subr.bf16.mxu0 0
        %1385 = vmatpush1.bf16.msra.mxu0 %v1267
        %1386 = vmatprep.subr.bf16.mxu0 0
        %1387 = vmatpush2.bf16.msra.mxu0 0
        %1388 = vmatprep.subr.bf16.mxu0 0
        %1389 = vmatpush2.bf16.msra.mxu0 0
        %1390 = vmatprep.subr.bf16.mxu0 0
        %1391 = vmatpush2.bf16.msra.mxu0 0
        %1392 = vmatprep.subr.bf16.mxu0 0
        %1393 = vmatpush2.bf16.msra.mxu0 0
        %1394 = vmatprep.subr.bf16.mxu0 0
        %1395 = vmatpush2.bf16.msra.mxu0 0
        %1396 = vmatprep.subr.bf16.mxu0 0
        %1397 = vmatpush2.bf16.msra.mxu0 0
        %1398 = vmatprep.subr.bf16.mxu0 0
        %1399 = vmatpush2.bf16.msra.mxu0 0
        %1400 = vmatprep.subr.bf16.mxu0 0
        %1401 = vmatpush2.bf16.msra.mxu0 0
        %1402 = vmatprep.mubr.bf16.mxu0 0
        %1403 = vmatmul.mubr.bf16.gmra.mxu0 %v1368
        %v1404 = vpop.f32.mrf.mxu0
        %v1405 = vadd.f32 0.0, %v1404
        %v1406 = vpop.f32.mrf.mxu0
        %v1407 = vpop.f32.mrf.mxu0
        %v1408 = vpop.f32.mrf.mxu0
        %1409 = vdwg.mxu0
        %1410 = vrot.lane.b32.xlu0 %v1195, 96
        %v1411 = vpop.permute.xlu0 %1410
        %1412 = vrot.lane.b32.xlu0 %v1196, 48
        %v1413 = vpop.permute.xlu0 %1412
        %v1415 = vsel %vm1200, %v1411, 0
        %v1418 = vsel %vm1200, %v1413, 0
        %1420 = vmatprep.subr.bf16.mxu0 0
        %1421 = vmatpush1.bf16.xpose.msra.mxu0 0
        %1422 = vmatprep.subr.bf16.mxu0 0
        %1423 = vmatpush1.bf16.xpose.msra.mxu0 0
        %1424 = vmatprep.subr.bf16.mxu0 0
        %1425 = vmatpush1.bf16.xpose.msra.mxu0 0
        %1426 = vmatprep.subr.bf16.mxu0 0
        %1427 = vmatpush1.bf16.xpose.msra.mxu0 0
        %1428 = vmatprep.subr.bf16.mxu0 0
        %1429 = vmatpush1.bf16.xpose.msra.mxu0 0
        %1430 = vmatprep.subr.bf16.mxu0 0
        %1431 = vmatpush1.bf16.xpose.msra.mxu0 0
        %1432 = vmatprep.subr.bf16.mxu0 0
        %1433 = vmatpush1.bf16.xpose.msra.mxu0 0
        %1434 = vmatprep.subr.bf16.mxu0 0
        %1435 = vmatpush1.bf16.xpose.msra.mxu0 %v1418
        %1436 = vmatprep.subr.bf16.mxu0 0
        %1437 = vmatpush2.bf16.xpose.msra.mxu0 0
        %1438 = vmatprep.subr.bf16.mxu0 0
        %1439 = vmatpush2.bf16.xpose.msra.mxu0 0
        %1440 = vmatprep.subr.bf16.mxu0 0
        %1441 = vmatpush2.bf16.xpose.msra.mxu0 0
        %1442 = vmatprep.subr.bf16.mxu0 0
        %1443 = vmatpush2.bf16.xpose.msra.mxu0 0
        %1444 = vmatprep.subr.bf16.mxu0 0
        %1445 = vmatpush2.bf16.xpose.msra.mxu0 0
        %1446 = vmatprep.subr.bf16.mxu0 0
        %1447 = vmatpush2.bf16.xpose.msra.mxu0 0
        %1448 = vmatprep.subr.bf16.mxu0 0
        %1449 = vmatpush2.bf16.xpose.msra.mxu0 0
        %1450 = vmatprep.subr.bf16.mxu0 0
        %1451 = vmatpush2.bf16.xpose.msra.mxu0 0
        %1452 = vmatprep.mubr.bf16.mxu0 0
        %1453 = vmatmul.mubr.bf16.gmra.mxu0 %v1415
        %v1454 = vpop.f32.mrf.mxu0
        %v1455 = vadd.f32 0.0, %v1454
        %v1456 = vpop.f32.mrf.mxu0
        %v1457 = vpop.f32.mrf.mxu0
        %v1458 = vpop.f32.mrf.mxu0
        %1459 = vdwg.mxu0
        %v1460 = vsel %vm1247, %v1455, -inf
        %1461 = vmax.xlane.f32.xlu0 %v1460
        %v1462 = vpop.xlane.xlu0 %1461
        %v1463 = vsub.f32 %v1455, %v1462
        %v1464 = vmul.f32 %v1463, 1.442695
        %v1465 = vpow.pop %v1464
        %v1466 = vsel %vm1247, %v1465, 0.0
        %1467 = vadd.xlane.f32.xlu0 %v1466
        %v1468 = vpop.xlane.xlu0 %1467
        %v1469 = vrcp.pop %v1468
        %v1470 = vmul.f32 %v1465, %v1469
        %v1471 = vpack.c.bf16 %v1470, %v1470
        %1472 = vrot.lane.b32.xlu0 %v1196, 16
        %v1473 = vpop.permute.xlu0 %1472
        %v1475 = vsel %vm1247, %v1471, 0
        %v1478 = vsel %vm1265, %v1473, 0
        %1480 = vmatprep.subr.bf16.mxu0 0
        %1481 = vmatpush1.bf16.msra.mxu0 0
        %1482 = vmatprep.subr.bf16.mxu0 0
        %1483 = vmatpush1.bf16.msra.mxu0 0
        %1484 = vmatprep.subr.bf16.mxu0 0
        %1485 = vmatpush1.bf16.msra.mxu0 0
        %1486 = vmatprep.subr.bf16.mxu0 0
        %1487 = vmatpush1.bf16.msra.mxu0 0
        %1488 = vmatprep.subr.bf16.mxu0 0
        %1489 = vmatpush1.bf16.msra.mxu0 0
        %1490 = vmatprep.subr.bf16.mxu0 0
        %1491 = vmatpush1.bf16.msra.mxu0 0
        %1492 = vmatprep.subr.bf16.mxu0 0
        %1493 = vmatpush1.bf16.msra.mxu0 0
        %1494 = vmatprep.subr.bf16.mxu0 0
        %1495 = vmatpush1.bf16.msra.mxu0 %v1478
        %1496 = vmatprep.subr.bf16.mxu0 0
        %1497 = vmatpush2.bf16.msra.mxu0 0
        %1498 = vmatprep.subr.bf16.mxu0 0
        %1499 = vmatpush2.bf16.msra.mxu0 0
        %1500 = vmatprep.subr.bf16.mxu0 0
        %1501 = vmatpush2.bf16.msra.mxu0 0
        %1502 = vmatprep.subr.bf16.mxu0 0
        %1503 = vmatpush2.bf16.msra.mxu0 0
        %1504 = vmatprep.subr.bf16.mxu0 0
        %1505 = vmatpush2.bf16.msra.mxu0 0
        %1506 = vmatprep.subr.bf16.mxu0 0
        %1507 = vmatpush2.bf16.msra.mxu0 0
        %1508 = vmatprep.subr.bf16.mxu0 0
        %1509 = vmatpush2.bf16.msra.mxu0 0
        %1510 = vmatprep.subr.bf16.mxu0 0
        %1511 = vmatpush2.bf16.msra.mxu0 0
        %1512 = vmatprep.mubr.bf16.mxu0 0
        %1513 = vmatmul.mubr.bf16.gmra.mxu0 %v1475
        %v1514 = vpop.f32.mrf.mxu0
        %v1515 = vadd.f32 0.0, %v1514
        %v1516 = vpop.f32.mrf.mxu0
        %v1517 = vpop.f32.mrf.mxu0
        %v1518 = vpop.f32.mrf.mxu0
        %1519 = vdwg.mxu0
        %1520 = vrot.lane.b32.xlu0 %v1195, 80
        %v1521 = vpop.permute.xlu0 %1520
        %v1523 = vsel %vm1200, %v1521, 0
        %1525 = vmatprep.subr.bf16.mxu0 0
        %1526 = vmatpush1.bf16.xpose.msra.mxu0 0
        %1527 = vmatprep.subr.bf16.mxu0 0
        %1528 = vmatpush1.bf16.xpose.msra.mxu0 0
        %1529 = vmatprep.subr.bf16.mxu0 0
        %1530 = vmatpush1.bf16.xpose.msra.mxu0 0
        %1531 = vmatprep.subr.bf16.mxu0 0
        %1532 = vmatpush1.bf16.xpose.msra.mxu0 0
        %1533 = vmatprep.subr.bf16.mxu0 0
        %1534 = vmatpush1.bf16.xpose.msra.mxu0 0
        %1535 = vmatprep.subr.bf16.mxu0 0
        %1536 = vmatpush1.bf16.xpose.msra.mxu0 0
        %1537 = vmatprep.subr.bf16.mxu0 0
        %1538 = vmatpush1.bf16.xpose.msra.mxu0 0
        %1539 = vmatprep.subr.bf16.mxu0 0
        %1540 = vmatpush1.bf16.xpose.msra.mxu0 %v1418
        %1541 = vmatprep.subr.bf16.mxu0 0
        %1542 = vmatpush2.bf16.xpose.msra.mxu0 0
        %1543 = vmatprep.subr.bf16.mxu0 0
        %1544 = vmatpush2.bf16.xpose.msra.mxu0 0
        %1545 = vmatprep.subr.bf16.mxu0 0
        %1546 = vmatpush2.bf16.xpose.msra.mxu0 0
        %1547 = vmatprep.subr.bf16.mxu0 0
        %1548 = vmatpush2.bf16.xpose.msra.mxu0 0
        %1549 = vmatprep.subr.bf16.mxu0 0
        %1550 = vmatpush2.bf16.xpose.msra.mxu0 0
        %1551 = vmatprep.subr.bf16.mxu0 0
        %1552 = vmatpush2.bf16.xpose.msra.mxu0 0
        %1553 = vmatprep.subr.bf16.mxu0 0
        %1554 = vmatpush2.bf16.xpose.msra.mxu0 0
        %1555 = vmatprep.subr.bf16.mxu0 0
        %1556 = vmatpush2.bf16.xpose.msra.mxu0 0
        %1557 = vmatprep.mubr.bf16.mxu0 0
        %1558 = vmatmul.mubr.bf16.gmra.mxu0 %v1523
        %v1559 = vpop.f32.mrf.mxu0
        %v1560 = vadd.f32 0.0, %v1559
        %v1561 = vpop.f32.mrf.mxu0
        %v1562 = vpop.f32.mrf.mxu0
        %v1563 = vpop.f32.mrf.mxu0
        %1564 = vdwg.mxu0
        %v1565 = vsel %vm1247, %v1560, -inf
        %1566 = vmax.xlane.f32.xlu0 %v1565
        %v1567 = vpop.xlane.xlu0 %1566
        %v1568 = vsub.f32 %v1560, %v1567
        %v1569 = vmul.f32 %v1568, 1.442695
        %v1570 = vpow.pop %v1569
        %v1571 = vsel %vm1247, %v1570, 0.0
        %1572 = vadd.xlane.f32.xlu0 %v1571
        %v1573 = vpop.xlane.xlu0 %1572
        %v1574 = vrcp.pop %v1573
        %v1575 = vmul.f32 %v1570, %v1574
        %v1576 = vpack.c.bf16 %v1575, %v1575
        %v1578 = vsel %vm1247, %v1576, 0
        %1580 = vmatprep.subr.bf16.mxu0 0
        %1581 = vmatpush1.bf16.msra.mxu0 0
        %1582 = vmatprep.subr.bf16.mxu0 0
        %1583 = vmatpush1.bf16.msra.mxu0 0
        %1584 = vmatprep.subr.bf16.mxu0 0
        %1585 = vmatpush1.bf16.msra.mxu0 0
        %1586 = vmatprep.subr.bf16.mxu0 0
        %1587 = vmatpush1.bf16.msra.mxu0 0
        %1588 = vmatprep.subr.bf16.mxu0 0
        %1589 = vmatpush1.bf16.msra.mxu0 0
        %1590 = vmatprep.subr.bf16.mxu0 0
        %1591 = vmatpush1.bf16.msra.mxu0 0
        %1592 = vmatprep.subr.bf16.mxu0 0
        %1593 = vmatpush1.bf16.msra.mxu0 0
        %1594 = vmatprep.subr.bf16.mxu0 0
        %1595 = vmatpush1.bf16.msra.mxu0 %v1478
        %1596 = vmatprep.subr.bf16.mxu0 0
        %1597 = vmatpush2.bf16.msra.mxu0 0
        %1598 = vmatprep.subr.bf16.mxu0 0
        %1599 = vmatpush2.bf16.msra.mxu0 0
        %1600 = vmatprep.subr.bf16.mxu0 0
        %1601 = vmatpush2.bf16.msra.mxu0 0
        %1602 = vmatprep.subr.bf16.mxu0 0
        %1603 = vmatpush2.bf16.msra.mxu0 0
        %1604 = vmatprep.subr.bf16.mxu0 0
        %1605 = vmatpush2.bf16.msra.mxu0 0
        %1606 = vmatprep.subr.bf16.mxu0 0
        %1607 = vmatpush2.bf16.msra.mxu0 0
        %1608 = vmatprep.subr.bf16.mxu0 0
        %1609 = vmatpush2.bf16.msra.mxu0 0
        %1610 = vmatprep.subr.bf16.mxu0 0
        %1611 = vmatpush2.bf16.msra.mxu0 0
        %1612 = vmatprep.mubr.bf16.mxu0 0
        %1613 = vmatmul.mubr.bf16.gmra.mxu0 %v1578
        %v1614 = vpop.f32.mrf.mxu0
        %v1615 = vadd.f32 0.0, %v1614
        %v1616 = vpop.f32.mrf.mxu0
        %v1617 = vpop.f32.mrf.mxu0
        %v1618 = vpop.f32.mrf.mxu0
        %1619 = vdwg.mxu0
        %1621 = vrot.lane.b32.xlu0 %v1405, 16
        %v1622 = vpop.permute.xlu0 %1621
        %1625 = vrot.lane.b32.xlu0 %v1515, 32
        %v1626 = vpop.permute.xlu0 %1625
        %1629 = vrot.lane.b32.xlu0 %v1615, 48
        %v1630 = vpop.permute.xlu0 %1629
        %v1632 = vsel %vm1200, %v1304, %v1622
        %v1633 = vsel %vm1141, %v1632, %v1626
        %vm1634 = vcmask 392192
        %v1635 = vsel %vm1634, %v1633, %v1630
        %v1636 = vpack.c.bf16 %v1635, %v1635
        %v1638 = vlaneseq
        %v1639 = vshrl.u32 %v1638, 7
        %v1640 = vsub.s32 0, %v1639
        %v1641 = vrot.slane %v1194, %v1640
        %v1651 = vunpack.c.l.b16 %v1186
        %v1652 = vunpack.c.l.b16 %v1187
        %v1653 = vunpack.c.l.b16 %v1188
        %v1654 = vunpack.c.l.b16 %v1189
        %v1655 = vunpack.c.l.b16 %v1190
        %v1656 = vunpack.c.l.b16 %v1191
        %v1657 = vunpack.c.l.b16 %v1192
        %v1658 = vunpack.c.l.b16 %v1193
        %v1659 = vpack.c.b16 %v1652, %v1651
        %v1660 = vpack.c.b16 %v1654, %v1653
        %v1661 = vpack.c.b16 %v1656, %v1655
        %v1662 = vpack.c.b16 %v1658, %v1657
        %vm1667 = vcmask 523264
        %v1669 = vsel %vm1667, %v1636, 0
        %1671 = vmatprep.subr.bf16.mxu0 0
        %1672 = vmatpush1.bf16.msra.mxu0 0
        %1673 = vmatprep.subr.bf16.mxu0 0
        %1674 = vmatpush1.bf16.msra.mxu0 0
        %1675 = vmatprep.subr.bf16.mxu0 0
        %1676 = vmatpush1.bf16.msra.mxu0 0
        %1677 = vmatprep.subr.bf16.mxu0 0
        %1678 = vmatpush1.bf16.msra.mxu0 0
        %1679 = vmatprep.subr.bf16.mxu0 0
        %1680 = vmatpush1.bf16.msra.mxu0 %v1662
        %1681 = vmatprep.subr.bf16.mxu0 0
        %1682 = vmatpush1.bf16.msra.mxu0 %v1661
        %1683 = vmatprep.subr.bf16.mxu0 0
        %1684 = vmatpush1.bf16.msra.mxu0 %v1660
        %1685 = vmatprep.subr.bf16.mxu0 0
        %1686 = vmatpush1.bf16.msra.mxu0 %v1659
        %1687 = vmatprep.subr.bf16.mxu0 0
        %1688 = vmatpush2.bf16.msra.mxu0 0
        %1689 = vmatprep.subr.bf16.mxu0 0
        %1690 = vmatpush2.bf16.msra.mxu0 0
        %1691 = vmatprep.subr.bf16.mxu0 0
        %1692 = vmatpush2.bf16.msra.mxu0 0
        %1693 = vmatprep.subr.bf16.mxu0 0
        %1694 = vmatpush2.bf16.msra.mxu0 0
        %1695 = vmatprep.subr.bf16.mxu0 0
        %1696 = vmatpush2.bf16.msra.mxu0 0
        %1697 = vmatprep.subr.bf16.mxu0 0
        %1698 = vmatpush2.bf16.msra.mxu0 0
        %1699 = vmatprep.subr.bf16.mxu0 0
        %1700 = vmatpush2.bf16.msra.mxu0 0
        %1701 = vmatprep.subr.bf16.mxu0 0
        %1702 = vmatpush2.bf16.msra.mxu0 0
        %1703 = vmatprep.mubr.bf16.mxu0 0
        %1704 = vmatmul.mubr.bf16.gmra.mxu0 %v1669
        %v1705 = vpop.f32.mrf.mxu0
        %v1706 = vadd.f32 %v1641, %v1705
        %v1707 = vpop.f32.mrf.mxu0
        %v1708 = vpop.f32.mrf.mxu0
        %v1709 = vpop.f32.mrf.mxu0
        %1710 = vdwg.mxu0
        %v1711 = vadd.f32 %v1116, %v1706
        %v1712 = vld [vmem:[%s13] sm:$0x1]
        %v1713 = vld [vmem:[%s15] sm:$0x1]
        %v1714 = vsel %vm1141, %v1711, 0.0
        %1715 = vadd.xlane.f32.xlu0 %v1714
        %v1716 = vpop.xlane.xlu0 %1715
        %v1717 = vrcp.pop 32.0
        %v1718 = vmul.f32 %v1716, %v1717
        %v1719 = vsub.f32 %v1711, %v1718
        %v1720 = vmul.f32 %v1719, %v1719
        %v1721 = vsel %vm1141, %v1720, 0.0
        %1722 = vadd.xlane.f32.xlu0 %v1721
        %v1723 = vpop.xlane.xlu0 %1722
        %v1724 = vmul.f32 %v1723, %v1717
        %v1725 = vadd.f32 %v1724, 1e-05
        %v1726 = vrsqrt.pop %v1725
        %v1727 = vmul.f32 %v1719, %v1726
        %v1729 = vlaneseq
        %v1730 = vshrl.u32 %v1729, 7
        %v1731 = vsub.s32 0, %v1730
        %v1732 = vrot.slane %v1712, %v1731
        %v1734 = vmul.f32 %v1727, %v1732
        %v1736 = vlaneseq
        %v1737 = vshrl.u32 %v1736, 7
        %v1738 = vsub.s32 0, %v1737
        %v1739 = vrot.slane %v1713, %v1738
        %v1741 = vadd.f32 %v1734, %v1739
        %v1742 = vld [vmem:[%s17] sm:$0xf]
        %v1743 = vld [vmem:[%s17 + $0x4] sm:$0xf]
        %v1744 = vld [vmem:[%s17 + $0x8] sm:$0xf]
        %v1745 = vld [vmem:[%s17 + $0xc] sm:$0xf]
        %v1746 = vpack.c.bf16 %v1741, %v1741
        %v1747 = vld [vmem:[%s19] sm:$0x1]
        %v1749 = vlaneseq
        %v1750 = vshrl.u32 %v1749, 7
        %v1751 = vsub.s32 0, %v1750
        %v1752 = vrot.slane %v1747, %v1751
        %v1758 = vunpack.c.l.b16 %v1742
        %v1759 = vunpack.c.l.b16 %v1743
        %v1760 = vunpack.c.l.b16 %v1744
        %v1761 = vunpack.c.l.b16 %v1745
        %v1762 = vpack.c.b16 %v1759, %v1758
        %v1763 = vpack.c.b16 %v1761, %v1760
        %v1767 = vsel %vm1141, %v1746, 0
        %1769 = vmatprep.subr.bf16.mxu0 0
        %1770 = vmatpush1.bf16.msra.mxu0 0
        %1771 = vmatprep.subr.bf16.mxu0 0
        %1772 = vmatpush1.bf16.msra.mxu0 0
        %1773 = vmatprep.subr.bf16.mxu0 0
        %1774 = vmatpush1.bf16.msra.mxu0 0
        %1775 = vmatprep.subr.bf16.mxu0 0
        %1776 = vmatpush1.bf16.msra.mxu0 0
        %1777 = vmatprep.subr.bf16.mxu0 0
        %1778 = vmatpush1.bf16.msra.mxu0 0
        %1779 = vmatprep.subr.bf16.mxu0 0
        %1780 = vmatpush1.bf16.msra.mxu0 0
        %1781 = vmatprep.subr.bf16.mxu0 0
        %1782 = vmatpush1.bf16.msra.mxu0 %v1763
        %1783 = vmatprep.subr.bf16.mxu0 0
        %1784 = vmatpush1.bf16.msra.mxu0 %v1762
        %1785 = vmatprep.subr.bf16.mxu0 0
        %1786 = vmatpush2.bf16.msra.mxu0 0
        %1787 = vmatprep.subr.bf16.mxu0 0
        %1788 = vmatpush2.bf16.msra.mxu0 0
        %1789 = vmatprep.subr.bf16.mxu0 0
        %1790 = vmatpush2.bf16.msra.mxu0 0
        %1791 = vmatprep.subr.bf16.mxu0 0
        %1792 = vmatpush2.bf16.msra.mxu0 0
        %1793 = vmatprep.subr.bf16.mxu0 0
        %1794 = vmatpush2.bf16.msra.mxu0 0
        %1795 = vmatprep.subr.bf16.mxu0 0
        %1796 = vmatpush2.bf16.msra.mxu0 0
        %1797 = vmatprep.subr.bf16.mxu0 0
        %1798 = vmatpush2.bf16.msra.mxu0 0
        %1799 = vmatprep.subr.bf16.mxu0 0
        %1800 = vmatpush2.bf16.msra.mxu0 0
        %1801 = vmatprep.mubr.bf16.mxu0 0
        %1802 = vmatmul.mubr.bf16.gmra.mxu0 %v1767
        %v1803 = vpop.f32.mrf.mxu0
        %v1804 = vadd.f32 %v1752, %v1803
        %v1805 = vpop.f32.mrf.mxu0
        %v1806 = vpop.f32.mrf.mxu0
        %v1807 = vpop.f32.mrf.mxu0
        %1808 = vdwg.mxu0
        %s1809 = sld [smem:[#allocation2]]
        %vm1810 = vcmp.ge.f32.partialorder %v1804, 0.0
        %v1811 = vstv %s1809
        %v1812 = vmul.f32 %v1811, %v1804
        %v1813 = vsel %vm1810, %v1804, %v1812
        %v1814 = vld [vmem:[%s23] sm:$0xf]
        %v1815 = vld [vmem:[%s23 + $0x4] sm:$0xf]
        %v1816 = vld [vmem:[%s23 + $0x8] sm:$0xf]
        %v1817 = vld [vmem:[%s23 + $0xc] sm:$0xf]
        %v1818 = vld [vmem:[%s23 + $0x10] sm:$0xf]
        %v1819 = vld [vmem:[%s23 + $0x14] sm:$0xf]
        %v1820 = vld [vmem:[%s23 + $0x18] sm:$0xf]
        %v1821 = vld [vmem:[%s23 + $0x1c] sm:$0xf]
        %v1822 = vld [vmem:[%s23 + $0x20] sm:$0xf]
        %v1823 = vld [vmem:[%s23 + $0x24] sm:$0xf]
        %v1824 = vld [vmem:[%s23 + $0x28] sm:$0xf]
        %v1825 = vld [vmem:[%s23 + $0x2c] sm:$0xf]
        %v1826 = vld [vmem:[%s23 + $0x30] sm:$0xf]
        %v1827 = vld [vmem:[%s23 + $0x34] sm:$0xf]
        %v1828 = vld [vmem:[%s23 + $0x38] sm:$0xf]
        %v1829 = vld [vmem:[%s23 + $0x3c] sm:$0xf]
        %v1830 = vpack.c.bf16 %v1813, %v1813
        %v1831 = vld [vmem:[%s25] sm:$0x1]
        %v1833 = vlaneseq
        %v1834 = vshrl.u32 %v1833, 7
        %v1835 = vsub.s32 0, %v1834
        %v1836 = vrot.slane %v1831, %v1835
        %v1854 = vunpack.c.l.b16 %v1814
        %v1855 = vunpack.c.l.b16 %v1815
        %v1856 = vunpack.c.l.b16 %v1816
        %v1857 = vunpack.c.l.b16 %v1817
        %v1858 = vunpack.c.l.b16 %v1818
        %v1859 = vunpack.c.l.b16 %v1819
        %v1860 = vunpack.c.l.b16 %v1820
        %v1861 = vunpack.c.l.b16 %v1821
        %v1862 = vunpack.c.l.b16 %v1822
        %v1863 = vunpack.c.l.b16 %v1823
        %v1864 = vunpack.c.l.b16 %v1824
        %v1865 = vunpack.c.l.b16 %v1825
        %v1866 = vunpack.c.l.b16 %v1826
        %v1867 = vunpack.c.l.b16 %v1827
        %v1868 = vunpack.c.l.b16 %v1828
        %v1869 = vunpack.c.l.b16 %v1829
        %v1870 = vpack.c.b16 %v1855, %v1854
        %v1871 = vpack.c.b16 %v1857, %v1856
        %v1872 = vpack.c.b16 %v1859, %v1858
        %v1873 = vpack.c.b16 %v1861, %v1860
        %v1874 = vpack.c.b16 %v1863, %v1862
        %v1875 = vpack.c.b16 %v1865, %v1864
        %v1876 = vpack.c.b16 %v1867, %v1866
        %v1877 = vpack.c.b16 %v1869, %v1868
        %1886 = vmatprep.subr.bf16.mxu0 0
        %1887 = vmatpush1.bf16.msra.mxu0 %v1877
        %1888 = vmatprep.subr.bf16.mxu0 0
        %1889 = vmatpush1.bf16.msra.mxu0 %v1876
        %1890 = vmatprep.subr.bf16.mxu0 0
        %1891 = vmatpush1.bf16.msra.mxu0 %v1875
        %1892 = vmatprep.subr.bf16.mxu0 0
        %1893 = vmatpush1.bf16.msra.mxu0 %v1874
        %1894 = vmatprep.subr.bf16.mxu0 0
        %1895 = vmatpush1.bf16.msra.mxu0 %v1873
        %1896 = vmatprep.subr.bf16.mxu0 0
        %1897 = vmatpush1.bf16.msra.mxu0 %v1872
        %1898 = vmatprep.subr.bf16.mxu0 0
        %1899 = vmatpush1.bf16.msra.mxu0 %v1871
        %1900 = vmatprep.subr.bf16.mxu0 0
        %1901 = vmatpush1.bf16.msra.mxu0 %v1870
        %1902 = vmatprep.subr.bf16.mxu0 0
        %1903 = vmatpush2.bf16.msra.mxu0 0
        %1904 = vmatprep.subr.bf16.mxu0 0
        %1905 = vmatpush2.bf16.msra.mxu0 0
        %1906 = vmatprep.subr.bf16.mxu0 0
        %1907 = vmatpush2.bf16.msra.mxu0 0
        %1908 = vmatprep.subr.bf16.mxu0 0
        %1909 = vmatpush2.bf16.msra.mxu0 0
        %1910 = vmatprep.subr.bf16.mxu0 0
        %1911 = vmatpush2.bf16.msra.mxu0 0
        %1912 = vmatprep.subr.bf16.mxu0 0
        %1913 = vmatpush2.bf16.msra.mxu0 0
        %1914 = vmatprep.subr.bf16.mxu0 0
        %1915 = vmatpush2.bf16.msra.mxu0 0
        %1916 = vmatprep.subr.bf16.mxu0 0
        %1917 = vmatpush2.bf16.msra.mxu0 0
        %1918 = vmatprep.mubr.bf16.mxu0 0
        %1919 = vmatmul.mubr.bf16.gmra.mxu0 %v1830
        %v1920 = vpop.f32.mrf.mxu0
        %v1921 = vadd.f32 %v1836, %v1920
        %v1922 = vpop.f32.mrf.mxu0
        %v1923 = vpop.f32.mrf.mxu0
        %v1924 = vpop.f32.mrf.mxu0
        %1925 = vdwg.mxu0
        %v1926 = vadd.f32 %v1741, %v1921
        %v1927 = vld [vmem:[%s27] sm:$0x1]
        %v1928 = vld [vmem:[%s29] sm:$0x1]
        %v1929 = vsel %vm1141, %v1926, 0.0
        %1930 = vadd.xlane.f32.xlu0 %v1929
        %v1931 = vpop.xlane.xlu0 %1930
        %v1932 = vmul.f32 %v1931, %v1717
        %v1933 = vsub.f32 %v1926, %v1932
        %v1934 = vmul.f32 %v1933, %v1933
        %v1935 = vsel %vm1141, %v1934, 0.0
        %1936 = vadd.xlane.f32.xlu0 %v1935
        %v1937 = vpop.xlane.xlu0 %1936
        %v1938 = vmul.f32 %v1937, %v1717
        %v1939 = vadd.f32 %v1938, 1e-05
        %v1940 = vrsqrt.pop %v1939
        %v1941 = vmul.f32 %v1933, %v1940
        %v1943 = vlaneseq
        %v1944 = vshrl.u32 %v1943, 7
        %v1945 = vsub.s32 0, %v1944
        %v1946 = vrot.slane %v1927, %v1945
        %v1948 = vmul.f32 %v1941, %v1946
        %v1950 = vlaneseq
        %v1951 = vshrl.u32 %v1950, 7
        %v1952 = vsub.s32 0, %v1951
        %v1953 = vrot.slane %v1928, %v1952
        %v1955 = vadd.f32 %v1948, %v1953
        %s1956 = scalar_lea.vmem %s5, 16
        %v1957 = vld [vmem:[%s1956] sm:$0xf]
        %v1958 = vld [vmem:[%s1956 + $0x4] sm:$0xf]
        %v1959 = vld [vmem:[%s1956 + $0x8] sm:$0xf]
        %v1960 = vld [vmem:[%s1956 + $0xc] sm:$0xf]
        %v1961 = vpack.c.bf16 %v1955, %v1955
        %s1962 = scalar_lea.vmem %s7, 1
        %v1963 = vld [vmem:[%s1962] sm:$0x1]
        %v1965 = vlaneseq
        %v1966 = vshrl.u32 %v1965, 7
        %v1967 = vsub.s32 0, %v1966
        %v1968 = vrot.slane %v1963, %v1967
        %v1974 = vunpack.c.l.b16 %v1957
        %v1975 = vunpack.c.l.b16 %v1958
        %v1976 = vunpack.c.l.b16 %v1959
        %v1977 = vunpack.c.l.b16 %v1960
        %v1978 = vpack.c.b16 %v1975, %v1974
        %v1979 = vpack.c.b16 %v1977, %v1976
        %v1983 = vsel %vm1141, %v1961, 0
        %1985 = vmatprep.subr.bf16.mxu0 0
        %1986 = vmatpush1.bf16.msra.mxu0 0
        %1987 = vmatprep.subr.bf16.mxu0 0
        %1988 = vmatpush1.bf16.msra.mxu0 0
        %1989 = vmatprep.subr.bf16.mxu0 0
        %1990 = vmatpush1.bf16.msra.mxu0 0
        %1991 = vmatprep.subr.bf16.mxu0 0
        %1992 = vmatpush1.bf16.msra.mxu0 0
        %1993 = vmatprep.subr.bf16.mxu0 0
        %1994 = vmatpush1.bf16.msra.mxu0 0
        %1995 = vmatprep.subr.bf16.mxu0 0
        %1996 = vmatpush1.bf16.msra.mxu0 0
        %1997 = vmatprep.subr.bf16.mxu0 0
        %1998 = vmatpush1.bf16.msra.mxu0 %v1979
        %1999 = vmatprep.subr.bf16.mxu0 0
        %2000 = vmatpush1.bf16.msra.mxu0 %v1978
        %2001 = vmatprep.subr.bf16.mxu0 0
        %2002 = vmatpush2.bf16.msra.mxu0 0
        %2003 = vmatprep.subr.bf16.mxu0 0
        %2004 = vmatpush2.bf16.msra.mxu0 0
        %2005 = vmatprep.subr.bf16.mxu0 0
        %2006 = vmatpush2.bf16.msra.mxu0 0
        %2007 = vmatprep.subr.bf16.mxu0 0
        %2008 = vmatpush2.bf16.msra.mxu0 0
        %2009 = vmatprep.subr.bf16.mxu0 0
        %2010 = vmatpush2.bf16.msra.mxu0 0
        %2011 = vmatprep.subr.bf16.mxu0 0
        %2012 = vmatpush2.bf16.msra.mxu0 0
        %2013 = vmatprep.subr.bf16.mxu0 0
        %2014 = vmatpush2.bf16.msra.mxu0 0
        %2015 = vmatprep.subr.bf16.mxu0 0
        %2016 = vmatpush2.bf16.msra.mxu0 0
        %2017 = vmatprep.mubr.bf16.mxu0 0
        %2018 = vmatmul.mubr.bf16.gmra.mxu0 %v1983
        %v2019 = vpop.f32.mrf.mxu0
        %v2020 = vadd.f32 %v1968, %v2019
        %v2021 = vpop.f32.mrf.mxu0
        %v2022 = vpop.f32.mrf.mxu0
        %v2023 = vpop.f32.mrf.mxu0
        %2024 = vdwg.mxu0
        %v2025 = vmul.f32 %v2020, 0.25
        %s2026 = scalar_lea.vmem %s9, 32
        %v2027 = vld [vmem:[%s2026] sm:$0xf]
        %v2028 = vld [vmem:[%s2026 + $0x4] sm:$0xf]
        %v2029 = vld [vmem:[%s2026 + $0x8] sm:$0xf]
        %v2030 = vld [vmem:[%s2026 + $0xc] sm:$0xf]
        %v2031 = vld [vmem:[%s2026 + $0x10] sm:$0xf]
        %v2032 = vld [vmem:[%s2026 + $0x14] sm:$0xf]
        %v2033 = vld [vmem:[%s2026 + $0x18] sm:$0xf]
        %v2034 = vld [vmem:[%s2026 + $0x1c] sm:$0xf]
        %s2035 = scalar_lea.vmem %s11, 1
        %v2036 = vld [vmem:[%s2035] sm:$0x1]
        %v2037 = vpack.c.bf16 %v2025, %v2025
        %v2038 = vpack.c.bf16 %v2020, %v2020
        %2040 = vrot.lane.b32.xlu0 %v2038, 64
        %v2041 = vpop.permute.xlu0 %2040
        %v2043 = vsel %vm1200, %v2037, 0
        %v2046 = vsel %vm1200, %v2041, 0
        %2048 = vmatprep.subr.bf16.mxu0 0
        %2049 = vmatpush1.bf16.xpose.msra.mxu0 0
        %2050 = vmatprep.subr.bf16.mxu0 0
        %2051 = vmatpush1.bf16.xpose.msra.mxu0 0
        %2052 = vmatprep.subr.bf16.mxu0 0
        %2053 = vmatpush1.bf16.xpose.msra.mxu0 0
        %2054 = vmatprep.subr.bf16.mxu0 0
        %2055 = vmatpush1.bf16.xpose.msra.mxu0 0
        %2056 = vmatprep.subr.bf16.mxu0 0
        %2057 = vmatpush1.bf16.xpose.msra.mxu0 0
        %2058 = vmatprep.subr.bf16.mxu0 0
        %2059 = vmatpush1.bf16.xpose.msra.mxu0 0
        %2060 = vmatprep.subr.bf16.mxu0 0
        %2061 = vmatpush1.bf16.xpose.msra.mxu0 0
        %2062 = vmatprep.subr.bf16.mxu0 0
        %2063 = vmatpush1.bf16.xpose.msra.mxu0 %v2046
        %2064 = vmatprep.subr.bf16.mxu0 0
        %2065 = vmatpush2.bf16.xpose.msra.mxu0 0
        %2066 = vmatprep.subr.bf16.mxu0 0
        %2067 = vmatpush2.bf16.xpose.msra.mxu0 0
        %2068 = vmatprep.subr.bf16.mxu0 0
        %2069 = vmatpush2.bf16.xpose.msra.mxu0 0
        %2070 = vmatprep.subr.bf16.mxu0 0
        %2071 = vmatpush2.bf16.xpose.msra.mxu0 0
        %2072 = vmatprep.subr.bf16.mxu0 0
        %2073 = vmatpush2.bf16.xpose.msra.mxu0 0
        %2074 = vmatprep.subr.bf16.mxu0 0
        %2075 = vmatpush2.bf16.xpose.msra.mxu0 0
        %2076 = vmatprep.subr.bf16.mxu0 0
        %2077 = vmatpush2.bf16.xpose.msra.mxu0 0
        %2078 = vmatprep.subr.bf16.mxu0 0
        %2079 = vmatpush2.bf16.xpose.msra.mxu0 0
        %2080 = vmatprep.mubr.bf16.mxu0 0
        %2081 = vmatmul.mubr.bf16.gmra.mxu0 %v2043
        %v2082 = vpop.f32.mrf.mxu0
        %v2083 = vadd.f32 0.0, %v2082
        %v2084 = vpop.f32.mrf.mxu0
        %v2085 = vpop.f32.mrf.mxu0
        %v2086 = vpop.f32.mrf.mxu0
        %2087 = vdwg.mxu0
        %v2088 = vsel %vm1247, %v2083, -inf
        %2089 = vmax.xlane.f32.xlu0 %v2088
        %v2090 = vpop.xlane.xlu0 %2089
        %v2091 = vsub.f32 %v2083, %v2090
        %v2092 = vmul.f32 %v2091, 1.442695
        %v2093 = vpow.pop %v2092
        %v2094 = vsel %vm1247, %v2093, 0.0
        %2095 = vadd.xlane.f32.xlu0 %v2094
        %v2096 = vpop.xlane.xlu0 %2095
        %v2097 = vrcp.pop %v2096
        %v2098 = vmul.f32 %v2093, %v2097
        %v2099 = vpack.c.bf16 %v2098, %v2098
        %2100 = vrot.lane.b32.xlu0 %v2038, 32
        %v2101 = vpop.permute.xlu0 %2100
        %v2103 = vsel %vm1247, %v2099, 0
        %v2106 = vsel %vm1265, %v2101, 0
        %2108 = vmatprep.subr.bf16.mxu0 0
        %2109 = vmatpush1.bf16.msra.mxu0 0
        %2110 = vmatprep.subr.bf16.mxu0 0
        %2111 = vmatpush1.bf16.msra.mxu0 0
        %2112 = vmatprep.subr.bf16.mxu0 0
        %2113 = vmatpush1.bf16.msra.mxu0 0
        %2114 = vmatprep.subr.bf16.mxu0 0
        %2115 = vmatpush1.bf16.msra.mxu0 0
        %2116 = vmatprep.subr.bf16.mxu0 0
        %2117 = vmatpush1.bf16.msra.mxu0 0
        %2118 = vmatprep.subr.bf16.mxu0 0
        %2119 = vmatpush1.bf16.msra.mxu0 0
        %2120 = vmatprep.subr.bf16.mxu0 0
        %2121 = vmatpush1.bf16.msra.mxu0 0
        %2122 = vmatprep.subr.bf16.mxu0 0
        %2123 = vmatpush1.bf16.msra.mxu0 %v2106
        %2124 = vmatprep.subr.bf16.mxu0 0
        %2125 = vmatpush2.bf16.msra.mxu0 0
        %2126 = vmatprep.subr.bf16.mxu0 0
        %2127 = vmatpush2.bf16.msra.mxu0 0
        %2128 = vmatprep.subr.bf16.mxu0 0
        %2129 = vmatpush2.bf16.msra.mxu0 0
        %2130 = vmatprep.subr.bf16.mxu0 0
        %2131 = vmatpush2.bf16.msra.mxu0 0
        %2132 = vmatprep.subr.bf16.mxu0 0
        %2133 = vmatpush2.bf16.msra.mxu0 0
        %2134 = vmatprep.subr.bf16.mxu0 0
        %2135 = vmatpush2.bf16.msra.mxu0 0
        %2136 = vmatprep.subr.bf16.mxu0 0
        %2137 = vmatpush2.bf16.msra.mxu0 0
        %2138 = vmatprep.subr.bf16.mxu0 0
        %2139 = vmatpush2.bf16.msra.mxu0 0
        %2140 = vmatprep.mubr.bf16.mxu0 0
        %2141 = vmatmul.mubr.bf16.gmra.mxu0 %v2103
        %v2142 = vpop.f32.mrf.mxu0
        %v2143 = vadd.f32 0.0, %v2142
        %v2144 = vpop.f32.mrf.mxu0
        %v2145 = vpop.f32.mrf.mxu0
        %v2146 = vpop.f32.mrf.mxu0
        %2147 = vdwg.mxu0
        %2149 = vrot.lane.b32.xlu0 %v2037, 112
        %v2150 = vpop.permute.xlu0 %2149
        %v2152 = vsel %vm1200, %v2150, 0
        %2154 = vmatprep.subr.bf16.mxu0 0
        %2155 = vmatpush1.bf16.xpose.msra.mxu0 0
        %2156 = vmatprep.subr.bf16.mxu0 0
        %2157 = vmatpush1.bf16.xpose.msra.mxu0 0
        %2158 = vmatprep.subr.bf16.mxu0 0
        %2159 = vmatpush1.bf16.xpose.msra.mxu0 0
        %2160 = vmatprep.subr.bf16.mxu0 0
        %2161 = vmatpush1.bf16.xpose.msra.mxu0 0
        %2162 = vmatprep.subr.bf16.mxu0 0
        %2163 = vmatpush1.bf16.xpose.msra.mxu0 0
        %2164 = vmatprep.subr.bf16.mxu0 0
        %2165 = vmatpush1.bf16.xpose.msra.mxu0 0
        %2166 = vmatprep.subr.bf16.mxu0 0
        %2167 = vmatpush1.bf16.xpose.msra.mxu0 0
        %2168 = vmatprep.subr.bf16.mxu0 0
        %2169 = vmatpush1.bf16.xpose.msra.mxu0 %v2046
        %2170 = vmatprep.subr.bf16.mxu0 0
        %2171 = vmatpush2.bf16.xpose.msra.mxu0 0
        %2172 = vmatprep.subr.bf16.mxu0 0
        %2173 = vmatpush2.bf16.xpose.msra.mxu0 0
        %2174 = vmatprep.subr.bf16.mxu0 0
        %2175 = vmatpush2.bf16.xpose.msra.mxu0 0
        %2176 = vmatprep.subr.bf16.mxu0 0
        %2177 = vmatpush2.bf16.xpose.msra.mxu0 0
        %2178 = vmatprep.subr.bf16.mxu0 0
        %2179 = vmatpush2.bf16.xpose.msra.mxu0 0
        %2180 = vmatprep.subr.bf16.mxu0 0
        %2181 = vmatpush2.bf16.xpose.msra.mxu0 0
        %2182 = vmatprep.subr.bf16.mxu0 0
        %2183 = vmatpush2.bf16.xpose.msra.mxu0 0
        %2184 = vmatprep.subr.bf16.mxu0 0
        %2185 = vmatpush2.bf16.xpose.msra.mxu0 0
        %2186 = vmatprep.mubr.bf16.mxu0 0
        %2187 = vmatmul.mubr.bf16.gmra.mxu0 %v2152
        %v2188 = vpop.f32.mrf.mxu0
        %v2189 = vadd.f32 0.0, %v2188
        %v2190 = vpop.f32.mrf.mxu0
        %v2191 = vpop.f32.mrf.mxu0
        %v2192 = vpop.f32.mrf.mxu0
        %2193 = vdwg.mxu0
        %v2194 = vsel %vm1247, %v2189, -inf
        %2195 = vmax.xlane.f32.xlu0 %v2194
        %v2196 = vpop.xlane.xlu0 %2195
        %v2197 = vsub.f32 %v2189, %v2196
        %v2198 = vmul.f32 %v2197, 1.442695
        %v2199 = vpow.pop %v2198
        %v2200 = vsel %vm1247, %v2199, 0.0
        %2201 = vadd.xlane.f32.xlu0 %v2200
        %v2202 = vpop.xlane.xlu0 %2201
        %v2203 = vrcp.pop %v2202
        %v2204 = vmul.f32 %v2199, %v2203
        %v2205 = vpack.c.bf16 %v2204, %v2204
        %v2207 = vsel %vm1247, %v2205, 0
        %2209 = vmatprep.subr.bf16.mxu0 0
        %2210 = vmatpush1.bf16.msra.mxu0 0
        %2211 = vmatprep.subr.bf16.mxu0 0
        %2212 = vmatpush1.bf16.msra.mxu0 0
        %2213 = vmatprep.subr.bf16.mxu0 0
        %2214 = vmatpush1.bf16.msra.mxu0 0
        %2215 = vmatprep.subr.bf16.mxu0 0
        %2216 = vmatpush1.bf16.msra.mxu0 0
        %2217 = vmatprep.subr.bf16.mxu0 0
        %2218 = vmatpush1.bf16.msra.mxu0 0
        %2219 = vmatprep.subr.bf16.mxu0 0
        %2220 = vmatpush1.bf16.msra.mxu0 0
        %2221 = vmatprep.subr.bf16.mxu0 0
        %2222 = vmatpush1.bf16.msra.mxu0 0
        %2223 = vmatprep.subr.bf16.mxu0 0
        %2224 = vmatpush1.bf16.msra.mxu0 %v2106
        %2225 = vmatprep.subr.bf16.mxu0 0
        %2226 = vmatpush2.bf16.msra.mxu0 0
        %2227 = vmatprep.subr.bf16.mxu0 0
        %2228 = vmatpush2.bf16.msra.mxu0 0
        %2229 = vmatprep.subr.bf16.mxu0 0
        %2230 = vmatpush2.bf16.msra.mxu0 0
        %2231 = vmatprep.subr.bf16.mxu0 0
        %2232 = vmatpush2.bf16.msra.mxu0 0
        %2233 = vmatprep.subr.bf16.mxu0 0
        %2234 = vmatpush2.bf16.msra.mxu0 0
        %2235 = vmatprep.subr.bf16.mxu0 0
        %2236 = vmatpush2.bf16.msra.mxu0 0
        %2237 = vmatprep.subr.bf16.mxu0 0
        %2238 = vmatpush2.bf16.msra.mxu0 0
        %2239 = vmatprep.subr.bf16.mxu0 0
        %2240 = vmatpush2.bf16.msra.mxu0 0
        %2241 = vmatprep.mubr.bf16.mxu0 0
        %2242 = vmatmul.mubr.bf16.gmra.mxu0 %v2207
        %v2243 = vpop.f32.mrf.mxu0
        %v2244 = vadd.f32 0.0, %v2243
        %v2245 = vpop.f32.mrf.mxu0
        %v2246 = vpop.f32.mrf.mxu0
        %v2247 = vpop.f32.mrf.mxu0
        %2248 = vdwg.mxu0
        %2249 = vrot.lane.b32.xlu0 %v2037, 96
        %v2250 = vpop.permute.xlu0 %2249
        %2251 = vrot.lane.b32.xlu0 %v2038, 48
        %v2252 = vpop.permute.xlu0 %2251
        %v2254 = vsel %vm1200, %v2250, 0
        %v2257 = vsel %vm1200, %v2252, 0
        %2259 = vmatprep.subr.bf16.mxu0 0
        %2260 = vmatpush1.bf16.xpose.msra.mxu0 0
        %2261 = vmatprep.subr.bf16.mxu0 0
        %2262 = vmatpush1.bf16.xpose.msra.mxu0 0
        %2263 = vmatprep.subr.bf16.mxu0 0
        %2264 = vmatpush1.bf16.xpose.msra.mxu0 0
        %2265 = vmatprep.subr.bf16.mxu0 0
        %2266 = vmatpush1.bf16.xpose.msra.mxu0 0
        %2267 = vmatprep.subr.bf16.mxu0 0
        %2268 = vmatpush1.bf16.xpose.msra.mxu0 0
        %2269 = vmatprep.subr.bf16.mxu0 0
        %2270 = vmatpush1.bf16.xpose.msra.mxu0 0
        %2271 = vmatprep.subr.bf16.mxu0 0
        %2272 = vmatpush1.bf16.xpose.msra.mxu0 0
        %2273 = vmatprep.subr.bf16.mxu0 0
        %2274 = vmatpush1.bf16.xpose.msra.mxu0 %v2257
        %2275 = vmatprep.subr.bf16.mxu0 0
        %2276 = vmatpush2.bf16.xpose.msra.mxu0 0
        %2277 = vmatprep.subr.bf16.mxu0 0
        %2278 = vmatpush2.bf16.xpose.msra.mxu0 0
        %2279 = vmatprep.subr.bf16.mxu0 0
        %2280 = vmatpush2.bf16.xpose.msra.mxu0 0
        %2281 = vmatprep.subr.bf16.mxu0 0
        %2282 = vmatpush2.bf16.xpose.msra.mxu0 0
        %2283 = vmatprep.subr.bf16.mxu0 0
        %2284 = vmatpush2.bf16.xpose.msra.mxu0 0
        %2285 = vmatprep.subr.bf16.mxu0 0
        %2286 = vmatpush2.bf16.xpose.msra.mxu0 0
        %2287 = vmatprep.subr.bf16.mxu0 0
        %2288 = vmatpush2.bf16.xpose.msra.mxu0 0
        %2289 = vmatprep.subr.bf16.mxu0 0
        %2290 = vmatpush2.bf16.xpose.msra.mxu0 0
        %2291 = vmatprep.mubr.bf16.mxu0 0
        %2292 = vmatmul.mubr.bf16.gmra.mxu0 %v2254
        %v2293 = vpop.f32.mrf.mxu0
        %v2294 = vadd.f32 0.0, %v2293
        %v2295 = vpop.f32.mrf.mxu0
        %v2296 = vpop.f32.mrf.mxu0
        %v2297 = vpop.f32.mrf.mxu0
        %2298 = vdwg.mxu0
        %v2299 = vsel %vm1247, %v2294, -inf
        %2300 = vmax.xlane.f32.xlu0 %v2299
        %v2301 = vpop.xlane.xlu0 %2300
        %v2302 = vsub.f32 %v2294, %v2301
        %v2303 = vmul.f32 %v2302, 1.442695
        %v2304 = vpow.pop %v2303
        %v2305 = vsel %vm1247, %v2304, 0.0
        %2306 = vadd.xlane.f32.xlu0 %v2305
        %v2307 = vpop.xlane.xlu0 %2306
        %v2308 = vrcp.pop %v2307
        %v2309 = vmul.f32 %v2304, %v2308
        %v2310 = vpack.c.bf16 %v2309, %v2309
        %2311 = vrot.lane.b32.xlu0 %v2038, 16
        %v2312 = vpop.permute.xlu0 %2311
        %v2314 = vsel %vm1247, %v2310, 0
        %v2317 = vsel %vm1265, %v2312, 0
        %2319 = vmatprep.subr.bf16.mxu0 0
        %2320 = vmatpush1.bf16.msra.mxu0 0
        %2321 = vmatprep.subr.bf16.mxu0 0
        %2322 = vmatpush1.bf16.msra.mxu0 0
        %2323 = vmatprep.subr.bf16.mxu0 0
        %2324 = vmatpush1.bf16.msra.mxu0 0
        %2325 = vmatprep.subr.bf16.mxu0 0
        %2326 = vmatpush1.bf16.msra.mxu0 0
        %2327 = vmatprep.subr.bf16.mxu0 0
        %2328 = vmatpush1.bf16.msra.mxu0 0
        %2329 = vmatprep.subr.bf16.mxu0 0
        %2330 = vmatpush1.bf16.msra.mxu0 0
        %2331 = vmatprep.subr.bf16.mxu0 0
        %2332 = vmatpush1.bf16.msra.mxu0 0
        %2333 = vmatprep.subr.bf16.mxu0 0
        %2334 = vmatpush1.bf16.msra.mxu0 %v2317
        %2335 = vmatprep.subr.bf16.mxu0 0
        %2336 = vmatpush2.bf16.msra.mxu0 0
        %2337 = vmatprep.subr.bf16.mxu0 0
        %2338 = vmatpush2.bf16.msra.mxu0 0
        %2339 = vmatprep.subr.bf16.mxu0 0
        %2340 = vmatpush2.bf16.msra.mxu0 0
        %2341 = vmatprep.subr.bf16.mxu0 0
        %2342 = vmatpush2.bf16.msra.mxu0 0
        %2343 = vmatprep.subr.bf16.mxu0 0
        %2344 = vmatpush2.bf16.msra.mxu0 0
        %2345 = vmatprep.subr.bf16.mxu0 0
        %2346 = vmatpush2.bf16.msra.mxu0 0
        %2347 = vmatprep.subr.bf16.mxu0 0
        %2348 = vmatpush2.bf16.msra.mxu0 0
        %2349 = vmatprep.subr.bf16.mxu0 0
        %2350 = vmatpush2.bf16.msra.mxu0 0
        %2351 = vmatprep.mubr.bf16.mxu0 0
        %2352 = vmatmul.mubr.bf16.gmra.mxu0 %v2314
        %v2353 = vpop.f32.mrf.mxu0
        %v2354 = vadd.f32 0.0, %v2353
        %v2355 = vpop.f32.mrf.mxu0
        %v2356 = vpop.f32.mrf.mxu0
        %v2357 = vpop.f32.mrf.mxu0
        %2358 = vdwg.mxu0
        %2359 = vrot.lane.b32.xlu0 %v2037, 80
        %v2360 = vpop.permute.xlu0 %2359
        %v2362 = vsel %vm1200, %v2360, 0
        %2364 = vmatprep.subr.bf16.mxu0 0
        %2365 = vmatpush1.bf16.xpose.msra.mxu0 0
        %2366 = vmatprep.subr.bf16.mxu0 0
        %2367 = vmatpush1.bf16.xpose.msra.mxu0 0
        %2368 = vmatprep.subr.bf16.mxu0 0
        %2369 = vmatpush1.bf16.xpose.msra.mxu0 0
        %2370 = vmatprep.subr.bf16.mxu0 0
        %2371 = vmatpush1.bf16.xpose.msra.mxu0 0
        %2372 = vmatprep.subr.bf16.mxu0 0
        %2373 = vmatpush1.bf16.xpose.msra.mxu0 0
        %2374 = vmatprep.subr.bf16.mxu0 0
        %2375 = vmatpush1.bf16.xpose.msra.mxu0 0
        %2376 = vmatprep.subr.bf16.mxu0 0
        %2377 = vmatpush1.bf16.xpose.msra.mxu0 0
        %2378 = vmatprep.subr.bf16.mxu0 0
        %2379 = vmatpush1.bf16.xpose.msra.mxu0 %v2257
        %2380 = vmatprep.subr.bf16.mxu0 0
        %2381 = vmatpush2.bf16.xpose.msra.mxu0 0
        %2382 = vmatprep.subr.bf16.mxu0 0
        %2383 = vmatpush2.bf16.xpose.msra.mxu0 0
        %2384 = vmatprep.subr.bf16.mxu0 0
        %2385 = vmatpush2.bf16.xpose.msra.mxu0 0
        %2386 = vmatprep.subr.bf16.mxu0 0
        %2387 = vmatpush2.bf16.xpose.msra.mxu0 0
        %2388 = vmatprep.subr.bf16.mxu0 0
        %2389 = vmatpush2.bf16.xpose.msra.mxu0 0
        %2390 = vmatprep.subr.bf16.mxu0 0
        %2391 = vmatpush2.bf16.xpose.msra.mxu0 0
        %2392 = vmatprep.subr.bf16.mxu0 0
        %2393 = vmatpush2.bf16.xpose.msra.mxu0 0
        %2394 = vmatprep.subr.bf16.mxu0 0
        %2395 = vmatpush2.bf16.xpose.msra.mxu0 0
        %2396 = vmatprep.mubr.bf16.mxu0 0
        %2397 = vmatmul.mubr.bf16.gmra.mxu0 %v2362
        %v2398 = vpop.f32.mrf.mxu0
        %v2399 = vadd.f32 0.0, %v2398
        %v2400 = vpop.f32.mrf.mxu0
        %v2401 = vpop.f32.mrf.mxu0
        %v2402 = vpop.f32.mrf.mxu0
        %2403 = vdwg.mxu0
        %v2404 = vsel %vm1247, %v2399, -inf
        %2405 = vmax.xlane.f32.xlu0 %v2404
        %v2406 = vpop.xlane.xlu0 %2405
        %v2407 = vsub.f32 %v2399, %v2406
        %v2408 = vmul.f32 %v2407, 1.442695
        %v2409 = vpow.pop %v2408
        %v2410 = vsel %vm1247, %v2409, 0.0
        %2411 = vadd.xlane.f32.xlu0 %v2410
        %v2412 = vpop.xlane.xlu0 %2411
        %v2413 = vrcp.pop %v2412
        %v2414 = vmul.f32 %v2409, %v2413
        %v2415 = vpack.c.bf16 %v2414, %v2414
        %v2417 = vsel %vm1247, %v2415, 0
        %2419 = vmatprep.subr.bf16.mxu0 0
        %2420 = vmatpush1.bf16.msra.mxu0 0
        %2421 = vmatprep.subr.bf16.mxu0 0
        %2422 = vmatpush1.bf16.msra.mxu0 0
        %2423 = vmatprep.subr.bf16.mxu0 0
        %2424 = vmatpush1.bf16.msra.mxu0 0
        %2425 = vmatprep.subr.bf16.mxu0 0
        %2426 = vmatpush1.bf16.msra.mxu0 0
        %2427 = vmatprep.subr.bf16.mxu0 0
        %2428 = vmatpush1.bf16.msra.mxu0 0
        %2429 = vmatprep.subr.bf16.mxu0 0
        %2430 = vmatpush1.bf16.msra.mxu0 0
        %2431 = vmatprep.subr.bf16.mxu0 0
        %2432 = vmatpush1.bf16.msra.mxu0 0
        %2433 = vmatprep.subr.bf16.mxu0 0
        %2434 = vmatpush1.bf16.msra.mxu0 %v2317
        %2435 = vmatprep.subr.bf16.mxu0 0
        %2436 = vmatpush2.bf16.msra.mxu0 0
        %2437 = vmatprep.subr.bf16.mxu0 0
        %2438 = vmatpush2.bf16.msra.mxu0 0
        %2439 = vmatprep.subr.bf16.mxu0 0
        %2440 = vmatpush2.bf16.msra.mxu0 0
        %2441 = vmatprep.subr.bf16.mxu0 0
        %2442 = vmatpush2.bf16.msra.mxu0 0
        %2443 = vmatprep.subr.bf16.mxu0 0
        %2444 = vmatpush2.bf16.msra.mxu0 0
        %2445 = vmatprep.subr.bf16.mxu0 0
        %2446 = vmatpush2.bf16.msra.mxu0 0
        %2447 = vmatprep.subr.bf16.mxu0 0
        %2448 = vmatpush2.bf16.msra.mxu0 0
        %2449 = vmatprep.subr.bf16.mxu0 0
        %2450 = vmatpush2.bf16.msra.mxu0 0
        %2451 = vmatprep.mubr.bf16.mxu0 0
        %2452 = vmatmul.mubr.bf16.gmra.mxu0 %v2417
        %v2453 = vpop.f32.mrf.mxu0
        %v2454 = vadd.f32 0.0, %v2453
        %v2455 = vpop.f32.mrf.mxu0
        %v2456 = vpop.f32.mrf.mxu0
        %v2457 = vpop.f32.mrf.mxu0
        %2458 = vdwg.mxu0
        %2460 = vrot.lane.b32.xlu0 %v2244, 16
        %v2461 = vpop.permute.xlu0 %2460
        %2464 = vrot.lane.b32.xlu0 %v2354, 32
        %v2465 = vpop.permute.xlu0 %2464
        %2468 = vrot.lane.b32.xlu0 %v2454, 48
        %v2469 = vpop.permute.xlu0 %2468
        %v2471 = vsel %vm1200, %v2143, %v2461
        %v2472 = vsel %vm1141, %v2471, %v2465
        %v2473 = vsel %vm1634, %v2472, %v2469
        %v2474 = vpack.c.bf16 %v2473, %v2473
        %v2476 = vlaneseq
        %v2477 = vshrl.u32 %v2476, 7
        %v2478 = vsub.s32 0, %v2477
        %v2479 = vrot.slane %v2036, %v2478
        %v2489 = vunpack.c.l.b16 %v2027
        %v2490 = vunpack.c.l.b16 %v2028
        %v2491 = vunpack.c.l.b16 %v2029
        %v2492 = vunpack.c.l.b16 %v2030
        %v2493 = vunpack.c.l.b16 %v2031
        %v2494 = vunpack.c.l.b16 %v2032
        %v2495 = vunpack.c.l.b16 %v2033
        %v2496 = vunpack.c.l.b16 %v2034
        %v2497 = vpack.c.b16 %v2490, %v2489
        %v2498 = vpack.c.b16 %v2492, %v2491
        %v2499 = vpack.c.b16 %v2494, %v2493
        %v2500 = vpack.c.b16 %v2496, %v2495
        %v2506 = vsel %vm1667, %v2474, 0
        %2508 = vmatprep.subr.bf16.mxu0 0
        %2509 = vmatpush1.bf16.msra.mxu0 0
        %2510 = vmatprep.subr.bf16.mxu0 0
        %2511 = vmatpush1.bf16.msra.mxu0 0
        %2512 = vmatprep.subr.bf16.mxu0 0
        %2513 = vmatpush1.bf16.msra.mxu0 0
        %2514 = vmatprep.subr.bf16.mxu0 0
        %2515 = vmatpush1.bf16.msra.mxu0 0
        %2516 = vmatprep.subr.bf16.mxu0 0
        %2517 = vmatpush1.bf16.msra.mxu0 %v2500
        %2518 = vmatprep.subr.bf16.mxu0 0
        %2519 = vmatpush1.bf16.msra.mxu0 %v2499
        %2520 = vmatprep.subr.bf16.mxu0 0
        %2521 = vmatpush1.bf16.msra.mxu0 %v2498
        %2522 = vmatprep.subr.bf16.mxu0 0
        %2523 = vmatpush1.bf16.msra.mxu0 %v2497
        %2524 = vmatprep.subr.bf16.mxu0 0
        %2525 = vmatpush2.bf16.msra.mxu0 0
        %2526 = vmatprep.subr.bf16.mxu0 0
        %2527 = vmatpush2.bf16.msra.mxu0 0
        %2528 = vmatprep.subr.bf16.mxu0 0
        %2529 = vmatpush2.bf16.msra.mxu0 0
        %2530 = vmatprep.subr.bf16.mxu0 0
        %2531 = vmatpush2.bf16.msra.mxu0 0
        %2532 = vmatprep.subr.bf16.mxu0 0
        %2533 = vmatpush2.bf16.msra.mxu0 0
        %2534 = vmatprep.subr.bf16.mxu0 0
        %2535 = vmatpush2.bf16.msra.mxu0 0
        %2536 = vmatprep.subr.bf16.mxu0 0
        %2537 = vmatpush2.bf16.msra.mxu0 0
        %2538 = vmatprep.subr.bf16.mxu0 0
        %2539 = vmatpush2.bf16.msra.mxu0 0
        %2540 = vmatprep.mubr.bf16.mxu0 0
        %2541 = vmatmul.mubr.bf16.gmra.mxu0 %v2506
        %v2542 = vpop.f32.mrf.mxu0
        %v2543 = vadd.f32 %v2479, %v2542
        %v2544 = vpop.f32.mrf.mxu0
        %v2545 = vpop.f32.mrf.mxu0
        %v2546 = vpop.f32.mrf.mxu0
        %2547 = vdwg.mxu0
        %v2548 = vadd.f32 %v1955, %v2543
        %s2549 = scalar_lea.vmem %s13, 1
        %v2550 = vld [vmem:[%s2549] sm:$0x1]
        %s2551 = scalar_lea.vmem %s15, 1
        %v2552 = vld [vmem:[%s2551] sm:$0x1]
        %v2553 = vsel %vm1141, %v2548, 0.0
        %2554 = vadd.xlane.f32.xlu0 %v2553
        %v2555 = vpop.xlane.xlu0 %2554
        %v2556 = vmul.f32 %v2555, %v1717
        %v2557 = vsub.f32 %v2548, %v2556
        %v2558 = vmul.f32 %v2557, %v2557
        %v2559 = vsel %vm1141, %v2558, 0.0
        %2560 = vadd.xlane.f32.xlu0 %v2559
        %v2561 = vpop.xlane.xlu0 %2560
        %v2562 = vmul.f32 %v2561, %v1717
        %v2563 = vadd.f32 %v2562, 1e-05
        %v2564 = vrsqrt.pop %v2563
        %v2565 = vmul.f32 %v2557, %v2564
        %v2567 = vlaneseq
        %v2568 = vshrl.u32 %v2567, 7
        %v2569 = vsub.s32 0, %v2568
        %v2570 = vrot.slane %v2550, %v2569
        %v2572 = vmul.f32 %v2565, %v2570
        %v2574 = vlaneseq
        %v2575 = vshrl.u32 %v2574, 7
        %v2576 = vsub.s32 0, %v2575
        %v2577 = vrot.slane %v2552, %v2576
        %v2579 = vadd.f32 %v2572, %v2577
        %s2580 = scalar_lea.vmem %s17, 16
        %v2581 = vld [vmem:[%s2580] sm:$0xf]
        %v2582 = vld [vmem:[%s2580 + $0x4] sm:$0xf]
        %v2583 = vld [vmem:[%s2580 + $0x8] sm:$0xf]
        %v2584 = vld [vmem:[%s2580 + $0xc] sm:$0xf]
        %v2585 = vpack.c.bf16 %v2579, %v2579
        %s2586 = scalar_lea.vmem %s19, 1
        %v2587 = vld [vmem:[%s2586] sm:$0x1]
        %v2589 = vlaneseq
        %v2590 = vshrl.u32 %v2589, 7
        %v2591 = vsub.s32 0, %v2590
        %v2592 = vrot.slane %v2587, %v2591
        %v2598 = vunpack.c.l.b16 %v2581
        %v2599 = vunpack.c.l.b16 %v2582
        %v2600 = vunpack.c.l.b16 %v2583
        %v2601 = vunpack.c.l.b16 %v2584
        %v2602 = vpack.c.b16 %v2599, %v2598
        %v2603 = vpack.c.b16 %v2601, %v2600
        %v2607 = vsel %vm1141, %v2585, 0
        %2609 = vmatprep.subr.bf16.mxu0 0
        %2610 = vmatpush1.bf16.msra.mxu0 0
        %2611 = vmatprep.subr.bf16.mxu0 0
        %2612 = vmatpush1.bf16.msra.mxu0 0
        %2613 = vmatprep.subr.bf16.mxu0 0
        %2614 = vmatpush1.bf16.msra.mxu0 0
        %2615 = vmatprep.subr.bf16.mxu0 0
        %2616 = vmatpush1.bf16.msra.mxu0 0
        %2617 = vmatprep.subr.bf16.mxu0 0
        %2618 = vmatpush1.bf16.msra.mxu0 0
        %2619 = vmatprep.subr.bf16.mxu0 0
        %2620 = vmatpush1.bf16.msra.mxu0 0
        %2621 = vmatprep.subr.bf16.mxu0 0
        %2622 = vmatpush1.bf16.msra.mxu0 %v2603
        %2623 = vmatprep.subr.bf16.mxu0 0
        %2624 = vmatpush1.bf16.msra.mxu0 %v2602
        %2625 = vmatprep.subr.bf16.mxu0 0
        %2626 = vmatpush2.bf16.msra.mxu0 0
        %2627 = vmatprep.subr.bf16.mxu0 0
        %2628 = vmatpush2.bf16.msra.mxu0 0
        %2629 = vmatprep.subr.bf16.mxu0 0
        %2630 = vmatpush2.bf16.msra.mxu0 0
        %2631 = vmatprep.subr.bf16.mxu0 0
        %2632 = vmatpush2.bf16.msra.mxu0 0
        %2633 = vmatprep.subr.bf16.mxu0 0
        %2634 = vmatpush2.bf16.msra.mxu0 0
        %2635 = vmatprep.subr.bf16.mxu0 0
        %2636 = vmatpush2.bf16.msra.mxu0 0
        %2637 = vmatprep.subr.bf16.mxu0 0
        %2638 = vmatpush2.bf16.msra.mxu0 0
        %2639 = vmatprep.subr.bf16.mxu0 0
        %2640 = vmatpush2.bf16.msra.mxu0 0
        %2641 = vmatprep.mubr.bf16.mxu0 0
        %2642 = vmatmul.mubr.bf16.gmra.mxu0 %v2607
        %v2643 = vpop.f32.mrf.mxu0
        %v2644 = vadd.f32 %v2592, %v2643
        %v2645 = vpop.f32.mrf.mxu0
        %v2646 = vpop.f32.mrf.mxu0
        %v2647 = vpop.f32.mrf.mxu0
        %2648 = vdwg.mxu0
        %s2649 = sld [smem:[#allocation2 + $0x1]]
        %vm2650 = vcmp.ge.f32.partialorder %v2644, 0.0
        %v2651 = vstv %s2649
        %v2652 = vmul.f32 %v2651, %v2644
        %v2653 = vsel %vm2650, %v2644, %v2652
        %s2654 = scalar_lea.vmem %s23, 64
        %v2655 = vld [vmem:[%s2654] sm:$0xf]
        %v2656 = vld [vmem:[%s2654 + $0x4] sm:$0xf]
        %v2657 = vld [vmem:[%s2654 + $0x8] sm:$0xf]
        %v2658 = vld [vmem:[%s2654 + $0xc] sm:$0xf]
        %v2659 = vld [vmem:[%s2654 + $0x10] sm:$0xf]
        %v2660 = vld [vmem:[%s2654 + $0x14] sm:$0xf]
        %v2661 = vld [vmem:[%s2654 + $0x18] sm:$0xf]
        %v2662 = vld [vmem:[%s2654 + $0x1c] sm:$0xf]
        %v2663 = vld [vmem:[%s2654 + $0x20] sm:$0xf]
        %v2664 = vld [vmem:[%s2654 + $0x24] sm:$0xf]
        %v2665 = vld [vmem:[%s2654 + $0x28] sm:$0xf]
        %v2666 = vld [vmem:[%s2654 + $0x2c] sm:$0xf]
        %v2667 = vld [vmem:[%s2654 + $0x30] sm:$0xf]
        %v2668 = vld [vmem:[%s2654 + $0x34] sm:$0xf]
        %v2669 = vld [vmem:[%s2654 + $0x38] sm:$0xf]
        %v2670 = vld [vmem:[%s2654 + $0x3c] sm:$0xf]
        %v2671 = vpack.c.bf16 %v2653, %v2653
        %s2672 = scalar_lea.vmem %s25, 1
        %v2673 = vld [vmem:[%s2672] sm:$0x1]
        %v2675 = vlaneseq
        %v2676 = vshrl.u32 %v2675, 7
        %v2677 = vsub.s32 0, %v2676
        %v2678 = vrot.slane %v2673, %v2677
        %v2696 = vunpack.c.l.b16 %v2655
        %v2697 = vunpack.c.l.b16 %v2656
        %v2698 = vunpack.c.l.b16 %v2657
        %v2699 = vunpack.c.l.b16 %v2658
        %v2700 = vunpack.c.l.b16 %v2659
        %v2701 = vunpack.c.l.b16 %v2660
        %v2702 = vunpack.c.l.b16 %v2661
        %v2703 = vunpack.c.l.b16 %v2662
        %v2704 = vunpack.c.l.b16 %v2663
        %v2705 = vunpack.c.l.b16 %v2664
        %v2706 = vunpack.c.l.b16 %v2665
        %v2707 = vunpack.c.l.b16 %v2666
        %v2708 = vunpack.c.l.b16 %v2667
        %v2709 = vunpack.c.l.b16 %v2668
        %v2710 = vunpack.c.l.b16 %v2669
        %v2711 = vunpack.c.l.b16 %v2670
        %v2712 = vpack.c.b16 %v2697, %v2696
        %v2713 = vpack.c.b16 %v2699, %v2698
        %v2714 = vpack.c.b16 %v2701, %v2700
        %v2715 = vpack.c.b16 %v2703, %v2702
        %v2716 = vpack.c.b16 %v2705, %v2704
        %v2717 = vpack.c.b16 %v2707, %v2706
        %v2718 = vpack.c.b16 %v2709, %v2708
        %v2719 = vpack.c.b16 %v2711, %v2710
        %2728 = vmatprep.subr.bf16.mxu0 0
        %2729 = vmatpush1.bf16.msra.mxu0 %v2719
        %2730 = vmatprep.subr.bf16.mxu0 0
        %2731 = vmatpush1.bf16.msra.mxu0 %v2718
        %2732 = vmatprep.subr.bf16.mxu0 0
        %2733 = vmatpush1.bf16.msra.mxu0 %v2717
        %2734 = vmatprep.subr.bf16.mxu0 0
        %2735 = vmatpush1.bf16.msra.mxu0 %v2716
        %2736 = vmatprep.subr.bf16.mxu0 0
        %2737 = vmatpush1.bf16.msra.mxu0 %v2715
        %2738 = vmatprep.subr.bf16.mxu0 0
        %2739 = vmatpush1.bf16.msra.mxu0 %v2714
        %2740 = vmatprep.subr.bf16.mxu0 0
        %2741 = vmatpush1.bf16.msra.mxu0 %v2713
        %2742 = vmatprep.subr.bf16.mxu0 0
        %2743 = vmatpush1.bf16.msra.mxu0 %v2712
        %2744 = vmatprep.subr.bf16.mxu0 0
        %2745 = vmatpush2.bf16.msra.mxu0 0
        %2746 = vmatprep.subr.bf16.mxu0 0
        %2747 = vmatpush2.bf16.msra.mxu0 0
        %2748 = vmatprep.subr.bf16.mxu0 0
        %2749 = vmatpush2.bf16.msra.mxu0 0
        %2750 = vmatprep.subr.bf16.mxu0 0
        %2751 = vmatpush2.bf16.msra.mxu0 0
        %2752 = vmatprep.subr.bf16.mxu0 0
        %2753 = vmatpush2.bf16.msra.mxu0 0
        %2754 = vmatprep.subr.bf16.mxu0 0
        %2755 = vmatpush2.bf16.msra.mxu0 0
        %2756 = vmatprep.subr.bf16.mxu0 0
        %2757 = vmatpush2.bf16.msra.mxu0 0
        %2758 = vmatprep.subr.bf16.mxu0 0
        %2759 = vmatpush2.bf16.msra.mxu0 0
        %2760 = vmatprep.mubr.bf16.mxu0 0
        %2761 = vmatmul.mubr.bf16.gmra.mxu0 %v2671
        %v2762 = vpop.f32.mrf.mxu0
        %v2763 = vadd.f32 %v2678, %v2762
        %v2764 = vpop.f32.mrf.mxu0
        %v2765 = vpop.f32.mrf.mxu0
        %v2766 = vpop.f32.mrf.mxu0
        %2767 = vdwg.mxu0
        %v2768 = vadd.f32 %v2579, %v2763
        %s2769 = scalar_lea.vmem %s27, 1
        %v2770 = vld [vmem:[%s2769] sm:$0x1]
        %s2771 = scalar_lea.vmem %s29, 1
        %v2772 = vld [vmem:[%s2771] sm:$0x1]
        %v2773 = vsel %vm1141, %v2768, 0.0
        %2774 = vadd.xlane.f32.xlu0 %v2773
        %v2775 = vpop.xlane.xlu0 %2774
        %v2776 = vmul.f32 %v2775, %v1717
        %v2777 = vsub.f32 %v2768, %v2776
        %v2778 = vmul.f32 %v2777, %v2777
        %v2779 = vsel %vm1141, %v2778, 0.0
        %2780 = vadd.xlane.f32.xlu0 %v2779
        %v2781 = vpop.xlane.xlu0 %2780
        %v2782 = vmul.f32 %v2781, %v1717
        %v2783 = vadd.f32 %v2782, 1e-05
        %v2784 = vrsqrt.pop %v2783
        %v2785 = vmul.f32 %v2777, %v2784
        %v2787 = vlaneseq
        %v2788 = vshrl.u32 %v2787, 7
        %v2789 = vsub.s32 0, %v2788
        %v2790 = vrot.slane %v2770, %v2789
        %v2792 = vmul.f32 %v2785, %v2790
        %v2794 = vlaneseq
        %v2795 = vshrl.u32 %v2794, 7
        %v2796 = vsub.s32 0, %v2795
        %v2797 = vrot.slane %v2772, %v2796
        %v2799 = vadd.f32 %v2792, %v2797
        %v2800 = vld [vmem:[%s1109] sm:$0xff]
        %v2801 = vld [vmem:[%s31] sm:$0xf]
        %v2802 = vld [vmem:[%s31 + $0x4] sm:$0xf]
        %v2803 = vld [vmem:[%s31 + $0x8] sm:$0xf]
        %v2804 = vld [vmem:[%s31 + $0xc] sm:$0xf]
        %v2805 = vpack.c.bf16 %v2800, %v2800
        %v2806 = vld [vmem:[%s33] sm:$0x1]
        %v2808 = vlaneseq
        %v2809 = vshrl.u32 %v2808, 7
        %v2810 = vsub.s32 0, %v2809
        %v2811 = vrot.slane %v2806, %v2810
        %v2817 = vunpack.c.l.b16 %v2801
        %v2818 = vunpack.c.l.b16 %v2802
        %v2819 = vunpack.c.l.b16 %v2803
        %v2820 = vunpack.c.l.b16 %v2804
        %v2821 = vpack.c.b16 %v2818, %v2817
        %v2822 = vpack.c.b16 %v2820, %v2819
        %v2826 = vsel %vm1141, %v2805, 0
        %2828 = vmatprep.subr.bf16.mxu0 0
        %2829 = vmatpush1.bf16.msra.mxu0 0
        %2830 = vmatprep.subr.bf16.mxu0 0
        %2831 = vmatpush1.bf16.msra.mxu0 0
        %2832 = vmatprep.subr.bf16.mxu0 0
        %2833 = vmatpush1.bf16.msra.mxu0 0
        %2834 = vmatprep.subr.bf16.mxu0 0
        %2835 = vmatpush1.bf16.msra.mxu0 0
        %2836 = vmatprep.subr.bf16.mxu0 0
        %2837 = vmatpush1.bf16.msra.mxu0 0
        %2838 = vmatprep.subr.bf16.mxu0 0
        %2839 = vmatpush1.bf16.msra.mxu0 0
        %2840 = vmatprep.subr.bf16.mxu0 0
        %2841 = vmatpush1.bf16.msra.mxu0 %v2822
        %2842 = vmatprep.subr.bf16.mxu0 0
        %2843 = vmatpush1.bf16.msra.mxu0 %v2821
        %2844 = vmatprep.subr.bf16.mxu0 0
        %2845 = vmatpush2.bf16.msra.mxu0 0
        %2846 = vmatprep.subr.bf16.mxu0 0
        %2847 = vmatpush2.bf16.msra.mxu0 0
        %2848 = vmatprep.subr.bf16.mxu0 0
        %2849 = vmatpush2.bf16.msra.mxu0 0
        %2850 = vmatprep.subr.bf16.mxu0 0
        %2851 = vmatpush2.bf16.msra.mxu0 0
        %2852 = vmatprep.subr.bf16.mxu0 0
        %2853 = vmatpush2.bf16.msra.mxu0 0
        %2854 = vmatprep.subr.bf16.mxu0 0
        %2855 = vmatpush2.bf16.msra.mxu0 0
        %2856 = vmatprep.subr.bf16.mxu0 0
        %2857 = vmatpush2.bf16.msra.mxu0 0
        %2858 = vmatprep.subr.bf16.mxu0 0
        %2859 = vmatpush2.bf16.msra.mxu0 0
        %2860 = vmatprep.mubr.bf16.mxu0 0
        %2861 = vmatmul.mubr.bf16.gmra.mxu0 %v2826
        %v2862 = vpop.f32.mrf.mxu0
        %v2863 = vadd.f32 %v2811, %v2862
        %v2864 = vpop.f32.mrf.mxu0
        %v2865 = vpop.f32.mrf.mxu0
        %v2866 = vpop.f32.mrf.mxu0
        %2867 = vdwg.mxu0
        %v2868 = vmul.f32 %v2863, 0.25
        %v2869 = vld [vmem:[%s35] sm:$0xf]
        %v2870 = vld [vmem:[%s35 + $0x4] sm:$0xf]
        %v2871 = vld [vmem:[%s35 + $0x8] sm:$0xf]
        %v2872 = vld [vmem:[%s35 + $0xc] sm:$0xf]
        %v2873 = vld [vmem:[%s35 + $0x10] sm:$0xf]
        %v2874 = vld [vmem:[%s35 + $0x14] sm:$0xf]
        %v2875 = vld [vmem:[%s35 + $0x18] sm:$0xf]
        %v2876 = vld [vmem:[%s35 + $0x1c] sm:$0xf]
        %v2877 = vld [vmem:[%s37] sm:$0x1]
        %v2878 = vpack.c.bf16 %v2868, %v2868
        %v2879 = vpack.c.bf16 %v2863, %v2863
        %2881 = vrot.lane.b32.xlu0 %v2879, 64
        %v2882 = vpop.permute.xlu0 %2881
        %v2884 = vsel %vm1200, %v2878, 0
        %v2887 = vsel %vm1200, %v2882, 0
        %2889 = vmatprep.subr.bf16.mxu0 0
        %2890 = vmatpush1.bf16.xpose.msra.mxu0 0
        %2891 = vmatprep.subr.bf16.mxu0 0
        %2892 = vmatpush1.bf16.xpose.msra.mxu0 0
        %2893 = vmatprep.subr.bf16.mxu0 0
        %2894 = vmatpush1.bf16.xpose.msra.mxu0 0
        %2895 = vmatprep.subr.bf16.mxu0 0
        %2896 = vmatpush1.bf16.xpose.msra.mxu0 0
        %2897 = vmatprep.subr.bf16.mxu0 0
        %2898 = vmatpush1.bf16.xpose.msra.mxu0 0
        %2899 = vmatprep.subr.bf16.mxu0 0
        %2900 = vmatpush1.bf16.xpose.msra.mxu0 0
        %2901 = vmatprep.subr.bf16.mxu0 0
        %2902 = vmatpush1.bf16.xpose.msra.mxu0 0
        %2903 = vmatprep.subr.bf16.mxu0 0
        %2904 = vmatpush1.bf16.xpose.msra.mxu0 %v2887
        %2905 = vmatprep.subr.bf16.mxu0 0
        %2906 = vmatpush2.bf16.xpose.msra.mxu0 0
        %2907 = vmatprep.subr.bf16.mxu0 0
        %2908 = vmatpush2.bf16.xpose.msra.mxu0 0
        %2909 = vmatprep.subr.bf16.mxu0 0
        %2910 = vmatpush2.bf16.xpose.msra.mxu0 0
        %2911 = vmatprep.subr.bf16.mxu0 0
        %2912 = vmatpush2.bf16.xpose.msra.mxu0 0
        %2913 = vmatprep.subr.bf16.mxu0 0
        %2914 = vmatpush2.bf16.xpose.msra.mxu0 0
        %2915 = vmatprep.subr.bf16.mxu0 0
        %2916 = vmatpush2.bf16.xpose.msra.mxu0 0
        %2917 = vmatprep.subr.bf16.mxu0 0
        %2918 = vmatpush2.bf16.xpose.msra.mxu0 0
        %2919 = vmatprep.subr.bf16.mxu0 0
        %2920 = vmatpush2.bf16.xpose.msra.mxu0 0
        %2921 = vmatprep.mubr.bf16.mxu0 0
        %2922 = vmatmul.mubr.bf16.gmra.mxu0 %v2884
        %v2923 = vpop.f32.mrf.mxu0
        %v2924 = vadd.f32 0.0, %v2923
        %v2925 = vpop.f32.mrf.mxu0
        %v2926 = vpop.f32.mrf.mxu0
        %v2927 = vpop.f32.mrf.mxu0
        %2928 = vdwg.mxu0
        %v2929 = vsel %vm1115, %v2924, -1e+30
        %v2930 = vsel %vm1247, %v2929, -inf
        %2931 = vmax.xlane.f32.xlu0 %v2930
        %v2932 = vpop.xlane.xlu0 %2931
        %v2933 = vsub.f32 %v2929, %v2932
        %v2934 = vmul.f32 %v2933, 1.442695
        %v2935 = vpow.pop %v2934
        %v2936 = vsel %vm1247, %v2935, 0.0
        %2937 = vadd.xlane.f32.xlu0 %v2936
        %v2938 = vpop.xlane.xlu0 %2937
        %v2939 = vrcp.pop %v2938
        %v2940 = vmul.f32 %v2935, %v2939
        %v2941 = vpack.c.bf16 %v2940, %v2940
        %2942 = vrot.lane.b32.xlu0 %v2879, 32
        %v2943 = vpop.permute.xlu0 %2942
        %v2945 = vsel %vm1247, %v2941, 0
        %v2948 = vsel %vm1265, %v2943, 0
        %2950 = vmatprep.subr.bf16.mxu0 0
        %2951 = vmatpush1.bf16.msra.mxu0 0
        %2952 = vmatprep.subr.bf16.mxu0 0
        %2953 = vmatpush1.bf16.msra.mxu0 0
        %2954 = vmatprep.subr.bf16.mxu0 0
        %2955 = vmatpush1.bf16.msra.mxu0 0
        %2956 = vmatprep.subr.bf16.mxu0 0
        %2957 = vmatpush1.bf16.msra.mxu0 0
        %2958 = vmatprep.subr.bf16.mxu0 0
        %2959 = vmatpush1.bf16.msra.mxu0 0
        %2960 = vmatprep.subr.bf16.mxu0 0
        %2961 = vmatpush1.bf16.msra.mxu0 0
        %2962 = vmatprep.subr.bf16.mxu0 0
        %2963 = vmatpush1.bf16.msra.mxu0 0
        %2964 = vmatprep.subr.bf16.mxu0 0
        %2965 = vmatpush1.bf16.msra.mxu0 %v2948
        %2966 = vmatprep.subr.bf16.mxu0 0
        %2967 = vmatpush2.bf16.msra.mxu0 0
        %2968 = vmatprep.subr.bf16.mxu0 0
        %2969 = vmatpush2.bf16.msra.mxu0 0
        %2970 = vmatprep.subr.bf16.mxu0 0
        %2971 = vmatpush2.bf16.msra.mxu0 0
        %2972 = vmatprep.subr.bf16.mxu0 0
        %2973 = vmatpush2.bf16.msra.mxu0 0
        %2974 = vmatprep.subr.bf16.mxu0 0
        %2975 = vmatpush2.bf16.msra.mxu0 0
        %2976 = vmatprep.subr.bf16.mxu0 0
        %2977 = vmatpush2.bf16.msra.mxu0 0
        %2978 = vmatprep.subr.bf16.mxu0 0
        %2979 = vmatpush2.bf16.msra.mxu0 0
        %2980 = vmatprep.subr.bf16.mxu0 0
        %2981 = vmatpush2.bf16.msra.mxu0 0
        %2982 = vmatprep.mubr.bf16.mxu0 0
        %2983 = vmatmul.mubr.bf16.gmra.mxu0 %v2945
        %v2984 = vpop.f32.mrf.mxu0
        %v2985 = vadd.f32 0.0, %v2984
        %v2986 = vpop.f32.mrf.mxu0
        %v2987 = vpop.f32.mrf.mxu0
        %v2988 = vpop.f32.mrf.mxu0
        %2989 = vdwg.mxu0
        %2991 = vrot.lane.b32.xlu0 %v2878, 112
        %v2992 = vpop.permute.xlu0 %2991
        %v2994 = vsel %vm1200, %v2992, 0
        %2996 = vmatprep.subr.bf16.mxu0 0
        %2997 = vmatpush1.bf16.xpose.msra.mxu0 0
        %2998 = vmatprep.subr.bf16.mxu0 0
        %2999 = vmatpush1.bf16.xpose.msra.mxu0 0
        %3000 = vmatprep.subr.bf16.mxu0 0
        %3001 = vmatpush1.bf16.xpose.msra.mxu0 0
        %3002 = vmatprep.subr.bf16.mxu0 0
        %3003 = vmatpush1.bf16.xpose.msra.mxu0 0
        %3004 = vmatprep.subr.bf16.mxu0 0
        %3005 = vmatpush1.bf16.xpose.msra.mxu0 0
        %3006 = vmatprep.subr.bf16.mxu0 0
        %3007 = vmatpush1.bf16.xpose.msra.mxu0 0
        %3008 = vmatprep.subr.bf16.mxu0 0
        %3009 = vmatpush1.bf16.xpose.msra.mxu0 0
        %3010 = vmatprep.subr.bf16.mxu0 0
        %3011 = vmatpush1.bf16.xpose.msra.mxu0 %v2887
        %3012 = vmatprep.subr.bf16.mxu0 0
        %3013 = vmatpush2.bf16.xpose.msra.mxu0 0
        %3014 = vmatprep.subr.bf16.mxu0 0
        %3015 = vmatpush2.bf16.xpose.msra.mxu0 0
        %3016 = vmatprep.subr.bf16.mxu0 0
        %3017 = vmatpush2.bf16.xpose.msra.mxu0 0
        %3018 = vmatprep.subr.bf16.mxu0 0
        %3019 = vmatpush2.bf16.xpose.msra.mxu0 0
        %3020 = vmatprep.subr.bf16.mxu0 0
        %3021 = vmatpush2.bf16.xpose.msra.mxu0 0
        %3022 = vmatprep.subr.bf16.mxu0 0
        %3023 = vmatpush2.bf16.xpose.msra.mxu0 0
        %3024 = vmatprep.subr.bf16.mxu0 0
        %3025 = vmatpush2.bf16.xpose.msra.mxu0 0
        %3026 = vmatprep.subr.bf16.mxu0 0
        %3027 = vmatpush2.bf16.xpose.msra.mxu0 0
        %3028 = vmatprep.mubr.bf16.mxu0 0
        %3029 = vmatmul.mubr.bf16.gmra.mxu0 %v2994
        %v3030 = vpop.f32.mrf.mxu0
        %v3031 = vadd.f32 0.0, %v3030
        %v3032 = vpop.f32.mrf.mxu0
        %v3033 = vpop.f32.mrf.mxu0
        %v3034 = vpop.f32.mrf.mxu0
        %3035 = vdwg.mxu0
        %v3036 = vsel %vm1115, %v3031, -1e+30
        %v3037 = vsel %vm1247, %v3036, -inf
        %3038 = vmax.xlane.f32.xlu0 %v3037
        %v3039 = vpop.xlane.xlu0 %3038
        %v3040 = vsub.f32 %v3036, %v3039
        %v3041 = vmul.f32 %v3040, 1.442695
        %v3042 = vpow.pop %v3041
        %v3043 = vsel %vm1247, %v3042, 0.0
        %3044 = vadd.xlane.f32.xlu0 %v3043
        %v3045 = vpop.xlane.xlu0 %3044
        %v3046 = vrcp.pop %v3045
        %v3047 = vmul.f32 %v3042, %v3046
        %v3048 = vpack.c.bf16 %v3047, %v3047
        %v3050 = vsel %vm1247, %v3048, 0
        %3052 = vmatprep.subr.bf16.mxu0 0
        %3053 = vmatpush1.bf16.msra.mxu0 0
        %3054 = vmatprep.subr.bf16.mxu0 0
        %3055 = vmatpush1.bf16.msra.mxu0 0
        %3056 = vmatprep.subr.bf16.mxu0 0
        %3057 = vmatpush1.bf16.msra.mxu0 0
        %3058 = vmatprep.subr.bf16.mxu0 0
        %3059 = vmatpush1.bf16.msra.mxu0 0
        %3060 = vmatprep.subr.bf16.mxu0 0
        %3061 = vmatpush1.bf16.msra.mxu0 0
        %3062 = vmatprep.subr.bf16.mxu0 0
        %3063 = vmatpush1.bf16.msra.mxu0 0
        %3064 = vmatprep.subr.bf16.mxu0 0
        %3065 = vmatpush1.bf16.msra.mxu0 0
        %3066 = vmatprep.subr.bf16.mxu0 0
        %3067 = vmatpush1.bf16.msra.mxu0 %v2948
        %3068 = vmatprep.subr.bf16.mxu0 0
        %3069 = vmatpush2.bf16.msra.mxu0 0
        %3070 = vmatprep.subr.bf16.mxu0 0
        %3071 = vmatpush2.bf16.msra.mxu0 0
        %3072 = vmatprep.subr.bf16.mxu0 0
        %3073 = vmatpush2.bf16.msra.mxu0 0
        %3074 = vmatprep.subr.bf16.mxu0 0
        %3075 = vmatpush2.bf16.msra.mxu0 0
        %3076 = vmatprep.subr.bf16.mxu0 0
        %3077 = vmatpush2.bf16.msra.mxu0 0
        %3078 = vmatprep.subr.bf16.mxu0 0
        %3079 = vmatpush2.bf16.msra.mxu0 0
        %3080 = vmatprep.subr.bf16.mxu0 0
        %3081 = vmatpush2.bf16.msra.mxu0 0
        %3082 = vmatprep.subr.bf16.mxu0 0
        %3083 = vmatpush2.bf16.msra.mxu0 0
        %3084 = vmatprep.mubr.bf16.mxu0 0
        %3085 = vmatmul.mubr.bf16.gmra.mxu0 %v3050
        %v3086 = vpop.f32.mrf.mxu0
        %v3087 = vadd.f32 0.0, %v3086
        %v3088 = vpop.f32.mrf.mxu0
        %v3089 = vpop.f32.mrf.mxu0
        %v3090 = vpop.f32.mrf.mxu0
        %3091 = vdwg.mxu0
        %3092 = vrot.lane.b32.xlu0 %v2878, 96
        %v3093 = vpop.permute.xlu0 %3092
        %3094 = vrot.lane.b32.xlu0 %v2879, 48
        %v3095 = vpop.permute.xlu0 %3094
        %v3097 = vsel %vm1200, %v3093, 0
        %v3100 = vsel %vm1200, %v3095, 0
        %3102 = vmatprep.subr.bf16.mxu0 0
        %3103 = vmatpush1.bf16.xpose.msra.mxu0 0
        %3104 = vmatprep.subr.bf16.mxu0 0
        %3105 = vmatpush1.bf16.xpose.msra.mxu0 0
        %3106 = vmatprep.subr.bf16.mxu0 0
        %3107 = vmatpush1.bf16.xpose.msra.mxu0 0
        %3108 = vmatprep.subr.bf16.mxu0 0
        %3109 = vmatpush1.bf16.xpose.msra.mxu0 0
        %3110 = vmatprep.subr.bf16.mxu0 0
        %3111 = vmatpush1.bf16.xpose.msra.mxu0 0
        %3112 = vmatprep.subr.bf16.mxu0 0
        %3113 = vmatpush1.bf16.xpose.msra.mxu0 0
        %3114 = vmatprep.subr.bf16.mxu0 0
        %3115 = vmatpush1.bf16.xpose.msra.mxu0 0
        %3116 = vmatprep.subr.bf16.mxu0 0
        %3117 = vmatpush1.bf16.xpose.msra.mxu0 %v3100
        %3118 = vmatprep.subr.bf16.mxu0 0
        %3119 = vmatpush2.bf16.xpose.msra.mxu0 0
        %3120 = vmatprep.subr.bf16.mxu0 0
        %3121 = vmatpush2.bf16.xpose.msra.mxu0 0
        %3122 = vmatprep.subr.bf16.mxu0 0
        %3123 = vmatpush2.bf16.xpose.msra.mxu0 0
        %3124 = vmatprep.subr.bf16.mxu0 0
        %3125 = vmatpush2.bf16.xpose.msra.mxu0 0
        %3126 = vmatprep.subr.bf16.mxu0 0
        %3127 = vmatpush2.bf16.xpose.msra.mxu0 0
        %3128 = vmatprep.subr.bf16.mxu0 0
        %3129 = vmatpush2.bf16.xpose.msra.mxu0 0
        %3130 = vmatprep.subr.bf16.mxu0 0
        %3131 = vmatpush2.bf16.xpose.msra.mxu0 0
        %3132 = vmatprep.subr.bf16.mxu0 0
        %3133 = vmatpush2.bf16.xpose.msra.mxu0 0
        %3134 = vmatprep.mubr.bf16.mxu0 0
        %3135 = vmatmul.mubr.bf16.gmra.mxu0 %v3097
        %v3136 = vpop.f32.mrf.mxu0
        %v3137 = vadd.f32 0.0, %v3136
        %v3138 = vpop.f32.mrf.mxu0
        %v3139 = vpop.f32.mrf.mxu0
        %v3140 = vpop.f32.mrf.mxu0
        %3141 = vdwg.mxu0
        %v3142 = vsel %vm1115, %v3137, -1e+30
        %v3143 = vsel %vm1247, %v3142, -inf
        %3144 = vmax.xlane.f32.xlu0 %v3143
        %v3145 = vpop.xlane.xlu0 %3144
        %v3146 = vsub.f32 %v3142, %v3145
        %v3147 = vmul.f32 %v3146, 1.442695
        %v3148 = vpow.pop %v3147
        %v3149 = vsel %vm1247, %v3148, 0.0
        %3150 = vadd.xlane.f32.xlu0 %v3149
        %v3151 = vpop.xlane.xlu0 %3150
        %v3152 = vrcp.pop %v3151
        %v3153 = vmul.f32 %v3148, %v3152
        %v3154 = vpack.c.bf16 %v3153, %v3153
        %3155 = vrot.lane.b32.xlu0 %v2879, 16
        %v3156 = vpop.permute.xlu0 %3155
        %v3158 = vsel %vm1247, %v3154, 0
        %v3161 = vsel %vm1265, %v3156, 0
        %3163 = vmatprep.subr.bf16.mxu0 0
        %3164 = vmatpush1.bf16.msra.mxu0 0
        %3165 = vmatprep.subr.bf16.mxu0 0
        %3166 = vmatpush1.bf16.msra.mxu0 0
        %3167 = vmatprep.subr.bf16.mxu0 0
        %3168 = vmatpush1.bf16.msra.mxu0 0
        %3169 = vmatprep.subr.bf16.mxu0 0
        %3170 = vmatpush1.bf16.msra.mxu0 0
        %3171 = vmatprep.subr.bf16.mxu0 0
        %3172 = vmatpush1.bf16.msra.mxu0 0
        %3173 = vmatprep.subr.bf16.mxu0 0
        %3174 = vmatpush1.bf16.msra.mxu0 0
        %3175 = vmatprep.subr.bf16.mxu0 0
        %3176 = vmatpush1.bf16.msra.mxu0 0
        %3177 = vmatprep.subr.bf16.mxu0 0
        %3178 = vmatpush1.bf16.msra.mxu0 %v3161
        %3179 = vmatprep.subr.bf16.mxu0 0
        %3180 = vmatpush2.bf16.msra.mxu0 0
        %3181 = vmatprep.subr.bf16.mxu0 0
        %3182 = vmatpush2.bf16.msra.mxu0 0
        %3183 = vmatprep.subr.bf16.mxu0 0
        %3184 = vmatpush2.bf16.msra.mxu0 0
        %3185 = vmatprep.subr.bf16.mxu0 0
        %3186 = vmatpush2.bf16.msra.mxu0 0
        %3187 = vmatprep.subr.bf16.mxu0 0
        %3188 = vmatpush2.bf16.msra.mxu0 0
        %3189 = vmatprep.subr.bf16.mxu0 0
        %3190 = vmatpush2.bf16.msra.mxu0 0
        %3191 = vmatprep.subr.bf16.mxu0 0
        %3192 = vmatpush2.bf16.msra.mxu0 0
        %3193 = vmatprep.subr.bf16.mxu0 0
        %3194 = vmatpush2.bf16.msra.mxu0 0
        %3195 = vmatprep.mubr.bf16.mxu0 0
        %3196 = vmatmul.mubr.bf16.gmra.mxu0 %v3158
        %v3197 = vpop.f32.mrf.mxu0
        %v3198 = vadd.f32 0.0, %v3197
        %v3199 = vpop.f32.mrf.mxu0
        %v3200 = vpop.f32.mrf.mxu0
        %v3201 = vpop.f32.mrf.mxu0
        %3202 = vdwg.mxu0
        %3203 = vrot.lane.b32.xlu0 %v2878, 80
        %v3204 = vpop.permute.xlu0 %3203
        %v3206 = vsel %vm1200, %v3204, 0
        %3208 = vmatprep.subr.bf16.mxu0 0
        %3209 = vmatpush1.bf16.xpose.msra.mxu0 0
        %3210 = vmatprep.subr.bf16.mxu0 0
        %3211 = vmatpush1.bf16.xpose.msra.mxu0 0
        %3212 = vmatprep.subr.bf16.mxu0 0
        %3213 = vmatpush1.bf16.xpose.msra.mxu0 0
        %3214 = vmatprep.subr.bf16.mxu0 0
        %3215 = vmatpush1.bf16.xpose.msra.mxu0 0
        %3216 = vmatprep.subr.bf16.mxu0 0
        %3217 = vmatpush1.bf16.xpose.msra.mxu0 0
        %3218 = vmatprep.subr.bf16.mxu0 0
        %3219 = vmatpush1.bf16.xpose.msra.mxu0 0
        %3220 = vmatprep.subr.bf16.mxu0 0
        %3221 = vmatpush1.bf16.xpose.msra.mxu0 0
        %3222 = vmatprep.subr.bf16.mxu0 0
        %3223 = vmatpush1.bf16.xpose.msra.mxu0 %v3100
        %3224 = vmatprep.subr.bf16.mxu0 0
        %3225 = vmatpush2.bf16.xpose.msra.mxu0 0
        %3226 = vmatprep.subr.bf16.mxu0 0
        %3227 = vmatpush2.bf16.xpose.msra.mxu0 0
        %3228 = vmatprep.subr.bf16.mxu0 0
        %3229 = vmatpush2.bf16.xpose.msra.mxu0 0
        %3230 = vmatprep.subr.bf16.mxu0 0
        %3231 = vmatpush2.bf16.xpose.msra.mxu0 0
        %3232 = vmatprep.subr.bf16.mxu0 0
        %3233 = vmatpush2.bf16.xpose.msra.mxu0 0
        %3234 = vmatprep.subr.bf16.mxu0 0
        %3235 = vmatpush2.bf16.xpose.msra.mxu0 0
        %3236 = vmatprep.subr.bf16.mxu0 0
        %3237 = vmatpush2.bf16.xpose.msra.mxu0 0
        %3238 = vmatprep.subr.bf16.mxu0 0
        %3239 = vmatpush2.bf16.xpose.msra.mxu0 0
        %3240 = vmatprep.mubr.bf16.mxu0 0
        %3241 = vmatmul.mubr.bf16.gmra.mxu0 %v3206
        %v3242 = vpop.f32.mrf.mxu0
        %v3243 = vadd.f32 0.0, %v3242
        %v3244 = vpop.f32.mrf.mxu0
        %v3245 = vpop.f32.mrf.mxu0
        %v3246 = vpop.f32.mrf.mxu0
        %3247 = vdwg.mxu0
        %v3248 = vsel %vm1115, %v3243, -1e+30
        %v3249 = vsel %vm1247, %v3248, -inf
        %3250 = vmax.xlane.f32.xlu0 %v3249
        %v3251 = vpop.xlane.xlu0 %3250
        %v3252 = vsub.f32 %v3248, %v3251
        %v3253 = vmul.f32 %v3252, 1.442695
        %v3254 = vpow.pop %v3253
        %v3255 = vsel %vm1247, %v3254, 0.0
        %3256 = vadd.xlane.f32.xlu0 %v3255
        %v3257 = vpop.xlane.xlu0 %3256
        %v3258 = vrcp.pop %v3257
        %v3259 = vmul.f32 %v3254, %v3258
        %v3260 = vpack.c.bf16 %v3259, %v3259
        %v3262 = vsel %vm1247, %v3260, 0
        %3264 = vmatprep.subr.bf16.mxu0 0
        %3265 = vmatpush1.bf16.msra.mxu0 0
        %3266 = vmatprep.subr.bf16.mxu0 0
        %3267 = vmatpush1.bf16.msra.mxu0 0
        %3268 = vmatprep.subr.bf16.mxu0 0
        %3269 = vmatpush1.bf16.msra.mxu0 0
        %3270 = vmatprep.subr.bf16.mxu0 0
        %3271 = vmatpush1.bf16.msra.mxu0 0
        %3272 = vmatprep.subr.bf16.mxu0 0
        %3273 = vmatpush1.bf16.msra.mxu0 0
        %3274 = vmatprep.subr.bf16.mxu0 0
        %3275 = vmatpush1.bf16.msra.mxu0 0
        %3276 = vmatprep.subr.bf16.mxu0 0
        %3277 = vmatpush1.bf16.msra.mxu0 0
        %3278 = vmatprep.subr.bf16.mxu0 0
        %3279 = vmatpush1.bf16.msra.mxu0 %v3161
        %3280 = vmatprep.subr.bf16.mxu0 0
        %3281 = vmatpush2.bf16.msra.mxu0 0
        %3282 = vmatprep.subr.bf16.mxu0 0
        %3283 = vmatpush2.bf16.msra.mxu0 0
        %3284 = vmatprep.subr.bf16.mxu0 0
        %3285 = vmatpush2.bf16.msra.mxu0 0
        %3286 = vmatprep.subr.bf16.mxu0 0
        %3287 = vmatpush2.bf16.msra.mxu0 0
        %3288 = vmatprep.subr.bf16.mxu0 0
        %3289 = vmatpush2.bf16.msra.mxu0 0
        %3290 = vmatprep.subr.bf16.mxu0 0
        %3291 = vmatpush2.bf16.msra.mxu0 0
        %3292 = vmatprep.subr.bf16.mxu0 0
        %3293 = vmatpush2.bf16.msra.mxu0 0
        %3294 = vmatprep.subr.bf16.mxu0 0
        %3295 = vmatpush2.bf16.msra.mxu0 0
        %3296 = vmatprep.mubr.bf16.mxu0 0
        %3297 = vmatmul.mubr.bf16.gmra.mxu0 %v3262
        %v3298 = vpop.f32.mrf.mxu0
        %v3299 = vadd.f32 0.0, %v3298
        %v3300 = vpop.f32.mrf.mxu0
        %v3301 = vpop.f32.mrf.mxu0
        %v3302 = vpop.f32.mrf.mxu0
        %3303 = vdwg.mxu0
        %3305 = vrot.lane.b32.xlu0 %v3087, 16
        %v3306 = vpop.permute.xlu0 %3305
        %3309 = vrot.lane.b32.xlu0 %v3198, 32
        %v3310 = vpop.permute.xlu0 %3309
        %3313 = vrot.lane.b32.xlu0 %v3299, 48
        %v3314 = vpop.permute.xlu0 %3313
        %v3316 = vsel %vm1200, %v2985, %v3306
        %v3317 = vsel %vm1141, %v3316, %v3310
        %v3318 = vsel %vm1634, %v3317, %v3314
        %v3319 = vpack.c.bf16 %v3318, %v3318
        %v3321 = vlaneseq
        %v3322 = vshrl.u32 %v3321, 7
        %v3323 = vsub.s32 0, %v3322
        %v3324 = vrot.slane %v2877, %v3323
        %v3334 = vunpack.c.l.b16 %v2869
        %v3335 = vunpack.c.l.b16 %v2870
        %v3336 = vunpack.c.l.b16 %v2871
        %v3337 = vunpack.c.l.b16 %v2872
        %v3338 = vunpack.c.l.b16 %v2873
        %v3339 = vunpack.c.l.b16 %v2874
        %v3340 = vunpack.c.l.b16 %v2875
        %v3341 = vunpack.c.l.b16 %v2876
        %v3342 = vpack.c.b16 %v3335, %v3334
        %v3343 = vpack.c.b16 %v3337, %v3336
        %v3344 = vpack.c.b16 %v3339, %v3338
        %v3345 = vpack.c.b16 %v3341, %v3340
        %v3351 = vsel %vm1667, %v3319, 0
        %3353 = vmatprep.subr.bf16.mxu0 0
        %3354 = vmatpush1.bf16.msra.mxu0 0
        %3355 = vmatprep.subr.bf16.mxu0 0
        %3356 = vmatpush1.bf16.msra.mxu0 0
        %3357 = vmatprep.subr.bf16.mxu0 0
        %3358 = vmatpush1.bf16.msra.mxu0 0
        %3359 = vmatprep.subr.bf16.mxu0 0
        %3360 = vmatpush1.bf16.msra.mxu0 0
        %3361 = vmatprep.subr.bf16.mxu0 0
        %3362 = vmatpush1.bf16.msra.mxu0 %v3345
        %3363 = vmatprep.subr.bf16.mxu0 0
        %3364 = vmatpush1.bf16.msra.mxu0 %v3344
        %3365 = vmatprep.subr.bf16.mxu0 0
        %3366 = vmatpush1.bf16.msra.mxu0 %v3343
        %3367 = vmatprep.subr.bf16.mxu0 0
        %3368 = vmatpush1.bf16.msra.mxu0 %v3342
        %3369 = vmatprep.subr.bf16.mxu0 0
        %3370 = vmatpush2.bf16.msra.mxu0 0
        %3371 = vmatprep.subr.bf16.mxu0 0
        %3372 = vmatpush2.bf16.msra.mxu0 0
        %3373 = vmatprep.subr.bf16.mxu0 0
        %3374 = vmatpush2.bf16.msra.mxu0 0
        %3375 = vmatprep.subr.bf16.mxu0 0
        %3376 = vmatpush2.bf16.msra.mxu0 0
        %3377 = vmatprep.subr.bf16.mxu0 0
        %3378 = vmatpush2.bf16.msra.mxu0 0
        %3379 = vmatprep.subr.bf16.mxu0 0
        %3380 = vmatpush2.bf16.msra.mxu0 0
        %3381 = vmatprep.subr.bf16.mxu0 0
        %3382 = vmatpush2.bf16.msra.mxu0 0
        %3383 = vmatprep.subr.bf16.mxu0 0
        %3384 = vmatpush2.bf16.msra.mxu0 0
        %3385 = vmatprep.mubr.bf16.mxu0 0
        %3386 = vmatmul.mubr.bf16.gmra.mxu0 %v3351
        %v3387 = vpop.f32.mrf.mxu0
        %v3388 = vadd.f32 %v3324, %v3387
        %v3389 = vpop.f32.mrf.mxu0
        %v3390 = vpop.f32.mrf.mxu0
        %v3391 = vpop.f32.mrf.mxu0
        %3392 = vdwg.mxu0
        %v3393 = vadd.f32 %v3388, %v2800
        %v3394 = vld [vmem:[%s39] sm:$0x1]
        %v3395 = vmul.f32 %v3393, %v3393
        %v3396 = vsel %vm1141, %v3395, 0.0
        %3397 = vadd.xlane.f32.xlu0 %v3396
        %v3398 = vpop.xlane.xlu0 %3397
        %v3399 = vmul.f32 %v3398, %v1717
        %v3400 = vadd.f32 %v3399, 1e-06
        %v3401 = vrsqrt.pop %v3400
        %v3402 = vmul.f32 %v3393, %v3401
        %v3404 = vlaneseq
        %v3405 = vshrl.u32 %v3404, 7
        %v3406 = vsub.s32 0, %v3405
        %v3407 = vrot.slane %v3394, %v3406
        %v3409 = vmul.f32 %v3402, %v3407
        %v3410 = vld [vmem:[%s41] sm:$0xf]
        %v3411 = vld [vmem:[%s41 + $0x4] sm:$0xf]
        %v3412 = vld [vmem:[%s41 + $0x8] sm:$0xf]
        %v3413 = vld [vmem:[%s41 + $0xc] sm:$0xf]
        %v3414 = vpack.c.bf16 %v3409, %v3409
        %v3415 = vld [vmem:[%s43] sm:$0x1]
        %v3417 = vlaneseq
        %v3418 = vshrl.u32 %v3417, 7
        %v3419 = vsub.s32 0, %v3418
        %v3420 = vrot.slane %v3415, %v3419
        %v3426 = vunpack.c.l.b16 %v3410
        %v3427 = vunpack.c.l.b16 %v3411
        %v3428 = vunpack.c.l.b16 %v3412
        %v3429 = vunpack.c.l.b16 %v3413
        %v3430 = vpack.c.b16 %v3427, %v3426
        %v3431 = vpack.c.b16 %v3429, %v3428
        %v3435 = vsel %vm1141, %v3414, 0
        %3437 = vmatprep.subr.bf16.mxu0 0
        %3438 = vmatpush1.bf16.msra.mxu0 0
        %3439 = vmatprep.subr.bf16.mxu0 0
        %3440 = vmatpush1.bf16.msra.mxu0 0
        %3441 = vmatprep.subr.bf16.mxu0 0
        %3442 = vmatpush1.bf16.msra.mxu0 0
        %3443 = vmatprep.subr.bf16.mxu0 0
        %3444 = vmatpush1.bf16.msra.mxu0 0
        %3445 = vmatprep.subr.bf16.mxu0 0
        %3446 = vmatpush1.bf16.msra.mxu0 0
        %3447 = vmatprep.subr.bf16.mxu0 0
        %3448 = vmatpush1.bf16.msra.mxu0 0
        %3449 = vmatprep.subr.bf16.mxu0 0
        %3450 = vmatpush1.bf16.msra.mxu0 %v3431
        %3451 = vmatprep.subr.bf16.mxu0 0
        %3452 = vmatpush1.bf16.msra.mxu0 %v3430
        %3453 = vmatprep.subr.bf16.mxu0 0
        %3454 = vmatpush2.bf16.msra.mxu0 0
        %3455 = vmatprep.subr.bf16.mxu0 0
        %3456 = vmatpush2.bf16.msra.mxu0 0
        %3457 = vmatprep.subr.bf16.mxu0 0
        %3458 = vmatpush2.bf16.msra.mxu0 0
        %3459 = vmatprep.subr.bf16.mxu0 0
        %3460 = vmatpush2.bf16.msra.mxu0 0
        %3461 = vmatprep.subr.bf16.mxu0 0
        %3462 = vmatpush2.bf16.msra.mxu0 0
        %3463 = vmatprep.subr.bf16.mxu0 0
        %3464 = vmatpush2.bf16.msra.mxu0 0
        %3465 = vmatprep.subr.bf16.mxu0 0
        %3466 = vmatpush2.bf16.msra.mxu0 0
        %3467 = vmatprep.subr.bf16.mxu0 0
        %3468 = vmatpush2.bf16.msra.mxu0 0
        %3469 = vmatprep.mubr.bf16.mxu0 0
        %3470 = vmatmul.mubr.bf16.gmra.mxu0 %v3435
        %v3471 = vpop.f32.mrf.mxu0
        %v3472 = vadd.f32 %v3420, %v3471
        %v3473 = vpop.f32.mrf.mxu0
        %v3474 = vpop.f32.mrf.mxu0
        %v3475 = vpop.f32.mrf.mxu0
        %3476 = vdwg.mxu0
        %v3477 = vmul.f32 %v3472, 0.25
        %v3478 = vld [vmem:[%s45] sm:$0xf]
        %v3479 = vld [vmem:[%s45 + $0x4] sm:$0xf]
        %v3480 = vld [vmem:[%s45 + $0x8] sm:$0xf]
        %v3481 = vld [vmem:[%s45 + $0xc] sm:$0xf]
        %v3482 = vpack.c.bf16 %v2799, %v2799
        %v3483 = vld [vmem:[%s47] sm:$0x1]
        %v3485 = vlaneseq
        %v3486 = vshrl.u32 %v3485, 7
        %v3487 = vsub.s32 0, %v3486
        %v3488 = vrot.slane %v3483, %v3487
        %v3494 = vunpack.c.l.b16 %v3478
        %v3495 = vunpack.c.l.b16 %v3479
        %v3496 = vunpack.c.l.b16 %v3480
        %v3497 = vunpack.c.l.b16 %v3481
        %v3498 = vpack.c.b16 %v3495, %v3494
        %v3499 = vpack.c.b16 %v3497, %v3496
        %v3503 = vsel %vm1141, %v3482, 0
        %3505 = vmatprep.subr.bf16.mxu0 0
        %3506 = vmatpush1.bf16.msra.mxu0 0
        %3507 = vmatprep.subr.bf16.mxu0 0
        %3508 = vmatpush1.bf16.msra.mxu0 0
        %3509 = vmatprep.subr.bf16.mxu0 0
        %3510 = vmatpush1.bf16.msra.mxu0 0
        %3511 = vmatprep.subr.bf16.mxu0 0
        %3512 = vmatpush1.bf16.msra.mxu0 0
        %3513 = vmatprep.subr.bf16.mxu0 0
        %3514 = vmatpush1.bf16.msra.mxu0 0
        %3515 = vmatprep.subr.bf16.mxu0 0
        %3516 = vmatpush1.bf16.msra.mxu0 0
        %3517 = vmatprep.subr.bf16.mxu0 0
        %3518 = vmatpush1.bf16.msra.mxu0 %v3499
        %3519 = vmatprep.subr.bf16.mxu0 0
        %3520 = vmatpush1.bf16.msra.mxu0 %v3498
        %3521 = vmatprep.subr.bf16.mxu0 0
        %3522 = vmatpush2.bf16.msra.mxu0 0
        %3523 = vmatprep.subr.bf16.mxu0 0
        %3524 = vmatpush2.bf16.msra.mxu0 0
        %3525 = vmatprep.subr.bf16.mxu0 0
        %3526 = vmatpush2.bf16.msra.mxu0 0
        %3527 = vmatprep.subr.bf16.mxu0 0
        %3528 = vmatpush2.bf16.msra.mxu0 0
        %3529 = vmatprep.subr.bf16.mxu0 0
        %3530 = vmatpush2.bf16.msra.mxu0 0
        %3531 = vmatprep.subr.bf16.mxu0 0
        %3532 = vmatpush2.bf16.msra.mxu0 0
        %3533 = vmatprep.subr.bf16.mxu0 0
        %3534 = vmatpush2.bf16.msra.mxu0 0
        %3535 = vmatprep.subr.bf16.mxu0 0
        %3536 = vmatpush2.bf16.msra.mxu0 0
        %3537 = vmatprep.mubr.bf16.mxu0 0
        %3538 = vmatmul.mubr.bf16.gmra.mxu0 %v3503
        %v3539 = vpop.f32.mrf.mxu0
        %v3540 = vadd.f32 %v3488, %v3539
        %v3541 = vpop.f32.mrf.mxu0
        %v3542 = vpop.f32.mrf.mxu0
        %v3543 = vpop.f32.mrf.mxu0
        %3544 = vdwg.mxu0
        %v3545 = vld [vmem:[%s49] sm:$0xf]
        %v3546 = vld [vmem:[%s49 + $0x4] sm:$0xf]
        %v3547 = vld [vmem:[%s49 + $0x8] sm:$0xf]
        %v3548 = vld [vmem:[%s49 + $0xc] sm:$0xf]
        %v3549 = vld [vmem:[%s49 + $0x10] sm:$0xf]
        %v3550 = vld [vmem:[%s49 + $0x14] sm:$0xf]
        %v3551 = vld [vmem:[%s49 + $0x18] sm:$0xf]
        %v3552 = vld [vmem:[%s49 + $0x1c] sm:$0xf]
        %v3553 = vld [vmem:[%s51] sm:$0x1]
        %v3554 = vpack.c.bf16 %v3477, %v3477
        %v3555 = vpack.c.bf16 %v3540, %v3540
        %v3557 = vsel %vm1200, %v3554, 0
        %v3560 = vsel %vm1200, %v3555, 0
        %3562 = vmatprep.subr.bf16.mxu0 0
        %3563 = vmatpush1.bf16.xpose.msra.mxu0 0
        %3564 = vmatprep.subr.bf16.mxu0 0
        %3565 = vmatpush1.bf16.xpose.msra.mxu0 0
        %3566 = vmatprep.subr.bf16.mxu0 0
        %3567 = vmatpush1.bf16.xpose.msra.mxu0 0
        %3568 = vmatprep.subr.bf16.mxu0 0
        %3569 = vmatpush1.bf16.xpose.msra.mxu0 0
        %3570 = vmatprep.subr.bf16.mxu0 0
        %3571 = vmatpush1.bf16.xpose.msra.mxu0 0
        %3572 = vmatprep.subr.bf16.mxu0 0
        %3573 = vmatpush1.bf16.xpose.msra.mxu0 0
        %3574 = vmatprep.subr.bf16.mxu0 0
        %3575 = vmatpush1.bf16.xpose.msra.mxu0 0
        %3576 = vmatprep.subr.bf16.mxu0 0
        %3577 = vmatpush1.bf16.xpose.msra.mxu0 %v3560
        %3578 = vmatprep.subr.bf16.mxu0 0
        %3579 = vmatpush2.bf16.xpose.msra.mxu0 0
        %3580 = vmatprep.subr.bf16.mxu0 0
        %3581 = vmatpush2.bf16.xpose.msra.mxu0 0
        %3582 = vmatprep.subr.bf16.mxu0 0
        %3583 = vmatpush2.bf16.xpose.msra.mxu0 0
        %3584 = vmatprep.subr.bf16.mxu0 0
        %3585 = vmatpush2.bf16.xpose.msra.mxu0 0
        %3586 = vmatprep.subr.bf16.mxu0 0
        %3587 = vmatpush2.bf16.xpose.msra.mxu0 0
        %3588 = vmatprep.subr.bf16.mxu0 0
        %3589 = vmatpush2.bf16.xpose.msra.mxu0 0
        %3590 = vmatprep.subr.bf16.mxu0 0
        %3591 = vmatpush2.bf16.xpose.msra.mxu0 0
        %3592 = vmatprep.subr.bf16.mxu0 0
        %3593 = vmatpush2.bf16.xpose.msra.mxu0 0
        %3594 = vmatprep.mubr.bf16.mxu0 0
        %3595 = vmatmul.mubr.bf16.gmra.mxu0 %v3557
        %v3596 = vpop.f32.mrf.mxu0
        %v3597 = vadd.f32 0.0, %v3596
        %v3598 = vpop.f32.mrf.mxu0
        %v3599 = vpop.f32.mrf.mxu0
        %v3600 = vpop.f32.mrf.mxu0
        %3601 = vdwg.mxu0
        %v3602 = vsel %vm1247, %v3597, -inf
        %3603 = vmax.xlane.f32.xlu0 %v3602
        %v3604 = vpop.xlane.xlu0 %3603
        %v3605 = vsub.f32 %v3597, %v3604
        %v3606 = vmul.f32 %v3605, 1.442695
        %v3607 = vpow.pop %v3606
        %v3608 = vsel %vm1247, %v3607, 0.0
        %3609 = vadd.xlane.f32.xlu0 %v3608
        %v3610 = vpop.xlane.xlu0 %3609
        %v3611 = vrcp.pop %v3610
        %v3612 = vmul.f32 %v3607, %v3611
        %v3613 = vpack.c.bf16 %v3612, %v3612
        %3615 = vrot.lane.b32.xlu0 %v3555, 96
        %v3616 = vpop.permute.xlu0 %3615
        %v3618 = vsel %vm1247, %v3613, 0
        %v3621 = vsel %vm1265, %v3616, 0
        %3623 = vmatprep.subr.bf16.mxu0 0
        %3624 = vmatpush1.bf16.msra.mxu0 0
        %3625 = vmatprep.subr.bf16.mxu0 0
        %3626 = vmatpush1.bf16.msra.mxu0 0
        %3627 = vmatprep.subr.bf16.mxu0 0
        %3628 = vmatpush1.bf16.msra.mxu0 0
        %3629 = vmatprep.subr.bf16.mxu0 0
        %3630 = vmatpush1.bf16.msra.mxu0 0
        %3631 = vmatprep.subr.bf16.mxu0 0
        %3632 = vmatpush1.bf16.msra.mxu0 0
        %3633 = vmatprep.subr.bf16.mxu0 0
        %3634 = vmatpush1.bf16.msra.mxu0 0
        %3635 = vmatprep.subr.bf16.mxu0 0
        %3636 = vmatpush1.bf16.msra.mxu0 0
        %3637 = vmatprep.subr.bf16.mxu0 0
        %3638 = vmatpush1.bf16.msra.mxu0 %v3621
        %3639 = vmatprep.subr.bf16.mxu0 0
        %3640 = vmatpush2.bf16.msra.mxu0 0
        %3641 = vmatprep.subr.bf16.mxu0 0
        %3642 = vmatpush2.bf16.msra.mxu0 0
        %3643 = vmatprep.subr.bf16.mxu0 0
        %3644 = vmatpush2.bf16.msra.mxu0 0
        %3645 = vmatprep.subr.bf16.mxu0 0
        %3646 = vmatpush2.bf16.msra.mxu0 0
        %3647 = vmatprep.subr.bf16.mxu0 0
        %3648 = vmatpush2.bf16.msra.mxu0 0
        %3649 = vmatprep.subr.bf16.mxu0 0
        %3650 = vmatpush2.bf16.msra.mxu0 0
        %3651 = vmatprep.subr.bf16.mxu0 0
        %3652 = vmatpush2.bf16.msra.mxu0 0
        %3653 = vmatprep.subr.bf16.mxu0 0
        %3654 = vmatpush2.bf16.msra.mxu0 0
        %3655 = vmatprep.mubr.bf16.mxu0 0
        %3656 = vmatmul.mubr.bf16.gmra.mxu0 %v3618
        %v3657 = vpop.f32.mrf.mxu0
        %v3658 = vadd.f32 0.0, %v3657
        %v3659 = vpop.f32.mrf.mxu0
        %v3660 = vpop.f32.mrf.mxu0
        %v3661 = vpop.f32.mrf.mxu0
        %3662 = vdwg.mxu0
        %3664 = vrot.lane.b32.xlu0 %v3554, 112
        %v3665 = vpop.permute.xlu0 %3664
        %v3667 = vsel %vm1200, %v3665, 0
        %3669 = vmatprep.subr.bf16.mxu0 0
        %3670 = vmatpush1.bf16.xpose.msra.mxu0 0
        %3671 = vmatprep.subr.bf16.mxu0 0
        %3672 = vmatpush1.bf16.xpose.msra.mxu0 0
        %3673 = vmatprep.subr.bf16.mxu0 0
        %3674 = vmatpush1.bf16.xpose.msra.mxu0 0
        %3675 = vmatprep.subr.bf16.mxu0 0
        %3676 = vmatpush1.bf16.xpose.msra.mxu0 0
        %3677 = vmatprep.subr.bf16.mxu0 0
        %3678 = vmatpush1.bf16.xpose.msra.mxu0 0
        %3679 = vmatprep.subr.bf16.mxu0 0
        %3680 = vmatpush1.bf16.xpose.msra.mxu0 0
        %3681 = vmatprep.subr.bf16.mxu0 0
        %3682 = vmatpush1.bf16.xpose.msra.mxu0 0
        %3683 = vmatprep.subr.bf16.mxu0 0
        %3684 = vmatpush1.bf16.xpose.msra.mxu0 %v3560
        %3685 = vmatprep.subr.bf16.mxu0 0
        %3686 = vmatpush2.bf16.xpose.msra.mxu0 0
        %3687 = vmatprep.subr.bf16.mxu0 0
        %3688 = vmatpush2.bf16.xpose.msra.mxu0 0
        %3689 = vmatprep.subr.bf16.mxu0 0
        %3690 = vmatpush2.bf16.xpose.msra.mxu0 0
        %3691 = vmatprep.subr.bf16.mxu0 0
        %3692 = vmatpush2.bf16.xpose.msra.mxu0 0
        %3693 = vmatprep.subr.bf16.mxu0 0
        %3694 = vmatpush2.bf16.xpose.msra.mxu0 0
        %3695 = vmatprep.subr.bf16.mxu0 0
        %3696 = vmatpush2.bf16.xpose.msra.mxu0 0
        %3697 = vmatprep.subr.bf16.mxu0 0
        %3698 = vmatpush2.bf16.xpose.msra.mxu0 0
        %3699 = vmatprep.subr.bf16.mxu0 0
        %3700 = vmatpush2.bf16.xpose.msra.mxu0 0
        %3701 = vmatprep.mubr.bf16.mxu0 0
        %3702 = vmatmul.mubr.bf16.gmra.mxu0 %v3667
        %v3703 = vpop.f32.mrf.mxu0
        %v3704 = vadd.f32 0.0, %v3703
        %v3705 = vpop.f32.mrf.mxu0
        %v3706 = vpop.f32.mrf.mxu0
        %v3707 = vpop.f32.mrf.mxu0
        %3708 = vdwg.mxu0
        %v3709 = vsel %vm1247, %v3704, -inf
        %3710 = vmax.xlane.f32.xlu0 %v3709
        %v3711 = vpop.xlane.xlu0 %3710
        %v3712 = vsub.f32 %v3704, %v3711
        %v3713 = vmul.f32 %v3712, 1.442695
        %v3714 = vpow.pop %v3713
        %v3715 = vsel %vm1247, %v3714, 0.0
        %3716 = vadd.xlane.f32.xlu0 %v3715
        %v3717 = vpop.xlane.xlu0 %3716
        %v3718 = vrcp.pop %v3717
        %v3719 = vmul.f32 %v3714, %v3718
        %v3720 = vpack.c.bf16 %v3719, %v3719
        %v3722 = vsel %vm1247, %v3720, 0
        %3724 = vmatprep.subr.bf16.mxu0 0
        %3725 = vmatpush1.bf16.msra.mxu0 0
        %3726 = vmatprep.subr.bf16.mxu0 0
        %3727 = vmatpush1.bf16.msra.mxu0 0
        %3728 = vmatprep.subr.bf16.mxu0 0
        %3729 = vmatpush1.bf16.msra.mxu0 0
        %3730 = vmatprep.subr.bf16.mxu0 0
        %3731 = vmatpush1.bf16.msra.mxu0 0
        %3732 = vmatprep.subr.bf16.mxu0 0
        %3733 = vmatpush1.bf16.msra.mxu0 0
        %3734 = vmatprep.subr.bf16.mxu0 0
        %3735 = vmatpush1.bf16.msra.mxu0 0
        %3736 = vmatprep.subr.bf16.mxu0 0
        %3737 = vmatpush1.bf16.msra.mxu0 0
        %3738 = vmatprep.subr.bf16.mxu0 0
        %3739 = vmatpush1.bf16.msra.mxu0 %v3621
        %3740 = vmatprep.subr.bf16.mxu0 0
        %3741 = vmatpush2.bf16.msra.mxu0 0
        %3742 = vmatprep.subr.bf16.mxu0 0
        %3743 = vmatpush2.bf16.msra.mxu0 0
        %3744 = vmatprep.subr.bf16.mxu0 0
        %3745 = vmatpush2.bf16.msra.mxu0 0
        %3746 = vmatprep.subr.bf16.mxu0 0
        %3747 = vmatpush2.bf16.msra.mxu0 0
        %3748 = vmatprep.subr.bf16.mxu0 0
        %3749 = vmatpush2.bf16.msra.mxu0 0
        %3750 = vmatprep.subr.bf16.mxu0 0
        %3751 = vmatpush2.bf16.msra.mxu0 0
        %3752 = vmatprep.subr.bf16.mxu0 0
        %3753 = vmatpush2.bf16.msra.mxu0 0
        %3754 = vmatprep.subr.bf16.mxu0 0
        %3755 = vmatpush2.bf16.msra.mxu0 0
        %3756 = vmatprep.mubr.bf16.mxu0 0
        %3757 = vmatmul.mubr.bf16.gmra.mxu0 %v3722
        %v3758 = vpop.f32.mrf.mxu0
        %v3759 = vadd.f32 0.0, %v3758
        %v3760 = vpop.f32.mrf.mxu0
        %v3761 = vpop.f32.mrf.mxu0
        %v3762 = vpop.f32.mrf.mxu0
        %3763 = vdwg.mxu0
        %3764 = vrot.lane.b32.xlu0 %v3554, 96
        %v3765 = vpop.permute.xlu0 %3764
        %3766 = vrot.lane.b32.xlu0 %v3555, 112
        %v3767 = vpop.permute.xlu0 %3766
        %v3769 = vsel %vm1200, %v3765, 0
        %v3772 = vsel %vm1200, %v3767, 0
        %3774 = vmatprep.subr.bf16.mxu0 0
        %3775 = vmatpush1.bf16.xpose.msra.mxu0 0
        %3776 = vmatprep.subr.bf16.mxu0 0
        %3777 = vmatpush1.bf16.xpose.msra.mxu0 0
        %3778 = vmatprep.subr.bf16.mxu0 0
        %3779 = vmatpush1.bf16.xpose.msra.mxu0 0
        %3780 = vmatprep.subr.bf16.mxu0 0
        %3781 = vmatpush1.bf16.xpose.msra.mxu0 0
        %3782 = vmatprep.subr.bf16.mxu0 0
        %3783 = vmatpush1.bf16.xpose.msra.mxu0 0
        %3784 = vmatprep.subr.bf16.mxu0 0
        %3785 = vmatpush1.bf16.xpose.msra.mxu0 0
        %3786 = vmatprep.subr.bf16.mxu0 0
        %3787 = vmatpush1.bf16.xpose.msra.mxu0 0
        %3788 = vmatprep.subr.bf16.mxu0 0
        %3789 = vmatpush1.bf16.xpose.msra.mxu0 %v3772
        %3790 = vmatprep.subr.bf16.mxu0 0
        %3791 = vmatpush2.bf16.xpose.msra.mxu0 0
        %3792 = vmatprep.subr.bf16.mxu0 0
        %3793 = vmatpush2.bf16.xpose.msra.mxu0 0
        %3794 = vmatprep.subr.bf16.mxu0 0
        %3795 = vmatpush2.bf16.xpose.msra.mxu0 0
        %3796 = vmatprep.subr.bf16.mxu0 0
        %3797 = vmatpush2.bf16.xpose.msra.mxu0 0
        %3798 = vmatprep.subr.bf16.mxu0 0
        %3799 = vmatpush2.bf16.xpose.msra.mxu0 0
        %3800 = vmatprep.subr.bf16.mxu0 0
        %3801 = vmatpush2.bf16.xpose.msra.mxu0 0
        %3802 = vmatprep.subr.bf16.mxu0 0
        %3803 = vmatpush2.bf16.xpose.msra.mxu0 0
        %3804 = vmatprep.subr.bf16.mxu0 0
        %3805 = vmatpush2.bf16.xpose.msra.mxu0 0
        %3806 = vmatprep.mubr.bf16.mxu0 0
        %3807 = vmatmul.mubr.bf16.gmra.mxu0 %v3769
        %v3808 = vpop.f32.mrf.mxu0
        %v3809 = vadd.f32 0.0, %v3808
        %v3810 = vpop.f32.mrf.mxu0
        %v3811 = vpop.f32.mrf.mxu0
        %v3812 = vpop.f32.mrf.mxu0
        %3813 = vdwg.mxu0
        %v3814 = vsel %vm1247, %v3809, -inf
        %3815 = vmax.xlane.f32.xlu0 %v3814
        %v3816 = vpop.xlane.xlu0 %3815
        %v3817 = vsub.f32 %v3809, %v3816
        %v3818 = vmul.f32 %v3817, 1.442695
        %v3819 = vpow.pop %v3818
        %v3820 = vsel %vm1247, %v3819, 0.0
        %3821 = vadd.xlane.f32.xlu0 %v3820
        %v3822 = vpop.xlane.xlu0 %3821
        %v3823 = vrcp.pop %v3822
        %v3824 = vmul.f32 %v3819, %v3823
        %v3825 = vpack.c.bf16 %v3824, %v3824
        %3826 = vrot.lane.b32.xlu0 %v3555, 80
        %v3827 = vpop.permute.xlu0 %3826
        %v3829 = vsel %vm1247, %v3825, 0
        %v3832 = vsel %vm1265, %v3827, 0
        %3834 = vmatprep.subr.bf16.mxu0 0
        %3835 = vmatpush1.bf16.msra.mxu0 0
        %3836 = vmatprep.subr.bf16.mxu0 0
        %3837 = vmatpush1.bf16.msra.mxu0 0
        %3838 = vmatprep.subr.bf16.mxu0 0
        %3839 = vmatpush1.bf16.msra.mxu0 0
        %3840 = vmatprep.subr.bf16.mxu0 0
        %3841 = vmatpush1.bf16.msra.mxu0 0
        %3842 = vmatprep.subr.bf16.mxu0 0
        %3843 = vmatpush1.bf16.msra.mxu0 0
        %3844 = vmatprep.subr.bf16.mxu0 0
        %3845 = vmatpush1.bf16.msra.mxu0 0
        %3846 = vmatprep.subr.bf16.mxu0 0
        %3847 = vmatpush1.bf16.msra.mxu0 0
        %3848 = vmatprep.subr.bf16.mxu0 0
        %3849 = vmatpush1.bf16.msra.mxu0 %v3832
        %3850 = vmatprep.subr.bf16.mxu0 0
        %3851 = vmatpush2.bf16.msra.mxu0 0
        %3852 = vmatprep.subr.bf16.mxu0 0
        %3853 = vmatpush2.bf16.msra.mxu0 0
        %3854 = vmatprep.subr.bf16.mxu0 0
        %3855 = vmatpush2.bf16.msra.mxu0 0
        %3856 = vmatprep.subr.bf16.mxu0 0
        %3857 = vmatpush2.bf16.msra.mxu0 0
        %3858 = vmatprep.subr.bf16.mxu0 0
        %3859 = vmatpush2.bf16.msra.mxu0 0
        %3860 = vmatprep.subr.bf16.mxu0 0
        %3861 = vmatpush2.bf16.msra.mxu0 0
        %3862 = vmatprep.subr.bf16.mxu0 0
        %3863 = vmatpush2.bf16.msra.mxu0 0
        %3864 = vmatprep.subr.bf16.mxu0 0
        %3865 = vmatpush2.bf16.msra.mxu0 0
        %3866 = vmatprep.mubr.bf16.mxu0 0
        %3867 = vmatmul.mubr.bf16.gmra.mxu0 %v3829
        %v3868 = vpop.f32.mrf.mxu0
        %v3869 = vadd.f32 0.0, %v3868
        %v3870 = vpop.f32.mrf.mxu0
        %v3871 = vpop.f32.mrf.mxu0
        %v3872 = vpop.f32.mrf.mxu0
        %3873 = vdwg.mxu0
        %3874 = vrot.lane.b32.xlu0 %v3554, 80
        %v3875 = vpop.permute.xlu0 %3874
        %v3877 = vsel %vm1200, %v3875, 0
        %3879 = vmatprep.subr.bf16.mxu0 0
        %3880 = vmatpush1.bf16.xpose.msra.mxu0 0
        %3881 = vmatprep.subr.bf16.mxu0 0
        %3882 = vmatpush1.bf16.xpose.msra.mxu0 0
        %3883 = vmatprep.subr.bf16.mxu0 0
        %3884 = vmatpush1.bf16.xpose.msra.mxu0 0
        %3885 = vmatprep.subr.bf16.mxu0 0
        %3886 = vmatpush1.bf16.xpose.msra.mxu0 0
        %3887 = vmatprep.subr.bf16.mxu0 0
        %3888 = vmatpush1.bf16.xpose.msra.mxu0 0
        %3889 = vmatprep.subr.bf16.mxu0 0
        %3890 = vmatpush1.bf16.xpose.msra.mxu0 0
        %3891 = vmatprep.subr.bf16.mxu0 0
        %3892 = vmatpush1.bf16.xpose.msra.mxu0 0
        %3893 = vmatprep.subr.bf16.mxu0 0
        %3894 = vmatpush1.bf16.xpose.msra.mxu0 %v3772
        %3895 = vmatprep.subr.bf16.mxu0 0
        %3896 = vmatpush2.bf16.xpose.msra.mxu0 0
        %3897 = vmatprep.subr.bf16.mxu0 0
        %3898 = vmatpush2.bf16.xpose.msra.mxu0 0
        %3899 = vmatprep.subr.bf16.mxu0 0
        %3900 = vmatpush2.bf16.xpose.msra.mxu0 0
        %3901 = vmatprep.subr.bf16.mxu0 0
        %3902 = vmatpush2.bf16.xpose.msra.mxu0 0
        %3903 = vmatprep.subr.bf16.mxu0 0
        %3904 = vmatpush2.bf16.xpose.msra.mxu0 0
        %3905 = vmatprep.subr.bf16.mxu0 0
        %3906 = vmatpush2.bf16.xpose.msra.mxu0 0
        %3907 = vmatprep.subr.bf16.mxu0 0
        %3908 = vmatpush2.bf16.xpose.msra.mxu0 0
        %3909 = vmatprep.subr.bf16.mxu0 0
        %3910 = vmatpush2.bf16.xpose.msra.mxu0 0
        %3911 = vmatprep.mubr.bf16.mxu0 0
        %3912 = vmatmul.mubr.bf16.gmra.mxu0 %v3877
        %v3913 = vpop.f32.mrf.mxu0
        %v3914 = vadd.f32 0.0, %v3913
        %v3915 = vpop.f32.mrf.mxu0
        %v3916 = vpop.f32.mrf.mxu0
        %v3917 = vpop.f32.mrf.mxu0
        %3918 = vdwg.mxu0
        %v3919 = vsel %vm1247, %v3914, -inf
        %3920 = vmax.xlane.f32.xlu0 %v3919
        %v3921 = vpop.xlane.xlu0 %3920
        %v3922 = vsub.f32 %v3914, %v3921
        %v3923 = vmul.f32 %v3922, 1.442695
        %v3924 = vpow.pop %v3923
        %v3925 = vsel %vm1247, %v3924, 0.0
        %3926 = vadd.xlane.f32.xlu0 %v3925
        %v3927 = vpop.xlane.xlu0 %3926
        %v3928 = vrcp.pop %v3927
        %v3929 = vmul.f32 %v3924, %v3928
        %v3930 = vpack.c.bf16 %v3929, %v3929
        %v3932 = vsel %vm1247, %v3930, 0
        %3934 = vmatprep.subr.bf16.mxu0 0
        %3935 = vmatpush1.bf16.msra.mxu0 0
        %3936 = vmatprep.subr.bf16.mxu0 0
        %3937 = vmatpush1.bf16.msra.mxu0 0
        %3938 = vmatprep.subr.bf16.mxu0 0
        %3939 = vmatpush1.bf16.msra.mxu0 0
        %3940 = vmatprep.subr.bf16.mxu0 0
        %3941 = vmatpush1.bf16.msra.mxu0 0
        %3942 = vmatprep.subr.bf16.mxu0 0
        %3943 = vmatpush1.bf16.msra.mxu0 0
        %3944 = vmatprep.subr.bf16.mxu0 0
        %3945 = vmatpush1.bf16.msra.mxu0 0
        %3946 = vmatprep.subr.bf16.mxu0 0
        %3947 = vmatpush1.bf16.msra.mxu0 0
        %3948 = vmatprep.subr.bf16.mxu0 0
        %3949 = vmatpush1.bf16.msra.mxu0 %v3832
        %3950 = vmatprep.subr.bf16.mxu0 0
        %3951 = vmatpush2.bf16.msra.mxu0 0
        %3952 = vmatprep.subr.bf16.mxu0 0
        %3953 = vmatpush2.bf16.msra.mxu0 0
        %3954 = vmatprep.subr.bf16.mxu0 0
        %3955 = vmatpush2.bf16.msra.mxu0 0
        %3956 = vmatprep.subr.bf16.mxu0 0
        %3957 = vmatpush2.bf16.msra.mxu0 0
        %3958 = vmatprep.subr.bf16.mxu0 0
        %3959 = vmatpush2.bf16.msra.mxu0 0
        %3960 = vmatprep.subr.bf16.mxu0 0
        %3961 = vmatpush2.bf16.msra.mxu0 0
        %3962 = vmatprep.subr.bf16.mxu0 0
        %3963 = vmatpush2.bf16.msra.mxu0 0
        %3964 = vmatprep.subr.bf16.mxu0 0
        %3965 = vmatpush2.bf16.msra.mxu0 0
        %3966 = vmatprep.mubr.bf16.mxu0 0
        %3967 = vmatmul.mubr.bf16.gmra.mxu0 %v3932
        %v3968 = vpop.f32.mrf.mxu0
        %v3969 = vadd.f32 0.0, %v3968
        %v3970 = vpop.f32.mrf.mxu0
        %v3971 = vpop.f32.mrf.mxu0
        %v3972 = vpop.f32.mrf.mxu0
        %3973 = vdwg.mxu0
        %3975 = vrot.lane.b32.xlu0 %v3759, 16
        %v3976 = vpop.permute.xlu0 %3975
        %3979 = vrot.lane.b32.xlu0 %v3869, 32
        %v3980 = vpop.permute.xlu0 %3979
        %3983 = vrot.lane.b32.xlu0 %v3969, 48
        %v3984 = vpop.permute.xlu0 %3983
        %v3986 = vsel %vm1200, %v3658, %v3976
        %v3987 = vsel %vm1141, %v3986, %v3980
        %v3988 = vsel %vm1634, %v3987, %v3984
        %v3989 = vpack.c.bf16 %v3988, %v3988
        %v3991 = vlaneseq
        %v3992 = vshrl.u32 %v3991, 7
        %v3993 = vsub.s32 0, %v3992
        %v3994 = vrot.slane %v3553, %v3993
        %v4004 = vunpack.c.l.b16 %v3545
        %v4005 = vunpack.c.l.b16 %v3546
        %v4006 = vunpack.c.l.b16 %v3547
        %v4007 = vunpack.c.l.b16 %v3548
        %v4008 = vunpack.c.l.b16 %v3549
        %v4009 = vunpack.c.l.b16 %v3550
        %v4010 = vunpack.c.l.b16 %v3551
        %v4011 = vunpack.c.l.b16 %v3552
        %v4012 = vpack.c.b16 %v4005, %v4004
        %v4013 = vpack.c.b16 %v4007, %v4006
        %v4014 = vpack.c.b16 %v4009, %v4008
        %v4015 = vpack.c.b16 %v4011, %v4010
        %v4021 = vsel %vm1667, %v3989, 0
        %4023 = vmatprep.subr.bf16.mxu0 0
        %4024 = vmatpush1.bf16.msra.mxu0 0
        %4025 = vmatprep.subr.bf16.mxu0 0
        %4026 = vmatpush1.bf16.msra.mxu0 0
        %4027 = vmatprep.subr.bf16.mxu0 0
        %4028 = vmatpush1.bf16.msra.mxu0 0
        %4029 = vmatprep.subr.bf16.mxu0 0
        %4030 = vmatpush1.bf16.msra.mxu0 0
        %4031 = vmatprep.subr.bf16.mxu0 0
        %4032 = vmatpush1.bf16.msra.mxu0 %v4015
        %4033 = vmatprep.subr.bf16.mxu0 0
        %4034 = vmatpush1.bf16.msra.mxu0 %v4014
        %4035 = vmatprep.subr.bf16.mxu0 0
        %4036 = vmatpush1.bf16.msra.mxu0 %v4013
        %4037 = vmatprep.subr.bf16.mxu0 0
        %4038 = vmatpush1.bf16.msra.mxu0 %v4012
        %4039 = vmatprep.subr.bf16.mxu0 0
        %4040 = vmatpush2.bf16.msra.mxu0 0
        %4041 = vmatprep.subr.bf16.mxu0 0
        %4042 = vmatpush2.bf16.msra.mxu0 0
        %4043 = vmatprep.subr.bf16.mxu0 0
        %4044 = vmatpush2.bf16.msra.mxu0 0
        %4045 = vmatprep.subr.bf16.mxu0 0
        %4046 = vmatpush2.bf16.msra.mxu0 0
        %4047 = vmatprep.subr.bf16.mxu0 0
        %4048 = vmatpush2.bf16.msra.mxu0 0
        %4049 = vmatprep.subr.bf16.mxu0 0
        %4050 = vmatpush2.bf16.msra.mxu0 0
        %4051 = vmatprep.subr.bf16.mxu0 0
        %4052 = vmatpush2.bf16.msra.mxu0 0
        %4053 = vmatprep.subr.bf16.mxu0 0
        %4054 = vmatpush2.bf16.msra.mxu0 0
        %4055 = vmatprep.mubr.bf16.mxu0 0
        %4056 = vmatmul.mubr.bf16.gmra.mxu0 %v4021
        %v4057 = vpop.f32.mrf.mxu0
        %v4058 = vadd.f32 %v3994, %v4057
        %v4059 = vpop.f32.mrf.mxu0
        %v4060 = vpop.f32.mrf.mxu0
        %v4061 = vpop.f32.mrf.mxu0
        %4062 = vdwg.mxu0
        %v4063 = vadd.f32 %v3409, %v4058
        %v4064 = vld [vmem:[%s53] sm:$0x1]
        %v4065 = vld [vmem:[%s55] sm:$0x1]
        %v4066 = vsel %vm1141, %v4063, 0.0
        %4067 = vadd.xlane.f32.xlu0 %v4066
        %v4068 = vpop.xlane.xlu0 %4067
        %v4069 = vmul.f32 %v4068, %v1717
        %v4070 = vsub.f32 %v4063, %v4069
        %v4071 = vmul.f32 %v4070, %v4070
        %v4072 = vsel %vm1141, %v4071, 0.0
        %4073 = vadd.xlane.f32.xlu0 %v4072
        %v4074 = vpop.xlane.xlu0 %4073
        %v4075 = vmul.f32 %v4074, %v1717
        %v4076 = vadd.f32 %v4075, 1e-05
        %v4077 = vrsqrt.pop %v4076
        %v4078 = vmul.f32 %v4070, %v4077
        %v4080 = vlaneseq
        %v4081 = vshrl.u32 %v4080, 7
        %v4082 = vsub.s32 0, %v4081
        %v4083 = vrot.slane %v4064, %v4082
        %v4085 = vmul.f32 %v4078, %v4083
        %v4087 = vlaneseq
        %v4088 = vshrl.u32 %v4087, 7
        %v4089 = vsub.s32 0, %v4088
        %v4090 = vrot.slane %v4065, %v4089
        %v4092 = vadd.f32 %v4085, %v4090
        %v4093 = vld [vmem:[%s57] sm:$0xf]
        %v4094 = vld [vmem:[%s57 + $0x4] sm:$0xf]
        %v4095 = vld [vmem:[%s57 + $0x8] sm:$0xf]
        %v4096 = vld [vmem:[%s57 + $0xc] sm:$0xf]
        %v4097 = vpack.c.bf16 %v4092, %v4092
        %v4098 = vld [vmem:[%s59] sm:$0x1]
        %v4100 = vlaneseq
        %v4101 = vshrl.u32 %v4100, 7
        %v4102 = vsub.s32 0, %v4101
        %v4103 = vrot.slane %v4098, %v4102
        %v4109 = vunpack.c.l.b16 %v4093
        %v4110 = vunpack.c.l.b16 %v4094
        %v4111 = vunpack.c.l.b16 %v4095
        %v4112 = vunpack.c.l.b16 %v4096
        %v4113 = vpack.c.b16 %v4110, %v4109
        %v4114 = vpack.c.b16 %v4112, %v4111
        %v4118 = vsel %vm1141, %v4097, 0
        %4120 = vmatprep.subr.bf16.mxu0 0
        %4121 = vmatpush1.bf16.msra.mxu0 0
        %4122 = vmatprep.subr.bf16.mxu0 0
        %4123 = vmatpush1.bf16.msra.mxu0 0
        %4124 = vmatprep.subr.bf16.mxu0 0
        %4125 = vmatpush1.bf16.msra.mxu0 0
        %4126 = vmatprep.subr.bf16.mxu0 0
        %4127 = vmatpush1.bf16.msra.mxu0 0
        %4128 = vmatprep.subr.bf16.mxu0 0
        %4129 = vmatpush1.bf16.msra.mxu0 0
        %4130 = vmatprep.subr.bf16.mxu0 0
        %4131 = vmatpush1.bf16.msra.mxu0 0
        %4132 = vmatprep.subr.bf16.mxu0 0
        %4133 = vmatpush1.bf16.msra.mxu0 %v4114
        %4134 = vmatprep.subr.bf16.mxu0 0
        %4135 = vmatpush1.bf16.msra.mxu0 %v4113
        %4136 = vmatprep.subr.bf16.mxu0 0
        %4137 = vmatpush2.bf16.msra.mxu0 0
        %4138 = vmatprep.subr.bf16.mxu0 0
        %4139 = vmatpush2.bf16.msra.mxu0 0
        %4140 = vmatprep.subr.bf16.mxu0 0
        %4141 = vmatpush2.bf16.msra.mxu0 0
        %4142 = vmatprep.subr.bf16.mxu0 0
        %4143 = vmatpush2.bf16.msra.mxu0 0
        %4144 = vmatprep.subr.bf16.mxu0 0
        %4145 = vmatpush2.bf16.msra.mxu0 0
        %4146 = vmatprep.subr.bf16.mxu0 0
        %4147 = vmatpush2.bf16.msra.mxu0 0
        %4148 = vmatprep.subr.bf16.mxu0 0
        %4149 = vmatpush2.bf16.msra.mxu0 0
        %4150 = vmatprep.subr.bf16.mxu0 0
        %4151 = vmatpush2.bf16.msra.mxu0 0
        %4152 = vmatprep.mubr.bf16.mxu0 0
        %4153 = vmatmul.mubr.bf16.gmra.mxu0 %v4118
        %v4154 = vpop.f32.mrf.mxu0
        %v4155 = vadd.f32 %v4103, %v4154
        %v4156 = vpop.f32.mrf.mxu0
        %v4157 = vpop.f32.mrf.mxu0
        %v4158 = vpop.f32.mrf.mxu0
        %4159 = vdwg.mxu0
        %s4160 = sld [smem:[#allocation5]]
        %vm4161 = vcmp.ge.f32.partialorder %v4155, 0.0
        %v4162 = vstv %s4160
        %v4163 = vmul.f32 %v4162, %v4155
        %v4164 = vsel %vm4161, %v4155, %v4163
        %v4165 = vld [vmem:[%s63] sm:$0xf]
        %v4166 = vld [vmem:[%s63 + $0x4] sm:$0xf]
        %v4167 = vld [vmem:[%s63 + $0x8] sm:$0xf]
        %v4168 = vld [vmem:[%s63 + $0xc] sm:$0xf]
        %v4169 = vld [vmem:[%s63 + $0x10] sm:$0xf]
        %v4170 = vld [vmem:[%s63 + $0x14] sm:$0xf]
        %v4171 = vld [vmem:[%s63 + $0x18] sm:$0xf]
        %v4172 = vld [vmem:[%s63 + $0x1c] sm:$0xf]
        %v4173 = vld [vmem:[%s63 + $0x20] sm:$0xf]
        %v4174 = vld [vmem:[%s63 + $0x24] sm:$0xf]
        %v4175 = vld [vmem:[%s63 + $0x28] sm:$0xf]
        %v4176 = vld [vmem:[%s63 + $0x2c] sm:$0xf]
        %v4177 = vld [vmem:[%s63 + $0x30] sm:$0xf]
        %v4178 = vld [vmem:[%s63 + $0x34] sm:$0xf]
        %v4179 = vld [vmem:[%s63 + $0x38] sm:$0xf]
        %v4180 = vld [vmem:[%s63 + $0x3c] sm:$0xf]
        %v4181 = vpack.c.bf16 %v4164, %v4164
        %v4182 = vld [vmem:[%s65] sm:$0x1]
        %v4184 = vlaneseq
        %v4185 = vshrl.u32 %v4184, 7
        %v4186 = vsub.s32 0, %v4185
        %v4187 = vrot.slane %v4182, %v4186
        %v4205 = vunpack.c.l.b16 %v4165
        %v4206 = vunpack.c.l.b16 %v4166
        %v4207 = vunpack.c.l.b16 %v4167
        %v4208 = vunpack.c.l.b16 %v4168
        %v4209 = vunpack.c.l.b16 %v4169
        %v4210 = vunpack.c.l.b16 %v4170
        %v4211 = vunpack.c.l.b16 %v4171
        %v4212 = vunpack.c.l.b16 %v4172
        %v4213 = vunpack.c.l.b16 %v4173
        %v4214 = vunpack.c.l.b16 %v4174
        %v4215 = vunpack.c.l.b16 %v4175
        %v4216 = vunpack.c.l.b16 %v4176
        %v4217 = vunpack.c.l.b16 %v4177
        %v4218 = vunpack.c.l.b16 %v4178
        %v4219 = vunpack.c.l.b16 %v4179
        %v4220 = vunpack.c.l.b16 %v4180
        %v4221 = vpack.c.b16 %v4206, %v4205
        %v4222 = vpack.c.b16 %v4208, %v4207
        %v4223 = vpack.c.b16 %v4210, %v4209
        %v4224 = vpack.c.b16 %v4212, %v4211
        %v4225 = vpack.c.b16 %v4214, %v4213
        %v4226 = vpack.c.b16 %v4216, %v4215
        %v4227 = vpack.c.b16 %v4218, %v4217
        %v4228 = vpack.c.b16 %v4220, %v4219
        %4237 = vmatprep.subr.bf16.mxu0 0
        %4238 = vmatpush1.bf16.msra.mxu0 %v4228
        %4239 = vmatprep.subr.bf16.mxu0 0
        %4240 = vmatpush1.bf16.msra.mxu0 %v4227
        %4241 = vmatprep.subr.bf16.mxu0 0
        %4242 = vmatpush1.bf16.msra.mxu0 %v4226
        %4243 = vmatprep.subr.bf16.mxu0 0
        %4244 = vmatpush1.bf16.msra.mxu0 %v4225
        %4245 = vmatprep.subr.bf16.mxu0 0
        %4246 = vmatpush1.bf16.msra.mxu0 %v4224
        %4247 = vmatprep.subr.bf16.mxu0 0
        %4248 = vmatpush1.bf16.msra.mxu0 %v4223
        %4249 = vmatprep.subr.bf16.mxu0 0
        %4250 = vmatpush1.bf16.msra.mxu0 %v4222
        %4251 = vmatprep.subr.bf16.mxu0 0
        %4252 = vmatpush1.bf16.msra.mxu0 %v4221
        %4253 = vmatprep.subr.bf16.mxu0 0
        %4254 = vmatpush2.bf16.msra.mxu0 0
        %4255 = vmatprep.subr.bf16.mxu0 0
        %4256 = vmatpush2.bf16.msra.mxu0 0
        %4257 = vmatprep.subr.bf16.mxu0 0
        %4258 = vmatpush2.bf16.msra.mxu0 0
        %4259 = vmatprep.subr.bf16.mxu0 0
        %4260 = vmatpush2.bf16.msra.mxu0 0
        %4261 = vmatprep.subr.bf16.mxu0 0
        %4262 = vmatpush2.bf16.msra.mxu0 0
        %4263 = vmatprep.subr.bf16.mxu0 0
        %4264 = vmatpush2.bf16.msra.mxu0 0
        %4265 = vmatprep.subr.bf16.mxu0 0
        %4266 = vmatpush2.bf16.msra.mxu0 0
        %4267 = vmatprep.subr.bf16.mxu0 0
        %4268 = vmatpush2.bf16.msra.mxu0 0
        %4269 = vmatprep.mubr.bf16.mxu0 0
        %4270 = vmatmul.mubr.bf16.gmra.mxu0 %v4181
        %v4271 = vpop.f32.mrf.mxu0
        %v4272 = vadd.f32 %v4187, %v4271
        %v4273 = vpop.f32.mrf.mxu0
        %v4274 = vpop.f32.mrf.mxu0
        %v4275 = vpop.f32.mrf.mxu0
        %4276 = vdwg.mxu0
        %v4277 = vadd.f32 %v4092, %v4272
        %v4278 = vld [vmem:[%s67] sm:$0x1]
        %v4279 = vld [vmem:[%s69] sm:$0x1]
        %v4280 = vsel %vm1141, %v4277, 0.0
        %4281 = vadd.xlane.f32.xlu0 %v4280
        %v4282 = vpop.xlane.xlu0 %4281
        %v4283 = vmul.f32 %v4282, %v1717
        %v4284 = vsub.f32 %v4277, %v4283
        %v4285 = vmul.f32 %v4284, %v4284
        %v4286 = vsel %vm1141, %v4285, 0.0
        %4287 = vadd.xlane.f32.xlu0 %v4286
        %v4288 = vpop.xlane.xlu0 %4287
        %v4289 = vmul.f32 %v4288, %v1717
        %v4290 = vadd.f32 %v4289, 1e-05
        %v4291 = vrsqrt.pop %v4290
        %v4292 = vmul.f32 %v4284, %v4291
        %v4294 = vlaneseq
        %v4295 = vshrl.u32 %v4294, 7
        %v4296 = vsub.s32 0, %v4295
        %v4297 = vrot.slane %v4278, %v4296
        %v4299 = vmul.f32 %v4292, %v4297
        %v4301 = vlaneseq
        %v4302 = vshrl.u32 %v4301, 7
        %v4303 = vsub.s32 0, %v4302
        %v4304 = vrot.slane %v4279, %v4303
        %v4306 = vadd.f32 %v4299, %v4304
        %s4307 = scalar_lea.vmem %s31, 16
        %v4308 = vld [vmem:[%s4307] sm:$0xf]
        %v4309 = vld [vmem:[%s4307 + $0x4] sm:$0xf]
        %v4310 = vld [vmem:[%s4307 + $0x8] sm:$0xf]
        %v4311 = vld [vmem:[%s4307 + $0xc] sm:$0xf]
        %v4312 = vpack.c.bf16 %v4306, %v4306
        %s4313 = scalar_lea.vmem %s33, 1
        %v4314 = vld [vmem:[%s4313] sm:$0x1]
        %v4316 = vlaneseq
        %v4317 = vshrl.u32 %v4316, 7
        %v4318 = vsub.s32 0, %v4317
        %v4319 = vrot.slane %v4314, %v4318
        %v4325 = vunpack.c.l.b16 %v4308
        %v4326 = vunpack.c.l.b16 %v4309
        %v4327 = vunpack.c.l.b16 %v4310
        %v4328 = vunpack.c.l.b16 %v4311
        %v4329 = vpack.c.b16 %v4326, %v4325
        %v4330 = vpack.c.b16 %v4328, %v4327
        %v4334 = vsel %vm1141, %v4312, 0
        %4336 = vmatprep.subr.bf16.mxu0 0
        %4337 = vmatpush1.bf16.msra.mxu0 0
        %4338 = vmatprep.subr.bf16.mxu0 0
        %4339 = vmatpush1.bf16.msra.mxu0 0
        %4340 = vmatprep.subr.bf16.mxu0 0
        %4341 = vmatpush1.bf16.msra.mxu0 0
        %4342 = vmatprep.subr.bf16.mxu0 0
        %4343 = vmatpush1.bf16.msra.mxu0 0
        %4344 = vmatprep.subr.bf16.mxu0 0
        %4345 = vmatpush1.bf16.msra.mxu0 0
        %4346 = vmatprep.subr.bf16.mxu0 0
        %4347 = vmatpush1.bf16.msra.mxu0 0
        %4348 = vmatprep.subr.bf16.mxu0 0
        %4349 = vmatpush1.bf16.msra.mxu0 %v4330
        %4350 = vmatprep.subr.bf16.mxu0 0
        %4351 = vmatpush1.bf16.msra.mxu0 %v4329
        %4352 = vmatprep.subr.bf16.mxu0 0
        %4353 = vmatpush2.bf16.msra.mxu0 0
        %4354 = vmatprep.subr.bf16.mxu0 0
        %4355 = vmatpush2.bf16.msra.mxu0 0
        %4356 = vmatprep.subr.bf16.mxu0 0
        %4357 = vmatpush2.bf16.msra.mxu0 0
        %4358 = vmatprep.subr.bf16.mxu0 0
        %4359 = vmatpush2.bf16.msra.mxu0 0
        %4360 = vmatprep.subr.bf16.mxu0 0
        %4361 = vmatpush2.bf16.msra.mxu0 0
        %4362 = vmatprep.subr.bf16.mxu0 0
        %4363 = vmatpush2.bf16.msra.mxu0 0
        %4364 = vmatprep.subr.bf16.mxu0 0
        %4365 = vmatpush2.bf16.msra.mxu0 0
        %4366 = vmatprep.subr.bf16.mxu0 0
        %4367 = vmatpush2.bf16.msra.mxu0 0
        %4368 = vmatprep.mubr.bf16.mxu0 0
        %4369 = vmatmul.mubr.bf16.gmra.mxu0 %v4334
        %v4370 = vpop.f32.mrf.mxu0
        %v4371 = vadd.f32 %v4319, %v4370
        %v4372 = vpop.f32.mrf.mxu0
        %v4373 = vpop.f32.mrf.mxu0
        %v4374 = vpop.f32.mrf.mxu0
        %4375 = vdwg.mxu0
        %v4376 = vmul.f32 %v4371, 0.25
        %s4377 = scalar_lea.vmem %s35, 32
        %v4378 = vld [vmem:[%s4377] sm:$0xf]
        %v4379 = vld [vmem:[%s4377 + $0x4] sm:$0xf]
        %v4380 = vld [vmem:[%s4377 + $0x8] sm:$0xf]
        %v4381 = vld [vmem:[%s4377 + $0xc] sm:$0xf]
        %v4382 = vld [vmem:[%s4377 + $0x10] sm:$0xf]
        %v4383 = vld [vmem:[%s4377 + $0x14] sm:$0xf]
        %v4384 = vld [vmem:[%s4377 + $0x18] sm:$0xf]
        %v4385 = vld [vmem:[%s4377 + $0x1c] sm:$0xf]
        %s4386 = scalar_lea.vmem %s37, 1
        %v4387 = vld [vmem:[%s4386] sm:$0x1]
        %v4388 = vpack.c.bf16 %v4376, %v4376
        %v4389 = vpack.c.bf16 %v4371, %v4371
        %4391 = vrot.lane.b32.xlu0 %v4389, 64
        %v4392 = vpop.permute.xlu0 %4391
        %v4394 = vsel %vm1200, %v4388, 0
        %v4397 = vsel %vm1200, %v4392, 0
        %4399 = vmatprep.subr.bf16.mxu0 0
        %4400 = vmatpush1.bf16.xpose.msra.mxu0 0
        %4401 = vmatprep.subr.bf16.mxu0 0
        %4402 = vmatpush1.bf16.xpose.msra.mxu0 0
        %4403 = vmatprep.subr.bf16.mxu0 0
        %4404 = vmatpush1.bf16.xpose.msra.mxu0 0
        %4405 = vmatprep.subr.bf16.mxu0 0
        %4406 = vmatpush1.bf16.xpose.msra.mxu0 0
        %4407 = vmatprep.subr.bf16.mxu0 0
        %4408 = vmatpush1.bf16.xpose.msra.mxu0 0
        %4409 = vmatprep.subr.bf16.mxu0 0
        %4410 = vmatpush1.bf16.xpose.msra.mxu0 0
        %4411 = vmatprep.subr.bf16.mxu0 0
        %4412 = vmatpush1.bf16.xpose.msra.mxu0 0
        %4413 = vmatprep.subr.bf16.mxu0 0
        %4414 = vmatpush1.bf16.xpose.msra.mxu0 %v4397
        %4415 = vmatprep.subr.bf16.mxu0 0
        %4416 = vmatpush2.bf16.xpose.msra.mxu0 0
        %4417 = vmatprep.subr.bf16.mxu0 0
        %4418 = vmatpush2.bf16.xpose.msra.mxu0 0
        %4419 = vmatprep.subr.bf16.mxu0 0
        %4420 = vmatpush2.bf16.xpose.msra.mxu0 0
        %4421 = vmatprep.subr.bf16.mxu0 0
        %4422 = vmatpush2.bf16.xpose.msra.mxu0 0
        %4423 = vmatprep.subr.bf16.mxu0 0
        %4424 = vmatpush2.bf16.xpose.msra.mxu0 0
        %4425 = vmatprep.subr.bf16.mxu0 0
        %4426 = vmatpush2.bf16.xpose.msra.mxu0 0
        %4427 = vmatprep.subr.bf16.mxu0 0
        %4428 = vmatpush2.bf16.xpose.msra.mxu0 0
        %4429 = vmatprep.subr.bf16.mxu0 0
        %4430 = vmatpush2.bf16.xpose.msra.mxu0 0
        %4431 = vmatprep.mubr.bf16.mxu0 0
        %4432 = vmatmul.mubr.bf16.gmra.mxu0 %v4394
        %v4433 = vpop.f32.mrf.mxu0
        %v4434 = vadd.f32 0.0, %v4433
        %v4435 = vpop.f32.mrf.mxu0
        %v4436 = vpop.f32.mrf.mxu0
        %v4437 = vpop.f32.mrf.mxu0
        %4438 = vdwg.mxu0
        %v4439 = vsel %vm1115, %v4434, -1e+30
        %v4440 = vsel %vm1247, %v4439, -inf
        %4441 = vmax.xlane.f32.xlu0 %v4440
        %v4442 = vpop.xlane.xlu0 %4441
        %v4443 = vsub.f32 %v4439, %v4442
        %v4444 = vmul.f32 %v4443, 1.442695
        %v4445 = vpow.pop %v4444
        %v4446 = vsel %vm1247, %v4445, 0.0
        %4447 = vadd.xlane.f32.xlu0 %v4446
        %v4448 = vpop.xlane.xlu0 %4447
        %v4449 = vrcp.pop %v4448
        %v4450 = vmul.f32 %v4445, %v4449
        %v4451 = vpack.c.bf16 %v4450, %v4450
        %4452 = vrot.lane.b32.xlu0 %v4389, 32
        %v4453 = vpop.permute.xlu0 %4452
        %v4455 = vsel %vm1247, %v4451, 0
        %v4458 = vsel %vm1265, %v4453, 0
        %4460 = vmatprep.subr.bf16.mxu0 0
        %4461 = vmatpush1.bf16.msra.mxu0 0
        %4462 = vmatprep.subr.bf16.mxu0 0
        %4463 = vmatpush1.bf16.msra.mxu0 0
        %4464 = vmatprep.subr.bf16.mxu0 0
        %4465 = vmatpush1.bf16.msra.mxu0 0
        %4466 = vmatprep.subr.bf16.mxu0 0
        %4467 = vmatpush1.bf16.msra.mxu0 0
        %4468 = vmatprep.subr.bf16.mxu0 0
        %4469 = vmatpush1.bf16.msra.mxu0 0
        %4470 = vmatprep.subr.bf16.mxu0 0
        %4471 = vmatpush1.bf16.msra.mxu0 0
        %4472 = vmatprep.subr.bf16.mxu0 0
        %4473 = vmatpush1.bf16.msra.mxu0 0
        %4474 = vmatprep.subr.bf16.mxu0 0
        %4475 = vmatpush1.bf16.msra.mxu0 %v4458
        %4476 = vmatprep.subr.bf16.mxu0 0
        %4477 = vmatpush2.bf16.msra.mxu0 0
        %4478 = vmatprep.subr.bf16.mxu0 0
        %4479 = vmatpush2.bf16.msra.mxu0 0
        %4480 = vmatprep.subr.bf16.mxu0 0
        %4481 = vmatpush2.bf16.msra.mxu0 0
        %4482 = vmatprep.subr.bf16.mxu0 0
        %4483 = vmatpush2.bf16.msra.mxu0 0
        %4484 = vmatprep.subr.bf16.mxu0 0
        %4485 = vmatpush2.bf16.msra.mxu0 0
        %4486 = vmatprep.subr.bf16.mxu0 0
        %4487 = vmatpush2.bf16.msra.mxu0 0
        %4488 = vmatprep.subr.bf16.mxu0 0
        %4489 = vmatpush2.bf16.msra.mxu0 0
        %4490 = vmatprep.subr.bf16.mxu0 0
        %4491 = vmatpush2.bf16.msra.mxu0 0
        %4492 = vmatprep.mubr.bf16.mxu0 0
        %4493 = vmatmul.mubr.bf16.gmra.mxu0 %v4455
        %v4494 = vpop.f32.mrf.mxu0
        %v4495 = vadd.f32 0.0, %v4494
        %v4496 = vpop.f32.mrf.mxu0
        %v4497 = vpop.f32.mrf.mxu0
        %v4498 = vpop.f32.mrf.mxu0
        %4499 = vdwg.mxu0
        %4501 = vrot.lane.b32.xlu0 %v4388, 112
        %v4502 = vpop.permute.xlu0 %4501
        %v4504 = vsel %vm1200, %v4502, 0
        %4506 = vmatprep.subr.bf16.mxu0 0
        %4507 = vmatpush1.bf16.xpose.msra.mxu0 0
        %4508 = vmatprep.subr.bf16.mxu0 0
        %4509 = vmatpush1.bf16.xpose.msra.mxu0 0
        %4510 = vmatprep.subr.bf16.mxu0 0
        %4511 = vmatpush1.bf16.xpose.msra.mxu0 0
        %4512 = vmatprep.subr.bf16.mxu0 0
        %4513 = vmatpush1.bf16.xpose.msra.mxu0 0
        %4514 = vmatprep.subr.bf16.mxu0 0
        %4515 = vmatpush1.bf16.xpose.msra.mxu0 0
        %4516 = vmatprep.subr.bf16.mxu0 0
        %4517 = vmatpush1.bf16.xpose.msra.mxu0 0
        %4518 = vmatprep.subr.bf16.mxu0 0
        %4519 = vmatpush1.bf16.xpose.msra.mxu0 0
        %4520 = vmatprep.subr.bf16.mxu0 0
        %4521 = vmatpush1.bf16.xpose.msra.mxu0 %v4397
        %4522 = vmatprep.subr.bf16.mxu0 0
        %4523 = vmatpush2.bf16.xpose.msra.mxu0 0
        %4524 = vmatprep.subr.bf16.mxu0 0
        %4525 = vmatpush2.bf16.xpose.msra.mxu0 0
        %4526 = vmatprep.subr.bf16.mxu0 0
        %4527 = vmatpush2.bf16.xpose.msra.mxu0 0
        %4528 = vmatprep.subr.bf16.mxu0 0
        %4529 = vmatpush2.bf16.xpose.msra.mxu0 0
        %4530 = vmatprep.subr.bf16.mxu0 0
        %4531 = vmatpush2.bf16.xpose.msra.mxu0 0
        %4532 = vmatprep.subr.bf16.mxu0 0
        %4533 = vmatpush2.bf16.xpose.msra.mxu0 0
        %4534 = vmatprep.subr.bf16.mxu0 0
        %4535 = vmatpush2.bf16.xpose.msra.mxu0 0
        %4536 = vmatprep.subr.bf16.mxu0 0
        %4537 = vmatpush2.bf16.xpose.msra.mxu0 0
        %4538 = vmatprep.mubr.bf16.mxu0 0
        %4539 = vmatmul.mubr.bf16.gmra.mxu0 %v4504
        %v4540 = vpop.f32.mrf.mxu0
        %v4541 = vadd.f32 0.0, %v4540
        %v4542 = vpop.f32.mrf.mxu0
        %v4543 = vpop.f32.mrf.mxu0
        %v4544 = vpop.f32.mrf.mxu0
        %4545 = vdwg.mxu0
        %v4546 = vsel %vm1115, %v4541, -1e+30
        %v4547 = vsel %vm1247, %v4546, -inf
        %4548 = vmax.xlane.f32.xlu0 %v4547
        %v4549 = vpop.xlane.xlu0 %4548
        %v4550 = vsub.f32 %v4546, %v4549
        %v4551 = vmul.f32 %v4550, 1.442695
        %v4552 = vpow.pop %v4551
        %v4553 = vsel %vm1247, %v4552, 0.0
        %4554 = vadd.xlane.f32.xlu0 %v4553
        %v4555 = vpop.xlane.xlu0 %4554
        %v4556 = vrcp.pop %v4555
        %v4557 = vmul.f32 %v4552, %v4556
        %v4558 = vpack.c.bf16 %v4557, %v4557
        %v4560 = vsel %vm1247, %v4558, 0
        %4562 = vmatprep.subr.bf16.mxu0 0
        %4563 = vmatpush1.bf16.msra.mxu0 0
        %4564 = vmatprep.subr.bf16.mxu0 0
        %4565 = vmatpush1.bf16.msra.mxu0 0
        %4566 = vmatprep.subr.bf16.mxu0 0
        %4567 = vmatpush1.bf16.msra.mxu0 0
        %4568 = vmatprep.subr.bf16.mxu0 0
        %4569 = vmatpush1.bf16.msra.mxu0 0
        %4570 = vmatprep.subr.bf16.mxu0 0
        %4571 = vmatpush1.bf16.msra.mxu0 0
        %4572 = vmatprep.subr.bf16.mxu0 0
        %4573 = vmatpush1.bf16.msra.mxu0 0
        %4574 = vmatprep.subr.bf16.mxu0 0
        %4575 = vmatpush1.bf16.msra.mxu0 0
        %4576 = vmatprep.subr.bf16.mxu0 0
        %4577 = vmatpush1.bf16.msra.mxu0 %v4458
        %4578 = vmatprep.subr.bf16.mxu0 0
        %4579 = vmatpush2.bf16.msra.mxu0 0
        %4580 = vmatprep.subr.bf16.mxu0 0
        %4581 = vmatpush2.bf16.msra.mxu0 0
        %4582 = vmatprep.subr.bf16.mxu0 0
        %4583 = vmatpush2.bf16.msra.mxu0 0
        %4584 = vmatprep.subr.bf16.mxu0 0
        %4585 = vmatpush2.bf16.msra.mxu0 0
        %4586 = vmatprep.subr.bf16.mxu0 0
        %4587 = vmatpush2.bf16.msra.mxu0 0
        %4588 = vmatprep.subr.bf16.mxu0 0
        %4589 = vmatpush2.bf16.msra.mxu0 0
        %4590 = vmatprep.subr.bf16.mxu0 0
        %4591 = vmatpush2.bf16.msra.mxu0 0
        %4592 = vmatprep.subr.bf16.mxu0 0
        %4593 = vmatpush2.bf16.msra.mxu0 0
        %4594 = vmatprep.mubr.bf16.mxu0 0
        %4595 = vmatmul.mubr.bf16.gmra.mxu0 %v4560
        %v4596 = vpop.f32.mrf.mxu0
        %v4597 = vadd.f32 0.0, %v4596
        %v4598 = vpop.f32.mrf.mxu0
        %v4599 = vpop.f32.mrf.mxu0
        %v4600 = vpop.f32.mrf.mxu0
        %4601 = vdwg.mxu0
        %4602 = vrot.lane.b32.xlu0 %v4388, 96
        %v4603 = vpop.permute.xlu0 %4602
        %4604 = vrot.lane.b32.xlu0 %v4389, 48
        %v4605 = vpop.permute.xlu0 %4604
        %v4607 = vsel %vm1200, %v4603, 0
        %v4610 = vsel %vm1200, %v4605, 0
        %4612 = vmatprep.subr.bf16.mxu0 0
        %4613 = vmatpush1.bf16.xpose.msra.mxu0 0
        %4614 = vmatprep.subr.bf16.mxu0 0
        %4615 = vmatpush1.bf16.xpose.msra.mxu0 0
        %4616 = vmatprep.subr.bf16.mxu0 0
        %4617 = vmatpush1.bf16.xpose.msra.mxu0 0
        %4618 = vmatprep.subr.bf16.mxu0 0
        %4619 = vmatpush1.bf16.xpose.msra.mxu0 0
        %4620 = vmatprep.subr.bf16.mxu0 0
        %4621 = vmatpush1.bf16.xpose.msra.mxu0 0
        %4622 = vmatprep.subr.bf16.mxu0 0
        %4623 = vmatpush1.bf16.xpose.msra.mxu0 0
        %4624 = vmatprep.subr.bf16.mxu0 0
        %4625 = vmatpush1.bf16.xpose.msra.mxu0 0
        %4626 = vmatprep.subr.bf16.mxu0 0
        %4627 = vmatpush1.bf16.xpose.msra.mxu0 %v4610
        %4628 = vmatprep.subr.bf16.mxu0 0
        %4629 = vmatpush2.bf16.xpose.msra.mxu0 0
        %4630 = vmatprep.subr.bf16.mxu0 0
        %4631 = vmatpush2.bf16.xpose.msra.mxu0 0
        %4632 = vmatprep.subr.bf16.mxu0 0
        %4633 = vmatpush2.bf16.xpose.msra.mxu0 0
        %4634 = vmatprep.subr.bf16.mxu0 0
        %4635 = vmatpush2.bf16.xpose.msra.mxu0 0
        %4636 = vmatprep.subr.bf16.mxu0 0
        %4637 = vmatpush2.bf16.xpose.msra.mxu0 0
        %4638 = vmatprep.subr.bf16.mxu0 0
        %4639 = vmatpush2.bf16.xpose.msra.mxu0 0
        %4640 = vmatprep.subr.bf16.mxu0 0
        %4641 = vmatpush2.bf16.xpose.msra.mxu0 0
        %4642 = vmatprep.subr.bf16.mxu0 0
        %4643 = vmatpush2.bf16.xpose.msra.mxu0 0
        %4644 = vmatprep.mubr.bf16.mxu0 0
        %4645 = vmatmul.mubr.bf16.gmra.mxu0 %v4607
        %v4646 = vpop.f32.mrf.mxu0
        %v4647 = vadd.f32 0.0, %v4646
        %v4648 = vpop.f32.mrf.mxu0
        %v4649 = vpop.f32.mrf.mxu0
        %v4650 = vpop.f32.mrf.mxu0
        %4651 = vdwg.mxu0
        %v4652 = vsel %vm1115, %v4647, -1e+30
        %v4653 = vsel %vm1247, %v4652, -inf
        %4654 = vmax.xlane.f32.xlu0 %v4653
        %v4655 = vpop.xlane.xlu0 %4654
        %v4656 = vsub.f32 %v4652, %v4655
        %v4657 = vmul.f32 %v4656, 1.442695
        %v4658 = vpow.pop %v4657
        %v4659 = vsel %vm1247, %v4658, 0.0
        %4660 = vadd.xlane.f32.xlu0 %v4659
        %v4661 = vpop.xlane.xlu0 %4660
        %v4662 = vrcp.pop %v4661
        %v4663 = vmul.f32 %v4658, %v4662
        %v4664 = vpack.c.bf16 %v4663, %v4663
        %4665 = vrot.lane.b32.xlu0 %v4389, 16
        %v4666 = vpop.permute.xlu0 %4665
        %v4668 = vsel %vm1247, %v4664, 0
        %v4671 = vsel %vm1265, %v4666, 0
        %4673 = vmatprep.subr.bf16.mxu0 0
        %4674 = vmatpush1.bf16.msra.mxu0 0
        %4675 = vmatprep.subr.bf16.mxu0 0
        %4676 = vmatpush1.bf16.msra.mxu0 0
        %4677 = vmatprep.subr.bf16.mxu0 0
        %4678 = vmatpush1.bf16.msra.mxu0 0
        %4679 = vmatprep.subr.bf16.mxu0 0
        %4680 = vmatpush1.bf16.msra.mxu0 0
        %4681 = vmatprep.subr.bf16.mxu0 0
        %4682 = vmatpush1.bf16.msra.mxu0 0
        %4683 = vmatprep.subr.bf16.mxu0 0
        %4684 = vmatpush1.bf16.msra.mxu0 0
        %4685 = vmatprep.subr.bf16.mxu0 0
        %4686 = vmatpush1.bf16.msra.mxu0 0
        %4687 = vmatprep.subr.bf16.mxu0 0
        %4688 = vmatpush1.bf16.msra.mxu0 %v4671
        %4689 = vmatprep.subr.bf16.mxu0 0
        %4690 = vmatpush2.bf16.msra.mxu0 0
        %4691 = vmatprep.subr.bf16.mxu0 0
        %4692 = vmatpush2.bf16.msra.mxu0 0
        %4693 = vmatprep.subr.bf16.mxu0 0
        %4694 = vmatpush2.bf16.msra.mxu0 0
        %4695 = vmatprep.subr.bf16.mxu0 0
        %4696 = vmatpush2.bf16.msra.mxu0 0
        %4697 = vmatprep.subr.bf16.mxu0 0
        %4698 = vmatpush2.bf16.msra.mxu0 0
        %4699 = vmatprep.subr.bf16.mxu0 0
        %4700 = vmatpush2.bf16.msra.mxu0 0
        %4701 = vmatprep.subr.bf16.mxu0 0
        %4702 = vmatpush2.bf16.msra.mxu0 0
        %4703 = vmatprep.subr.bf16.mxu0 0
        %4704 = vmatpush2.bf16.msra.mxu0 0
        %4705 = vmatprep.mubr.bf16.mxu0 0
        %4706 = vmatmul.mubr.bf16.gmra.mxu0 %v4668
        %v4707 = vpop.f32.mrf.mxu0
        %v4708 = vadd.f32 0.0, %v4707
        %v4709 = vpop.f32.mrf.mxu0
        %v4710 = vpop.f32.mrf.mxu0
        %v4711 = vpop.f32.mrf.mxu0
        %4712 = vdwg.mxu0
        %4713 = vrot.lane.b32.xlu0 %v4388, 80
        %v4714 = vpop.permute.xlu0 %4713
        %v4716 = vsel %vm1200, %v4714, 0
        %4718 = vmatprep.subr.bf16.mxu0 0
        %4719 = vmatpush1.bf16.xpose.msra.mxu0 0
        %4720 = vmatprep.subr.bf16.mxu0 0
        %4721 = vmatpush1.bf16.xpose.msra.mxu0 0
        %4722 = vmatprep.subr.bf16.mxu0 0
        %4723 = vmatpush1.bf16.xpose.msra.mxu0 0
        %4724 = vmatprep.subr.bf16.mxu0 0
        %4725 = vmatpush1.bf16.xpose.msra.mxu0 0
        %4726 = vmatprep.subr.bf16.mxu0 0
        %4727 = vmatpush1.bf16.xpose.msra.mxu0 0
        %4728 = vmatprep.subr.bf16.mxu0 0
        %4729 = vmatpush1.bf16.xpose.msra.mxu0 0
        %4730 = vmatprep.subr.bf16.mxu0 0
        %4731 = vmatpush1.bf16.xpose.msra.mxu0 0
        %4732 = vmatprep.subr.bf16.mxu0 0
        %4733 = vmatpush1.bf16.xpose.msra.mxu0 %v4610
        %4734 = vmatprep.subr.bf16.mxu0 0
        %4735 = vmatpush2.bf16.xpose.msra.mxu0 0
        %4736 = vmatprep.subr.bf16.mxu0 0
        %4737 = vmatpush2.bf16.xpose.msra.mxu0 0
        %4738 = vmatprep.subr.bf16.mxu0 0
        %4739 = vmatpush2.bf16.xpose.msra.mxu0 0
        %4740 = vmatprep.subr.bf16.mxu0 0
        %4741 = vmatpush2.bf16.xpose.msra.mxu0 0
        %4742 = vmatprep.subr.bf16.mxu0 0
        %4743 = vmatpush2.bf16.xpose.msra.mxu0 0
        %4744 = vmatprep.subr.bf16.mxu0 0
        %4745 = vmatpush2.bf16.xpose.msra.mxu0 0
        %4746 = vmatprep.subr.bf16.mxu0 0
        %4747 = vmatpush2.bf16.xpose.msra.mxu0 0
        %4748 = vmatprep.subr.bf16.mxu0 0
        %4749 = vmatpush2.bf16.xpose.msra.mxu0 0
        %4750 = vmatprep.mubr.bf16.mxu0 0
        %4751 = vmatmul.mubr.bf16.gmra.mxu0 %v4716
        %v4752 = vpop.f32.mrf.mxu0
        %v4753 = vadd.f32 0.0, %v4752
        %v4754 = vpop.f32.mrf.mxu0
        %v4755 = vpop.f32.mrf.mxu0
        %v4756 = vpop.f32.mrf.mxu0
        %4757 = vdwg.mxu0
        %v4758 = vsel %vm1115, %v4753, -1e+30
        %v4759 = vsel %vm1247, %v4758, -inf
        %4760 = vmax.xlane.f32.xlu0 %v4759
        %v4761 = vpop.xlane.xlu0 %4760
        %v4762 = vsub.f32 %v4758, %v4761
        %v4763 = vmul.f32 %v4762, 1.442695
        %v4764 = vpow.pop %v4763
        %v4765 = vsel %vm1247, %v4764, 0.0
        %4766 = vadd.xlane.f32.xlu0 %v4765
        %v4767 = vpop.xlane.xlu0 %4766
        %v4768 = vrcp.pop %v4767
        %v4769 = vmul.f32 %v4764, %v4768
        %v4770 = vpack.c.bf16 %v4769, %v4769
        %v4772 = vsel %vm1247, %v4770, 0
        %4774 = vmatprep.subr.bf16.mxu0 0
        %4775 = vmatpush1.bf16.msra.mxu0 0
        %4776 = vmatprep.subr.bf16.mxu0 0
        %4777 = vmatpush1.bf16.msra.mxu0 0
        %4778 = vmatprep.subr.bf16.mxu0 0
        %4779 = vmatpush1.bf16.msra.mxu0 0
        %4780 = vmatprep.subr.bf16.mxu0 0
        %4781 = vmatpush1.bf16.msra.mxu0 0
        %4782 = vmatprep.subr.bf16.mxu0 0
        %4783 = vmatpush1.bf16.msra.mxu0 0
        %4784 = vmatprep.subr.bf16.mxu0 0
        %4785 = vmatpush1.bf16.msra.mxu0 0
        %4786 = vmatprep.subr.bf16.mxu0 0
        %4787 = vmatpush1.bf16.msra.mxu0 0
        %4788 = vmatprep.subr.bf16.mxu0 0
        %4789 = vmatpush1.bf16.msra.mxu0 %v4671
        %4790 = vmatprep.subr.bf16.mxu0 0
        %4791 = vmatpush2.bf16.msra.mxu0 0
        %4792 = vmatprep.subr.bf16.mxu0 0
        %4793 = vmatpush2.bf16.msra.mxu0 0
        %4794 = vmatprep.subr.bf16.mxu0 0
        %4795 = vmatpush2.bf16.msra.mxu0 0
        %4796 = vmatprep.subr.bf16.mxu0 0
        %4797 = vmatpush2.bf16.msra.mxu0 0
        %4798 = vmatprep.subr.bf16.mxu0 0
        %4799 = vmatpush2.bf16.msra.mxu0 0
        %4800 = vmatprep.subr.bf16.mxu0 0
        %4801 = vmatpush2.bf16.msra.mxu0 0
        %4802 = vmatprep.subr.bf16.mxu0 0
        %4803 = vmatpush2.bf16.msra.mxu0 0
        %4804 = vmatprep.subr.bf16.mxu0 0
        %4805 = vmatpush2.bf16.msra.mxu0 0
        %4806 = vmatprep.mubr.bf16.mxu0 0
        %4807 = vmatmul.mubr.bf16.gmra.mxu0 %v4772
        %v4808 = vpop.f32.mrf.mxu0
        %v4809 = vadd.f32 0.0, %v4808
        %v4810 = vpop.f32.mrf.mxu0
        %v4811 = vpop.f32.mrf.mxu0
        %v4812 = vpop.f32.mrf.mxu0
        %4813 = vdwg.mxu0
        %4815 = vrot.lane.b32.xlu0 %v4597, 16
        %v4816 = vpop.permute.xlu0 %4815
        %4819 = vrot.lane.b32.xlu0 %v4708, 32
        %v4820 = vpop.permute.xlu0 %4819
        %4823 = vrot.lane.b32.xlu0 %v4809, 48
        %v4824 = vpop.permute.xlu0 %4823
        %v4826 = vsel %vm1200, %v4495, %v4816
        %v4827 = vsel %vm1141, %v4826, %v4820
        %v4828 = vsel %vm1634, %v4827, %v4824
        %v4829 = vpack.c.bf16 %v4828, %v4828
        %v4831 = vlaneseq
        %v4832 = vshrl.u32 %v4831, 7
        %v4833 = vsub.s32 0, %v4832
        %v4834 = vrot.slane %v4387, %v4833
        %v4844 = vunpack.c.l.b16 %v4378
        %v4845 = vunpack.c.l.b16 %v4379
        %v4846 = vunpack.c.l.b16 %v4380
        %v4847 = vunpack.c.l.b16 %v4381
        %v4848 = vunpack.c.l.b16 %v4382
        %v4849 = vunpack.c.l.b16 %v4383
        %v4850 = vunpack.c.l.b16 %v4384
        %v4851 = vunpack.c.l.b16 %v4385
        %v4852 = vpack.c.b16 %v4845, %v4844
        %v4853 = vpack.c.b16 %v4847, %v4846
        %v4854 = vpack.c.b16 %v4849, %v4848
        %v4855 = vpack.c.b16 %v4851, %v4850
        %v4861 = vsel %vm1667, %v4829, 0
        %4863 = vmatprep.subr.bf16.mxu0 0
        %4864 = vmatpush1.bf16.msra.mxu0 0
        %4865 = vmatprep.subr.bf16.mxu0 0
        %4866 = vmatpush1.bf16.msra.mxu0 0
        %4867 = vmatprep.subr.bf16.mxu0 0
        %4868 = vmatpush1.bf16.msra.mxu0 0
        %4869 = vmatprep.subr.bf16.mxu0 0
        %4870 = vmatpush1.bf16.msra.mxu0 0
        %4871 = vmatprep.subr.bf16.mxu0 0
        %4872 = vmatpush1.bf16.msra.mxu0 %v4855
        %4873 = vmatprep.subr.bf16.mxu0 0
        %4874 = vmatpush1.bf16.msra.mxu0 %v4854
        %4875 = vmatprep.subr.bf16.mxu0 0
        %4876 = vmatpush1.bf16.msra.mxu0 %v4853
        %4877 = vmatprep.subr.bf16.mxu0 0
        %4878 = vmatpush1.bf16.msra.mxu0 %v4852
        %4879 = vmatprep.subr.bf16.mxu0 0
        %4880 = vmatpush2.bf16.msra.mxu0 0
        %4881 = vmatprep.subr.bf16.mxu0 0
        %4882 = vmatpush2.bf16.msra.mxu0 0
        %4883 = vmatprep.subr.bf16.mxu0 0
        %4884 = vmatpush2.bf16.msra.mxu0 0
        %4885 = vmatprep.subr.bf16.mxu0 0
        %4886 = vmatpush2.bf16.msra.mxu0 0
        %4887 = vmatprep.subr.bf16.mxu0 0
        %4888 = vmatpush2.bf16.msra.mxu0 0
        %4889 = vmatprep.subr.bf16.mxu0 0
        %4890 = vmatpush2.bf16.msra.mxu0 0
        %4891 = vmatprep.subr.bf16.mxu0 0
        %4892 = vmatpush2.bf16.msra.mxu0 0
        %4893 = vmatprep.subr.bf16.mxu0 0
        %4894 = vmatpush2.bf16.msra.mxu0 0
        %4895 = vmatprep.mubr.bf16.mxu0 0
        %4896 = vmatmul.mubr.bf16.gmra.mxu0 %v4861
        %v4897 = vpop.f32.mrf.mxu0
        %v4898 = vadd.f32 %v4834, %v4897
        %v4899 = vpop.f32.mrf.mxu0
        %v4900 = vpop.f32.mrf.mxu0
        %v4901 = vpop.f32.mrf.mxu0
        %4902 = vdwg.mxu0
        %v4903 = vadd.f32 %v4898, %v4306
        %s4904 = scalar_lea.vmem %s39, 1
        %v4905 = vld [vmem:[%s4904] sm:$0x1]
        %v4906 = vmul.f32 %v4903, %v4903
        %v4907 = vsel %vm1141, %v4906, 0.0
        %4908 = vadd.xlane.f32.xlu0 %v4907
        %v4909 = vpop.xlane.xlu0 %4908
        %v4910 = vmul.f32 %v4909, %v1717
        %v4911 = vadd.f32 %v4910, 1e-06
        %v4912 = vrsqrt.pop %v4911
        %v4913 = vmul.f32 %v4903, %v4912
        %v4915 = vlaneseq
        %v4916 = vshrl.u32 %v4915, 7
        %v4917 = vsub.s32 0, %v4916
        %v4918 = vrot.slane %v4905, %v4917
        %v4920 = vmul.f32 %v4913, %v4918
        %s4921 = scalar_lea.vmem %s41, 16
        %v4922 = vld [vmem:[%s4921] sm:$0xf]
        %v4923 = vld [vmem:[%s4921 + $0x4] sm:$0xf]
        %v4924 = vld [vmem:[%s4921 + $0x8] sm:$0xf]
        %v4925 = vld [vmem:[%s4921 + $0xc] sm:$0xf]
        %v4926 = vpack.c.bf16 %v4920, %v4920
        %s4927 = scalar_lea.vmem %s43, 1
        %v4928 = vld [vmem:[%s4927] sm:$0x1]
        %v4930 = vlaneseq
        %v4931 = vshrl.u32 %v4930, 7
        %v4932 = vsub.s32 0, %v4931
        %v4933 = vrot.slane %v4928, %v4932
        %v4939 = vunpack.c.l.b16 %v4922
        %v4940 = vunpack.c.l.b16 %v4923
        %v4941 = vunpack.c.l.b16 %v4924
        %v4942 = vunpack.c.l.b16 %v4925
        %v4943 = vpack.c.b16 %v4940, %v4939
        %v4944 = vpack.c.b16 %v4942, %v4941
        %v4948 = vsel %vm1141, %v4926, 0
        %4950 = vmatprep.subr.bf16.mxu0 0
        %4951 = vmatpush1.bf16.msra.mxu0 0
        %4952 = vmatprep.subr.bf16.mxu0 0
        %4953 = vmatpush1.bf16.msra.mxu0 0
        %4954 = vmatprep.subr.bf16.mxu0 0
        %4955 = vmatpush1.bf16.msra.mxu0 0
        %4956 = vmatprep.subr.bf16.mxu0 0
        %4957 = vmatpush1.bf16.msra.mxu0 0
        %4958 = vmatprep.subr.bf16.mxu0 0
        %4959 = vmatpush1.bf16.msra.mxu0 0
        %4960 = vmatprep.subr.bf16.mxu0 0
        %4961 = vmatpush1.bf16.msra.mxu0 0
        %4962 = vmatprep.subr.bf16.mxu0 0
        %4963 = vmatpush1.bf16.msra.mxu0 %v4944
        %4964 = vmatprep.subr.bf16.mxu0 0
        %4965 = vmatpush1.bf16.msra.mxu0 %v4943
        %4966 = vmatprep.subr.bf16.mxu0 0
        %4967 = vmatpush2.bf16.msra.mxu0 0
        %4968 = vmatprep.subr.bf16.mxu0 0
        %4969 = vmatpush2.bf16.msra.mxu0 0
        %4970 = vmatprep.subr.bf16.mxu0 0
        %4971 = vmatpush2.bf16.msra.mxu0 0
        %4972 = vmatprep.subr.bf16.mxu0 0
        %4973 = vmatpush2.bf16.msra.mxu0 0
        %4974 = vmatprep.subr.bf16.mxu0 0
        %4975 = vmatpush2.bf16.msra.mxu0 0
        %4976 = vmatprep.subr.bf16.mxu0 0
        %4977 = vmatpush2.bf16.msra.mxu0 0
        %4978 = vmatprep.subr.bf16.mxu0 0
        %4979 = vmatpush2.bf16.msra.mxu0 0
        %4980 = vmatprep.subr.bf16.mxu0 0
        %4981 = vmatpush2.bf16.msra.mxu0 0
        %4982 = vmatprep.mubr.bf16.mxu0 0
        %4983 = vmatmul.mubr.bf16.gmra.mxu0 %v4948
        %v4984 = vpop.f32.mrf.mxu0
        %v4985 = vadd.f32 %v4933, %v4984
        %v4986 = vpop.f32.mrf.mxu0
        %v4987 = vpop.f32.mrf.mxu0
        %v4988 = vpop.f32.mrf.mxu0
        %4989 = vdwg.mxu0
        %v4990 = vmul.f32 %v4985, 0.25
        %s4991 = scalar_lea.vmem %s45, 16
        %v4992 = vld [vmem:[%s4991] sm:$0xf]
        %v4993 = vld [vmem:[%s4991 + $0x4] sm:$0xf]
        %v4994 = vld [vmem:[%s4991 + $0x8] sm:$0xf]
        %v4995 = vld [vmem:[%s4991 + $0xc] sm:$0xf]
        %s4996 = scalar_lea.vmem %s47, 1
        %v4997 = vld [vmem:[%s4996] sm:$0x1]
        %v4999 = vlaneseq
        %v5000 = vshrl.u32 %v4999, 7
        %v5001 = vsub.s32 0, %v5000
        %v5002 = vrot.slane %v4997, %v5001
        %v5008 = vunpack.c.l.b16 %v4992
        %v5009 = vunpack.c.l.b16 %v4993
        %v5010 = vunpack.c.l.b16 %v4994
        %v5011 = vunpack.c.l.b16 %v4995
        %v5012 = vpack.c.b16 %v5009, %v5008
        %v5013 = vpack.c.b16 %v5011, %v5010
        %5016 = vmatprep.subr.bf16.mxu0 0
        %5017 = vmatpush1.bf16.msra.mxu0 0
        %5018 = vmatprep.subr.bf16.mxu0 0
        %5019 = vmatpush1.bf16.msra.mxu0 0
        %5020 = vmatprep.subr.bf16.mxu0 0
        %5021 = vmatpush1.bf16.msra.mxu0 0
        %5022 = vmatprep.subr.bf16.mxu0 0
        %5023 = vmatpush1.bf16.msra.mxu0 0
        %5024 = vmatprep.subr.bf16.mxu0 0
        %5025 = vmatpush1.bf16.msra.mxu0 0
        %5026 = vmatprep.subr.bf16.mxu0 0
        %5027 = vmatpush1.bf16.msra.mxu0 0
        %5028 = vmatprep.subr.bf16.mxu0 0
        %5029 = vmatpush1.bf16.msra.mxu0 %v5013
        %5030 = vmatprep.subr.bf16.mxu0 0
        %5031 = vmatpush1.bf16.msra.mxu0 %v5012
        %5032 = vmatprep.subr.bf16.mxu0 0
        %5033 = vmatpush2.bf16.msra.mxu0 0
        %5034 = vmatprep.subr.bf16.mxu0 0
        %5035 = vmatpush2.bf16.msra.mxu0 0
        %5036 = vmatprep.subr.bf16.mxu0 0
        %5037 = vmatpush2.bf16.msra.mxu0 0
        %5038 = vmatprep.subr.bf16.mxu0 0
        %5039 = vmatpush2.bf16.msra.mxu0 0
        %5040 = vmatprep.subr.bf16.mxu0 0
        %5041 = vmatpush2.bf16.msra.mxu0 0
        %5042 = vmatprep.subr.bf16.mxu0 0
        %5043 = vmatpush2.bf16.msra.mxu0 0
        %5044 = vmatprep.subr.bf16.mxu0 0
        %5045 = vmatpush2.bf16.msra.mxu0 0
        %5046 = vmatprep.subr.bf16.mxu0 0
        %5047 = vmatpush2.bf16.msra.mxu0 0
        %5048 = vmatprep.mubr.bf16.mxu0 0
        %5049 = vmatmul.mubr.bf16.gmra.mxu0 %v3503
        %v5050 = vpop.f32.mrf.mxu0
        %v5051 = vadd.f32 %v5002, %v5050
        %v5052 = vpop.f32.mrf.mxu0
        %v5053 = vpop.f32.mrf.mxu0
        %v5054 = vpop.f32.mrf.mxu0
        %5055 = vdwg.mxu0
        %s5056 = scalar_lea.vmem %s49, 32
        %v5057 = vld [vmem:[%s5056] sm:$0xf]
        %v5058 = vld [vmem:[%s5056 + $0x4] sm:$0xf]
        %v5059 = vld [vmem:[%s5056 + $0x8] sm:$0xf]
        %v5060 = vld [vmem:[%s5056 + $0xc] sm:$0xf]
        %v5061 = vld [vmem:[%s5056 + $0x10] sm:$0xf]
        %v5062 = vld [vmem:[%s5056 + $0x14] sm:$0xf]
        %v5063 = vld [vmem:[%s5056 + $0x18] sm:$0xf]
        %v5064 = vld [vmem:[%s5056 + $0x1c] sm:$0xf]
        %s5065 = scalar_lea.vmem %s51, 1
        %v5066 = vld [vmem:[%s5065] sm:$0x1]
        %v5067 = vpack.c.bf16 %v4990, %v4990
        %v5068 = vpack.c.bf16 %v5051, %v5051
        %v5070 = vsel %vm1200, %v5067, 0
        %v5073 = vsel %vm1200, %v5068, 0
        %5075 = vmatprep.subr.bf16.mxu0 0
        %5076 = vmatpush1.bf16.xpose.msra.mxu0 0
        %5077 = vmatprep.subr.bf16.mxu0 0
        %5078 = vmatpush1.bf16.xpose.msra.mxu0 0
        %5079 = vmatprep.subr.bf16.mxu0 0
        %5080 = vmatpush1.bf16.xpose.msra.mxu0 0
        %5081 = vmatprep.subr.bf16.mxu0 0
        %5082 = vmatpush1.bf16.xpose.msra.mxu0 0
        %5083 = vmatprep.subr.bf16.mxu0 0
        %5084 = vmatpush1.bf16.xpose.msra.mxu0 0
        %5085 = vmatprep.subr.bf16.mxu0 0
        %5086 = vmatpush1.bf16.xpose.msra.mxu0 0
        %5087 = vmatprep.subr.bf16.mxu0 0
        %5088 = vmatpush1.bf16.xpose.msra.mxu0 0
        %5089 = vmatprep.subr.bf16.mxu0 0
        %5090 = vmatpush1.bf16.xpose.msra.mxu0 %v5073
        %5091 = vmatprep.subr.bf16.mxu0 0
        %5092 = vmatpush2.bf16.xpose.msra.mxu0 0
        %5093 = vmatprep.subr.bf16.mxu0 0
        %5094 = vmatpush2.bf16.xpose.msra.mxu0 0
        %5095 = vmatprep.subr.bf16.mxu0 0
        %5096 = vmatpush2.bf16.xpose.msra.mxu0 0
        %5097 = vmatprep.subr.bf16.mxu0 0
        %5098 = vmatpush2.bf16.xpose.msra.mxu0 0
        %5099 = vmatprep.subr.bf16.mxu0 0
        %5100 = vmatpush2.bf16.xpose.msra.mxu0 0
        %5101 = vmatprep.subr.bf16.mxu0 0
        %5102 = vmatpush2.bf16.xpose.msra.mxu0 0
        %5103 = vmatprep.subr.bf16.mxu0 0
        %5104 = vmatpush2.bf16.xpose.msra.mxu0 0
        %5105 = vmatprep.subr.bf16.mxu0 0
        %5106 = vmatpush2.bf16.xpose.msra.mxu0 0
        %5107 = vmatprep.mubr.bf16.mxu0 0
        %5108 = vmatmul.mubr.bf16.gmra.mxu0 %v5070
        %v5109 = vpop.f32.mrf.mxu0
        %v5110 = vadd.f32 0.0, %v5109
        %v5111 = vpop.f32.mrf.mxu0
        %v5112 = vpop.f32.mrf.mxu0
        %v5113 = vpop.f32.mrf.mxu0
        %5114 = vdwg.mxu0
        %v5115 = vsel %vm1247, %v5110, -inf
        %5116 = vmax.xlane.f32.xlu0 %v5115
        %v5117 = vpop.xlane.xlu0 %5116
        %v5118 = vsub.f32 %v5110, %v5117
        %v5119 = vmul.f32 %v5118, 1.442695
        %v5120 = vpow.pop %v5119
        %v5121 = vsel %vm1247, %v5120, 0.0
        %5122 = vadd.xlane.f32.xlu0 %v5121
        %v5123 = vpop.xlane.xlu0 %5122
        %v5124 = vrcp.pop %v5123
        %v5125 = vmul.f32 %v5120, %v5124
        %v5126 = vpack.c.bf16 %v5125, %v5125
        %5128 = vrot.lane.b32.xlu0 %v5068, 96
        %v5129 = vpop.permute.xlu0 %5128
        %v5131 = vsel %vm1247, %v5126, 0
        %v5134 = vsel %vm1265, %v5129, 0
        %5136 = vmatprep.subr.bf16.mxu0 0
        %5137 = vmatpush1.bf16.msra.mxu0 0
        %5138 = vmatprep.subr.bf16.mxu0 0
        %5139 = vmatpush1.bf16.msra.mxu0 0
        %5140 = vmatprep.subr.bf16.mxu0 0
        %5141 = vmatpush1.bf16.msra.mxu0 0
        %5142 = vmatprep.subr.bf16.mxu0 0
        %5143 = vmatpush1.bf16.msra.mxu0 0
        %5144 = vmatprep.subr.bf16.mxu0 0
        %5145 = vmatpush1.bf16.msra.mxu0 0
        %5146 = vmatprep.subr.bf16.mxu0 0
        %5147 = vmatpush1.bf16.msra.mxu0 0
        %5148 = vmatprep.subr.bf16.mxu0 0
        %5149 = vmatpush1.bf16.msra.mxu0 0
        %5150 = vmatprep.subr.bf16.mxu0 0
        %5151 = vmatpush1.bf16.msra.mxu0 %v5134
        %5152 = vmatprep.subr.bf16.mxu0 0
        %5153 = vmatpush2.bf16.msra.mxu0 0
        %5154 = vmatprep.subr.bf16.mxu0 0
        %5155 = vmatpush2.bf16.msra.mxu0 0
        %5156 = vmatprep.subr.bf16.mxu0 0
        %5157 = vmatpush2.bf16.msra.mxu0 0
        %5158 = vmatprep.subr.bf16.mxu0 0
        %5159 = vmatpush2.bf16.msra.mxu0 0
        %5160 = vmatprep.subr.bf16.mxu0 0
        %5161 = vmatpush2.bf16.msra.mxu0 0
        %5162 = vmatprep.subr.bf16.mxu0 0
        %5163 = vmatpush2.bf16.msra.mxu0 0
        %5164 = vmatprep.subr.bf16.mxu0 0
        %5165 = vmatpush2.bf16.msra.mxu0 0
        %5166 = vmatprep.subr.bf16.mxu0 0
        %5167 = vmatpush2.bf16.msra.mxu0 0
        %5168 = vmatprep.mubr.bf16.mxu0 0
        %5169 = vmatmul.mubr.bf16.gmra.mxu0 %v5131
        %v5170 = vpop.f32.mrf.mxu0
        %v5171 = vadd.f32 0.0, %v5170
        %v5172 = vpop.f32.mrf.mxu0
        %v5173 = vpop.f32.mrf.mxu0
        %v5174 = vpop.f32.mrf.mxu0
        %5175 = vdwg.mxu0
        %5177 = vrot.lane.b32.xlu0 %v5067, 112
        %v5178 = vpop.permute.xlu0 %5177
        %v5180 = vsel %vm1200, %v5178, 0
        %5182 = vmatprep.subr.bf16.mxu0 0
        %5183 = vmatpush1.bf16.xpose.msra.mxu0 0
        %5184 = vmatprep.subr.bf16.mxu0 0
        %5185 = vmatpush1.bf16.xpose.msra.mxu0 0
        %5186 = vmatprep.subr.bf16.mxu0 0
        %5187 = vmatpush1.bf16.xpose.msra.mxu0 0
        %5188 = vmatprep.subr.bf16.mxu0 0
        %5189 = vmatpush1.bf16.xpose.msra.mxu0 0
        %5190 = vmatprep.subr.bf16.mxu0 0
        %5191 = vmatpush1.bf16.xpose.msra.mxu0 0
        %5192 = vmatprep.subr.bf16.mxu0 0
        %5193 = vmatpush1.bf16.xpose.msra.mxu0 0
        %5194 = vmatprep.subr.bf16.mxu0 0
        %5195 = vmatpush1.bf16.xpose.msra.mxu0 0
        %5196 = vmatprep.subr.bf16.mxu0 0
        %5197 = vmatpush1.bf16.xpose.msra.mxu0 %v5073
        %5198 = vmatprep.subr.bf16.mxu0 0
        %5199 = vmatpush2.bf16.xpose.msra.mxu0 0
        %5200 = vmatprep.subr.bf16.mxu0 0
        %5201 = vmatpush2.bf16.xpose.msra.mxu0 0
        %5202 = vmatprep.subr.bf16.mxu0 0
        %5203 = vmatpush2.bf16.xpose.msra.mxu0 0
        %5204 = vmatprep.subr.bf16.mxu0 0
        %5205 = vmatpush2.bf16.xpose.msra.mxu0 0
        %5206 = vmatprep.subr.bf16.mxu0 0
        %5207 = vmatpush2.bf16.xpose.msra.mxu0 0
        %5208 = vmatprep.subr.bf16.mxu0 0
        %5209 = vmatpush2.bf16.xpose.msra.mxu0 0
        %5210 = vmatprep.subr.bf16.mxu0 0
        %5211 = vmatpush2.bf16.xpose.msra.mxu0 0
        %5212 = vmatprep.subr.bf16.mxu0 0
        %5213 = vmatpush2.bf16.xpose.msra.mxu0 0
        %5214 = vmatprep.mubr.bf16.mxu0 0
        %5215 = vmatmul.mubr.bf16.gmra.mxu0 %v5180
        %v5216 = vpop.f32.mrf.mxu0
        %v5217 = vadd.f32 0.0, %v5216
        %v5218 = vpop.f32.mrf.mxu0
        %v5219 = vpop.f32.mrf.mxu0
        %v5220 = vpop.f32.mrf.mxu0
        %5221 = vdwg.mxu0
        %v5222 = vsel %vm1247, %v5217, -inf
        %5223 = vmax.xlane.f32.xlu0 %v5222
        %v5224 = vpop.xlane.xlu0 %5223
        %v5225 = vsub.f32 %v5217, %v5224
        %v5226 = vmul.f32 %v5225, 1.442695
        %v5227 = vpow.pop %v5226
        %v5228 = vsel %vm1247, %v5227, 0.0
        %5229 = vadd.xlane.f32.xlu0 %v5228
        %v5230 = vpop.xlane.xlu0 %5229
        %v5231 = vrcp.pop %v5230
        %v5232 = vmul.f32 %v5227, %v5231
        %v5233 = vpack.c.bf16 %v5232, %v5232
        %v5235 = vsel %vm1247, %v5233, 0
        %5237 = vmatprep.subr.bf16.mxu0 0
        %5238 = vmatpush1.bf16.msra.mxu0 0
        %5239 = vmatprep.subr.bf16.mxu0 0
        %5240 = vmatpush1.bf16.msra.mxu0 0
        %5241 = vmatprep.subr.bf16.mxu0 0
        %5242 = vmatpush1.bf16.msra.mxu0 0
        %5243 = vmatprep.subr.bf16.mxu0 0
        %5244 = vmatpush1.bf16.msra.mxu0 0
        %5245 = vmatprep.subr.bf16.mxu0 0
        %5246 = vmatpush1.bf16.msra.mxu0 0
        %5247 = vmatprep.subr.bf16.mxu0 0
        %5248 = vmatpush1.bf16.msra.mxu0 0
        %5249 = vmatprep.subr.bf16.mxu0 0
        %5250 = vmatpush1.bf16.msra.mxu0 0
        %5251 = vmatprep.subr.bf16.mxu0 0
        %5252 = vmatpush1.bf16.msra.mxu0 %v5134
        %5253 = vmatprep.subr.bf16.mxu0 0
        %5254 = vmatpush2.bf16.msra.mxu0 0
        %5255 = vmatprep.subr.bf16.mxu0 0
        %5256 = vmatpush2.bf16.msra.mxu0 0
        %5257 = vmatprep.subr.bf16.mxu0 0
        %5258 = vmatpush2.bf16.msra.mxu0 0
        %5259 = vmatprep.subr.bf16.mxu0 0
        %5260 = vmatpush2.bf16.msra.mxu0 0
        %5261 = vmatprep.subr.bf16.mxu0 0
        %5262 = vmatpush2.bf16.msra.mxu0 0
        %5263 = vmatprep.subr.bf16.mxu0 0
        %5264 = vmatpush2.bf16.msra.mxu0 0
        %5265 = vmatprep.subr.bf16.mxu0 0
        %5266 = vmatpush2.bf16.msra.mxu0 0
        %5267 = vmatprep.subr.bf16.mxu0 0
        %5268 = vmatpush2.bf16.msra.mxu0 0
        %5269 = vmatprep.mubr.bf16.mxu0 0
        %5270 = vmatmul.mubr.bf16.gmra.mxu0 %v5235
        %v5271 = vpop.f32.mrf.mxu0
        %v5272 = vadd.f32 0.0, %v5271
        %v5273 = vpop.f32.mrf.mxu0
        %v5274 = vpop.f32.mrf.mxu0
        %v5275 = vpop.f32.mrf.mxu0
        %5276 = vdwg.mxu0
        %5277 = vrot.lane.b32.xlu0 %v5067, 96
        %v5278 = vpop.permute.xlu0 %5277
        %5279 = vrot.lane.b32.xlu0 %v5068, 112
        %v5280 = vpop.permute.xlu0 %5279
        %v5282 = vsel %vm1200, %v5278, 0
        %v5285 = vsel %vm1200, %v5280, 0
        %5287 = vmatprep.subr.bf16.mxu0 0
        %5288 = vmatpush1.bf16.xpose.msra.mxu0 0
        %5289 = vmatprep.subr.bf16.mxu0 0
        %5290 = vmatpush1.bf16.xpose.msra.mxu0 0
        %5291 = vmatprep.subr.bf16.mxu0 0
        %5292 = vmatpush1.bf16.xpose.msra.mxu0 0
        %5293 = vmatprep.subr.bf16.mxu0 0
        %5294 = vmatpush1.bf16.xpose.msra.mxu0 0
        %5295 = vmatprep.subr.bf16.mxu0 0
        %5296 = vmatpush1.bf16.xpose.msra.mxu0 0
        %5297 = vmatprep.subr.bf16.mxu0 0
        %5298 = vmatpush1.bf16.xpose.msra.mxu0 0
        %5299 = vmatprep.subr.bf16.mxu0 0
        %5300 = vmatpush1.bf16.xpose.msra.mxu0 0
        %5301 = vmatprep.subr.bf16.mxu0 0
        %5302 = vmatpush1.bf16.xpose.msra.mxu0 %v5285
        %5303 = vmatprep.subr.bf16.mxu0 0
        %5304 = vmatpush2.bf16.xpose.msra.mxu0 0
        %5305 = vmatprep.subr.bf16.mxu0 0
        %5306 = vmatpush2.bf16.xpose.msra.mxu0 0
        %5307 = vmatprep.subr.bf16.mxu0 0
        %5308 = vmatpush2.bf16.xpose.msra.mxu0 0
        %5309 = vmatprep.subr.bf16.mxu0 0
        %5310 = vmatpush2.bf16.xpose.msra.mxu0 0
        %5311 = vmatprep.subr.bf16.mxu0 0
        %5312 = vmatpush2.bf16.xpose.msra.mxu0 0
        %5313 = vmatprep.subr.bf16.mxu0 0
        %5314 = vmatpush2.bf16.xpose.msra.mxu0 0
        %5315 = vmatprep.subr.bf16.mxu0 0
        %5316 = vmatpush2.bf16.xpose.msra.mxu0 0
        %5317 = vmatprep.subr.bf16.mxu0 0
        %5318 = vmatpush2.bf16.xpose.msra.mxu0 0
        %5319 = vmatprep.mubr.bf16.mxu0 0
        %5320 = vmatmul.mubr.bf16.gmra.mxu0 %v5282
        %v5321 = vpop.f32.mrf.mxu0
        %v5322 = vadd.f32 0.0, %v5321
        %v5323 = vpop.f32.mrf.mxu0
        %v5324 = vpop.f32.mrf.mxu0
        %v5325 = vpop.f32.mrf.mxu0
        %5326 = vdwg.mxu0
        %v5327 = vsel %vm1247, %v5322, -inf
        %5328 = vmax.xlane.f32.xlu0 %v5327
        %v5329 = vpop.xlane.xlu0 %5328
        %v5330 = vsub.f32 %v5322, %v5329
        %v5331 = vmul.f32 %v5330, 1.442695
        %v5332 = vpow.pop %v5331
        %v5333 = vsel %vm1247, %v5332, 0.0
        %5334 = vadd.xlane.f32.xlu0 %v5333
        %v5335 = vpop.xlane.xlu0 %5334
        %v5336 = vrcp.pop %v5335
        %v5337 = vmul.f32 %v5332, %v5336
        %v5338 = vpack.c.bf16 %v5337, %v5337
        %5339 = vrot.lane.b32.xlu0 %v5068, 80
        %v5340 = vpop.permute.xlu0 %5339
        %v5342 = vsel %vm1247, %v5338, 0
        %v5345 = vsel %vm1265, %v5340, 0
        %5347 = vmatprep.subr.bf16.mxu0 0
        %5348 = vmatpush1.bf16.msra.mxu0 0
        %5349 = vmatprep.subr.bf16.mxu0 0
        %5350 = vmatpush1.bf16.msra.mxu0 0
        %5351 = vmatprep.subr.bf16.mxu0 0
        %5352 = vmatpush1.bf16.msra.mxu0 0
        %5353 = vmatprep.subr.bf16.mxu0 0
        %5354 = vmatpush1.bf16.msra.mxu0 0
        %5355 = vmatprep.subr.bf16.mxu0 0
        %5356 = vmatpush1.bf16.msra.mxu0 0
        %5357 = vmatprep.subr.bf16.mxu0 0
        %5358 = vmatpush1.bf16.msra.mxu0 0
        %5359 = vmatprep.subr.bf16.mxu0 0
        %5360 = vmatpush1.bf16.msra.mxu0 0
        %5361 = vmatprep.subr.bf16.mxu0 0
        %5362 = vmatpush1.bf16.msra.mxu0 %v5345
        %5363 = vmatprep.subr.bf16.mxu0 0
        %5364 = vmatpush2.bf16.msra.mxu0 0
        %5365 = vmatprep.subr.bf16.mxu0 0
        %5366 = vmatpush2.bf16.msra.mxu0 0
        %5367 = vmatprep.subr.bf16.mxu0 0
        %5368 = vmatpush2.bf16.msra.mxu0 0
        %5369 = vmatprep.subr.bf16.mxu0 0
        %5370 = vmatpush2.bf16.msra.mxu0 0
        %5371 = vmatprep.subr.bf16.mxu0 0
        %5372 = vmatpush2.bf16.msra.mxu0 0
        %5373 = vmatprep.subr.bf16.mxu0 0
        %5374 = vmatpush2.bf16.msra.mxu0 0
        %5375 = vmatprep.subr.bf16.mxu0 0
        %5376 = vmatpush2.bf16.msra.mxu0 0
        %5377 = vmatprep.subr.bf16.mxu0 0
        %5378 = vmatpush2.bf16.msra.mxu0 0
        %5379 = vmatprep.mubr.bf16.mxu0 0
        %5380 = vmatmul.mubr.bf16.gmra.mxu0 %v5342
        %v5381 = vpop.f32.mrf.mxu0
        %v5382 = vadd.f32 0.0, %v5381
        %v5383 = vpop.f32.mrf.mxu0
        %v5384 = vpop.f32.mrf.mxu0
        %v5385 = vpop.f32.mrf.mxu0
        %5386 = vdwg.mxu0
        %5387 = vrot.lane.b32.xlu0 %v5067, 80
        %v5388 = vpop.permute.xlu0 %5387
        %v5390 = vsel %vm1200, %v5388, 0
        %5392 = vmatprep.subr.bf16.mxu0 0
        %5393 = vmatpush1.bf16.xpose.msra.mxu0 0
        %5394 = vmatprep.subr.bf16.mxu0 0
        %5395 = vmatpush1.bf16.xpose.msra.mxu0 0
        %5396 = vmatprep.subr.bf16.mxu0 0
        %5397 = vmatpush1.bf16.xpose.msra.mxu0 0
        %5398 = vmatprep.subr.bf16.mxu0 0
        %5399 = vmatpush1.bf16.xpose.msra.mxu0 0
        %5400 = vmatprep.subr.bf16.mxu0 0
        %5401 = vmatpush1.bf16.xpose.msra.mxu0 0
        %5402 = vmatprep.subr.bf16.mxu0 0
        %5403 = vmatpush1.bf16.xpose.msra.mxu0 0
        %5404 = vmatprep.subr.bf16.mxu0 0
        %5405 = vmatpush1.bf16.xpose.msra.mxu0 0
        %5406 = vmatprep.subr.bf16.mxu0 0
        %5407 = vmatpush1.bf16.xpose.msra.mxu0 %v5285
        %5408 = vmatprep.subr.bf16.mxu0 0
        %5409 = vmatpush2.bf16.xpose.msra.mxu0 0
        %5410 = vmatprep.subr.bf16.mxu0 0
        %5411 = vmatpush2.bf16.xpose.msra.mxu0 0
        %5412 = vmatprep.subr.bf16.mxu0 0
        %5413 = vmatpush2.bf16.xpose.msra.mxu0 0
        %5414 = vmatprep.subr.bf16.mxu0 0
        %5415 = vmatpush2.bf16.xpose.msra.mxu0 0
        %5416 = vmatprep.subr.bf16.mxu0 0
        %5417 = vmatpush2.bf16.xpose.msra.mxu0 0
        %5418 = vmatprep.subr.bf16.mxu0 0
        %5419 = vmatpush2.bf16.xpose.msra.mxu0 0
        %5420 = vmatprep.subr.bf16.mxu0 0
        %5421 = vmatpush2.bf16.xpose.msra.mxu0 0
        %5422 = vmatprep.subr.bf16.mxu0 0
        %5423 = vmatpush2.bf16.xpose.msra.mxu0 0
        %5424 = vmatprep.mubr.bf16.mxu0 0
        %5425 = vmatmul.mubr.bf16.gmra.mxu0 %v5390
        %v5426 = vpop.f32.mrf.mxu0
        %v5427 = vadd.f32 0.0, %v5426
        %v5428 = vpop.f32.mrf.mxu0
        %v5429 = vpop.f32.mrf.mxu0
        %v5430 = vpop.f32.mrf.mxu0
        %5431 = vdwg.mxu0
        %v5432 = vsel %vm1247, %v5427, -inf
        %5433 = vmax.xlane.f32.xlu0 %v5432
        %v5434 = vpop.xlane.xlu0 %5433
        %v5435 = vsub.f32 %v5427, %v5434
        %v5436 = vmul.f32 %v5435, 1.442695
        %v5437 = vpow.pop %v5436
        %v5438 = vsel %vm1247, %v5437, 0.0
        %5439 = vadd.xlane.f32.xlu0 %v5438
        %v5440 = vpop.xlane.xlu0 %5439
        %v5441 = vrcp.pop %v5440
        %v5442 = vmul.f32 %v5437, %v5441
        %v5443 = vpack.c.bf16 %v5442, %v5442
        %v5445 = vsel %vm1247, %v5443, 0
        %5447 = vmatprep.subr.bf16.mxu0 0
        %5448 = vmatpush1.bf16.msra.mxu0 0
        %5449 = vmatprep.subr.bf16.mxu0 0
        %5450 = vmatpush1.bf16.msra.mxu0 0
        %5451 = vmatprep.subr.bf16.mxu0 0
        %5452 = vmatpush1.bf16.msra.mxu0 0
        %5453 = vmatprep.subr.bf16.mxu0 0
        %5454 = vmatpush1.bf16.msra.mxu0 0
        %5455 = vmatprep.subr.bf16.mxu0 0
        %5456 = vmatpush1.bf16.msra.mxu0 0
        %5457 = vmatprep.subr.bf16.mxu0 0
        %5458 = vmatpush1.bf16.msra.mxu0 0
        %5459 = vmatprep.subr.bf16.mxu0 0
        %5460 = vmatpush1.bf16.msra.mxu0 0
        %5461 = vmatprep.subr.bf16.mxu0 0
        %5462 = vmatpush1.bf16.msra.mxu0 %v5345
        %5463 = vmatprep.subr.bf16.mxu0 0
        %5464 = vmatpush2.bf16.msra.mxu0 0
        %5465 = vmatprep.subr.bf16.mxu0 0
        %5466 = vmatpush2.bf16.msra.mxu0 0
        %5467 = vmatprep.subr.bf16.mxu0 0
        %5468 = vmatpush2.bf16.msra.mxu0 0
        %5469 = vmatprep.subr.bf16.mxu0 0
        %5470 = vmatpush2.bf16.msra.mxu0 0
        %5471 = vmatprep.subr.bf16.mxu0 0
        %5472 = vmatpush2.bf16.msra.mxu0 0
        %5473 = vmatprep.subr.bf16.mxu0 0
        %5474 = vmatpush2.bf16.msra.mxu0 0
        %5475 = vmatprep.subr.bf16.mxu0 0
        %5476 = vmatpush2.bf16.msra.mxu0 0
        %5477 = vmatprep.subr.bf16.mxu0 0
        %5478 = vmatpush2.bf16.msra.mxu0 0
        %5479 = vmatprep.mubr.bf16.mxu0 0
        %5480 = vmatmul.mubr.bf16.gmra.mxu0 %v5445
        %v5481 = vpop.f32.mrf.mxu0
        %v5482 = vadd.f32 0.0, %v5481
        %v5483 = vpop.f32.mrf.mxu0
        %v5484 = vpop.f32.mrf.mxu0
        %v5485 = vpop.f32.mrf.mxu0
        %5486 = vdwg.mxu0
        %5488 = vrot.lane.b32.xlu0 %v5272, 16
        %v5489 = vpop.permute.xlu0 %5488
        %5492 = vrot.lane.b32.xlu0 %v5382, 32
        %v5493 = vpop.permute.xlu0 %5492
        %5496 = vrot.lane.b32.xlu0 %v5482, 48
        %v5497 = vpop.permute.xlu0 %5496
        %v5499 = vsel %vm1200, %v5171, %v5489
        %v5500 = vsel %vm1141, %v5499, %v5493
        %v5501 = vsel %vm1634, %v5500, %v5497
        %v5502 = vpack.c.bf16 %v5501, %v5501
        %v5504 = vlaneseq
        %v5505 = vshrl.u32 %v5504, 7
        %v5506 = vsub.s32 0, %v5505
        %v5507 = vrot.slane %v5066, %v5506
        %v5517 = vunpack.c.l.b16 %v5057
        %v5518 = vunpack.c.l.b16 %v5058
        %v5519 = vunpack.c.l.b16 %v5059
        %v5520 = vunpack.c.l.b16 %v5060
        %v5521 = vunpack.c.l.b16 %v5061
        %v5522 = vunpack.c.l.b16 %v5062
        %v5523 = vunpack.c.l.b16 %v5063
        %v5524 = vunpack.c.l.b16 %v5064
        %v5525 = vpack.c.b16 %v5518, %v5517
        %v5526 = vpack.c.b16 %v5520, %v5519
        %v5527 = vpack.c.b16 %v5522, %v5521
        %v5528 = vpack.c.b16 %v5524, %v5523
        %v5534 = vsel %vm1667, %v5502, 0
        %5536 = vmatprep.subr.bf16.mxu0 0
        %5537 = vmatpush1.bf16.msra.mxu0 0
        %5538 = vmatprep.subr.bf16.mxu0 0
        %5539 = vmatpush1.bf16.msra.mxu0 0
        %5540 = vmatprep.subr.bf16.mxu0 0
        %5541 = vmatpush1.bf16.msra.mxu0 0
        %5542 = vmatprep.subr.bf16.mxu0 0
        %5543 = vmatpush1.bf16.msra.mxu0 0
        %5544 = vmatprep.subr.bf16.mxu0 0
        %5545 = vmatpush1.bf16.msra.mxu0 %v5528
        %5546 = vmatprep.subr.bf16.mxu0 0
        %5547 = vmatpush1.bf16.msra.mxu0 %v5527
        %5548 = vmatprep.subr.bf16.mxu0 0
        %5549 = vmatpush1.bf16.msra.mxu0 %v5526
        %5550 = vmatprep.subr.bf16.mxu0 0
        %5551 = vmatpush1.bf16.msra.mxu0 %v5525
        %5552 = vmatprep.subr.bf16.mxu0 0
        %5553 = vmatpush2.bf16.msra.mxu0 0
        %5554 = vmatprep.subr.bf16.mxu0 0
        %5555 = vmatpush2.bf16.msra.mxu0 0
        %5556 = vmatprep.subr.bf16.mxu0 0
        %5557 = vmatpush2.bf16.msra.mxu0 0
        %5558 = vmatprep.subr.bf16.mxu0 0
        %5559 = vmatpush2.bf16.msra.mxu0 0
        %5560 = vmatprep.subr.bf16.mxu0 0
        %5561 = vmatpush2.bf16.msra.mxu0 0
        %5562 = vmatprep.subr.bf16.mxu0 0
        %5563 = vmatpush2.bf16.msra.mxu0 0
        %5564 = vmatprep.subr.bf16.mxu0 0
        %5565 = vmatpush2.bf16.msra.mxu0 0
        %5566 = vmatprep.subr.bf16.mxu0 0
        %5567 = vmatpush2.bf16.msra.mxu0 0
        %5568 = vmatprep.mubr.bf16.mxu0 0
        %5569 = vmatmul.mubr.bf16.gmra.mxu0 %v5534
        %v5570 = vpop.f32.mrf.mxu0
        %v5571 = vadd.f32 %v5507, %v5570
        %v5572 = vpop.f32.mrf.mxu0
        %v5573 = vpop.f32.mrf.mxu0
        %v5574 = vpop.f32.mrf.mxu0
        %5575 = vdwg.mxu0
        %v5576 = vadd.f32 %v4920, %v5571
        %s5577 = scalar_lea.vmem %s53, 1
        %v5578 = vld [vmem:[%s5577] sm:$0x1]
        %s5579 = scalar_lea.vmem %s55, 1
        %v5580 = vld [vmem:[%s5579] sm:$0x1]
        %v5581 = vsel %vm1141, %v5576, 0.0
        %5582 = vadd.xlane.f32.xlu0 %v5581
        %v5583 = vpop.xlane.xlu0 %5582
        %v5584 = vmul.f32 %v5583, %v1717
        %v5585 = vsub.f32 %v5576, %v5584
        %v5586 = vmul.f32 %v5585, %v5585
        %v5587 = vsel %vm1141, %v5586, 0.0
        %5588 = vadd.xlane.f32.xlu0 %v5587
        %v5589 = vpop.xlane.xlu0 %5588
        %v5590 = vmul.f32 %v5589, %v1717
        %v5591 = vadd.f32 %v5590, 1e-05
        %v5592 = vrsqrt.pop %v5591
        %v5593 = vmul.f32 %v5585, %v5592
        %v5595 = vlaneseq
        %v5596 = vshrl.u32 %v5595, 7
        %v5597 = vsub.s32 0, %v5596
        %v5598 = vrot.slane %v5578, %v5597
        %v5600 = vmul.f32 %v5593, %v5598
        %v5602 = vlaneseq
        %v5603 = vshrl.u32 %v5602, 7
        %v5604 = vsub.s32 0, %v5603
        %v5605 = vrot.slane %v5580, %v5604
        %v5607 = vadd.f32 %v5600, %v5605
        %s5608 = scalar_lea.vmem %s57, 16
        %v5609 = vld [vmem:[%s5608] sm:$0xf]
        %v5610 = vld [vmem:[%s5608 + $0x4] sm:$0xf]
        %v5611 = vld [vmem:[%s5608 + $0x8] sm:$0xf]
        %v5612 = vld [vmem:[%s5608 + $0xc] sm:$0xf]
        %v5613 = vpack.c.bf16 %v5607, %v5607
        %s5614 = scalar_lea.vmem %s59, 1
        %v5615 = vld [vmem:[%s5614] sm:$0x1]
        %v5617 = vlaneseq
        %v5618 = vshrl.u32 %v5617, 7
        %v5619 = vsub.s32 0, %v5618
        %v5620 = vrot.slane %v5615, %v5619
        %v5626 = vunpack.c.l.b16 %v5609
        %v5627 = vunpack.c.l.b16 %v5610
        %v5628 = vunpack.c.l.b16 %v5611
        %v5629 = vunpack.c.l.b16 %v5612
        %v5630 = vpack.c.b16 %v5627, %v5626
        %v5631 = vpack.c.b16 %v5629, %v5628
        %v5635 = vsel %vm1141, %v5613, 0
        %5637 = vmatprep.subr.bf16.mxu0 0
        %5638 = vmatpush1.bf16.msra.mxu0 0
        %5639 = vmatprep.subr.bf16.mxu0 0
        %5640 = vmatpush1.bf16.msra.mxu0 0
        %5641 = vmatprep.subr.bf16.mxu0 0
        %5642 = vmatpush1.bf16.msra.mxu0 0
        %5643 = vmatprep.subr.bf16.mxu0 0
        %5644 = vmatpush1.bf16.msra.mxu0 0
        %5645 = vmatprep.subr.bf16.mxu0 0
        %5646 = vmatpush1.bf16.msra.mxu0 0
        %5647 = vmatprep.subr.bf16.mxu0 0
        %5648 = vmatpush1.bf16.msra.mxu0 0
        %5649 = vmatprep.subr.bf16.mxu0 0
        %5650 = vmatpush1.bf16.msra.mxu0 %v5631
        %5651 = vmatprep.subr.bf16.mxu0 0
        %5652 = vmatpush1.bf16.msra.mxu0 %v5630
        %5653 = vmatprep.subr.bf16.mxu0 0
        %5654 = vmatpush2.bf16.msra.mxu0 0
        %5655 = vmatprep.subr.bf16.mxu0 0
        %5656 = vmatpush2.bf16.msra.mxu0 0
        %5657 = vmatprep.subr.bf16.mxu0 0
        %5658 = vmatpush2.bf16.msra.mxu0 0
        %5659 = vmatprep.subr.bf16.mxu0 0
        %5660 = vmatpush2.bf16.msra.mxu0 0
        %5661 = vmatprep.subr.bf16.mxu0 0
        %5662 = vmatpush2.bf16.msra.mxu0 0
        %5663 = vmatprep.subr.bf16.mxu0 0
        %5664 = vmatpush2.bf16.msra.mxu0 0
        %5665 = vmatprep.subr.bf16.mxu0 0
        %5666 = vmatpush2.bf16.msra.mxu0 0
        %5667 = vmatprep.subr.bf16.mxu0 0
        %5668 = vmatpush2.bf16.msra.mxu0 0
        %5669 = vmatprep.mubr.bf16.mxu0 0
        %5670 = vmatmul.mubr.bf16.gmra.mxu0 %v5635
        %v5671 = vpop.f32.mrf.mxu0
        %v5672 = vadd.f32 %v5620, %v5671
        %v5673 = vpop.f32.mrf.mxu0
        %v5674 = vpop.f32.mrf.mxu0
        %v5675 = vpop.f32.mrf.mxu0
        %5676 = vdwg.mxu0
        %s5677 = sld [smem:[#allocation5 + $0x1]]
        %vm5678 = vcmp.ge.f32.partialorder %v5672, 0.0
        %v5679 = vstv %s5677
        %v5680 = vmul.f32 %v5679, %v5672
        %v5681 = vsel %vm5678, %v5672, %v5680
        %s5682 = scalar_lea.vmem %s63, 64
        %v5683 = vld [vmem:[%s5682] sm:$0xf]
        %v5684 = vld [vmem:[%s5682 + $0x4] sm:$0xf]
        %v5685 = vld [vmem:[%s5682 + $0x8] sm:$0xf]
        %v5686 = vld [vmem:[%s5682 + $0xc] sm:$0xf]
        %v5687 = vld [vmem:[%s5682 + $0x10] sm:$0xf]
        %v5688 = vld [vmem:[%s5682 + $0x14] sm:$0xf]
        %v5689 = vld [vmem:[%s5682 + $0x18] sm:$0xf]
        %v5690 = vld [vmem:[%s5682 + $0x1c] sm:$0xf]
        %v5691 = vld [vmem:[%s5682 + $0x20] sm:$0xf]
        %v5692 = vld [vmem:[%s5682 + $0x24] sm:$0xf]
        %v5693 = vld [vmem:[%s5682 + $0x28] sm:$0xf]
        %v5694 = vld [vmem:[%s5682 + $0x2c] sm:$0xf]
        %v5695 = vld [vmem:[%s5682 + $0x30] sm:$0xf]
        %v5696 = vld [vmem:[%s5682 + $0x34] sm:$0xf]
        %v5697 = vld [vmem:[%s5682 + $0x38] sm:$0xf]
        %v5698 = vld [vmem:[%s5682 + $0x3c] sm:$0xf]
        %v5699 = vpack.c.bf16 %v5681, %v5681
        %s5700 = scalar_lea.vmem %s65, 1
        %v5701 = vld [vmem:[%s5700] sm:$0x1]
        %v5703 = vlaneseq
        %v5704 = vshrl.u32 %v5703, 7
        %v5705 = vsub.s32 0, %v5704
        %v5706 = vrot.slane %v5701, %v5705
        %v5724 = vunpack.c.l.b16 %v5683
        %v5725 = vunpack.c.l.b16 %v5684
        %v5726 = vunpack.c.l.b16 %v5685
        %v5727 = vunpack.c.l.b16 %v5686
        %v5728 = vunpack.c.l.b16 %v5687
        %v5729 = vunpack.c.l.b16 %v5688
        %v5730 = vunpack.c.l.b16 %v5689
        %v5731 = vunpack.c.l.b16 %v5690
        %v5732 = vunpack.c.l.b16 %v5691
        %v5733 = vunpack.c.l.b16 %v5692
        %v5734 = vunpack.c.l.b16 %v5693
        %v5735 = vunpack.c.l.b16 %v5694
        %v5736 = vunpack.c.l.b16 %v5695
        %v5737 = vunpack.c.l.b16 %v5696
        %v5738 = vunpack.c.l.b16 %v5697
        %v5739 = vunpack.c.l.b16 %v5698
        %v5740 = vpack.c.b16 %v5725, %v5724
        %v5741 = vpack.c.b16 %v5727, %v5726
        %v5742 = vpack.c.b16 %v5729, %v5728
        %v5743 = vpack.c.b16 %v5731, %v5730
        %v5744 = vpack.c.b16 %v5733, %v5732
        %v5745 = vpack.c.b16 %v5735, %v5734
        %v5746 = vpack.c.b16 %v5737, %v5736
        %v5747 = vpack.c.b16 %v5739, %v5738
        %5756 = vmatprep.subr.bf16.mxu0 0
        %5757 = vmatpush1.bf16.msra.mxu0 %v5747
        %5758 = vmatprep.subr.bf16.mxu0 0
        %5759 = vmatpush1.bf16.msra.mxu0 %v5746
        %5760 = vmatprep.subr.bf16.mxu0 0
        %5761 = vmatpush1.bf16.msra.mxu0 %v5745
        %5762 = vmatprep.subr.bf16.mxu0 0
        %5763 = vmatpush1.bf16.msra.mxu0 %v5744
        %5764 = vmatprep.subr.bf16.mxu0 0
        %5765 = vmatpush1.bf16.msra.mxu0 %v5743
        %5766 = vmatprep.subr.bf16.mxu0 0
        %5767 = vmatpush1.bf16.msra.mxu0 %v5742
        %5768 = vmatprep.subr.bf16.mxu0 0
        %5769 = vmatpush1.bf16.msra.mxu0 %v5741
        %5770 = vmatprep.subr.bf16.mxu0 0
        %5771 = vmatpush1.bf16.msra.mxu0 %v5740
        %5772 = vmatprep.subr.bf16.mxu0 0
        %5773 = vmatpush2.bf16.msra.mxu0 0
        %5774 = vmatprep.subr.bf16.mxu0 0
        %5775 = vmatpush2.bf16.msra.mxu0 0
        %5776 = vmatprep.subr.bf16.mxu0 0
        %5777 = vmatpush2.bf16.msra.mxu0 0
        %5778 = vmatprep.subr.bf16.mxu0 0
        %5779 = vmatpush2.bf16.msra.mxu0 0
        %5780 = vmatprep.subr.bf16.mxu0 0
        %5781 = vmatpush2.bf16.msra.mxu0 0
        %5782 = vmatprep.subr.bf16.mxu0 0
        %5783 = vmatpush2.bf16.msra.mxu0 0
        %5784 = vmatprep.subr.bf16.mxu0 0
        %5785 = vmatpush2.bf16.msra.mxu0 0
        %5786 = vmatprep.subr.bf16.mxu0 0
        %5787 = vmatpush2.bf16.msra.mxu0 0
        %5788 = vmatprep.mubr.bf16.mxu0 0
        %5789 = vmatmul.mubr.bf16.gmra.mxu0 %v5699
        %v5790 = vpop.f32.mrf.mxu0
        %v5791 = vadd.f32 %v5706, %v5790
        %v5792 = vpop.f32.mrf.mxu0
        %v5793 = vpop.f32.mrf.mxu0
        %v5794 = vpop.f32.mrf.mxu0
        %5795 = vdwg.mxu0
        %v5796 = vadd.f32 %v5607, %v5791
        %s5797 = scalar_lea.vmem %s67, 1
        %v5798 = vld [vmem:[%s5797] sm:$0x1]
        %s5799 = scalar_lea.vmem %s69, 1
        %v5800 = vld [vmem:[%s5799] sm:$0x1]
        %v5801 = vsel %vm1141, %v5796, 0.0
        %5802 = vadd.xlane.f32.xlu0 %v5801
        %v5803 = vpop.xlane.xlu0 %5802
        %v5804 = vmul.f32 %v5803, %v1717
        %v5805 = vsub.f32 %v5796, %v5804
        %v5806 = vmul.f32 %v5805, %v5805
        %v5807 = vsel %vm1141, %v5806, 0.0
        %5808 = vadd.xlane.f32.xlu0 %v5807
        %v5809 = vpop.xlane.xlu0 %5808
        %v5810 = vmul.f32 %v5809, %v1717
        %v5811 = vadd.f32 %v5810, 1e-05
        %v5812 = vrsqrt.pop %v5811
        %v5813 = vmul.f32 %v5805, %v5812
        %v5815 = vlaneseq
        %v5816 = vshrl.u32 %v5815, 7
        %v5817 = vsub.s32 0, %v5816
        %v5818 = vrot.slane %v5798, %v5817
        %v5820 = vmul.f32 %v5813, %v5818
        %v5822 = vlaneseq
        %v5823 = vshrl.u32 %v5822, 7
        %v5824 = vsub.s32 0, %v5823
        %v5825 = vrot.slane %v5800, %v5824
        %v5827 = vadd.f32 %v5820, %v5825
        %5828 = vst.msk [vmem:[%s1101] sm:$0xff] %vm1141, %v5827
        %s5829 = sand.u32 %s840, 1
        %s5830 = scalar_lea.sflag [#allocation3], %s5829
        %s5831 = sand.u32 %s840, 1
        %s5832 = smul.addr %s5831, 8
        %s5833 = scalar_lea.vmem [#allocation7], %s5832
        // Predicated region
        $region169: #{transformer_forward.1} parent=159 // pred_check
          %p5834 = pneg %p850
        $region170: #{transformer_forward.1} parent=159 // pred_check_branch
          %5836 = sbr.rel (%p5834) target = $region172
        $region171: #{transformer_forward.1} parent=159 // pred_region
          %s5838 = ssub.s32 128, 128
          %5839 = vsyncadd %s5830, %s5838
          %s5840 = smul.addr %s87, 128
          %s5841 = scalar_lea.hbm %s71, %s5840
          %s5843 = sshll.u32 %s5833, 4
          %s5844 = int_to_ptr.vmem [resolvable:$true] %s5843
          %5846 = dma.vmem_to_hbm [thread:$0]  %s5844, 128, %s5841, %s5830
        $region172: #{transformer_forward.1} parent=159 // pred_fallthru
          _
      $region160: #{transformer_forward.1} parent=5 // pred_fallthru
        _
      %p5847 = scmp.le.s32.totalorder 2, %s82
      // Predicated region
      $region173: #{transformer_forward.1} parent=5 // pred_check
        %p5848 = pneg %p5847
      $region174: #{transformer_forward.1} parent=5 // pred_check_branch
        %5850 = sbr.rel (%p5848) target = $region176
      $region175: #{transformer_forward.1} parent=5 // pred_region
        %s5851 = ssub.s32 %s82, 2
        // Predicated region
        $region177: #{transformer_forward.1} parent=175 // pred_check
          %p5852 = pneg %p856
        $region178: #{transformer_forward.1} parent=175 // pred_check_branch
          %5854 = sbr.rel (%p5852) target = $region180
        $region179: #{transformer_forward.1} parent=175 // pred_region
          %s5855 = sand.u32 %s841, 1
          %s5856 = scalar_lea.sflag [#allocation3], %s5855
          %s5857 = sand.u32 %s841, 1
          %s5858 = smul.addr %s5857, 8
          %s5859 = scalar_lea.vmem [#allocation7], %s5858
          %5860 = dma.done %s5856, 128
        $region180: #{transformer_forward.1} parent=175 // pred_fallthru
          _
      $region176: #{transformer_forward.1} parent=5 // pred_fallthru
        _
    $region6: #{transformer_forward.1} parent=1 // loop_footer
      %s86 = sadd.s32 1, %s82
    $region7: #{transformer_forward.1} parent=1 // loop_footer_branch
      %81 = sbr.rel target = $region3
    $region8: #{transformer_forward.1} parent=1 // loop_exit
      _
    %5861 = vsyncpa [#allocation3], 1
    %s5862 = scalar_lea.sflag [#allocation3], 1
    %5863 = vsyncpa %s5862, 1
    %5864 = vsyncpa [#allocation4], 1
    %s5865 = scalar_lea.sflag [#allocation4], 1
    %5866 = vsyncpa %s5865, 1
    %5867 = vsyncpa [#allocation6], 1

</llo_original>
